<compile_context>
chip_gen: v5e
topology: v5e:2x2
jax: 0.10.0
libtpu: 0.0.40
codegen_flags: <defaults>
</compile_context>

<pallas_src>
import jax
import jax.numpy as jnp
from jax.experimental import pallas as pl
from jax.experimental.pallas import tpu as pltpu


# ----------------------------- model constants -----------------------------
H0 = W0 = 32                  # input spatial size
C0 = 3                        # input channels
K = 5                         # conv kernel size
C1, C2 = 6, 16                # conv1 / conv2 output channels
CP = 128                      # lane-dense channel padding
H1 = H0 - K + 1               # 28  (conv1 output height/width)
P1 = H1 // 2                  # 14  (after pool1)
H2 = P1 - K + 1               # 10  (conv2 output height/width)
P2 = H2 // 2                  # 5   (after pool2)
HID1, HID2, OUT_DIM = 120, 84, 10
FC1_IN = C2 * P2 * P2         # 400

IM2COL_K = K * K * C0         # 75 im2col contraction depth (pad -> 128)
N_POOL1 = P1 * P1             # 196 pooled conv1 pixels
N_POOL1_PAD = 208             # >= 4*14 + 4 + 140 (conv2 slab overrun), mult of 8
N_WIDE2 = H2 * P1             # 140 wide conv2 rows (cols ow>=10 are garbage)
N_Q = 4                       # 2x2 pool-window offsets packed on the host
X_ROWS = N_Q * N_POOL1_PAD    # 832 im2col rows per image


# ------------------------------ fused kernel -------------------------------
def _simple_cnn_kernel(x_ref, w1_ref, b1_ref, w2_ref, b2_ref,
                       wf1_ref, fb1_ref, wf2_ref, fb2_ref, wf3_ref, fb3_ref,
                       out_ref, p1_scr, a2_scr):
    f32 = jnp.float32

    # ---- conv1 + ReLU + 2x2 max-pool, fused: one dense matmul per pool
    # window offset on the host-packed im2col slab, then an elementwise max
    # (max commutes with the shared bias add + ReLU).  Rows are the pooled
    # 14x14 grid (i*14+j); rows >= 196 come from zero-padded patches.
    m = jnp.dot(x_ref[0, 0:N_POOL1_PAD, :], w1_ref[...],
                preferred_element_type=f32)
    for q in range(1, N_Q):
        y = jnp.dot(x_ref[0, q * N_POOL1_PAD:(q + 1) * N_POOL1_PAD, :],
                    w1_ref[...], preferred_element_type=f32)
        m = jnp.maximum(m, y)
    p1_scr[...] = jnp.maximum(m + b1_ref[...], 0.0)          # (208, 128)

    # ---- conv2 (5x5 on the 14x14x128 pooled map), wide trick: 25 shifted
    # matmuls; output rows indexed oh*14+ow, columns ow>=10 are garbage and
    # are never read by the pool2/fc1 fusion below.
    acc2 = jnp.zeros((N_WIDE2, CP), f32)
    for kh in range(K):
        for kw in range(K):
            off = kh * P1 + kw
            slab = p1_scr[off:off + N_WIDE2, :]               # (140, 128)
            acc2 = acc2 + jnp.dot(slab, w2_ref[kh * K + kw],
                                  preferred_element_type=f32)
    a2_scr[...] = jnp.maximum(acc2 + b2_ref[...], 0.0)

    # ---- 2x2 max-pool #2 + (C,H,W) flatten + fc1, fused: for each of the
    # 25 pooled spatial positions, max the four window rows and accumulate a
    # rank-16 matmul against the permutation-folded fc1 weights.
    h = fb1_ref[...]                                          # (1, 128)
    for i in range(P2):
        for j in range(P2):
            r = 2 * i * P1 + 2 * j
            f00 = a2_scr[r:r + 1, 0:C2]
            f01 = a2_scr[r + 1:r + 2, 0:C2]
            f10 = a2_scr[r + P1:r + P1 + 1, 0:C2]
            f11 = a2_scr[r + P1 + 1:r + P1 + 2, 0:C2]
            feat = jnp.maximum(jnp.maximum(f00, f01),
                               jnp.maximum(f10, f11))         # (1, 16)
            h = h + jnp.dot(feat, wf1_ref[i * P2 + j],
                            preferred_element_type=f32)
    h = jnp.maximum(h, 0.0)

    # ---- fc2 + ReLU, fc3 (all padded to 128 lanes; extra lanes stay 0).
    h = jnp.maximum(jnp.dot(h, wf2_ref[...], preferred_element_type=f32)
                    + fb2_ref[...], 0.0)
    h = jnp.dot(h, wf3_ref[...], preferred_element_type=f32) + fb3_ref[...]
    out_ref[0] = h


# ------------------------------ host wrappers -------------------------------
def prepare_params(params):
    """One-time packing of raw (PyTorch-layout) params into kernel layouts."""
    def pad_to(a, shape):
        return jnp.pad(a, [(0, s - d) for d, s in zip(a.shape, shape)])

    # conv1 (Cout, Cin, K, K) -> im2col weight ((kh,kw,c)=75, Cout) -> (128,128).
    w1 = jnp.transpose(params["conv1_w"], (2, 3, 1, 0)).reshape(IM2COL_K, C1)
    w1 = pad_to(w1, (CP, CP))
    b1 = pad_to(params["conv1_b"].reshape(1, C1), (1, CP))

    # conv2 (Cout, Cin, K, K) -> (K*K, Cin_pad, Cout_pad).
    w2 = jnp.transpose(params["conv2_w"], (2, 3, 1, 0)).reshape(K * K, C1, C2)
    w2 = pad_to(w2, (K * K, CP, CP))
    b2 = pad_to(params["conv2_b"].reshape(1, C2), (1, CP))

    # fc1 (in=400, out=120): fold the PyTorch (C, H, W) flatten order into a
    # (25 spatial, 16 channel, 128) layout so the kernel never transposes.
    wf1 = params["fc1_w"].reshape(C2, P2 * P2, HID1).transpose(1, 0, 2)
    wf1 = pad_to(wf1, (P2 * P2, C2, CP))
    fb1 = pad_to(params["fc1_b"].reshape(1, HID1), (1, CP))
    wf2 = pad_to(params["fc2_w"], (CP, CP))
    fb2 = pad_to(params["fc2_b"].reshape(1, HID2), (1, CP))
    wf3 = pad_to(params["fc3_w"], (CP, CP))
    fb3 = pad_to(params["fc3_b"].reshape(1, OUT_DIM), (1, CP))

    return dict(w1=w1, b1=b1, w2=w2, b2=b2, wf1=wf1, fb1=fb1,
                wf2=wf2, fb2=fb2, wf3=wf3, fb3=fb3)


def _im2col_pool_pack(x_nhwc):
    """(B,32,32,3) -> (B, 4*208, 128) im2col slabs, one block per 2x2 pool
    window offset q=(di,dj); rows are pooled pixels i*14+j, cols (kh,kw,c)."""
    bsz = x_nhwc.shape[0]
    cols = []
    for kh in range(K):
        for kw in range(K):
            cols.append(x_nhwc[:, kh:kh + H1, kw:kw + H1, :])     # (B,28,28,3)
    patches = jnp.stack(cols, axis=3).reshape(bsz, H1, H1, IM2COL_K)
    patches = patches.reshape(bsz, P1, 2, P1, 2, IM2COL_K)
    patches = patches.transpose(0, 2, 4, 1, 3, 5)                 # (B,2,2,14,14,75)
    patches = patches.reshape(bsz, N_Q, N_POOL1, IM2COL_K)
    patches = jnp.pad(patches, ((0, 0), (0, 0),
                                (0, N_POOL1_PAD - N_POOL1),
                                (0, CP - IM2COL_K)))
    return patches.reshape(bsz, X_ROWS, CP)


@jax.jit
def simple_cnn_forward(x_nchw, kp):
    """Forward pass equivalent to SimpleCNN.forward for NCHW float32 input."""
    bsz = x_nchw.shape[0]
    x = _im2col_pool_pack(jnp.transpose(x_nchw, (0, 2, 3, 1)))

    def fixed(nd):
        return lambda b: (0,) * nd

    out = pl.pallas_call(
        _simple_cnn_kernel,
        out_shape=jax.ShapeDtypeStruct((bsz, 1, CP), jnp.float32),
        grid=(bsz,),
        in_specs=[
            pl.BlockSpec((1, X_ROWS, CP), lambda b: (b, 0, 0)),
            pl.BlockSpec((CP, CP), fixed(2)),
            pl.BlockSpec((1, CP), fixed(2)),
            pl.BlockSpec((K * K, CP, CP), fixed(3)),
            pl.BlockSpec((1, CP), fixed(2)),
            pl.BlockSpec((P2 * P2, C2, CP), fixed(3)),
            pl.BlockSpec((1, CP), fixed(2)),
            pl.BlockSpec((CP, CP), fixed(2)),
            pl.BlockSpec((1, CP), fixed(2)),
            pl.BlockSpec((CP, CP), fixed(2)),
            pl.BlockSpec((1, CP), fixed(2)),
        ],
        out_specs=pl.BlockSpec((1, 1, CP), lambda b: (b, 0, 0)),
        scratch_shapes=[pltpu.VMEM((N_POOL1_PAD, CP), jnp.float32),
                        pltpu.VMEM((N_WIDE2, CP), jnp.float32)],
        compiler_params=pltpu.CompilerParams(
            dimension_semantics=("parallel",),
            vmem_limit_bytes=32 * 1024 * 1024),
    )(x, kp["w1"], kp["b1"], kp["w2"], kp["b2"],
      kp["wf1"], kp["fb1"], kp["wf2"], kp["fb2"], kp["wf3"], kp["fb3"])
    return out[:, 0, :OUT_DIM]


# ------------------------- deterministic parameters -------------------------
def init_params(key, input_dim, hidden_dims, output_dim):
    ks = jax.random.split(key, 10)

    def rnd(k, shape, fan_in):
        return jax.random.normal(k, shape, jnp.float32) / jnp.sqrt(float(fan_in))

    return {
        "conv1_w": rnd(ks[0], (C1, C0, K, K), C0 * K * K),   # (Cout, Cin, K, K)
        "conv1_b": rnd(ks[1], (C1,), C0 * K * K),
        "conv2_w": rnd(ks[2], (C2, C1, K, K), C1 * K * K),
        "conv2_b": rnd(ks[3], (C2,), C1 * K * K),
        # Linear weights stored as (in, out) for direct matmul.
        "fc1_w": rnd(ks[4], (input_dim, hidden_dims[0]), input_dim),
        "fc1_b": rnd(ks[5], (hidden_dims[0],), input_dim),
        "fc2_w": rnd(ks[6], (hidden_dims[0], hidden_dims[1]), hidden_dims[0]),
        "fc2_b": rnd(ks[7], (hidden_dims[1],), hidden_dims[0]),
        "fc3_w": rnd(ks[8], (hidden_dims[1], output_dim), hidden_dims[1]),
        "fc3_b": rnd(ks[9], (output_dim,), hidden_dims[1]),
    }


# ------------------------ pure-JAX reference (check) ------------------------
def _reference_forward(x_nchw, params):
    x = jnp.transpose(x_nchw, (0, 2, 3, 1))

    def conv_relu(x, w, b):
        cout, cin, k, _ = w.shape
        bsz, h, wd, c = x.shape
        oh, ow = h - k + 1, wd - k + 1
        cols = []
        for kh in range(k):
            for kw in range(k):
                cols.append(x[:, kh:kh + oh, kw:kw + ow, :])
        patches = jnp.concatenate(cols, axis=-1).reshape(bsz * oh * ow, k * k * c)
        wm = jnp.transpose(w, (2, 3, 1, 0)).reshape(k * k * cin, cout)
        y = jnp.maximum(patches @ wm + b[None, :], 0.0)
        return y.reshape(bsz, oh, ow, cout)

    def pool(x):
        bsz, h, wd, c = x.shape
        return x.reshape(bsz, h // 2, 2, wd // 2, 2, c).max(axis=(2, 4))

    x = pool(conv_relu(x, params["conv1_w"], params["conv1_b"]))
    x = pool(conv_relu(x, params["conv2_w"], params["conv2_b"]))
    bsz = x.shape[0]
    feat = jnp.transpose(x, (0, 3, 1, 2)).reshape(bsz, -1)   # (C, H, W) flatten
    h = jnp.maximum(feat @ params["fc1_w"] + params["fc1_b"], 0.0)
    h = jnp.maximum(h @ params["fc2_w"] + params["fc2_b"], 0.0)
    return h @ params["fc3_w"] + params["fc3_b"]


if __name__ == "__main__":
    batch = 2
    key = jax.random.PRNGKey(0)
    kx, kparam = jax.random.split(key)
    x = jax.random.normal(kx, (batch, C0, H0, W0), jnp.float32)
    params = init_params(kparam, FC1_IN, (HID1, HID2), OUT_DIM)
    kernel_params = prepare_params(params)

    out = simple_cnn_forward(x, kernel_params)
    out = jax.block_until_ready(out)
    assert out.shape == (batch, OUT_DIM) and out.dtype == jnp.float32
    assert bool(jnp.all(jnp.isfinite(out)))

    ref = _reference_forward(x, params)
    err = float(jnp.max(jnp.abs(out - ref)))
    assert err < 5e-2, f"mismatch vs reference: {err}"
    print("KERNEL_OK")
</pallas_src>

<mosaic_0001>
module attributes {stable_mosaic.version = 11 : i64} {
  func.func @_simple_cnn_kernel(%arg0: i32, %arg1: memref<1x832x128xf32, #tpu.memory_space<vmem>>, %arg2: memref<128x128xf32, #tpu.memory_space<vmem>>, %arg3: memref<1x128xf32, #tpu.memory_space<vmem>>, %arg4: memref<25x128x128xf32, #tpu.memory_space<vmem>>, %arg5: memref<1x128xf32, #tpu.memory_space<vmem>>, %arg6: memref<25x16x128xf32, #tpu.memory_space<vmem>>, %arg7: memref<1x128xf32, #tpu.memory_space<vmem>>, %arg8: memref<128x128xf32, #tpu.memory_space<vmem>>, %arg9: memref<1x128xf32, #tpu.memory_space<vmem>>, %arg10: memref<128x128xf32, #tpu.memory_space<vmem>>, %arg11: memref<1x128xf32, #tpu.memory_space<vmem>>, %arg12: memref<1x1x128xf32, #tpu.memory_space<vmem>>, %arg13: memref<208x128xf32, #tpu.memory_space<vmem>>, %arg14: memref<140x128xf32, #tpu.memory_space<vmem>>) attributes {dimension_semantics = [#tpu.dimension_semantics<parallel>], iteration_bounds = array<i64: 2>, scalar_prefetch = 0 : i64, scratch_operands = 2 : i64, tpu.core_type = #tpu.core_type<tc>, window_params = [{transform_indices = @transform_0, window_bounds = array<i64: 1, 832, 128>}, {pipeline_mode = #tpu.pipeline_mode<synchronous>, transform_indices = @transform_1, window_bounds = array<i64: 128, 128>}, {pipeline_mode = #tpu.pipeline_mode<synchronous>, transform_indices = @transform_2, window_bounds = array<i64: 1, 128>}, {pipeline_mode = #tpu.pipeline_mode<synchronous>, transform_indices = @transform_3, window_bounds = array<i64: 25, 128, 128>}, {pipeline_mode = #tpu.pipeline_mode<synchronous>, transform_indices = @transform_4, window_bounds = array<i64: 1, 128>}, {pipeline_mode = #tpu.pipeline_mode<synchronous>, transform_indices = @transform_5, window_bounds = array<i64: 25, 16, 128>}, {pipeline_mode = #tpu.pipeline_mode<synchronous>, transform_indices = @transform_6, window_bounds = array<i64: 1, 128>}, {pipeline_mode = #tpu.pipeline_mode<synchronous>, transform_indices = @transform_7, window_bounds = array<i64: 128, 128>}, {pipeline_mode = #tpu.pipeline_mode<synchronous>, transform_indices = @transform_8, window_bounds = array<i64: 1, 128>}, {pipeline_mode = #tpu.pipeline_mode<synchronous>, transform_indices = @transform_9, window_bounds = array<i64: 128, 128>}, {pipeline_mode = #tpu.pipeline_mode<synchronous>, transform_indices = @transform_10, window_bounds = array<i64: 1, 128>}, {transform_indices = @transform_11, window_bounds = array<i64: 1, 1, 128>}]} {
    %c0 = arith.constant 0 : index
    %c0_0 = arith.constant 0 : index
    %c0_1 = arith.constant 0 : index
    %0 = vector.load %arg1[%c0, %c0_0, %c0_1] : memref<1x832x128xf32, #tpu.memory_space<vmem>>, vector<1x208x128xf32>
    %1 = vector.shape_cast %0 : vector<1x208x128xf32> to vector<208x128xf32>
    %c0_2 = arith.constant 0 : index
    %c0_3 = arith.constant 0 : index
    %2 = vector.load %arg2[%c0_2, %c0_3] : memref<128x128xf32, #tpu.memory_space<vmem>>, vector<128x128xf32>
    %cst = arith.constant dense<0.000000e+00> : vector<208x128xf32>
    %3 = tpu.matmul %1, %2, %cst {dimension_numbers = #tpu.dot_dimension_numbers<[1], [0], [0], [1], [0, 0, 1, 1], [], []>} : vector<208x128xf32>, vector<128x128xf32>, vector<208x128xf32> -> vector<208x128xf32>
    %c0_4 = arith.constant 0 : index
    %c208 = arith.constant 208 : index
    %c0_5 = arith.constant 0 : index
    %4 = vector.load %arg1[%c0_4, %c208, %c0_5] : memref<1x832x128xf32, #tpu.memory_space<vmem>>, vector<1x208x128xf32>
    %5 = vector.shape_cast %4 : vector<1x208x128xf32> to vector<208x128xf32>
    %c0_6 = arith.constant 0 : index
    %c0_7 = arith.constant 0 : index
    %6 = vector.load %arg2[%c0_6, %c0_7] : memref<128x128xf32, #tpu.memory_space<vmem>>, vector<128x128xf32>
    %cst_8 = arith.constant dense<0.000000e+00> : vector<208x128xf32>
    %7 = tpu.matmul %5, %6, %cst_8 {dimension_numbers = #tpu.dot_dimension_numbers<[1], [0], [0], [1], [0, 0, 1, 1], [], []>} : vector<208x128xf32>, vector<128x128xf32>, vector<208x128xf32> -> vector<208x128xf32>
    %8 = arith.maximumf %3, %7 : vector<208x128xf32>
    %c0_9 = arith.constant 0 : index
    %c416 = arith.constant 416 : index
    %c0_10 = arith.constant 0 : index
    %9 = vector.load %arg1[%c0_9, %c416, %c0_10] : memref<1x832x128xf32, #tpu.memory_space<vmem>>, vector<1x208x128xf32>
    %10 = vector.shape_cast %9 : vector<1x208x128xf32> to vector<208x128xf32>
    %c0_11 = arith.constant 0 : index
    %c0_12 = arith.constant 0 : index
    %11 = vector.load %arg2[%c0_11, %c0_12] : memref<128x128xf32, #tpu.memory_space<vmem>>, vector<128x128xf32>
    %cst_13 = arith.constant dense<0.000000e+00> : vector<208x128xf32>
    %12 = tpu.matmul %10, %11, %cst_13 {dimension_numbers = #tpu.dot_dimension_numbers<[1], [0], [0], [1], [0, 0, 1, 1], [], []>} : vector<208x128xf32>, vector<128x128xf32>, vector<208x128xf32> -> vector<208x128xf32>
    %13 = arith.maximumf %8, %12 : vector<208x128xf32>
    %c0_14 = arith.constant 0 : index
    %c624 = arith.constant 624 : index
    %c0_15 = arith.constant 0 : index
    %14 = vector.load %arg1[%c0_14, %c624, %c0_15] : memref<1x832x128xf32, #tpu.memory_space<vmem>>, vector<1x208x128xf32>
    %15 = vector.shape_cast %14 : vector<1x208x128xf32> to vector<208x128xf32>
    %c0_16 = arith.constant 0 : index
    %c0_17 = arith.constant 0 : index
    %16 = vector.load %arg2[%c0_16, %c0_17] : memref<128x128xf32, #tpu.memory_space<vmem>>, vector<128x128xf32>
    %cst_18 = arith.constant dense<0.000000e+00> : vector<208x128xf32>
    %17 = tpu.matmul %15, %16, %cst_18 {dimension_numbers = #tpu.dot_dimension_numbers<[1], [0], [0], [1], [0, 0, 1, 1], [], []>} : vector<208x128xf32>, vector<128x128xf32>, vector<208x128xf32> -> vector<208x128xf32>
    %18 = arith.maximumf %13, %17 : vector<208x128xf32>
    %c0_19 = arith.constant 0 : index
    %c0_20 = arith.constant 0 : index
    %19 = vector.load %arg3[%c0_19, %c0_20] : memref<1x128xf32, #tpu.memory_space<vmem>>, vector<1x128xf32>
    %20 = vector.broadcast %19 : vector<1x128xf32> to vector<208x128xf32>
    %21 = arith.addf %18, %20 : vector<208x128xf32>
    %cst_21 = arith.constant 0.000000e+00 : f32
    %22 = vector.broadcast %cst_21 : f32 to vector<208x128xf32>
    %23 = arith.maximumf %21, %22 : vector<208x128xf32>
    %c0_22 = arith.constant 0 : index
    %c0_23 = arith.constant 0 : index
    %24 = vector.load %arg13[%c0_22, %c0_23] : memref<208x128xf32, #tpu.memory_space<vmem>>, vector<208x128xf32>
    tpu.vector_store %arg13[%c0_22, %c0_23], %23 {strides = array<i32>} : memref<208x128xf32, #tpu.memory_space<vmem>>, vector<208x128xf32>,
    %cst_24 = arith.constant 0.000000e+00 : f32
    %25 = vector.broadcast %cst_24 : f32 to vector<140x128xf32>
    %c0_25 = arith.constant 0 : index
    %c0_26 = arith.constant 0 : index
    %26 = vector.load %arg13[%c0_25, %c0_26] : memref<208x128xf32, #tpu.memory_space<vmem>>, vector<140x128xf32>
    %c0_27 = arith.constant 0 : index
    %c0_28 = arith.constant 0 : index
    %c0_29 = arith.constant 0 : index
    %27 = vector.load %arg4[%c0_27, %c0_28, %c0_29] : memref<25x128x128xf32, #tpu.memory_space<vmem>>, vector<1x128x128xf32>
    %28 = vector.shape_cast %27 : vector<1x128x128xf32> to vector<128x128xf32>
    %cst_30 = arith.constant dense<0.000000e+00> : vector<140x128xf32>
    %29 = tpu.matmul %26, %28, %cst_30 {dimension_numbers = #tpu.dot_dimension_numbers<[1], [0], [0], [1], [0, 0, 1, 1], [], []>} : vector<140x128xf32>, vector<128x128xf32>, vector<140x128xf32> -> vector<140x128xf32>
    %30 = arith.addf %25, %29 : vector<140x128xf32>
    %c1 = arith.constant 1 : index
    %c0_31 = arith.constant 0 : index
    %31 = vector.load %arg13[%c1, %c0_31] : memref<208x128xf32, #tpu.memory_space<vmem>>, vector<140x128xf32>
    %c1_32 = arith.constant 1 : index
    %c0_33 = arith.constant 0 : index
    %c0_34 = arith.constant 0 : index
    %32 = vector.load %arg4[%c1_32, %c0_33, %c0_34] : memref<25x128x128xf32, #tpu.memory_space<vmem>>, vector<1x128x128xf32>
    %33 = vector.shape_cast %32 : vector<1x128x128xf32> to vector<128x128xf32>
    %cst_35 = arith.constant dense<0.000000e+00> : vector<140x128xf32>
    %34 = tpu.matmul %31, %33, %cst_35 {dimension_numbers = #tpu.dot_dimension_numbers<[1], [0], [0], [1], [0, 0, 1, 1], [], []>} : vector<140x128xf32>, vector<128x128xf32>, vector<140x128xf32> -> vector<140x128xf32>
    %35 = arith.addf %30, %34 : vector<140x128xf32>
    %c2 = arith.constant 2 : index
    %c0_36 = arith.constant 0 : index
    %36 = vector.load %arg13[%c2, %c0_36] : memref<208x128xf32, #tpu.memory_space<vmem>>, vector<140x128xf32>
    %c2_37 = arith.constant 2 : index
    %c0_38 = arith.constant 0 : index
    %c0_39 = arith.constant 0 : index
    %37 = vector.load %arg4[%c2_37, %c0_38, %c0_39] : memref<25x128x128xf32, #tpu.memory_space<vmem>>, vector<1x128x128xf32>
    %38 = vector.shape_cast %37 : vector<1x128x128xf32> to vector<128x128xf32>
    %cst_40 = arith.constant dense<0.000000e+00> : vector<140x128xf32>
    %39 = tpu.matmul %36, %38, %cst_40 {dimension_numbers = #tpu.dot_dimension_numbers<[1], [0], [0], [1], [0, 0, 1, 1], [], []>} : vector<140x128xf32>, vector<128x128xf32>, vector<140x128xf32> -> vector<140x128xf32>
    %40 = arith.addf %35, %39 : vector<140x128xf32>
    %c3 = arith.constant 3 : index
    %c0_41 = arith.constant 0 : index
    %41 = vector.load %arg13[%c3, %c0_41] : memref<208x128xf32, #tpu.memory_space<vmem>>, vector<140x128xf32>
    %c3_42 = arith.constant 3 : index
    %c0_43 = arith.constant 0 : index
    %c0_44 = arith.constant 0 : index
    %42 = vector.load %arg4[%c3_42, %c0_43, %c0_44] : memref<25x128x128xf32, #tpu.memory_space<vmem>>, vector<1x128x128xf32>
    %43 = vector.shape_cast %42 : vector<1x128x128xf32> to vector<128x128xf32>
    %cst_45 = arith.constant dense<0.000000e+00> : vector<140x128xf32>
    %44 = tpu.matmul %41, %43, %cst_45 {dimension_numbers = #tpu.dot_dimension_numbers<[1], [0], [0], [1], [0, 0, 1, 1], [], []>} : vector<140x128xf32>, vector<128x128xf32>, vector<140x128xf32> -> vector<140x128xf32>
    %45 = arith.addf %40, %44 : vector<140x128xf32>
    %c4 = arith.constant 4 : index
    %c0_46 = arith.constant 0 : index
    %46 = vector.load %arg13[%c4, %c0_46] : memref<208x128xf32, #tpu.memory_space<vmem>>, vector<140x128xf32>
    %c4_47 = arith.constant 4 : index
    %c0_48 = arith.constant 0 : index
    %c0_49 = arith.constant 0 : index
    %47 = vector.load %arg4[%c4_47, %c0_48, %c0_49] : memref<25x128x128xf32, #tpu.memory_space<vmem>>, vector<1x128x128xf32>
    %48 = vector.shape_cast %47 : vector<1x128x128xf32> to vector<128x128xf32>
    %cst_50 = arith.constant dense<0.000000e+00> : vector<140x128xf32>
    %49 = tpu.matmul %46, %48, %cst_50 {dimension_numbers = #tpu.dot_dimension_numbers<[1], [0], [0], [1], [0, 0, 1, 1], [], []>} : vector<140x128xf32>, vector<128x128xf32>, vector<140x128xf32> -> vector<140x128xf32>
    %50 = arith.addf %45, %49 : vector<140x128xf32>
    %c14 = arith.constant 14 : index
    %c0_51 = arith.constant 0 : index
    %51 = vector.load %arg13[%c14, %c0_51] : memref<208x128xf32, #tpu.memory_space<vmem>>, vector<140x128xf32>
    %c5 = arith.constant 5 : index
    %c0_52 = arith.constant 0 : index
    %c0_53 = arith.constant 0 : index
    %52 = vector.load %arg4[%c5, %c0_52, %c0_53] : memref<25x128x128xf32, #tpu.memory_space<vmem>>, vector<1x128x128xf32>
    %53 = vector.shape_cast %52 : vector<1x128x128xf32> to vector<128x128xf32>
    %cst_54 = arith.constant dense<0.000000e+00> : vector<140x128xf32>
    %54 = tpu.matmul %51, %53, %cst_54 {dimension_numbers = #tpu.dot_dimension_numbers<[1], [0], [0], [1], [0, 0, 1, 1], [], []>} : vector<140x128xf32>, vector<128x128xf32>, vector<140x128xf32> -> vector<140x128xf32>
    %55 = arith.addf %50, %54 : vector<140x128xf32>
    %c15 = arith.constant 15 : index
    %c0_55 = arith.constant 0 : index
    %56 = vector.load %arg13[%c15, %c0_55] : memref<208x128xf32, #tpu.memory_space<vmem>>, vector<140x128xf32>
    %c6 = arith.constant 6 : index
    %c0_56 = arith.constant 0 : index
    %c0_57 = arith.constant 0 : index
    %57 = vector.load %arg4[%c6, %c0_56, %c0_57] : memref<25x128x128xf32, #tpu.memory_space<vmem>>, vector<1x128x128xf32>
    %58 = vector.shape_cast %57 : vector<1x128x128xf32> to vector<128x128xf32>
    %cst_58 = arith.constant dense<0.000000e+00> : vector<140x128xf32>
    %59 = tpu.matmul %56, %58, %cst_58 {dimension_numbers = #tpu.dot_dimension_numbers<[1], [0], [0], [1], [0, 0, 1, 1], [], []>} : vector<140x128xf32>, vector<128x128xf32>, vector<140x128xf32> -> vector<140x128xf32>
    %60 = arith.addf %55, %59 : vector<140x128xf32>
    %c16 = arith.constant 16 : index
    %c0_59 = arith.constant 0 : index
    %61 = vector.load %arg13[%c16, %c0_59] : memref<208x128xf32, #tpu.memory_space<vmem>>, vector<140x128xf32>
    %c7 = arith.constant 7 : index
    %c0_60 = arith.constant 0 : index
    %c0_61 = arith.constant 0 : index
    %62 = vector.load %arg4[%c7, %c0_60, %c0_61] : memref<25x128x128xf32, #tpu.memory_space<vmem>>, vector<1x128x128xf32>
    %63 = vector.shape_cast %62 : vector<1x128x128xf32> to vector<128x128xf32>
    %cst_62 = arith.constant dense<0.000000e+00> : vector<140x128xf32>
    %64 = tpu.matmul %61, %63, %cst_62 {dimension_numbers = #tpu.dot_dimension_numbers<[1], [0], [0], [1], [0, 0, 1, 1], [], []>} : vector<140x128xf32>, vector<128x128xf32>, vector<140x128xf32> -> vector<140x128xf32>
    %65 = arith.addf %60, %64 : vector<140x128xf32>
    %c17 = arith.constant 17 : index
    %c0_63 = arith.constant 0 : index
    %66 = vector.load %arg13[%c17, %c0_63] : memref<208x128xf32, #tpu.memory_space<vmem>>, vector<140x128xf32>
    %c8 = arith.constant 8 : index
    %c0_64 = arith.constant 0 : index
    %c0_65 = arith.constant 0 : index
    %67 = vector.load %arg4[%c8, %c0_64, %c0_65] : memref<25x128x128xf32, #tpu.memory_space<vmem>>, vector<1x128x128xf32>
    %68 = vector.shape_cast %67 : vector<1x128x128xf32> to vector<128x128xf32>
    %cst_66 = arith.constant dense<0.000000e+00> : vector<140x128xf32>
    %69 = tpu.matmul %66, %68, %cst_66 {dimension_numbers = #tpu.dot_dimension_numbers<[1], [0], [0], [1], [0, 0, 1, 1], [], []>} : vector<140x128xf32>, vector<128x128xf32>, vector<140x128xf32> -> vector<140x128xf32>
    %70 = arith.addf %65, %69 : vector<140x128xf32>
    %c18 = arith.constant 18 : index
    %c0_67 = arith.constant 0 : index
    %71 = vector.load %arg13[%c18, %c0_67] : memref<208x128xf32, #tpu.memory_space<vmem>>, vector<140x128xf32>
    %c9 = arith.constant 9 : index
    %c0_68 = arith.constant 0 : index
    %c0_69 = arith.constant 0 : index
    %72 = vector.load %arg4[%c9, %c0_68, %c0_69] : memref<25x128x128xf32, #tpu.memory_space<vmem>>, vector<1x128x128xf32>
    %73 = vector.shape_cast %72 : vector<1x128x128xf32> to vector<128x128xf32>
    %cst_70 = arith.constant dense<0.000000e+00> : vector<140x128xf32>
    %74 = tpu.matmul %71, %73, %cst_70 {dimension_numbers = #tpu.dot_dimension_numbers<[1], [0], [0], [1], [0, 0, 1, 1], [], []>} : vector<140x128xf32>, vector<128x128xf32>, vector<140x128xf32> -> vector<140x128xf32>
    %75 = arith.addf %70, %74 : vector<140x128xf32>
    %c28 = arith.constant 28 : index
    %c0_71 = arith.constant 0 : index
    %76 = vector.load %arg13[%c28, %c0_71] : memref<208x128xf32, #tpu.memory_space<vmem>>, vector<140x128xf32>
    %c10 = arith.constant 10 : index
    %c0_72 = arith.constant 0 : index
    %c0_73 = arith.constant 0 : index
    %77 = vector.load %arg4[%c10, %c0_72, %c0_73] : memref<25x128x128xf32, #tpu.memory_space<vmem>>, vector<1x128x128xf32>
    %78 = vector.shape_cast %77 : vector<1x128x128xf32> to vector<128x128xf32>
    %cst_74 = arith.constant dense<0.000000e+00> : vector<140x128xf32>
    %79 = tpu.matmul %76, %78, %cst_74 {dimension_numbers = #tpu.dot_dimension_numbers<[1], [0], [0], [1], [0, 0, 1, 1], [], []>} : vector<140x128xf32>, vector<128x128xf32>, vector<140x128xf32> -> vector<140x128xf32>
    %80 = arith.addf %75, %79 : vector<140x128xf32>
    %c29 = arith.constant 29 : index
    %c0_75 = arith.constant 0 : index
    %81 = vector.load %arg13[%c29, %c0_75] : memref<208x128xf32, #tpu.memory_space<vmem>>, vector<140x128xf32>
    %c11 = arith.constant 11 : index
    %c0_76 = arith.constant 0 : index
    %c0_77 = arith.constant 0 : index
    %82 = vector.load %arg4[%c11, %c0_76, %c0_77] : memref<25x128x128xf32, #tpu.memory_space<vmem>>, vector<1x128x128xf32>
    %83 = vector.shape_cast %82 : vector<1x128x128xf32> to vector<128x128xf32>
    %cst_78 = arith.constant dense<0.000000e+00> : vector<140x128xf32>
    %84 = tpu.matmul %81, %83, %cst_78 {dimension_numbers = #tpu.dot_dimension_numbers<[1], [0], [0], [1], [0, 0, 1, 1], [], []>} : vector<140x128xf32>, vector<128x128xf32>, vector<140x128xf32> -> vector<140x128xf32>
    %85 = arith.addf %80, %84 : vector<140x128xf32>
    %c30 = arith.constant 30 : index
    %c0_79 = arith.constant 0 : index
    %86 = vector.load %arg13[%c30, %c0_79] : memref<208x128xf32, #tpu.memory_space<vmem>>, vector<140x128xf32>
    %c12 = arith.constant 12 : index
    %c0_80 = arith.constant 0 : index
    %c0_81 = arith.constant 0 : index
    %87 = vector.load %arg4[%c12, %c0_80, %c0_81] : memref<25x128x128xf32, #tpu.memory_space<vmem>>, vector<1x128x128xf32>
    %88 = vector.shape_cast %87 : vector<1x128x128xf32> to vector<128x128xf32>
    %cst_82 = arith.constant dense<0.000000e+00> : vector<140x128xf32>
    %89 = tpu.matmul %86, %88, %cst_82 {dimension_numbers = #tpu.dot_dimension_numbers<[1], [0], [0], [1], [0, 0, 1, 1], [], []>} : vector<140x128xf32>, vector<128x128xf32>, vector<140x128xf32> -> vector<140x128xf32>
    %90 = arith.addf %85, %89 : vector<140x128xf32>
    %c31 = arith.constant 31 : index
    %c0_83 = arith.constant 0 : index
    %91 = vector.load %arg13[%c31, %c0_83] : memref<208x128xf32, #tpu.memory_space<vmem>>, vector<140x128xf32>
    %c13 = arith.constant 13 : index
    %c0_84 = arith.constant 0 : index
    %c0_85 = arith.constant 0 : index
    %92 = vector.load %arg4[%c13, %c0_84, %c0_85] : memref<25x128x128xf32, #tpu.memory_space<vmem>>, vector<1x128x128xf32>
    %93 = vector.shape_cast %92 : vector<1x128x128xf32> to vector<128x128xf32>
    %cst_86 = arith.constant dense<0.000000e+00> : vector<140x128xf32>
    %94 = tpu.matmul %91, %93, %cst_86 {dimension_numbers = #tpu.dot_dimension_numbers<[1], [0], [0], [1], [0, 0, 1, 1], [], []>} : vector<140x128xf32>, vector<128x128xf32>, vector<140x128xf32> -> vector<140x128xf32>
    %95 = arith.addf %90, %94 : vector<140x128xf32>
    %c32 = arith.constant 32 : index
    %c0_87 = arith.constant 0 : index
    %96 = vector.load %arg13[%c32, %c0_87] : memref<208x128xf32, #tpu.memory_space<vmem>>, vector<140x128xf32>
    %c14_88 = arith.constant 14 : index
    %c0_89 = arith.constant 0 : index
    %c0_90 = arith.constant 0 : index
    %97 = vector.load %arg4[%c14_88, %c0_89, %c0_90] : memref<25x128x128xf32, #tpu.memory_space<vmem>>, vector<1x128x128xf32>
    %98 = vector.shape_cast %97 : vector<1x128x128xf32> to vector<128x128xf32>
    %cst_91 = arith.constant dense<0.000000e+00> : vector<140x128xf32>
    %99 = tpu.matmul %96, %98, %cst_91 {dimension_numbers = #tpu.dot_dimension_numbers<[1], [0], [0], [1], [0, 0, 1, 1], [], []>} : vector<140x128xf32>, vector<128x128xf32>, vector<140x128xf32> -> vector<140x128xf32>
    %100 = arith.addf %95, %99 : vector<140x128xf32>
    %c42 = arith.constant 42 : index
    %c0_92 = arith.constant 0 : index
    %101 = vector.load %arg13[%c42, %c0_92] : memref<208x128xf32, #tpu.memory_space<vmem>>, vector<140x128xf32>
    %c15_93 = arith.constant 15 : index
    %c0_94 = arith.constant 0 : index
    %c0_95 = arith.constant 0 : index
    %102 = vector.load %arg4[%c15_93, %c0_94, %c0_95] : memref<25x128x128xf32, #tpu.memory_space<vmem>>, vector<1x128x128xf32>
    %103 = vector.shape_cast %102 : vector<1x128x128xf32> to vector<128x128xf32>
    %cst_96 = arith.constant dense<0.000000e+00> : vector<140x128xf32>
    %104 = tpu.matmul %101, %103, %cst_96 {dimension_numbers = #tpu.dot_dimension_numbers<[1], [0], [0], [1], [0, 0, 1, 1], [], []>} : vector<140x128xf32>, vector<128x128xf32>, vector<140x128xf32> -> vector<140x128xf32>
    %105 = arith.addf %100, %104 : vector<140x128xf32>
    %c43 = arith.constant 43 : index
    %c0_97 = arith.constant 0 : index
    %106 = vector.load %arg13[%c43, %c0_97] : memref<208x128xf32, #tpu.memory_space<vmem>>, vector<140x128xf32>
    %c16_98 = arith.constant 16 : index
    %c0_99 = arith.constant 0 : index
    %c0_100 = arith.constant 0 : index
    %107 = vector.load %arg4[%c16_98, %c0_99, %c0_100] : memref<25x128x128xf32, #tpu.memory_space<vmem>>, vector<1x128x128xf32>
    %108 = vector.shape_cast %107 : vector<1x128x128xf32> to vector<128x128xf32>
    %cst_101 = arith.constant dense<0.000000e+00> : vector<140x128xf32>
    %109 = tpu.matmul %106, %108, %cst_101 {dimension_numbers = #tpu.dot_dimension_numbers<[1], [0], [0], [1], [0, 0, 1, 1], [], []>} : vector<140x128xf32>, vector<128x128xf32>, vector<140x128xf32> -> vector<140x128xf32>
    %110 = arith.addf %105, %109 : vector<140x128xf32>
    %c44 = arith.constant 44 : index
    %c0_102 = arith.constant 0 : index
    %111 = vector.load %arg13[%c44, %c0_102] : memref<208x128xf32, #tpu.memory_space<vmem>>, vector<140x128xf32>
    %c17_103 = arith.constant 17 : index
    %c0_104 = arith.constant 0 : index
    %c0_105 = arith.constant 0 : index
    %112 = vector.load %arg4[%c17_103, %c0_104, %c0_105] : memref<25x128x128xf32, #tpu.memory_space<vmem>>, vector<1x128x128xf32>
    %113 = vector.shape_cast %112 : vector<1x128x128xf32> to vector<128x128xf32>
    %cst_106 = arith.constant dense<0.000000e+00> : vector<140x128xf32>
    %114 = tpu.matmul %111, %113, %cst_106 {dimension_numbers = #tpu.dot_dimension_numbers<[1], [0], [0], [1], [0, 0, 1, 1], [], []>} : vector<140x128xf32>, vector<128x128xf32>, vector<140x128xf32> -> vector<140x128xf32>
    %115 = arith.addf %110, %114 : vector<140x128xf32>
    %c45 = arith.constant 45 : index
    %c0_107 = arith.constant 0 : index
    %116 = vector.load %arg13[%c45, %c0_107] : memref<208x128xf32, #tpu.memory_space<vmem>>, vector<140x128xf32>
    %c18_108 = arith.constant 18 : index
    %c0_109 = arith.constant 0 : index
    %c0_110 = arith.constant 0 : index
    %117 = vector.load %arg4[%c18_108, %c0_109, %c0_110] : memref<25x128x128xf32, #tpu.memory_space<vmem>>, vector<1x128x128xf32>
    %118 = vector.shape_cast %117 : vector<1x128x128xf32> to vector<128x128xf32>
    %cst_111 = arith.constant dense<0.000000e+00> : vector<140x128xf32>
    %119 = tpu.matmul %116, %118, %cst_111 {dimension_numbers = #tpu.dot_dimension_numbers<[1], [0], [0], [1], [0, 0, 1, 1], [], []>} : vector<140x128xf32>, vector<128x128xf32>, vector<140x128xf32> -> vector<140x128xf32>
    %120 = arith.addf %115, %119 : vector<140x128xf32>
    %c46 = arith.constant 46 : index
    %c0_112 = arith.constant 0 : index
    %121 = vector.load %arg13[%c46, %c0_112] : memref<208x128xf32, #tpu.memory_space<vmem>>, vector<140x128xf32>
    %c19 = arith.constant 19 : index
    %c0_113 = arith.constant 0 : index
    %c0_114 = arith.constant 0 : index
    %122 = vector.load %arg4[%c19, %c0_113, %c0_114] : memref<25x128x128xf32, #tpu.memory_space<vmem>>, vector<1x128x128xf32>
    %123 = vector.shape_cast %122 : vector<1x128x128xf32> to vector<128x128xf32>
    %cst_115 = arith.constant dense<0.000000e+00> : vector<140x128xf32>
    %124 = tpu.matmul %121, %123, %cst_115 {dimension_numbers = #tpu.dot_dimension_numbers<[1], [0], [0], [1], [0, 0, 1, 1], [], []>} : vector<140x128xf32>, vector<128x128xf32>, vector<140x128xf32> -> vector<140x128xf32>
    %125 = arith.addf %120, %124 : vector<140x128xf32>
    %c56 = arith.constant 56 : index
    %c0_116 = arith.constant 0 : index
    %126 = vector.load %arg13[%c56, %c0_116] : memref<208x128xf32, #tpu.memory_space<vmem>>, vector<140x128xf32>
    %c20 = arith.constant 20 : index
    %c0_117 = arith.constant 0 : index
    %c0_118 = arith.constant 0 : index
    %127 = vector.load %arg4[%c20, %c0_117, %c0_118] : memref<25x128x128xf32, #tpu.memory_space<vmem>>, vector<1x128x128xf32>
    %128 = vector.shape_cast %127 : vector<1x128x128xf32> to vector<128x128xf32>
    %cst_119 = arith.constant dense<0.000000e+00> : vector<140x128xf32>
    %129 = tpu.matmul %126, %128, %cst_119 {dimension_numbers = #tpu.dot_dimension_numbers<[1], [0], [0], [1], [0, 0, 1, 1], [], []>} : vector<140x128xf32>, vector<128x128xf32>, vector<140x128xf32> -> vector<140x128xf32>
    %130 = arith.addf %125, %129 : vector<140x128xf32>
    %c57 = arith.constant 57 : index
    %c0_120 = arith.constant 0 : index
    %131 = vector.load %arg13[%c57, %c0_120] : memref<208x128xf32, #tpu.memory_space<vmem>>, vector<140x128xf32>
    %c21 = arith.constant 21 : index
    %c0_121 = arith.constant 0 : index
    %c0_122 = arith.constant 0 : index
    %132 = vector.load %arg4[%c21, %c0_121, %c0_122] : memref<25x128x128xf32, #tpu.memory_space<vmem>>, vector<1x128x128xf32>
    %133 = vector.shape_cast %132 : vector<1x128x128xf32> to vector<128x128xf32>
    %cst_123 = arith.constant dense<0.000000e+00> : vector<140x128xf32>
    %134 = tpu.matmul %131, %133, %cst_123 {dimension_numbers = #tpu.dot_dimension_numbers<[1], [0], [0], [1], [0, 0, 1, 1], [], []>} : vector<140x128xf32>, vector<128x128xf32>, vector<140x128xf32> -> vector<140x128xf32>
    %135 = arith.addf %130, %134 : vector<140x128xf32>
    %c58 = arith.constant 58 : index
    %c0_124 = arith.constant 0 : index
    %136 = vector.load %arg13[%c58, %c0_124] : memref<208x128xf32, #tpu.memory_space<vmem>>, vector<140x128xf32>
    %c22 = arith.constant 22 : index
    %c0_125 = arith.constant 0 : index
    %c0_126 = arith.constant 0 : index
    %137 = vector.load %arg4[%c22, %c0_125, %c0_126] : memref<25x128x128xf32, #tpu.memory_space<vmem>>, vector<1x128x128xf32>
    %138 = vector.shape_cast %137 : vector<1x128x128xf32> to vector<128x128xf32>
    %cst_127 = arith.constant dense<0.000000e+00> : vector<140x128xf32>
    %139 = tpu.matmul %136, %138, %cst_127 {dimension_numbers = #tpu.dot_dimension_numbers<[1], [0], [0], [1], [0, 0, 1, 1], [], []>} : vector<140x128xf32>, vector<128x128xf32>, vector<140x128xf32> -> vector<140x128xf32>
    %140 = arith.addf %135, %139 : vector<140x128xf32>
    %c59 = arith.constant 59 : index
    %c0_128 = arith.constant 0 : index
    %141 = vector.load %arg13[%c59, %c0_128] : memref<208x128xf32, #tpu.memory_space<vmem>>, vector<140x128xf32>
    %c23 = arith.constant 23 : index
    %c0_129 = arith.constant 0 : index
    %c0_130 = arith.constant 0 : index
    %142 = vector.load %arg4[%c23, %c0_129, %c0_130] : memref<25x128x128xf32, #tpu.memory_space<vmem>>, vector<1x128x128xf32>
    %143 = vector.shape_cast %142 : vector<1x128x128xf32> to vector<128x128xf32>
    %cst_131 = arith.constant dense<0.000000e+00> : vector<140x128xf32>
    %144 = tpu.matmul %141, %143, %cst_131 {dimension_numbers = #tpu.dot_dimension_numbers<[1], [0], [0], [1], [0, 0, 1, 1], [], []>} : vector<140x128xf32>, vector<128x128xf32>, vector<140x128xf32> -> vector<140x128xf32>
    %145 = arith.addf %140, %144 : vector<140x128xf32>
    %c60 = arith.constant 60 : index
    %c0_132 = arith.constant 0 : index
    %146 = vector.load %arg13[%c60, %c0_132] : memref<208x128xf32, #tpu.memory_space<vmem>>, vector<140x128xf32>
    %c24 = arith.constant 24 : index
    %c0_133 = arith.constant 0 : index
    %c0_134 = arith.constant 0 : index
    %147 = vector.load %arg4[%c24, %c0_133, %c0_134] : memref<25x128x128xf32, #tpu.memory_space<vmem>>, vector<1x128x128xf32>
    %148 = vector.shape_cast %147 : vector<1x128x128xf32> to vector<128x128xf32>
    %cst_135 = arith.constant dense<0.000000e+00> : vector<140x128xf32>
    %149 = tpu.matmul %146, %148, %cst_135 {dimension_numbers = #tpu.dot_dimension_numbers<[1], [0], [0], [1], [0, 0, 1, 1], [], []>} : vector<140x128xf32>, vector<128x128xf32>, vector<140x128xf32> -> vector<140x128xf32>
    %150 = arith.addf %145, %149 : vector<140x128xf32>
    %c0_136 = arith.constant 0 : index
    %c0_137 = arith.constant 0 : index
    %151 = vector.load %arg5[%c0_136, %c0_137] : memref<1x128xf32, #tpu.memory_space<vmem>>, vector<1x128xf32>
    %152 = vector.broadcast %151 : vector<1x128xf32> to vector<140x128xf32>
    %153 = arith.addf %150, %152 : vector<140x128xf32>
    %cst_138 = arith.constant 0.000000e+00 : f32
    %154 = vector.broadcast %cst_138 : f32 to vector<140x128xf32>
    %155 = arith.maximumf %153, %154 : vector<140x128xf32>
    %c0_139 = arith.constant 0 : index
    %c0_140 = arith.constant 0 : index
    %156 = vector.load %arg14[%c0_139, %c0_140] : memref<140x128xf32, #tpu.memory_space<vmem>>, vector<140x128xf32>
    tpu.vector_store %arg14[%c0_139, %c0_140], %155 {strides = array<i32>} : memref<140x128xf32, #tpu.memory_space<vmem>>, vector<140x128xf32>,
    %c0_141 = arith.constant 0 : index
    %c0_142 = arith.constant 0 : index
    %157 = vector.load %arg7[%c0_141, %c0_142] : memref<1x128xf32, #tpu.memory_space<vmem>>, vector<1x128xf32>
    %c0_143 = arith.constant 0 : index
    %c0_144 = arith.constant 0 : index
    %158 = vector.load %arg14[%c0_143, %c0_144] : memref<140x128xf32, #tpu.memory_space<vmem>>, vector<1x16xf32>
    %c1_145 = arith.constant 1 : index
    %c0_146 = arith.constant 0 : index
    %159 = vector.load %arg14[%c1_145, %c0_146] : memref<140x128xf32, #tpu.memory_space<vmem>>, vector<1x16xf32>
    %c14_147 = arith.constant 14 : index
    %c0_148 = arith.constant 0 : index
    %160 = vector.load %arg14[%c14_147, %c0_148] : memref<140x128xf32, #tpu.memory_space<vmem>>, vector<1x16xf32>
    %c15_149 = arith.constant 15 : index
    %c0_150 = arith.constant 0 : index
    %161 = vector.load %arg14[%c15_149, %c0_150] : memref<140x128xf32, #tpu.memory_space<vmem>>, vector<1x16xf32>
    %162 = arith.maximumf %158, %159 : vector<1x16xf32>
    %163 = arith.maximumf %160, %161 : vector<1x16xf32>
    %164 = arith.maximumf %162, %163 : vector<1x16xf32>
    %c0_151 = arith.constant 0 : index
    %c0_152 = arith.constant 0 : index
    %c0_153 = arith.constant 0 : index
    %165 = vector.load %arg6[%c0_151, %c0_152, %c0_153] : memref<25x16x128xf32, #tpu.memory_space<vmem>>, vector<1x16x128xf32>
    %166 = vector.shape_cast %165 : vector<1x16x128xf32> to vector<16x128xf32>
    %cst_154 = arith.constant dense<0.000000e+00> : vector<1x128xf32>
    %167 = tpu.matmul %164, %166, %cst_154 {dimension_numbers = #tpu.dot_dimension_numbers<[1], [0], [0], [1], [0, 0, 1, 1], [], []>} : vector<1x16xf32>, vector<16x128xf32>, vector<1x128xf32> -> vector<1x128xf32>
    %168 = arith.addf %157, %167 : vector<1x128xf32>
    %c2_155 = arith.constant 2 : index
    %c0_156 = arith.constant 0 : index
    %169 = vector.load %arg14[%c2_155, %c0_156] : memref<140x128xf32, #tpu.memory_space<vmem>>, vector<1x16xf32>
    %c3_157 = arith.constant 3 : index
    %c0_158 = arith.constant 0 : index
    %170 = vector.load %arg14[%c3_157, %c0_158] : memref<140x128xf32, #tpu.memory_space<vmem>>, vector<1x16xf32>
    %c16_159 = arith.constant 16 : index
    %c0_160 = arith.constant 0 : index
    %171 = vector.load %arg14[%c16_159, %c0_160] : memref<140x128xf32, #tpu.memory_space<vmem>>, vector<1x16xf32>
    %c17_161 = arith.constant 17 : index
    %c0_162 = arith.constant 0 : index
    %172 = vector.load %arg14[%c17_161, %c0_162] : memref<140x128xf32, #tpu.memory_space<vmem>>, vector<1x16xf32>
    %173 = arith.maximumf %169, %170 : vector<1x16xf32>
    %174 = arith.maximumf %171, %172 : vector<1x16xf32>
    %175 = arith.maximumf %173, %174 : vector<1x16xf32>
    %c1_163 = arith.constant 1 : index
    %c0_164 = arith.constant 0 : index
    %c0_165 = arith.constant 0 : index
    %176 = vector.load %arg6[%c1_163, %c0_164, %c0_165] : memref<25x16x128xf32, #tpu.memory_space<vmem>>, vector<1x16x128xf32>
    %177 = vector.shape_cast %176 : vector<1x16x128xf32> to vector<16x128xf32>
    %cst_166 = arith.constant dense<0.000000e+00> : vector<1x128xf32>
    %178 = tpu.matmul %175, %177, %cst_166 {dimension_numbers = #tpu.dot_dimension_numbers<[1], [0], [0], [1], [0, 0, 1, 1], [], []>} : vector<1x16xf32>, vector<16x128xf32>, vector<1x128xf32> -> vector<1x128xf32>
    %179 = arith.addf %168, %178 : vector<1x128xf32>
    %c4_167 = arith.constant 4 : index
    %c0_168 = arith.constant 0 : index
    %180 = vector.load %arg14[%c4_167, %c0_168] : memref<140x128xf32, #tpu.memory_space<vmem>>, vector<1x16xf32>
    %c5_169 = arith.constant 5 : index
    %c0_170 = arith.constant 0 : index
    %181 = vector.load %arg14[%c5_169, %c0_170] : memref<140x128xf32, #tpu.memory_space<vmem>>, vector<1x16xf32>
    %c18_171 = arith.constant 18 : index
    %c0_172 = arith.constant 0 : index
    %182 = vector.load %arg14[%c18_171, %c0_172] : memref<140x128xf32, #tpu.memory_space<vmem>>, vector<1x16xf32>
    %c19_173 = arith.constant 19 : index
    %c0_174 = arith.constant 0 : index
    %183 = vector.load %arg14[%c19_173, %c0_174] : memref<140x128xf32, #tpu.memory_space<vmem>>, vector<1x16xf32>
    %184 = arith.maximumf %180, %181 : vector<1x16xf32>
    %185 = arith.maximumf %182, %183 : vector<1x16xf32>
    %186 = arith.maximumf %184, %185 : vector<1x16xf32>
    %c2_175 = arith.constant 2 : index
    %c0_176 = arith.constant 0 : index
    %c0_177 = arith.constant 0 : index
    %187 = vector.load %arg6[%c2_175, %c0_176, %c0_177] : memref<25x16x128xf32, #tpu.memory_space<vmem>>, vector<1x16x128xf32>
    %188 = vector.shape_cast %187 : vector<1x16x128xf32> to vector<16x128xf32>
    %cst_178 = arith.constant dense<0.000000e+00> : vector<1x128xf32>
    %189 = tpu.matmul %186, %188, %cst_178 {dimension_numbers = #tpu.dot_dimension_numbers<[1], [0], [0], [1], [0, 0, 1, 1], [], []>} : vector<1x16xf32>, vector<16x128xf32>, vector<1x128xf32> -> vector<1x128xf32>
    %190 = arith.addf %179, %189 : vector<1x128xf32>
    %c6_179 = arith.constant 6 : index
    %c0_180 = arith.constant 0 : index
    %191 = vector.load %arg14[%c6_179, %c0_180] : memref<140x128xf32, #tpu.memory_space<vmem>>, vector<1x16xf32>
    %c7_181 = arith.constant 7 : index
    %c0_182 = arith.constant 0 : index
    %192 = vector.load %arg14[%c7_181, %c0_182] : memref<140x128xf32, #tpu.memory_space<vmem>>, vector<1x16xf32>
    %c20_183 = arith.constant 20 : index
    %c0_184 = arith.constant 0 : index
    %193 = vector.load %arg14[%c20_183, %c0_184] : memref<140x128xf32, #tpu.memory_space<vmem>>, vector<1x16xf32>
    %c21_185 = arith.constant 21 : index
    %c0_186 = arith.constant 0 : index
    %194 = vector.load %arg14[%c21_185, %c0_186] : memref<140x128xf32, #tpu.memory_space<vmem>>, vector<1x16xf32>
    %195 = arith.maximumf %191, %192 : vector<1x16xf32>
    %196 = arith.maximumf %193, %194 : vector<1x16xf32>
    %197 = arith.maximumf %195, %196 : vector<1x16xf32>
    %c3_187 = arith.constant 3 : index
    %c0_188 = arith.constant 0 : index
    %c0_189 = arith.constant 0 : index
    %198 = vector.load %arg6[%c3_187, %c0_188, %c0_189] : memref<25x16x128xf32, #tpu.memory_space<vmem>>, vector<1x16x128xf32>
    %199 = vector.shape_cast %198 : vector<1x16x128xf32> to vector<16x128xf32>
    %cst_190 = arith.constant dense<0.000000e+00> : vector<1x128xf32>
    %200 = tpu.matmul %197, %199, %cst_190 {dimension_numbers = #tpu.dot_dimension_numbers<[1], [0], [0], [1], [0, 0, 1, 1], [], []>} : vector<1x16xf32>, vector<16x128xf32>, vector<1x128xf32> -> vector<1x128xf32>
    %201 = arith.addf %190, %200 : vector<1x128xf32>
    %c8_191 = arith.constant 8 : index
    %c0_192 = arith.constant 0 : index
    %202 = vector.load %arg14[%c8_191, %c0_192] : memref<140x128xf32, #tpu.memory_space<vmem>>, vector<1x16xf32>
    %c9_193 = arith.constant 9 : index
    %c0_194 = arith.constant 0 : index
    %203 = vector.load %arg14[%c9_193, %c0_194] : memref<140x128xf32, #tpu.memory_space<vmem>>, vector<1x16xf32>
    %c22_195 = arith.constant 22 : index
    %c0_196 = arith.constant 0 : index
    %204 = vector.load %arg14[%c22_195, %c0_196] : memref<140x128xf32, #tpu.memory_space<vmem>>, vector<1x16xf32>
    %c23_197 = arith.constant 23 : index
    %c0_198 = arith.constant 0 : index
    %205 = vector.load %arg14[%c23_197, %c0_198] : memref<140x128xf32, #tpu.memory_space<vmem>>, vector<1x16xf32>
    %206 = arith.maximumf %202, %203 : vector<1x16xf32>
    %207 = arith.maximumf %204, %205 : vector<1x16xf32>
    %208 = arith.maximumf %206, %207 : vector<1x16xf32>
    %c4_199 = arith.constant 4 : index
    %c0_200 = arith.constant 0 : index
    %c0_201 = arith.constant 0 : index
    %209 = vector.load %arg6[%c4_199, %c0_200, %c0_201] : memref<25x16x128xf32, #tpu.memory_space<vmem>>, vector<1x16x128xf32>
    %210 = vector.shape_cast %209 : vector<1x16x128xf32> to vector<16x128xf32>
    %cst_202 = arith.constant dense<0.000000e+00> : vector<1x128xf32>
    %211 = tpu.matmul %208, %210, %cst_202 {dimension_numbers = #tpu.dot_dimension_numbers<[1], [0], [0], [1], [0, 0, 1, 1], [], []>} : vector<1x16xf32>, vector<16x128xf32>, vector<1x128xf32> -> vector<1x128xf32>
    %212 = arith.addf %201, %211 : vector<1x128xf32>
    %c28_203 = arith.constant 28 : index
    %c0_204 = arith.constant 0 : index
    %213 = vector.load %arg14[%c28_203, %c0_204] : memref<140x128xf32, #tpu.memory_space<vmem>>, vector<1x16xf32>
    %c29_205 = arith.constant 29 : index
    %c0_206 = arith.constant 0 : index
    %214 = vector.load %arg14[%c29_205, %c0_206] : memref<140x128xf32, #tpu.memory_space<vmem>>, vector<1x16xf32>
    %c42_207 = arith.constant 42 : index
    %c0_208 = arith.constant 0 : index
    %215 = vector.load %arg14[%c42_207, %c0_208] : memref<140x128xf32, #tpu.memory_space<vmem>>, vector<1x16xf32>
    %c43_209 = arith.constant 43 : index
    %c0_210 = arith.constant 0 : index
    %216 = vector.load %arg14[%c43_209, %c0_210] : memref<140x128xf32, #tpu.memory_space<vmem>>, vector<1x16xf32>
    %217 = arith.maximumf %213, %214 : vector<1x16xf32>
    %218 = arith.maximumf %215, %216 : vector<1x16xf32>
    %219 = arith.maximumf %217, %218 : vector<1x16xf32>
    %c5_211 = arith.constant 5 : index
    %c0_212 = arith.constant 0 : index
    %c0_213 = arith.constant 0 : index
    %220 = vector.load %arg6[%c5_211, %c0_212, %c0_213] : memref<25x16x128xf32, #tpu.memory_space<vmem>>, vector<1x16x128xf32>
    %221 = vector.shape_cast %220 : vector<1x16x128xf32> to vector<16x128xf32>
    %cst_214 = arith.constant dense<0.000000e+00> : vector<1x128xf32>
    %222 = tpu.matmul %219, %221, %cst_214 {dimension_numbers = #tpu.dot_dimension_numbers<[1], [0], [0], [1], [0, 0, 1, 1], [], []>} : vector<1x16xf32>, vector<16x128xf32>, vector<1x128xf32> -> vector<1x128xf32>
    %223 = arith.addf %212, %222 : vector<1x128xf32>
    %c30_215 = arith.constant 30 : index
    %c0_216 = arith.constant 0 : index
    %224 = vector.load %arg14[%c30_215, %c0_216] : memref<140x128xf32, #tpu.memory_space<vmem>>, vector<1x16xf32>
    %c31_217 = arith.constant 31 : index
    %c0_218 = arith.constant 0 : index
    %225 = vector.load %arg14[%c31_217, %c0_218] : memref<140x128xf32, #tpu.memory_space<vmem>>, vector<1x16xf32>
    %c44_219 = arith.constant 44 : index
    %c0_220 = arith.constant 0 : index
    %226 = vector.load %arg14[%c44_219, %c0_220] : memref<140x128xf32, #tpu.memory_space<vmem>>, vector<1x16xf32>
    %c45_221 = arith.constant 45 : index
    %c0_222 = arith.constant 0 : index
    %227 = vector.load %arg14[%c45_221, %c0_222] : memref<140x128xf32, #tpu.memory_space<vmem>>, vector<1x16xf32>
    %228 = arith.maximumf %224, %225 : vector<1x16xf32>
    %229 = arith.maximumf %226, %227 : vector<1x16xf32>
    %230 = arith.maximumf %228, %229 : vector<1x16xf32>
    %c6_223 = arith.constant 6 : index
    %c0_224 = arith.constant 0 : index
    %c0_225 = arith.constant 0 : index
    %231 = vector.load %arg6[%c6_223, %c0_224, %c0_225] : memref<25x16x128xf32, #tpu.memory_space<vmem>>, vector<1x16x128xf32>
    %232 = vector.shape_cast %231 : vector<1x16x128xf32> to vector<16x128xf32>
    %cst_226 = arith.constant dense<0.000000e+00> : vector<1x128xf32>
    %233 = tpu.matmul %230, %232, %cst_226 {dimension_numbers = #tpu.dot_dimension_numbers<[1], [0], [0], [1], [0, 0, 1, 1], [], []>} : vector<1x16xf32>, vector<16x128xf32>, vector<1x128xf32> -> vector<1x128xf32>
    %234 = arith.addf %223, %233 : vector<1x128xf32>
    %c32_227 = arith.constant 32 : index
    %c0_228 = arith.constant 0 : index
    %235 = vector.load %arg14[%c32_227, %c0_228] : memref<140x128xf32, #tpu.memory_space<vmem>>, vector<1x16xf32>
    %c33 = arith.constant 33 : index
    %c0_229 = arith.constant 0 : index
    %236 = vector.load %arg14[%c33, %c0_229] : memref<140x128xf32, #tpu.memory_space<vmem>>, vector<1x16xf32>
    %c46_230 = arith.constant 46 : index
    %c0_231 = arith.constant 0 : index
    %237 = vector.load %arg14[%c46_230, %c0_231] : memref<140x128xf32, #tpu.memory_space<vmem>>, vector<1x16xf32>
    %c47 = arith.constant 47 : index
    %c0_232 = arith.constant 0 : index
    %238 = vector.load %arg14[%c47, %c0_232] : memref<140x128xf32, #tpu.memory_space<vmem>>, vector<1x16xf32>
    %239 = arith.maximumf %235, %236 : vector<1x16xf32>
    %240 = arith.maximumf %237, %238 : vector<1x16xf32>
    %241 = arith.maximumf %239, %240 : vector<1x16xf32>
    %c7_233 = arith.constant 7 : index
    %c0_234 = arith.constant 0 : index
    %c0_235 = arith.constant 0 : index
    %242 = vector.load %arg6[%c7_233, %c0_234, %c0_235] : memref<25x16x128xf32, #tpu.memory_space<vmem>>, vector<1x16x128xf32>
    %243 = vector.shape_cast %242 : vector<1x16x128xf32> to vector<16x128xf32>
    %cst_236 = arith.constant dense<0.000000e+00> : vector<1x128xf32>
    %244 = tpu.matmul %241, %243, %cst_236 {dimension_numbers = #tpu.dot_dimension_numbers<[1], [0], [0], [1], [0, 0, 1, 1], [], []>} : vector<1x16xf32>, vector<16x128xf32>, vector<1x128xf32> -> vector<1x128xf32>
    %245 = arith.addf %234, %244 : vector<1x128xf32>
    %c34 = arith.constant 34 : index
    %c0_237 = arith.constant 0 : index
    %246 = vector.load %arg14[%c34, %c0_237] : memref<140x128xf32, #tpu.memory_space<vmem>>, vector<1x16xf32>
    %c35 = arith.constant 35 : index
    %c0_238 = arith.constant 0 : index
    %247 = vector.load %arg14[%c35, %c0_238] : memref<140x128xf32, #tpu.memory_space<vmem>>, vector<1x16xf32>
    %c48 = arith.constant 48 : index
    %c0_239 = arith.constant 0 : index
    %248 = vector.load %arg14[%c48, %c0_239] : memref<140x128xf32, #tpu.memory_space<vmem>>, vector<1x16xf32>
    %c49 = arith.constant 49 : index
    %c0_240 = arith.constant 0 : index
    %249 = vector.load %arg14[%c49, %c0_240] : memref<140x128xf32, #tpu.memory_space<vmem>>, vector<1x16xf32>
    %250 = arith.maximumf %246, %247 : vector<1x16xf32>
    %251 = arith.maximumf %248, %249 : vector<1x16xf32>
    %252 = arith.maximumf %250, %251 : vector<1x16xf32>
    %c8_241 = arith.constant 8 : index
    %c0_242 = arith.constant 0 : index
    %c0_243 = arith.constant 0 : index
    %253 = vector.load %arg6[%c8_241, %c0_242, %c0_243] : memref<25x16x128xf32, #tpu.memory_space<vmem>>, vector<1x16x128xf32>
    %254 = vector.shape_cast %253 : vector<1x16x128xf32> to vector<16x128xf32>
    %cst_244 = arith.constant dense<0.000000e+00> : vector<1x128xf32>
    %255 = tpu.matmul %252, %254, %cst_244 {dimension_numbers = #tpu.dot_dimension_numbers<[1], [0], [0], [1], [0, 0, 1, 1], [], []>} : vector<1x16xf32>, vector<16x128xf32>, vector<1x128xf32> -> vector<1x128xf32>
    %256 = arith.addf %245, %255 : vector<1x128xf32>
    %c36 = arith.constant 36 : index
    %c0_245 = arith.constant 0 : index
    %257 = vector.load %arg14[%c36, %c0_245] : memref<140x128xf32, #tpu.memory_space<vmem>>, vector<1x16xf32>
    %c37 = arith.constant 37 : index
    %c0_246 = arith.constant 0 : index
    %258 = vector.load %arg14[%c37, %c0_246] : memref<140x128xf32, #tpu.memory_space<vmem>>, vector<1x16xf32>
    %c50 = arith.constant 50 : index
    %c0_247 = arith.constant 0 : index
    %259 = vector.load %arg14[%c50, %c0_247] : memref<140x128xf32, #tpu.memory_space<vmem>>, vector<1x16xf32>
    %c51 = arith.constant 51 : index
    %c0_248 = arith.constant 0 : index
    %260 = vector.load %arg14[%c51, %c0_248] : memref<140x128xf32, #tpu.memory_space<vmem>>, vector<1x16xf32>
    %261 = arith.maximumf %257, %258 : vector<1x16xf32>
    %262 = arith.maximumf %259, %260 : vector<1x16xf32>
    %263 = arith.maximumf %261, %262 : vector<1x16xf32>
    %c9_249 = arith.constant 9 : index
    %c0_250 = arith.constant 0 : index
    %c0_251 = arith.constant 0 : index
    %264 = vector.load %arg6[%c9_249, %c0_250, %c0_251] : memref<25x16x128xf32, #tpu.memory_space<vmem>>, vector<1x16x128xf32>
    %265 = vector.shape_cast %264 : vector<1x16x128xf32> to vector<16x128xf32>
    %cst_252 = arith.constant dense<0.000000e+00> : vector<1x128xf32>
    %266 = tpu.matmul %263, %265, %cst_252 {dimension_numbers = #tpu.dot_dimension_numbers<[1], [0], [0], [1], [0, 0, 1, 1], [], []>} : vector<1x16xf32>, vector<16x128xf32>, vector<1x128xf32> -> vector<1x128xf32>
    %267 = arith.addf %256, %266 : vector<1x128xf32>
    %c56_253 = arith.constant 56 : index
    %c0_254 = arith.constant 0 : index
    %268 = vector.load %arg14[%c56_253, %c0_254] : memref<140x128xf32, #tpu.memory_space<vmem>>, vector<1x16xf32>
    %c57_255 = arith.constant 57 : index
    %c0_256 = arith.constant 0 : index
    %269 = vector.load %arg14[%c57_255, %c0_256] : memref<140x128xf32, #tpu.memory_space<vmem>>, vector<1x16xf32>
    %c70 = arith.constant 70 : index
    %c0_257 = arith.constant 0 : index
    %270 = vector.load %arg14[%c70, %c0_257] : memref<140x128xf32, #tpu.memory_space<vmem>>, vector<1x16xf32>
    %c71 = arith.constant 71 : index
    %c0_258 = arith.constant 0 : index
    %271 = vector.load %arg14[%c71, %c0_258] : memref<140x128xf32, #tpu.memory_space<vmem>>, vector<1x16xf32>
    %272 = arith.maximumf %268, %269 : vector<1x16xf32>
    %273 = arith.maximumf %270, %271 : vector<1x16xf32>
    %274 = arith.maximumf %272, %273 : vector<1x16xf32>
    %c10_259 = arith.constant 10 : index
    %c0_260 = arith.constant 0 : index
    %c0_261 = arith.constant 0 : index
    %275 = vector.load %arg6[%c10_259, %c0_260, %c0_261] : memref<25x16x128xf32, #tpu.memory_space<vmem>>, vector<1x16x128xf32>
    %276 = vector.shape_cast %275 : vector<1x16x128xf32> to vector<16x128xf32>
    %cst_262 = arith.constant dense<0.000000e+00> : vector<1x128xf32>
    %277 = tpu.matmul %274, %276, %cst_262 {dimension_numbers = #tpu.dot_dimension_numbers<[1], [0], [0], [1], [0, 0, 1, 1], [], []>} : vector<1x16xf32>, vector<16x128xf32>, vector<1x128xf32> -> vector<1x128xf32>
    %278 = arith.addf %267, %277 : vector<1x128xf32>
    %c58_263 = arith.constant 58 : index
    %c0_264 = arith.constant 0 : index
    %279 = vector.load %arg14[%c58_263, %c0_264] : memref<140x128xf32, #tpu.memory_space<vmem>>, vector<1x16xf32>
    %c59_265 = arith.constant 59 : index
    %c0_266 = arith.constant 0 : index
    %280 = vector.load %arg14[%c59_265, %c0_266] : memref<140x128xf32, #tpu.memory_space<vmem>>, vector<1x16xf32>
    %c72 = arith.constant 72 : index
    %c0_267 = arith.constant 0 : index
    %281 = vector.load %arg14[%c72, %c0_267] : memref<140x128xf32, #tpu.memory_space<vmem>>, vector<1x16xf32>
    %c73 = arith.constant 73 : index
    %c0_268 = arith.constant 0 : index
    %282 = vector.load %arg14[%c73, %c0_268] : memref<140x128xf32, #tpu.memory_space<vmem>>, vector<1x16xf32>
    %283 = arith.maximumf %279, %280 : vector<1x16xf32>
    %284 = arith.maximumf %281, %282 : vector<1x16xf32>
    %285 = arith.maximumf %283, %284 : vector<1x16xf32>
    %c11_269 = arith.constant 11 : index
    %c0_270 = arith.constant 0 : index
    %c0_271 = arith.constant 0 : index
    %286 = vector.load %arg6[%c11_269, %c0_270, %c0_271] : memref<25x16x128xf32, #tpu.memory_space<vmem>>, vector<1x16x128xf32>
    %287 = vector.shape_cast %286 : vector<1x16x128xf32> to vector<16x128xf32>
    %cst_272 = arith.constant dense<0.000000e+00> : vector<1x128xf32>
    %288 = tpu.matmul %285, %287, %cst_272 {dimension_numbers = #tpu.dot_dimension_numbers<[1], [0], [0], [1], [0, 0, 1, 1], [], []>} : vector<1x16xf32>, vector<16x128xf32>, vector<1x128xf32> -> vector<1x128xf32>
    %289 = arith.addf %278, %288 : vector<1x128xf32>
    %c60_273 = arith.constant 60 : index
    %c0_274 = arith.constant 0 : index
    %290 = vector.load %arg14[%c60_273, %c0_274] : memref<140x128xf32, #tpu.memory_space<vmem>>, vector<1x16xf32>
    %c61 = arith.constant 61 : index
    %c0_275 = arith.constant 0 : index
    %291 = vector.load %arg14[%c61, %c0_275] : memref<140x128xf32, #tpu.memory_space<vmem>>, vector<1x16xf32>
    %c74 = arith.constant 74 : index
    %c0_276 = arith.constant 0 : index
    %292 = vector.load %arg14[%c74, %c0_276] : memref<140x128xf32, #tpu.memory_space<vmem>>, vector<1x16xf32>
    %c75 = arith.constant 75 : index
    %c0_277 = arith.constant 0 : index
    %293 = vector.load %arg14[%c75, %c0_277] : memref<140x128xf32, #tpu.memory_space<vmem>>, vector<1x16xf32>
    %294 = arith.maximumf %290, %291 : vector<1x16xf32>
    %295 = arith.maximumf %292, %293 : vector<1x16xf32>
    %296 = arith.maximumf %294, %295 : vector<1x16xf32>
    %c12_278 = arith.constant 12 : index
    %c0_279 = arith.constant 0 : index
    %c0_280 = arith.constant 0 : index
    %297 = vector.load %arg6[%c12_278, %c0_279, %c0_280] : memref<25x16x128xf32, #tpu.memory_space<vmem>>, vector<1x16x128xf32>
    %298 = vector.shape_cast %297 : vector<1x16x128xf32> to vector<16x128xf32>
    %cst_281 = arith.constant dense<0.000000e+00> : vector<1x128xf32>
    %299 = tpu.matmul %296, %298, %cst_281 {dimension_numbers = #tpu.dot_dimension_numbers<[1], [0], [0], [1], [0, 0, 1, 1], [], []>} : vector<1x16xf32>, vector<16x128xf32>, vector<1x128xf32> -> vector<1x128xf32>
    %300 = arith.addf %289, %299 : vector<1x128xf32>
    %c62 = arith.constant 62 : index
    %c0_282 = arith.constant 0 : index
    %301 = vector.load %arg14[%c62, %c0_282] : memref<140x128xf32, #tpu.memory_space<vmem>>, vector<1x16xf32>
    %c63 = arith.constant 63 : index
    %c0_283 = arith.constant 0 : index
    %302 = vector.load %arg14[%c63, %c0_283] : memref<140x128xf32, #tpu.memory_space<vmem>>, vector<1x16xf32>
    %c76 = arith.constant 76 : index
    %c0_284 = arith.constant 0 : index
    %303 = vector.load %arg14[%c76, %c0_284] : memref<140x128xf32, #tpu.memory_space<vmem>>, vector<1x16xf32>
    %c77 = arith.constant 77 : index
    %c0_285 = arith.constant 0 : index
    %304 = vector.load %arg14[%c77, %c0_285] : memref<140x128xf32, #tpu.memory_space<vmem>>, vector<1x16xf32>
    %305 = arith.maximumf %301, %302 : vector<1x16xf32>
    %306 = arith.maximumf %303, %304 : vector<1x16xf32>
    %307 = arith.maximumf %305, %306 : vector<1x16xf32>
    %c13_286 = arith.constant 13 : index
    %c0_287 = arith.constant 0 : index
    %c0_288 = arith.constant 0 : index
    %308 = vector.load %arg6[%c13_286, %c0_287, %c0_288] : memref<25x16x128xf32, #tpu.memory_space<vmem>>, vector<1x16x128xf32>
    %309 = vector.shape_cast %308 : vector<1x16x128xf32> to vector<16x128xf32>
    %cst_289 = arith.constant dense<0.000000e+00> : vector<1x128xf32>
    %310 = tpu.matmul %307, %309, %cst_289 {dimension_numbers = #tpu.dot_dimension_numbers<[1], [0], [0], [1], [0, 0, 1, 1], [], []>} : vector<1x16xf32>, vector<16x128xf32>, vector<1x128xf32> -> vector<1x128xf32>
    %311 = arith.addf %300, %310 : vector<1x128xf32>
    %c64 = arith.constant 64 : index
    %c0_290 = arith.constant 0 : index
    %312 = vector.load %arg14[%c64, %c0_290] : memref<140x128xf32, #tpu.memory_space<vmem>>, vector<1x16xf32>
    %c65 = arith.constant 65 : index
    %c0_291 = arith.constant 0 : index
    %313 = vector.load %arg14[%c65, %c0_291] : memref<140x128xf32, #tpu.memory_space<vmem>>, vector<1x16xf32>
    %c78 = arith.constant 78 : index
    %c0_292 = arith.constant 0 : index
    %314 = vector.load %arg14[%c78, %c0_292] : memref<140x128xf32, #tpu.memory_space<vmem>>, vector<1x16xf32>
    %c79 = arith.constant 79 : index
    %c0_293 = arith.constant 0 : index
    %315 = vector.load %arg14[%c79, %c0_293] : memref<140x128xf32, #tpu.memory_space<vmem>>, vector<1x16xf32>
    %316 = arith.maximumf %312, %313 : vector<1x16xf32>
    %317 = arith.maximumf %314, %315 : vector<1x16xf32>
    %318 = arith.maximumf %316, %317 : vector<1x16xf32>
    %c14_294 = arith.constant 14 : index
    %c0_295 = arith.constant 0 : index
    %c0_296 = arith.constant 0 : index
    %319 = vector.load %arg6[%c14_294, %c0_295, %c0_296] : memref<25x16x128xf32, #tpu.memory_space<vmem>>, vector<1x16x128xf32>
    %320 = vector.shape_cast %319 : vector<1x16x128xf32> to vector<16x128xf32>
    %cst_297 = arith.constant dense<0.000000e+00> : vector<1x128xf32>
    %321 = tpu.matmul %318, %320, %cst_297 {dimension_numbers = #tpu.dot_dimension_numbers<[1], [0], [0], [1], [0, 0, 1, 1], [], []>} : vector<1x16xf32>, vector<16x128xf32>, vector<1x128xf32> -> vector<1x128xf32>
    %322 = arith.addf %311, %321 : vector<1x128xf32>
    %c84 = arith.constant 84 : index
    %c0_298 = arith.constant 0 : index
    %323 = vector.load %arg14[%c84, %c0_298] : memref<140x128xf32, #tpu.memory_space<vmem>>, vector<1x16xf32>
    %c85 = arith.constant 85 : index
    %c0_299 = arith.constant 0 : index
    %324 = vector.load %arg14[%c85, %c0_299] : memref<140x128xf32, #tpu.memory_space<vmem>>, vector<1x16xf32>
    %c98 = arith.constant 98 : index
    %c0_300 = arith.constant 0 : index
    %325 = vector.load %arg14[%c98, %c0_300] : memref<140x128xf32, #tpu.memory_space<vmem>>, vector<1x16xf32>
    %c99 = arith.constant 99 : index
    %c0_301 = arith.constant 0 : index
    %326 = vector.load %arg14[%c99, %c0_301] : memref<140x128xf32, #tpu.memory_space<vmem>>, vector<1x16xf32>
    %327 = arith.maximumf %323, %324 : vector<1x16xf32>
    %328 = arith.maximumf %325, %326 : vector<1x16xf32>
    %329 = arith.maximumf %327, %328 : vector<1x16xf32>
    %c15_302 = arith.constant 15 : index
    %c0_303 = arith.constant 0 : index
    %c0_304 = arith.constant 0 : index
    %330 = vector.load %arg6[%c15_302, %c0_303, %c0_304] : memref<25x16x128xf32, #tpu.memory_space<vmem>>, vector<1x16x128xf32>
    %331 = vector.shape_cast %330 : vector<1x16x128xf32> to vector<16x128xf32>
    %cst_305 = arith.constant dense<0.000000e+00> : vector<1x128xf32>
    %332 = tpu.matmul %329, %331, %cst_305 {dimension_numbers = #tpu.dot_dimension_numbers<[1], [0], [0], [1], [0, 0, 1, 1], [], []>} : vector<1x16xf32>, vector<16x128xf32>, vector<1x128xf32> -> vector<1x128xf32>
    %333 = arith.addf %322, %332 : vector<1x128xf32>
    %c86 = arith.constant 86 : index
    %c0_306 = arith.constant 0 : index
    %334 = vector.load %arg14[%c86, %c0_306] : memref<140x128xf32, #tpu.memory_space<vmem>>, vector<1x16xf32>
    %c87 = arith.constant 87 : index
    %c0_307 = arith.constant 0 : index
    %335 = vector.load %arg14[%c87, %c0_307] : memref<140x128xf32, #tpu.memory_space<vmem>>, vector<1x16xf32>
    %c100 = arith.constant 100 : index
    %c0_308 = arith.constant 0 : index
    %336 = vector.load %arg14[%c100, %c0_308] : memref<140x128xf32, #tpu.memory_space<vmem>>, vector<1x16xf32>
    %c101 = arith.constant 101 : index
    %c0_309 = arith.constant 0 : index
    %337 = vector.load %arg14[%c101, %c0_309] : memref<140x128xf32, #tpu.memory_space<vmem>>, vector<1x16xf32>
    %338 = arith.maximumf %334, %335 : vector<1x16xf32>
    %339 = arith.maximumf %336, %337 : vector<1x16xf32>
    %340 = arith.maximumf %338, %339 : vector<1x16xf32>
    %c16_310 = arith.constant 16 : index
    %c0_311 = arith.constant 0 : index
    %c0_312 = arith.constant 0 : index
    %341 = vector.load %arg6[%c16_310, %c0_311, %c0_312] : memref<25x16x128xf32, #tpu.memory_space<vmem>>, vector<1x16x128xf32>
    %342 = vector.shape_cast %341 : vector<1x16x128xf32> to vector<16x128xf32>
    %cst_313 = arith.constant dense<0.000000e+00> : vector<1x128xf32>
    %343 = tpu.matmul %340, %342, %cst_313 {dimension_numbers = #tpu.dot_dimension_numbers<[1], [0], [0], [1], [0, 0, 1, 1], [], []>} : vector<1x16xf32>, vector<16x128xf32>, vector<1x128xf32> -> vector<1x128xf32>
    %344 = arith.addf %333, %343 : vector<1x128xf32>
    %c88 = arith.constant 88 : index
    %c0_314 = arith.constant 0 : index
    %345 = vector.load %arg14[%c88, %c0_314] : memref<140x128xf32, #tpu.memory_space<vmem>>, vector<1x16xf32>
    %c89 = arith.constant 89 : index
    %c0_315 = arith.constant 0 : index
    %346 = vector.load %arg14[%c89, %c0_315] : memref<140x128xf32, #tpu.memory_space<vmem>>, vector<1x16xf32>
    %c102 = arith.constant 102 : index
    %c0_316 = arith.constant 0 : index
    %347 = vector.load %arg14[%c102, %c0_316] : memref<140x128xf32, #tpu.memory_space<vmem>>, vector<1x16xf32>
    %c103 = arith.constant 103 : index
    %c0_317 = arith.constant 0 : index
    %348 = vector.load %arg14[%c103, %c0_317] : memref<140x128xf32, #tpu.memory_space<vmem>>, vector<1x16xf32>
    %349 = arith.maximumf %345, %346 : vector<1x16xf32>
    %350 = arith.maximumf %347, %348 : vector<1x16xf32>
    %351 = arith.maximumf %349, %350 : vector<1x16xf32>
    %c17_318 = arith.constant 17 : index
    %c0_319 = arith.constant 0 : index
    %c0_320 = arith.constant 0 : index
    %352 = vector.load %arg6[%c17_318, %c0_319, %c0_320] : memref<25x16x128xf32, #tpu.memory_space<vmem>>, vector<1x16x128xf32>
    %353 = vector.shape_cast %352 : vector<1x16x128xf32> to vector<16x128xf32>
    %cst_321 = arith.constant dense<0.000000e+00> : vector<1x128xf32>
    %354 = tpu.matmul %351, %353, %cst_321 {dimension_numbers = #tpu.dot_dimension_numbers<[1], [0], [0], [1], [0, 0, 1, 1], [], []>} : vector<1x16xf32>, vector<16x128xf32>, vector<1x128xf32> -> vector<1x128xf32>
    %355 = arith.addf %344, %354 : vector<1x128xf32>
    %c90 = arith.constant 90 : index
    %c0_322 = arith.constant 0 : index
    %356 = vector.load %arg14[%c90, %c0_322] : memref<140x128xf32, #tpu.memory_space<vmem>>, vector<1x16xf32>
    %c91 = arith.constant 91 : index
    %c0_323 = arith.constant 0 : index
    %357 = vector.load %arg14[%c91, %c0_323] : memref<140x128xf32, #tpu.memory_space<vmem>>, vector<1x16xf32>
    %c104 = arith.constant 104 : index
    %c0_324 = arith.constant 0 : index
    %358 = vector.load %arg14[%c104, %c0_324] : memref<140x128xf32, #tpu.memory_space<vmem>>, vector<1x16xf32>
    %c105 = arith.constant 105 : index
    %c0_325 = arith.constant 0 : index
    %359 = vector.load %arg14[%c105, %c0_325] : memref<140x128xf32, #tpu.memory_space<vmem>>, vector<1x16xf32>
    %360 = arith.maximumf %356, %357 : vector<1x16xf32>
    %361 = arith.maximumf %358, %359 : vector<1x16xf32>
    %362 = arith.maximumf %360, %361 : vector<1x16xf32>
    %c18_326 = arith.constant 18 : index
    %c0_327 = arith.constant 0 : index
    %c0_328 = arith.constant 0 : index
    %363 = vector.load %arg6[%c18_326, %c0_327, %c0_328] : memref<25x16x128xf32, #tpu.memory_space<vmem>>, vector<1x16x128xf32>
    %364 = vector.shape_cast %363 : vector<1x16x128xf32> to vector<16x128xf32>
    %cst_329 = arith.constant dense<0.000000e+00> : vector<1x128xf32>
    %365 = tpu.matmul %362, %364, %cst_329 {dimension_numbers = #tpu.dot_dimension_numbers<[1], [0], [0], [1], [0, 0, 1, 1], [], []>} : vector<1x16xf32>, vector<16x128xf32>, vector<1x128xf32> -> vector<1x128xf32>
    %366 = arith.addf %355, %365 : vector<1x128xf32>
    %c92 = arith.constant 92 : index
    %c0_330 = arith.constant 0 : index
    %367 = vector.load %arg14[%c92, %c0_330] : memref<140x128xf32, #tpu.memory_space<vmem>>, vector<1x16xf32>
    %c93 = arith.constant 93 : index
    %c0_331 = arith.constant 0 : index
    %368 = vector.load %arg14[%c93, %c0_331] : memref<140x128xf32, #tpu.memory_space<vmem>>, vector<1x16xf32>
    %c106 = arith.constant 106 : index
    %c0_332 = arith.constant 0 : index
    %369 = vector.load %arg14[%c106, %c0_332] : memref<140x128xf32, #tpu.memory_space<vmem>>, vector<1x16xf32>
    %c107 = arith.constant 107 : index
    %c0_333 = arith.constant 0 : index
    %370 = vector.load %arg14[%c107, %c0_333] : memref<140x128xf32, #tpu.memory_space<vmem>>, vector<1x16xf32>
    %371 = arith.maximumf %367, %368 : vector<1x16xf32>
    %372 = arith.maximumf %369, %370 : vector<1x16xf32>
    %373 = arith.maximumf %371, %372 : vector<1x16xf32>
    %c19_334 = arith.constant 19 : index
    %c0_335 = arith.constant 0 : index
    %c0_336 = arith.constant 0 : index
    %374 = vector.load %arg6[%c19_334, %c0_335, %c0_336] : memref<25x16x128xf32, #tpu.memory_space<vmem>>, vector<1x16x128xf32>
    %375 = vector.shape_cast %374 : vector<1x16x128xf32> to vector<16x128xf32>
    %cst_337 = arith.constant dense<0.000000e+00> : vector<1x128xf32>
    %376 = tpu.matmul %373, %375, %cst_337 {dimension_numbers = #tpu.dot_dimension_numbers<[1], [0], [0], [1], [0, 0, 1, 1], [], []>} : vector<1x16xf32>, vector<16x128xf32>, vector<1x128xf32> -> vector<1x128xf32>
    %377 = arith.addf %366, %376 : vector<1x128xf32>
    %c112 = arith.constant 112 : index
    %c0_338 = arith.constant 0 : index
    %378 = vector.load %arg14[%c112, %c0_338] : memref<140x128xf32, #tpu.memory_space<vmem>>, vector<1x16xf32>
    %c113 = arith.constant 113 : index
    %c0_339 = arith.constant 0 : index
    %379 = vector.load %arg14[%c113, %c0_339] : memref<140x128xf32, #tpu.memory_space<vmem>>, vector<1x16xf32>
    %c126 = arith.constant 126 : index
    %c0_340 = arith.constant 0 : index
    %380 = vector.load %arg14[%c126, %c0_340] : memref<140x128xf32, #tpu.memory_space<vmem>>, vector<1x16xf32>
    %c127 = arith.constant 127 : index
    %c0_341 = arith.constant 0 : index
    %381 = vector.load %arg14[%c127, %c0_341] : memref<140x128xf32, #tpu.memory_space<vmem>>, vector<1x16xf32>
    %382 = arith.maximumf %378, %379 : vector<1x16xf32>
    %383 = arith.maximumf %380, %381 : vector<1x16xf32>
    %384 = arith.maximumf %382, %383 : vector<1x16xf32>
    %c20_342 = arith.constant 20 : index
    %c0_343 = arith.constant 0 : index
    %c0_344 = arith.constant 0 : index
    %385 = vector.load %arg6[%c20_342, %c0_343, %c0_344] : memref<25x16x128xf32, #tpu.memory_space<vmem>>, vector<1x16x128xf32>
    %386 = vector.shape_cast %385 : vector<1x16x128xf32> to vector<16x128xf32>
    %cst_345 = arith.constant dense<0.000000e+00> : vector<1x128xf32>
    %387 = tpu.matmul %384, %386, %cst_345 {dimension_numbers = #tpu.dot_dimension_numbers<[1], [0], [0], [1], [0, 0, 1, 1], [], []>} : vector<1x16xf32>, vector<16x128xf32>, vector<1x128xf32> -> vector<1x128xf32>
    %388 = arith.addf %377, %387 : vector<1x128xf32>
    %c114 = arith.constant 114 : index
    %c0_346 = arith.constant 0 : index
    %389 = vector.load %arg14[%c114, %c0_346] : memref<140x128xf32, #tpu.memory_space<vmem>>, vector<1x16xf32>
    %c115 = arith.constant 115 : index
    %c0_347 = arith.constant 0 : index
    %390 = vector.load %arg14[%c115, %c0_347] : memref<140x128xf32, #tpu.memory_space<vmem>>, vector<1x16xf32>
    %c128 = arith.constant 128 : index
    %c0_348 = arith.constant 0 : index
    %391 = vector.load %arg14[%c128, %c0_348] : memref<140x128xf32, #tpu.memory_space<vmem>>, vector<1x16xf32>
    %c129 = arith.constant 129 : index
    %c0_349 = arith.constant 0 : index
    %392 = vector.load %arg14[%c129, %c0_349] : memref<140x128xf32, #tpu.memory_space<vmem>>, vector<1x16xf32>
    %393 = arith.maximumf %389, %390 : vector<1x16xf32>
    %394 = arith.maximumf %391, %392 : vector<1x16xf32>
    %395 = arith.maximumf %393, %394 : vector<1x16xf32>
    %c21_350 = arith.constant 21 : index
    %c0_351 = arith.constant 0 : index
    %c0_352 = arith.constant 0 : index
    %396 = vector.load %arg6[%c21_350, %c0_351, %c0_352] : memref<25x16x128xf32, #tpu.memory_space<vmem>>, vector<1x16x128xf32>
    %397 = vector.shape_cast %396 : vector<1x16x128xf32> to vector<16x128xf32>
    %cst_353 = arith.constant dense<0.000000e+00> : vector<1x128xf32>
    %398 = tpu.matmul %395, %397, %cst_353 {dimension_numbers = #tpu.dot_dimension_numbers<[1], [0], [0], [1], [0, 0, 1, 1], [], []>} : vector<1x16xf32>, vector<16x128xf32>, vector<1x128xf32> -> vector<1x128xf32>
    %399 = arith.addf %388, %398 : vector<1x128xf32>
    %c116 = arith.constant 116 : index
    %c0_354 = arith.constant 0 : index
    %400 = vector.load %arg14[%c116, %c0_354] : memref<140x128xf32, #tpu.memory_space<vmem>>, vector<1x16xf32>
    %c117 = arith.constant 117 : index
    %c0_355 = arith.constant 0 : index
    %401 = vector.load %arg14[%c117, %c0_355] : memref<140x128xf32, #tpu.memory_space<vmem>>, vector<1x16xf32>
    %c130 = arith.constant 130 : index
    %c0_356 = arith.constant 0 : index
    %402 = vector.load %arg14[%c130, %c0_356] : memref<140x128xf32, #tpu.memory_space<vmem>>, vector<1x16xf32>
    %c131 = arith.constant 131 : index
    %c0_357 = arith.constant 0 : index
    %403 = vector.load %arg14[%c131, %c0_357] : memref<140x128xf32, #tpu.memory_space<vmem>>, vector<1x16xf32>
    %404 = arith.maximumf %400, %401 : vector<1x16xf32>
    %405 = arith.maximumf %402, %403 : vector<1x16xf32>
    %406 = arith.maximumf %404, %405 : vector<1x16xf32>
    %c22_358 = arith.constant 22 : index
    %c0_359 = arith.constant 0 : index
    %c0_360 = arith.constant 0 : index
    %407 = vector.load %arg6[%c22_358, %c0_359, %c0_360] : memref<25x16x128xf32, #tpu.memory_space<vmem>>, vector<1x16x128xf32>
    %408 = vector.shape_cast %407 : vector<1x16x128xf32> to vector<16x128xf32>
    %cst_361 = arith.constant dense<0.000000e+00> : vector<1x128xf32>
    %409 = tpu.matmul %406, %408, %cst_361 {dimension_numbers = #tpu.dot_dimension_numbers<[1], [0], [0], [1], [0, 0, 1, 1], [], []>} : vector<1x16xf32>, vector<16x128xf32>, vector<1x128xf32> -> vector<1x128xf32>
    %410 = arith.addf %399, %409 : vector<1x128xf32>
    %c118 = arith.constant 118 : index
    %c0_362 = arith.constant 0 : index
    %411 = vector.load %arg14[%c118, %c0_362] : memref<140x128xf32, #tpu.memory_space<vmem>>, vector<1x16xf32>
    %c119 = arith.constant 119 : index
    %c0_363 = arith.constant 0 : index
    %412 = vector.load %arg14[%c119, %c0_363] : memref<140x128xf32, #tpu.memory_space<vmem>>, vector<1x16xf32>
    %c132 = arith.constant 132 : index
    %c0_364 = arith.constant 0 : index
    %413 = vector.load %arg14[%c132, %c0_364] : memref<140x128xf32, #tpu.memory_space<vmem>>, vector<1x16xf32>
    %c133 = arith.constant 133 : index
    %c0_365 = arith.constant 0 : index
    %414 = vector.load %arg14[%c133, %c0_365] : memref<140x128xf32, #tpu.memory_space<vmem>>, vector<1x16xf32>
    %415 = arith.maximumf %411, %412 : vector<1x16xf32>
    %416 = arith.maximumf %413, %414 : vector<1x16xf32>
    %417 = arith.maximumf %415, %416 : vector<1x16xf32>
    %c23_366 = arith.constant 23 : index
    %c0_367 = arith.constant 0 : index
    %c0_368 = arith.constant 0 : index
    %418 = vector.load %arg6[%c23_366, %c0_367, %c0_368] : memref<25x16x128xf32, #tpu.memory_space<vmem>>, vector<1x16x128xf32>
    %419 = vector.shape_cast %418 : vector<1x16x128xf32> to vector<16x128xf32>
    %cst_369 = arith.constant dense<0.000000e+00> : vector<1x128xf32>
    %420 = tpu.matmul %417, %419, %cst_369 {dimension_numbers = #tpu.dot_dimension_numbers<[1], [0], [0], [1], [0, 0, 1, 1], [], []>} : vector<1x16xf32>, vector<16x128xf32>, vector<1x128xf32> -> vector<1x128xf32>
    %421 = arith.addf %410, %420 : vector<1x128xf32>
    %c120 = arith.constant 120 : index
    %c0_370 = arith.constant 0 : index
    %422 = vector.load %arg14[%c120, %c0_370] : memref<140x128xf32, #tpu.memory_space<vmem>>, vector<1x16xf32>
    %c121 = arith.constant 121 : index
    %c0_371 = arith.constant 0 : index
    %423 = vector.load %arg14[%c121, %c0_371] : memref<140x128xf32, #tpu.memory_space<vmem>>, vector<1x16xf32>
    %c134 = arith.constant 134 : index
    %c0_372 = arith.constant 0 : index
    %424 = vector.load %arg14[%c134, %c0_372] : memref<140x128xf32, #tpu.memory_space<vmem>>, vector<1x16xf32>
    %c135 = arith.constant 135 : index
    %c0_373 = arith.constant 0 : index
    %425 = vector.load %arg14[%c135, %c0_373] : memref<140x128xf32, #tpu.memory_space<vmem>>, vector<1x16xf32>
    %426 = arith.maximumf %422, %423 : vector<1x16xf32>
    %427 = arith.maximumf %424, %425 : vector<1x16xf32>
    %428 = arith.maximumf %426, %427 : vector<1x16xf32>
    %c24_374 = arith.constant 24 : index
    %c0_375 = arith.constant 0 : index
    %c0_376 = arith.constant 0 : index
    %429 = vector.load %arg6[%c24_374, %c0_375, %c0_376] : memref<25x16x128xf32, #tpu.memory_space<vmem>>, vector<1x16x128xf32>
    %430 = vector.shape_cast %429 : vector<1x16x128xf32> to vector<16x128xf32>
    %cst_377 = arith.constant dense<0.000000e+00> : vector<1x128xf32>
    %431 = tpu.matmul %428, %430, %cst_377 {dimension_numbers = #tpu.dot_dimension_numbers<[1], [0], [0], [1], [0, 0, 1, 1], [], []>} : vector<1x16xf32>, vector<16x128xf32>, vector<1x128xf32> -> vector<1x128xf32>
    %432 = arith.addf %421, %431 : vector<1x128xf32>
    %cst_378 = arith.constant 0.000000e+00 : f32
    %433 = vector.broadcast %cst_378 : f32 to vector<1x128xf32>
    %434 = arith.maximumf %432, %433 : vector<1x128xf32>
    %c0_379 = arith.constant 0 : index
    %c0_380 = arith.constant 0 : index
    %435 = vector.load %arg8[%c0_379, %c0_380] : memref<128x128xf32, #tpu.memory_space<vmem>>, vector<128x128xf32>
    %cst_381 = arith.constant dense<0.000000e+00> : vector<1x128xf32>
    %436 = tpu.matmul %434, %435, %cst_381 {dimension_numbers = #tpu.dot_dimension_numbers<[1], [0], [0], [1], [0, 0, 1, 1], [], []>} : vector<1x128xf32>, vector<128x128xf32>, vector<1x128xf32> -> vector<1x128xf32>
    %c0_382 = arith.constant 0 : index
    %c0_383 = arith.constant 0 : index
    %437 = vector.load %arg9[%c0_382, %c0_383] : memref<1x128xf32, #tpu.memory_space<vmem>>, vector<1x128xf32>
    %438 = arith.addf %436, %437 : vector<1x128xf32>
    %cst_384 = arith.constant 0.000000e+00 : f32
    %439 = vector.broadcast %cst_384 : f32 to vector<1x128xf32>
    %440 = arith.maximumf %438, %439 : vector<1x128xf32>
    %c0_385 = arith.constant 0 : index
    %c0_386 = arith.constant 0 : index
    %441 = vector.load %arg10[%c0_385, %c0_386] : memref<128x128xf32, #tpu.memory_space<vmem>>, vector<128x128xf32>
    %cst_387 = arith.constant dense<0.000000e+00> : vector<1x128xf32>
    %442 = tpu.matmul %440, %441, %cst_387 {dimension_numbers = #tpu.dot_dimension_numbers<[1], [0], [0], [1], [0, 0, 1, 1], [], []>} : vector<1x128xf32>, vector<128x128xf32>, vector<1x128xf32> -> vector<1x128xf32>
    %c0_388 = arith.constant 0 : index
    %c0_389 = arith.constant 0 : index
    %443 = vector.load %arg11[%c0_388, %c0_389] : memref<1x128xf32, #tpu.memory_space<vmem>>, vector<1x128xf32>
    %444 = arith.addf %442, %443 : vector<1x128xf32>
    %c0_390 = arith.constant 0 : index
    %c0_391 = arith.constant 0 : index
    %c0_392 = arith.constant 0 : index
    %445 = vector.load %arg12[%c0_390, %c0_391, %c0_392] : memref<1x1x128xf32, #tpu.memory_space<vmem>>, vector<1x1x128xf32>
    %446 = vector.shape_cast %445 : vector<1x1x128xf32> to vector<1x128xf32>
    %447 = vector.shape_cast %444 : vector<1x128xf32> to vector<1x1x128xf32>
    tpu.vector_store %arg12[%c0_390, %c0_391, %c0_392], %447 {strides = array<i32>} : memref<1x1x128xf32, #tpu.memory_space<vmem>>, vector<1x1x128xf32>,
    return
  }
  func.func @transform_0(%arg0: i32) -> (i32, i32, i32) {
    %c0_i32 = arith.constant 0 : i32
    %c0_i32_0 = arith.constant 0 : i32
    %c0_i32_1 = arith.constant 0 : i32
    return %arg0, %c0_i32, %c0_i32_0 : i32, i32, i32
  }
  func.func @transform_1(%arg0: i32) -> (i32, i32) {
    %c0_i32 = arith.constant 0 : i32
    %c0_i32_0 = arith.constant 0 : i32
    %c0_i32_1 = arith.constant 0 : i32
    return %c0_i32, %c0_i32_0 : i32, i32
  }
  func.func @transform_2(%arg0: i32) -> (i32, i32) {
    %c0_i32 = arith.constant 0 : i32
    %c0_i32_0 = arith.constant 0 : i32
    %c0_i32_1 = arith.constant 0 : i32
    return %c0_i32, %c0_i32_0 : i32, i32
  }
  func.func @transform_3(%arg0: i32) -> (i32, i32, i32) {
    %c0_i32 = arith.constant 0 : i32
    %c0_i32_0 = arith.constant 0 : i32
    %c0_i32_1 = arith.constant 0 : i32
    %c0_i32_2 = arith.constant 0 : i32
    return %c0_i32, %c0_i32_0, %c0_i32_1 : i32, i32, i32
  }
  func.func @transform_4(%arg0: i32) -> (i32, i32) {
    %c0_i32 = arith.constant 0 : i32
    %c0_i32_0 = arith.constant 0 : i32
    %c0_i32_1 = arith.constant 0 : i32
    return %c0_i32, %c0_i32_0 : i32, i32
  }
  func.func @transform_5(%arg0: i32) -> (i32, i32, i32) {
    %c0_i32 = arith.constant 0 : i32
    %c0_i32_0 = arith.constant 0 : i32
    %c0_i32_1 = arith.constant 0 : i32
    %c0_i32_2 = arith.constant 0 : i32
    return %c0_i32, %c0_i32_0, %c0_i32_1 : i32, i32, i32
  }
  func.func @transform_6(%arg0: i32) -> (i32, i32) {
    %c0_i32 = arith.constant 0 : i32
    %c0_i32_0 = arith.constant 0 : i32
    %c0_i32_1 = arith.constant 0 : i32
    return %c0_i32, %c0_i32_0 : i32, i32
  }
  func.func @transform_7(%arg0: i32) -> (i32, i32) {
    %c0_i32 = arith.constant 0 : i32
    %c0_i32_0 = arith.constant 0 : i32
    %c0_i32_1 = arith.constant 0 : i32
    return %c0_i32, %c0_i32_0 : i32, i32
  }
  func.func @transform_8(%arg0: i32) -> (i32, i32) {
    %c0_i32 = arith.constant 0 : i32
    %c0_i32_0 = arith.constant 0 : i32
    %c0_i32_1 = arith.constant 0 : i32
    return %c0_i32, %c0_i32_0 : i32, i32
  }
  func.func @transform_9(%arg0: i32) -> (i32, i32) {
    %c0_i32 = arith.constant 0 : i32
    %c0_i32_0 = arith.constant 0 : i32
    %c0_i32_1 = arith.constant 0 : i32
    return %c0_i32, %c0_i32_0 : i32, i32
  }
  func.func @transform_10(%arg0: i32) -> (i32, i32) {
    %c0_i32 = arith.constant 0 : i32
    %c0_i32_0 = arith.constant 0 : i32
    %c0_i32_1 = arith.constant 0 : i32
    return %c0_i32, %c0_i32_0 : i32, i32
  }
  func.func @transform_11(%arg0: i32) -> (i32, i32, i32) {
    %c0_i32 = arith.constant 0 : i32
    %c0_i32_0 = arith.constant 0 : i32
    %c0_i32_1 = arith.constant 0 : i32
    return %arg0, %c0_i32, %c0_i32_0 : i32, i32, i32
  }
}

</mosaic_0001>

<llo_original>
// kernel: simple_cnn_forward.1
$region0: #{simple_cnn_forward.1}
  #allocation0 [shape = 'u32[]', space=smem, size = 0x4, offset = 0x4, fixed_abs, tag = 'smem constant byte address 0x4 - core index']
  #allocation1 [shape = 'u32[72,128]{1,0:T(1,128)}', space=vmem, size = 0x9000, scoped, tag = 'internal scratch']
  #allocation2 [shape = 'f32[208,128]{1,0:T(8,128)}', space=vmem, size = 0x1a000, scoped, tag = 'scratch operand']
  #allocation3 [shape = 'f32[140,128]{1,0:T(8,128)}', space=vmem, size = 0x12000, scoped, tag = 'scratch operand']
  %s0 = inlined_call_operand.vmem [shape: f32[2,832,128], index: 0, kind: input, shape index: {}]
  %s1 = inlined_call_operand.vmem [shape: f32[128,128], index: 1, kind: input, shape index: {}]
  %s2 = inlined_call_operand.vmem [shape: f32[1,128], index: 2, kind: input, shape index: {}]
  %s3 = inlined_call_operand.vmem [shape: f32[25,128,128], index: 3, kind: input, shape index: {}]
  %s4 = inlined_call_operand.vmem [shape: f32[1,128], index: 4, kind: input, shape index: {}]
  %s5 = inlined_call_operand.vmem [shape: f32[25,16,128], index: 5, kind: input, shape index: {}]
  %s6 = inlined_call_operand.vmem [shape: f32[1,128], index: 6, kind: input, shape index: {}]
  %s7 = inlined_call_operand.vmem [shape: f32[128,128], index: 7, kind: input, shape index: {}]
  %s8 = inlined_call_operand.vmem [shape: f32[1,128], index: 8, kind: input, shape index: {}]
  %s9 = inlined_call_operand.vmem [shape: f32[128,128], index: 9, kind: input, shape index: {}]
  %s10 = inlined_call_operand.vmem [shape: f32[1,128], index: 10, kind: input, shape index: {}]
  %s11 = inlined_call_operand.hbm [shape: f32[2,1,128], index: 11, kind: output, shape index: {}]
  %s12 = sld [smem:[#allocation0]]
  $region77: #{simple_cnn_forward.1} parent=0
    _
  %s14 = ssub.s32 1, %s12
  %s15 = scalar_select 0, %s14, %s12
  $region1: #{simple_cnn_forward.1} parent=0
    #allocation4 [shape = 'u8[1024]{0}', space=vmem, size = 0x400, scoped, tag = 'output window, operand 0']
    #allocation5 [shape = 's32[2]{0}', space=sflag, size = 0x8, scoped, tag = 'scoped memory for simple_cnn_forward.1']
    %16 = vsyncpa [#allocation5], 0
    %s17 = scalar_lea.sflag [#allocation5], 1
    %18 = vsyncpa %s17, 0
    loop: start=0, step=1, limit=4
    $region2: #{simple_cnn_forward.1} parent=1 // loop_pre_header
      _
    $region3: #{simple_cnn_forward.1} parent=1 // loop_header
      %s20 = sphi 0, %s24
      %p21 = scmp.ge.s32.totalorder %s20, 4
      %s30 = sphi 0, %s32
      %s33 = sphi 0, %s30
      %s34 = sphi 0, %s33
      %s50 = sphi 0, %s34
      %s54 = sphi 0, %s54
      %s56 = sphi 0, %s54
      %s57 = sphi 0, %s56
      %s71 = sphi 0, %s57
      %s75 = sphi 0, %s75
      %s77 = sphi 0, %s75
      %s78 = sphi 0, %s77
      %s92 = sphi 0, %s78
      %s96 = sphi 0, %s96
      %s98 = sphi 0, %s96
      %s99 = sphi 0, %s98
      %s113 = sphi 0, %s99
      %s117 = sphi 0, %s117
      %s119 = sphi 0, %s117
      %s120 = sphi 0, %s119
      %s134 = sphi 0, %s120
      %s138 = sphi 0, %s138
      %s140 = sphi 0, %s138
      %s141 = sphi 0, %s140
      %s155 = sphi 0, %s141
      %s159 = sphi 0, %s159
      %s161 = sphi 0, %s159
      %s162 = sphi 0, %s161
      %s176 = sphi 0, %s162
      %s180 = sphi 0, %s180
      %s182 = sphi 0, %s180
      %s183 = sphi 0, %s182
      %s197 = sphi 0, %s183
      %s201 = sphi 0, %s201
      %s203 = sphi 0, %s201
      %s204 = sphi 0, %s203
      %s218 = sphi 0, %s204
      %s222 = sphi 0, %s222
      %s224 = sphi 0, %s222
      %s225 = sphi 0, %s224
      %s239 = sphi 0, %s225
      %s243 = sphi 0, %s243
      %s245 = sphi 0, %s243
      %s246 = sphi 0, %s245
      %s260 = sphi 0, %s246
      %s266 = sphi 0, %s268
      %s269 = sphi 0, %s266
      %s270 = sphi 0, %s269
      %s286 = sphi 0, %s270
    $region4: #{simple_cnn_forward.1} parent=1 // loop_header_branch
      %23 = sbr.rel (%p21) target = $region8
    $region5: #{simple_cnn_forward.1} parent=1 // loop_body
      %s25 = ssub.s32 %s20, 1
      %s26 = ssub.s32 %s20, 2
      %s27 = sadd.s32 %s20, 1
      %s28 = ssub.s32 %s20, %s27
      %p29 = scmp.eq.s32.totalorder %s28, 0
      %s31 = sadd.s32 %s30, 1
      %s32 = scalar_select %p29, %s30, %s31
      %p35 = pneg %p29
      %p36 = scmp.eq.s32.totalorder %s20, 1
      %p37 = por %p35, %p36
      %p38 = scmp.ne.s32.totalorder %s30, %s33
      %p39 = scmp.eq.s32.totalorder %s20, 0
      %p40 = por %p38, %p39
      %p41 = scmp.ne.s32.totalorder %s30, %s33
      %p42 = scmp.eq.s32.totalorder %s25, 1
      %p43 = por %p41, %p42
      %p44 = scmp.ne.s32.totalorder %s33, %s34
      %p45 = scmp.eq.s32.totalorder %s25, 0
      %p46 = por %p44, %p45
      %p47 = scmp.ne.s32.totalorder %s33, %s34
      %p48 = scmp.eq.s32.totalorder %s26, 1
      %p49 = por %p47, %p48
      %p51 = scmp.ne.s32.totalorder %s34, %s50
      %p52 = scmp.eq.s32.totalorder %s26, 0
      %p53 = por %p51, %p52
      %s55 = sadd.s32 %s54, 1
      %p58 = scmp.eq.s32.totalorder %s20, 1
      %p59 = scmp.ne.s32.totalorder %s54, %s56
      %p60 = scmp.eq.s32.totalorder %s20, 0
      %p61 = por %p59, %p60
      %p62 = scmp.ne.s32.totalorder %s54, %s56
      %p63 = scmp.eq.s32.totalorder %s25, 1
      %p64 = por %p62, %p63
      %p65 = scmp.ne.s32.totalorder %s56, %s57
      %p66 = scmp.eq.s32.totalorder %s25, 0
      %p67 = por %p65, %p66
      %p68 = scmp.ne.s32.totalorder %s56, %s57
      %p69 = scmp.eq.s32.totalorder %s26, 1
      %p70 = por %p68, %p69
      %p72 = scmp.ne.s32.totalorder %s57, %s71
      %p73 = scmp.eq.s32.totalorder %s26, 0
      %p74 = por %p72, %p73
      %s76 = sadd.s32 %s75, 1
      %p79 = scmp.eq.s32.totalorder %s20, 1
      %p80 = scmp.ne.s32.totalorder %s75, %s77
      %p81 = scmp.eq.s32.totalorder %s20, 0
      %p82 = por %p80, %p81
      %p83 = scmp.ne.s32.totalorder %s75, %s77
      %p84 = scmp.eq.s32.totalorder %s25, 1
      %p85 = por %p83, %p84
      %p86 = scmp.ne.s32.totalorder %s77, %s78
      %p87 = scmp.eq.s32.totalorder %s25, 0
      %p88 = por %p86, %p87
      %p89 = scmp.ne.s32.totalorder %s77, %s78
      %p90 = scmp.eq.s32.totalorder %s26, 1
      %p91 = por %p89, %p90
      %p93 = scmp.ne.s32.totalorder %s78, %s92
      %p94 = scmp.eq.s32.totalorder %s26, 0
      %p95 = por %p93, %p94
      %s97 = sadd.s32 %s96, 1
      %p100 = scmp.eq.s32.totalorder %s20, 1
      %p101 = scmp.ne.s32.totalorder %s96, %s98
      %p102 = scmp.eq.s32.totalorder %s20, 0
      %p103 = por %p101, %p102
      %p104 = scmp.ne.s32.totalorder %s96, %s98
      %p105 = scmp.eq.s32.totalorder %s25, 1
      %p106 = por %p104, %p105
      %p107 = scmp.ne.s32.totalorder %s98, %s99
      %p108 = scmp.eq.s32.totalorder %s25, 0
      %p109 = por %p107, %p108
      %p110 = scmp.ne.s32.totalorder %s98, %s99
      %p111 = scmp.eq.s32.totalorder %s26, 1
      %p112 = por %p110, %p111
      %p114 = scmp.ne.s32.totalorder %s99, %s113
      %p115 = scmp.eq.s32.totalorder %s26, 0
      %p116 = por %p114, %p115
      %s118 = sadd.s32 %s117, 1
      %p121 = scmp.eq.s32.totalorder %s20, 1
      %p122 = scmp.ne.s32.totalorder %s117, %s119
      %p123 = scmp.eq.s32.totalorder %s20, 0
      %p124 = por %p122, %p123
      %p125 = scmp.ne.s32.totalorder %s117, %s119
      %p126 = scmp.eq.s32.totalorder %s25, 1
      %p127 = por %p125, %p126
      %p128 = scmp.ne.s32.totalorder %s119, %s120
      %p129 = scmp.eq.s32.totalorder %s25, 0
      %p130 = por %p128, %p129
      %p131 = scmp.ne.s32.totalorder %s119, %s120
      %p132 = scmp.eq.s32.totalorder %s26, 1
      %p133 = por %p131, %p132
      %p135 = scmp.ne.s32.totalorder %s120, %s134
      %p136 = scmp.eq.s32.totalorder %s26, 0
      %p137 = por %p135, %p136
      %s139 = sadd.s32 %s138, 1
      %p142 = scmp.eq.s32.totalorder %s20, 1
      %p143 = scmp.ne.s32.totalorder %s138, %s140
      %p144 = scmp.eq.s32.totalorder %s20, 0
      %p145 = por %p143, %p144
      %p146 = scmp.ne.s32.totalorder %s138, %s140
      %p147 = scmp.eq.s32.totalorder %s25, 1
      %p148 = por %p146, %p147
      %p149 = scmp.ne.s32.totalorder %s140, %s141
      %p150 = scmp.eq.s32.totalorder %s25, 0
      %p151 = por %p149, %p150
      %p152 = scmp.ne.s32.totalorder %s140, %s141
      %p153 = scmp.eq.s32.totalorder %s26, 1
      %p154 = por %p152, %p153
      %p156 = scmp.ne.s32.totalorder %s141, %s155
      %p157 = scmp.eq.s32.totalorder %s26, 0
      %p158 = por %p156, %p157
      %s160 = sadd.s32 %s159, 1
      %p163 = scmp.eq.s32.totalorder %s20, 1
      %p164 = scmp.ne.s32.totalorder %s159, %s161
      %p165 = scmp.eq.s32.totalorder %s20, 0
      %p166 = por %p164, %p165
      %p167 = scmp.ne.s32.totalorder %s159, %s161
      %p168 = scmp.eq.s32.totalorder %s25, 1
      %p169 = por %p167, %p168
      %p170 = scmp.ne.s32.totalorder %s161, %s162
      %p171 = scmp.eq.s32.totalorder %s25, 0
      %p172 = por %p170, %p171
      %p173 = scmp.ne.s32.totalorder %s161, %s162
      %p174 = scmp.eq.s32.totalorder %s26, 1
      %p175 = por %p173, %p174
      %p177 = scmp.ne.s32.totalorder %s162, %s176
      %p178 = scmp.eq.s32.totalorder %s26, 0
      %p179 = por %p177, %p178
      %s181 = sadd.s32 %s180, 1
      %p184 = scmp.eq.s32.totalorder %s20, 1
      %p185 = scmp.ne.s32.totalorder %s180, %s182
      %p186 = scmp.eq.s32.totalorder %s20, 0
      %p187 = por %p185, %p186
      %p188 = scmp.ne.s32.totalorder %s180, %s182
      %p189 = scmp.eq.s32.totalorder %s25, 1
      %p190 = por %p188, %p189
      %p191 = scmp.ne.s32.totalorder %s182, %s183
      %p192 = scmp.eq.s32.totalorder %s25, 0
      %p193 = por %p191, %p192
      %p194 = scmp.ne.s32.totalorder %s182, %s183
      %p195 = scmp.eq.s32.totalorder %s26, 1
      %p196 = por %p194, %p195
      %p198 = scmp.ne.s32.totalorder %s183, %s197
      %p199 = scmp.eq.s32.totalorder %s26, 0
      %p200 = por %p198, %p199
      %s202 = sadd.s32 %s201, 1
      %p205 = scmp.eq.s32.totalorder %s20, 1
      %p206 = scmp.ne.s32.totalorder %s201, %s203
      %p207 = scmp.eq.s32.totalorder %s20, 0
      %p208 = por %p206, %p207
      %p209 = scmp.ne.s32.totalorder %s201, %s203
      %p210 = scmp.eq.s32.totalorder %s25, 1
      %p211 = por %p209, %p210
      %p212 = scmp.ne.s32.totalorder %s203, %s204
      %p213 = scmp.eq.s32.totalorder %s25, 0
      %p214 = por %p212, %p213
      %p215 = scmp.ne.s32.totalorder %s203, %s204
      %p216 = scmp.eq.s32.totalorder %s26, 1
      %p217 = por %p215, %p216
      %p219 = scmp.ne.s32.totalorder %s204, %s218
      %p220 = scmp.eq.s32.totalorder %s26, 0
      %p221 = por %p219, %p220
      %s223 = sadd.s32 %s222, 1
      %p226 = scmp.eq.s32.totalorder %s20, 1
      %p227 = scmp.ne.s32.totalorder %s222, %s224
      %p228 = scmp.eq.s32.totalorder %s20, 0
      %p229 = por %p227, %p228
      %p230 = scmp.ne.s32.totalorder %s222, %s224
      %p231 = scmp.eq.s32.totalorder %s25, 1
      %p232 = por %p230, %p231
      %p233 = scmp.ne.s32.totalorder %s224, %s225
      %p234 = scmp.eq.s32.totalorder %s25, 0
      %p235 = por %p233, %p234
      %p236 = scmp.ne.s32.totalorder %s224, %s225
      %p237 = scmp.eq.s32.totalorder %s26, 1
      %p238 = por %p236, %p237
      %p240 = scmp.ne.s32.totalorder %s225, %s239
      %p241 = scmp.eq.s32.totalorder %s26, 0
      %p242 = por %p240, %p241
      %s244 = sadd.s32 %s243, 1
      %p247 = scmp.eq.s32.totalorder %s20, 1
      %p248 = scmp.ne.s32.totalorder %s243, %s245
      %p249 = scmp.eq.s32.totalorder %s20, 0
      %p250 = por %p248, %p249
      %p251 = scmp.ne.s32.totalorder %s243, %s245
      %p252 = scmp.eq.s32.totalorder %s25, 1
      %p253 = por %p251, %p252
      %p254 = scmp.ne.s32.totalorder %s245, %s246
      %p255 = scmp.eq.s32.totalorder %s25, 0
      %p256 = por %p254, %p255
      %p257 = scmp.ne.s32.totalorder %s245, %s246
      %p258 = scmp.eq.s32.totalorder %s26, 1
      %p259 = por %p257, %p258
      %p261 = scmp.ne.s32.totalorder %s246, %s260
      %p262 = scmp.eq.s32.totalorder %s26, 0
      %p263 = por %p261, %p262
      %s264 = ssub.s32 %s20, %s27
      %p265 = scmp.eq.s32.totalorder %s264, 0
      %s267 = sadd.s32 %s266, 1
      %s268 = scalar_select %p265, %s266, %s267
      %p271 = pneg %p265
      %p272 = scmp.eq.s32.totalorder %s20, 1
      %p273 = por %p271, %p272
      %p274 = scmp.ne.s32.totalorder %s266, %s269
      %p275 = scmp.eq.s32.totalorder %s20, 0
      %p276 = por %p274, %p275
      %p277 = scmp.ne.s32.totalorder %s266, %s269
      %p278 = scmp.eq.s32.totalorder %s25, 1
      %p279 = por %p277, %p278
      %p280 = scmp.ne.s32.totalorder %s269, %s270
      %p281 = scmp.eq.s32.totalorder %s25, 0
      %p282 = por %p280, %p281
      %p283 = scmp.ne.s32.totalorder %s269, %s270
      %p284 = scmp.eq.s32.totalorder %s26, 1
      %p285 = por %p283, %p284
      %p287 = scmp.ne.s32.totalorder %s270, %s286
      %p288 = scmp.eq.s32.totalorder %s26, 0
      %p289 = por %p287, %p288
      %p290 = scmp.le.s32.totalorder 1, %s20
      %p291 = scmp.lt.s32.totalorder %s20, 3
      %p292 = pnand %p290, %p291
      %p293 = pneg %p292
      // Predicated region
      $region9: #{simple_cnn_forward.1} parent=5 // pred_check
        _
      $region10: #{simple_cnn_forward.1} parent=5 // pred_check_branch
        %295 = sbr.rel (%p292) target = $region12
      $region11: #{simple_cnn_forward.1} parent=5 // pred_region
        %s296 = ssub.s32 %s20, 1
        // Predicated region
        $region13: #{simple_cnn_forward.1} parent=11 // pred_check
          %p297 = pneg %p67
        $region14: #{simple_cnn_forward.1} parent=11 // pred_check_branch
          %299 = sbr.rel (%p297) target = $region16
        $region15: #{simple_cnn_forward.1} parent=11 // pred_region
          _
        $region16: #{simple_cnn_forward.1} parent=11 // pred_fallthru
          _
        // Predicated region
        $region17: #{simple_cnn_forward.1} parent=11 // pred_check
          %p300 = pneg %p88
        $region18: #{simple_cnn_forward.1} parent=11 // pred_check_branch
          %302 = sbr.rel (%p300) target = $region20
        $region19: #{simple_cnn_forward.1} parent=11 // pred_region
          _
        $region20: #{simple_cnn_forward.1} parent=11 // pred_fallthru
          _
        // Predicated region
        $region21: #{simple_cnn_forward.1} parent=11 // pred_check
          %p303 = pneg %p109
        $region22: #{simple_cnn_forward.1} parent=11 // pred_check_branch
          %305 = sbr.rel (%p303) target = $region24
        $region23: #{simple_cnn_forward.1} parent=11 // pred_region
          _
        $region24: #{simple_cnn_forward.1} parent=11 // pred_fallthru
          _
        // Predicated region
        $region25: #{simple_cnn_forward.1} parent=11 // pred_check
          %p306 = pneg %p130
        $region26: #{simple_cnn_forward.1} parent=11 // pred_check_branch
          %308 = sbr.rel (%p306) target = $region28
        $region27: #{simple_cnn_forward.1} parent=11 // pred_region
          _
        $region28: #{simple_cnn_forward.1} parent=11 // pred_fallthru
          _
        // Predicated region
        $region29: #{simple_cnn_forward.1} parent=11 // pred_check
          %p309 = pneg %p151
        $region30: #{simple_cnn_forward.1} parent=11 // pred_check_branch
          %311 = sbr.rel (%p309) target = $region32
        $region31: #{simple_cnn_forward.1} parent=11 // pred_region
          _
        $region32: #{simple_cnn_forward.1} parent=11 // pred_fallthru
          _
        // Predicated region
        $region33: #{simple_cnn_forward.1} parent=11 // pred_check
          %p312 = pneg %p172
        $region34: #{simple_cnn_forward.1} parent=11 // pred_check_branch
          %314 = sbr.rel (%p312) target = $region36
        $region35: #{simple_cnn_forward.1} parent=11 // pred_region
          _
        $region36: #{simple_cnn_forward.1} parent=11 // pred_fallthru
          _
        // Predicated region
        $region37: #{simple_cnn_forward.1} parent=11 // pred_check
          %p315 = pneg %p193
        $region38: #{simple_cnn_forward.1} parent=11 // pred_check_branch
          %317 = sbr.rel (%p315) target = $region40
        $region39: #{simple_cnn_forward.1} parent=11 // pred_region
          _
        $region40: #{simple_cnn_forward.1} parent=11 // pred_fallthru
          _
        // Predicated region
        $region41: #{simple_cnn_forward.1} parent=11 // pred_check
          %p318 = pneg %p214
        $region42: #{simple_cnn_forward.1} parent=11 // pred_check_branch
          %320 = sbr.rel (%p318) target = $region44
        $region43: #{simple_cnn_forward.1} parent=11 // pred_region
          _
        $region44: #{simple_cnn_forward.1} parent=11 // pred_fallthru
          _
        // Predicated region
        $region45: #{simple_cnn_forward.1} parent=11 // pred_check
          %p321 = pneg %p235
        $region46: #{simple_cnn_forward.1} parent=11 // pred_check_branch
          %323 = sbr.rel (%p321) target = $region48
        $region47: #{simple_cnn_forward.1} parent=11 // pred_region
          _
        $region48: #{simple_cnn_forward.1} parent=11 // pred_fallthru
          _
        // Predicated region
        $region49: #{simple_cnn_forward.1} parent=11 // pred_check
          %p324 = pneg %p256
        $region50: #{simple_cnn_forward.1} parent=11 // pred_check_branch
          %326 = sbr.rel (%p324) target = $region52
        $region51: #{simple_cnn_forward.1} parent=11 // pred_region
          _
        $region52: #{simple_cnn_forward.1} parent=11 // pred_fallthru
          _
      $region12: #{simple_cnn_forward.1} parent=5 // pred_fallthru
        _
      %p327 = scmp.lt.s32.totalorder %s20, 2
      // Predicated region
      $region53: #{simple_cnn_forward.1} parent=5 // pred_check
        %p328 = pneg %p327
      $region54: #{simple_cnn_forward.1} parent=5 // pred_check_branch
        %330 = sbr.rel (%p328) target = $region56
      $region55: #{simple_cnn_forward.1} parent=5 // pred_region
        // Predicated region
        $region57: #{simple_cnn_forward.1} parent=55 // pred_check
          %p331 = pneg %p40
        $region58: #{simple_cnn_forward.1} parent=55 // pred_check_branch
          %333 = sbr.rel (%p331) target = $region60
        $region59: #{simple_cnn_forward.1} parent=55 // pred_region
          %p334 = scmp.lt.s32.totalorder %s20, 1
          %s335 = scalar_select %p334, %s20, 1
          %s336 = smul.addr %s335, 104
          %s337 = smul.addr %s336, 8
          %s338 = scalar_lea.vmem %s0, %s337
        $region60: #{simple_cnn_forward.1} parent=55 // pred_fallthru
          _
      $region56: #{simple_cnn_forward.1} parent=5 // pred_fallthru
        _
      %p339 = scmp.le.s32.totalorder 1, %s20
      %p340 = scmp.lt.s32.totalorder %s20, 3
      %p341 = pnand %p339, %p340
      %p342 = pneg %p341
      // Predicated region
      $region61: #{simple_cnn_forward.1} parent=5 // pred_check
        _
      $region62: #{simple_cnn_forward.1} parent=5 // pred_check_branch
        %344 = sbr.rel (%p341) target = $region64
      $region63: #{simple_cnn_forward.1} parent=5 // pred_region
        %s345 = ssub.s32 %s20, 1
        %p346 = scmp.lt.s32.totalorder %s25, 1
        %s347 = scalar_select %p346, %s25, 1
        %s348 = smul.addr %s347, 104
        %s349 = smul.addr %s348, 8
        %s350 = scalar_lea.vmem %s0, %s349
        %p351 = pneg %p46
        %p352 = pneg %p43
        %p353 = pneg %p67
        %p354 = pneg %p64
        %p355 = pneg %p88
        %p356 = pneg %p85
        %p357 = pneg %p109
        %p358 = pneg %p106
        %p359 = pneg %p130
        %p360 = pneg %p127
        %p361 = pneg %p151
        %p362 = pneg %p148
        %p363 = pneg %p172
        %p364 = pneg %p169
        %p365 = pneg %p193
        %p366 = pneg %p190
        %p367 = pneg %p214
        %p368 = pneg %p211
        %p369 = pneg %p235
        %p370 = pneg %p232
        %p371 = pneg %p256
        %p372 = pneg %p253
        %p373 = pneg %p282
        %p374 = pneg %p279
        %s375 = sand.u32 %s269, 1
        %s376 = scalar_lea.sflag [#allocation5], %s375
        %s377 = sand.u32 %s269, 1
        %s378 = scalar_lea.vmem [#allocation4], %s377
        %p379 = scmp.lt.s32.totalorder %s25, 1
        %s380 = scalar_select %p379, %s25, 1
        %s381 = smul.addr %s380, 104
        %s382 = smul.addr %s381, 8
        %s383 = scalar_lea.vmem %s0, %s382
        %v384 = vld [vmem:[%s383] sm:$0xff]
        %v385 = vld [vmem:[%s383 + $0x8] sm:$0xff]
        %v386 = vld [vmem:[%s383 + $0x10] sm:$0xff]
        %v387 = vld [vmem:[%s383 + $0x18] sm:$0xff]
        %v388 = vld [vmem:[%s383 + $0x20] sm:$0xff]
        %v389 = vld [vmem:[%s383 + $0x28] sm:$0xff]
        %v390 = vld [vmem:[%s383 + $0x30] sm:$0xff]
        %v391 = vld [vmem:[%s383 + $0x38] sm:$0xff]
        %v392 = vld [vmem:[%s383 + $0x40] sm:$0xff]
        %v393 = vld [vmem:[%s383 + $0x48] sm:$0xff]
        %v394 = vld [vmem:[%s383 + $0x50] sm:$0xff]
        %v395 = vld [vmem:[%s383 + $0x58] sm:$0xff]
        %v396 = vld [vmem:[%s383 + $0x60] sm:$0xff]
        %v397 = vld [vmem:[%s383 + $0x68] sm:$0xff]
        %v398 = vld [vmem:[%s383 + $0x70] sm:$0xff]
        %v399 = vld [vmem:[%s383 + $0x78] sm:$0xff]
        %v400 = vld [vmem:[%s383 + $0x80] sm:$0xff]
        %v401 = vld [vmem:[%s383 + $0x88] sm:$0xff]
        %v402 = vld [vmem:[%s383 + $0x90] sm:$0xff]
        %v403 = vld [vmem:[%s383 + $0x98] sm:$0xff]
        %v404 = vld [vmem:[%s383 + $0xa0] sm:$0xff]
        %v405 = vld [vmem:[%s383 + $0xa8] sm:$0xff]
        %v406 = vld [vmem:[%s383 + $0xb0] sm:$0xff]
        %v407 = vld [vmem:[%s383 + $0xb8] sm:$0xff]
        %v408 = vld [vmem:[%s383 + $0xc0] sm:$0xff]
        %v409 = vld [vmem:[%s383 + $0xc8] sm:$0xff]
        %v410 = vld [vmem:[%s1] sm:$0xff]
        %v411 = vld [vmem:[%s1 + $0x8] sm:$0xff]
        %v412 = vld [vmem:[%s1 + $0x10] sm:$0xff]
        %v413 = vld [vmem:[%s1 + $0x18] sm:$0xff]
        %v414 = vld [vmem:[%s1 + $0x20] sm:$0xff]
        %v415 = vld [vmem:[%s1 + $0x28] sm:$0xff]
        %v416 = vld [vmem:[%s1 + $0x30] sm:$0xff]
        %v417 = vld [vmem:[%s1 + $0x38] sm:$0xff]
        %v418 = vld [vmem:[%s1 + $0x40] sm:$0xff]
        %v419 = vld [vmem:[%s1 + $0x48] sm:$0xff]
        %v420 = vld [vmem:[%s1 + $0x50] sm:$0xff]
        %v421 = vld [vmem:[%s1 + $0x58] sm:$0xff]
        %v422 = vld [vmem:[%s1 + $0x60] sm:$0xff]
        %v423 = vld [vmem:[%s1 + $0x68] sm:$0xff]
        %v424 = vld [vmem:[%s1 + $0x70] sm:$0xff]
        %v425 = vld [vmem:[%s1 + $0x78] sm:$0xff]
        %426 = vmatpush.msra.mxu0 %v425
        %427 = vmatpush.msra.mxu0 %v424
        %428 = vmatpush.msra.mxu0 %v423
        %429 = vmatpush.msra.mxu0 %v422
        %430 = vmatpush.msra.mxu0 %v421
        %431 = vmatpush.msra.mxu0 %v420
        %432 = vmatpush.msra.mxu0 %v419
        %433 = vmatpush.msra.mxu0 %v418
        %434 = vmatpush.msra.mxu0 %v417
        %435 = vmatpush.msra.mxu0 %v416
        %436 = vmatpush.msra.mxu0 %v415
        %437 = vmatpush.msra.mxu0 %v414
        %438 = vmatpush.msra.mxu0 %v413
        %439 = vmatpush.msra.mxu0 %v412
        %440 = vmatpush.msra.mxu0 %v411
        %441 = vmatpush.msra.mxu0 %v410
        %442 = vmatmul.f32.gmra.mxu0 %v384
        %v443 = vpop.f32.mrf.mxu0
        %v444 = vadd.f32 0.0, %v443
        %445 = vmatmul.f32.gmra.mxu0 %v385
        %v446 = vpop.f32.mrf.mxu0
        %v447 = vadd.f32 0.0, %v446
        %448 = vmatmul.f32.gmra.mxu0 %v386
        %v449 = vpop.f32.mrf.mxu0
        %v450 = vadd.f32 0.0, %v449
        %451 = vmatmul.f32.gmra.mxu0 %v387
        %v452 = vpop.f32.mrf.mxu0
        %v453 = vadd.f32 0.0, %v452
        %454 = vmatmul.f32.gmra.mxu0 %v388
        %v455 = vpop.f32.mrf.mxu0
        %v456 = vadd.f32 0.0, %v455
        %457 = vmatmul.f32.gmra.mxu0 %v389
        %v458 = vpop.f32.mrf.mxu0
        %v459 = vadd.f32 0.0, %v458
        %460 = vmatmul.f32.gmra.mxu0 %v390
        %v461 = vpop.f32.mrf.mxu0
        %v462 = vadd.f32 0.0, %v461
        %463 = vmatmul.f32.gmra.mxu0 %v391
        %v464 = vpop.f32.mrf.mxu0
        %v465 = vadd.f32 0.0, %v464
        %466 = vmatmul.f32.gmra.mxu0 %v392
        %v467 = vpop.f32.mrf.mxu0
        %v468 = vadd.f32 0.0, %v467
        %469 = vmatmul.f32.gmra.mxu0 %v393
        %v470 = vpop.f32.mrf.mxu0
        %v471 = vadd.f32 0.0, %v470
        %472 = vmatmul.f32.gmra.mxu0 %v394
        %v473 = vpop.f32.mrf.mxu0
        %v474 = vadd.f32 0.0, %v473
        %475 = vmatmul.f32.gmra.mxu0 %v395
        %v476 = vpop.f32.mrf.mxu0
        %v477 = vadd.f32 0.0, %v476
        %478 = vmatmul.f32.gmra.mxu0 %v396
        %v479 = vpop.f32.mrf.mxu0
        %v480 = vadd.f32 0.0, %v479
        %481 = vmatmul.f32.gmra.mxu0 %v397
        %v482 = vpop.f32.mrf.mxu0
        %v483 = vadd.f32 0.0, %v482
        %484 = vmatmul.f32.gmra.mxu0 %v398
        %v485 = vpop.f32.mrf.mxu0
        %v486 = vadd.f32 0.0, %v485
        %487 = vmatmul.f32.gmra.mxu0 %v399
        %v488 = vpop.f32.mrf.mxu0
        %v489 = vadd.f32 0.0, %v488
        %490 = vmatmul.f32.gmra.mxu0 %v400
        %v491 = vpop.f32.mrf.mxu0
        %v492 = vadd.f32 0.0, %v491
        %493 = vmatmul.f32.gmra.mxu0 %v401
        %v494 = vpop.f32.mrf.mxu0
        %v495 = vadd.f32 0.0, %v494
        %496 = vmatmul.f32.gmra.mxu0 %v402
        %v497 = vpop.f32.mrf.mxu0
        %v498 = vadd.f32 0.0, %v497
        %499 = vmatmul.f32.gmra.mxu0 %v403
        %v500 = vpop.f32.mrf.mxu0
        %v501 = vadd.f32 0.0, %v500
        %502 = vmatmul.f32.gmra.mxu0 %v404
        %v503 = vpop.f32.mrf.mxu0
        %v504 = vadd.f32 0.0, %v503
        %505 = vmatmul.f32.gmra.mxu0 %v405
        %v506 = vpop.f32.mrf.mxu0
        %v507 = vadd.f32 0.0, %v506
        %508 = vmatmul.f32.gmra.mxu0 %v406
        %v509 = vpop.f32.mrf.mxu0
        %v510 = vadd.f32 0.0, %v509
        %511 = vmatmul.f32.gmra.mxu0 %v407
        %v512 = vpop.f32.mrf.mxu0
        %v513 = vadd.f32 0.0, %v512
        %514 = vmatmul.f32.gmra.mxu0 %v408
        %v515 = vpop.f32.mrf.mxu0
        %v516 = vadd.f32 0.0, %v515
        %517 = vmatmul.f32.gmra.mxu0 %v409
        %v518 = vpop.f32.mrf.mxu0
        %v519 = vadd.f32 0.0, %v518
        %520 = vdwg.mxu0
        %v521 = vld [vmem:[%s383 + $0xd0] sm:$0xff]
        %v522 = vld [vmem:[%s383 + $0xd8] sm:$0xff]
        %v523 = vld [vmem:[%s383 + $0xe0] sm:$0xff]
        %v524 = vld [vmem:[%s383 + $0xe8] sm:$0xff]
        %v525 = vld [vmem:[%s383 + $0xf0] sm:$0xff]
        %v526 = vld [vmem:[%s383 + $0xf8] sm:$0xff]
        %v527 = vld [vmem:[%s383 + $0x100] sm:$0xff]
        %v528 = vld [vmem:[%s383 + $0x108] sm:$0xff]
        %v529 = vld [vmem:[%s383 + $0x110] sm:$0xff]
        %v530 = vld [vmem:[%s383 + $0x118] sm:$0xff]
        %v531 = vld [vmem:[%s383 + $0x120] sm:$0xff]
        %v532 = vld [vmem:[%s383 + $0x128] sm:$0xff]
        %v533 = vld [vmem:[%s383 + $0x130] sm:$0xff]
        %v534 = vld [vmem:[%s383 + $0x138] sm:$0xff]
        %v535 = vld [vmem:[%s383 + $0x140] sm:$0xff]
        %v536 = vld [vmem:[%s383 + $0x148] sm:$0xff]
        %v537 = vld [vmem:[%s383 + $0x150] sm:$0xff]
        %v538 = vld [vmem:[%s383 + $0x158] sm:$0xff]
        %v539 = vld [vmem:[%s383 + $0x160] sm:$0xff]
        %v540 = vld [vmem:[%s383 + $0x168] sm:$0xff]
        %v541 = vld [vmem:[%s383 + $0x170] sm:$0xff]
        %v542 = vld [vmem:[%s383 + $0x178] sm:$0xff]
        %v543 = vld [vmem:[%s383 + $0x180] sm:$0xff]
        %v544 = vld [vmem:[%s383 + $0x188] sm:$0xff]
        %v545 = vld [vmem:[%s383 + $0x190] sm:$0xff]
        %v546 = vld [vmem:[%s383 + $0x198] sm:$0xff]
        %547 = vmatpush.msra.mxu0 %v425
        %548 = vmatpush.msra.mxu0 %v424
        %549 = vmatpush.msra.mxu0 %v423
        %550 = vmatpush.msra.mxu0 %v422
        %551 = vmatpush.msra.mxu0 %v421
        %552 = vmatpush.msra.mxu0 %v420
        %553 = vmatpush.msra.mxu0 %v419
        %554 = vmatpush.msra.mxu0 %v418
        %555 = vmatpush.msra.mxu0 %v417
        %556 = vmatpush.msra.mxu0 %v416
        %557 = vmatpush.msra.mxu0 %v415
        %558 = vmatpush.msra.mxu0 %v414
        %559 = vmatpush.msra.mxu0 %v413
        %560 = vmatpush.msra.mxu0 %v412
        %561 = vmatpush.msra.mxu0 %v411
        %562 = vmatpush.msra.mxu0 %v410
        %563 = vmatmul.f32.gmra.mxu0 %v521
        %v564 = vpop.f32.mrf.mxu0
        %v565 = vadd.f32 0.0, %v564
        %566 = vmatmul.f32.gmra.mxu0 %v522
        %v567 = vpop.f32.mrf.mxu0
        %v568 = vadd.f32 0.0, %v567
        %569 = vmatmul.f32.gmra.mxu0 %v523
        %v570 = vpop.f32.mrf.mxu0
        %v571 = vadd.f32 0.0, %v570
        %572 = vmatmul.f32.gmra.mxu0 %v524
        %v573 = vpop.f32.mrf.mxu0
        %v574 = vadd.f32 0.0, %v573
        %575 = vmatmul.f32.gmra.mxu0 %v525
        %v576 = vpop.f32.mrf.mxu0
        %v577 = vadd.f32 0.0, %v576
        %578 = vmatmul.f32.gmra.mxu0 %v526
        %v579 = vpop.f32.mrf.mxu0
        %v580 = vadd.f32 0.0, %v579
        %581 = vmatmul.f32.gmra.mxu0 %v527
        %v582 = vpop.f32.mrf.mxu0
        %v583 = vadd.f32 0.0, %v582
        %584 = vmatmul.f32.gmra.mxu0 %v528
        %v585 = vpop.f32.mrf.mxu0
        %v586 = vadd.f32 0.0, %v585
        %587 = vmatmul.f32.gmra.mxu0 %v529
        %v588 = vpop.f32.mrf.mxu0
        %v589 = vadd.f32 0.0, %v588
        %590 = vmatmul.f32.gmra.mxu0 %v530
        %v591 = vpop.f32.mrf.mxu0
        %v592 = vadd.f32 0.0, %v591
        %593 = vmatmul.f32.gmra.mxu0 %v531
        %v594 = vpop.f32.mrf.mxu0
        %v595 = vadd.f32 0.0, %v594
        %596 = vmatmul.f32.gmra.mxu0 %v532
        %v597 = vpop.f32.mrf.mxu0
        %v598 = vadd.f32 0.0, %v597
        %599 = vmatmul.f32.gmra.mxu0 %v533
        %v600 = vpop.f32.mrf.mxu0
        %v601 = vadd.f32 0.0, %v600
        %602 = vmatmul.f32.gmra.mxu0 %v534
        %v603 = vpop.f32.mrf.mxu0
        %v604 = vadd.f32 0.0, %v603
        %605 = vmatmul.f32.gmra.mxu0 %v535
        %v606 = vpop.f32.mrf.mxu0
        %v607 = vadd.f32 0.0, %v606
        %608 = vmatmul.f32.gmra.mxu0 %v536
        %v609 = vpop.f32.mrf.mxu0
        %v610 = vadd.f32 0.0, %v609
        %611 = vmatmul.f32.gmra.mxu0 %v537
        %v612 = vpop.f32.mrf.mxu0
        %v613 = vadd.f32 0.0, %v612
        %614 = vmatmul.f32.gmra.mxu0 %v538
        %v615 = vpop.f32.mrf.mxu0
        %v616 = vadd.f32 0.0, %v615
        %617 = vmatmul.f32.gmra.mxu0 %v539
        %v618 = vpop.f32.mrf.mxu0
        %v619 = vadd.f32 0.0, %v618
        %620 = vmatmul.f32.gmra.mxu0 %v540
        %v621 = vpop.f32.mrf.mxu0
        %v622 = vadd.f32 0.0, %v621
        %623 = vmatmul.f32.gmra.mxu0 %v541
        %v624 = vpop.f32.mrf.mxu0
        %v625 = vadd.f32 0.0, %v624
        %626 = vmatmul.f32.gmra.mxu0 %v542
        %v627 = vpop.f32.mrf.mxu0
        %v628 = vadd.f32 0.0, %v627
        %629 = vmatmul.f32.gmra.mxu0 %v543
        %v630 = vpop.f32.mrf.mxu0
        %v631 = vadd.f32 0.0, %v630
        %632 = vmatmul.f32.gmra.mxu0 %v544
        %v633 = vpop.f32.mrf.mxu0
        %v634 = vadd.f32 0.0, %v633
        %635 = vmatmul.f32.gmra.mxu0 %v545
        %v636 = vpop.f32.mrf.mxu0
        %v637 = vadd.f32 0.0, %v636
        %638 = vmatmul.f32.gmra.mxu0 %v546
        %v639 = vpop.f32.mrf.mxu0
        %v640 = vadd.f32 0.0, %v639
        %641 = vdwg.mxu0
        %v642 = vmax.f32 %v444, %v565
        %v643 = vmax.f32 %v447, %v568
        %v644 = vmax.f32 %v450, %v571
        %v645 = vmax.f32 %v453, %v574
        %v646 = vmax.f32 %v456, %v577
        %v647 = vmax.f32 %v459, %v580
        %v648 = vmax.f32 %v462, %v583
        %v649 = vmax.f32 %v465, %v586
        %v650 = vmax.f32 %v468, %v589
        %v651 = vmax.f32 %v471, %v592
        %v652 = vmax.f32 %v474, %v595
        %v653 = vmax.f32 %v477, %v598
        %v654 = vmax.f32 %v480, %v601
        %v655 = vmax.f32 %v483, %v604
        %v656 = vmax.f32 %v486, %v607
        %v657 = vmax.f32 %v489, %v610
        %v658 = vmax.f32 %v492, %v613
        %v659 = vmax.f32 %v495, %v616
        %v660 = vmax.f32 %v498, %v619
        %v661 = vmax.f32 %v501, %v622
        %v662 = vmax.f32 %v504, %v625
        %v663 = vmax.f32 %v507, %v628
        %v664 = vmax.f32 %v510, %v631
        %v665 = vmax.f32 %v513, %v634
        %v666 = vmax.f32 %v516, %v637
        %v667 = vmax.f32 %v519, %v640
        %v668 = vld [vmem:[%s383 + $0x1a0] sm:$0xff]
        %v669 = vld [vmem:[%s383 + $0x1a8] sm:$0xff]
        %v670 = vld [vmem:[%s383 + $0x1b0] sm:$0xff]
        %v671 = vld [vmem:[%s383 + $0x1b8] sm:$0xff]
        %v672 = vld [vmem:[%s383 + $0x1c0] sm:$0xff]
        %v673 = vld [vmem:[%s383 + $0x1c8] sm:$0xff]
        %v674 = vld [vmem:[%s383 + $0x1d0] sm:$0xff]
        %v675 = vld [vmem:[%s383 + $0x1d8] sm:$0xff]
        %v676 = vld [vmem:[%s383 + $0x1e0] sm:$0xff]
        %v677 = vld [vmem:[%s383 + $0x1e8] sm:$0xff]
        %v678 = vld [vmem:[%s383 + $0x1f0] sm:$0xff]
        %v679 = vld [vmem:[%s383 + $0x1f8] sm:$0xff]
        %v680 = vld [vmem:[%s383 + $0x200] sm:$0xff]
        %v681 = vld [vmem:[%s383 + $0x208] sm:$0xff]
        %v682 = vld [vmem:[%s383 + $0x210] sm:$0xff]
        %v683 = vld [vmem:[%s383 + $0x218] sm:$0xff]
        %v684 = vld [vmem:[%s383 + $0x220] sm:$0xff]
        %v685 = vld [vmem:[%s383 + $0x228] sm:$0xff]
        %v686 = vld [vmem:[%s383 + $0x230] sm:$0xff]
        %v687 = vld [vmem:[%s383 + $0x238] sm:$0xff]
        %v688 = vld [vmem:[%s383 + $0x240] sm:$0xff]
        %v689 = vld [vmem:[%s383 + $0x248] sm:$0xff]
        %v690 = vld [vmem:[%s383 + $0x250] sm:$0xff]
        %v691 = vld [vmem:[%s383 + $0x258] sm:$0xff]
        %v692 = vld [vmem:[%s383 + $0x260] sm:$0xff]
        %v693 = vld [vmem:[%s383 + $0x268] sm:$0xff]
        %694 = vmatpush.msra.mxu0 %v425
        %695 = vmatpush.msra.mxu0 %v424
        %696 = vmatpush.msra.mxu0 %v423
        %697 = vmatpush.msra.mxu0 %v422
        %698 = vmatpush.msra.mxu0 %v421
        %699 = vmatpush.msra.mxu0 %v420
        %700 = vmatpush.msra.mxu0 %v419
        %701 = vmatpush.msra.mxu0 %v418
        %702 = vmatpush.msra.mxu0 %v417
        %703 = vmatpush.msra.mxu0 %v416
        %704 = vmatpush.msra.mxu0 %v415
        %705 = vmatpush.msra.mxu0 %v414
        %706 = vmatpush.msra.mxu0 %v413
        %707 = vmatpush.msra.mxu0 %v412
        %708 = vmatpush.msra.mxu0 %v411
        %709 = vmatpush.msra.mxu0 %v410
        %710 = vmatmul.f32.gmra.mxu0 %v668
        %v711 = vpop.f32.mrf.mxu0
        %v712 = vadd.f32 0.0, %v711
        %713 = vmatmul.f32.gmra.mxu0 %v669
        %v714 = vpop.f32.mrf.mxu0
        %v715 = vadd.f32 0.0, %v714
        %716 = vmatmul.f32.gmra.mxu0 %v670
        %v717 = vpop.f32.mrf.mxu0
        %v718 = vadd.f32 0.0, %v717
        %719 = vmatmul.f32.gmra.mxu0 %v671
        %v720 = vpop.f32.mrf.mxu0
        %v721 = vadd.f32 0.0, %v720
        %722 = vmatmul.f32.gmra.mxu0 %v672
        %v723 = vpop.f32.mrf.mxu0
        %v724 = vadd.f32 0.0, %v723
        %725 = vmatmul.f32.gmra.mxu0 %v673
        %v726 = vpop.f32.mrf.mxu0
        %v727 = vadd.f32 0.0, %v726
        %728 = vmatmul.f32.gmra.mxu0 %v674
        %v729 = vpop.f32.mrf.mxu0
        %v730 = vadd.f32 0.0, %v729
        %731 = vmatmul.f32.gmra.mxu0 %v675
        %v732 = vpop.f32.mrf.mxu0
        %v733 = vadd.f32 0.0, %v732
        %734 = vmatmul.f32.gmra.mxu0 %v676
        %v735 = vpop.f32.mrf.mxu0
        %v736 = vadd.f32 0.0, %v735
        %737 = vmatmul.f32.gmra.mxu0 %v677
        %v738 = vpop.f32.mrf.mxu0
        %v739 = vadd.f32 0.0, %v738
        %740 = vmatmul.f32.gmra.mxu0 %v678
        %v741 = vpop.f32.mrf.mxu0
        %v742 = vadd.f32 0.0, %v741
        %743 = vmatmul.f32.gmra.mxu0 %v679
        %v744 = vpop.f32.mrf.mxu0
        %v745 = vadd.f32 0.0, %v744
        %746 = vmatmul.f32.gmra.mxu0 %v680
        %v747 = vpop.f32.mrf.mxu0
        %v748 = vadd.f32 0.0, %v747
        %749 = vmatmul.f32.gmra.mxu0 %v681
        %v750 = vpop.f32.mrf.mxu0
        %v751 = vadd.f32 0.0, %v750
        %752 = vmatmul.f32.gmra.mxu0 %v682
        %v753 = vpop.f32.mrf.mxu0
        %v754 = vadd.f32 0.0, %v753
        %755 = vmatmul.f32.gmra.mxu0 %v683
        %v756 = vpop.f32.mrf.mxu0
        %v757 = vadd.f32 0.0, %v756
        %758 = vmatmul.f32.gmra.mxu0 %v684
        %v759 = vpop.f32.mrf.mxu0
        %v760 = vadd.f32 0.0, %v759
        %761 = vmatmul.f32.gmra.mxu0 %v685
        %v762 = vpop.f32.mrf.mxu0
        %v763 = vadd.f32 0.0, %v762
        %764 = vmatmul.f32.gmra.mxu0 %v686
        %v765 = vpop.f32.mrf.mxu0
        %v766 = vadd.f32 0.0, %v765
        %767 = vmatmul.f32.gmra.mxu0 %v687
        %v768 = vpop.f32.mrf.mxu0
        %v769 = vadd.f32 0.0, %v768
        %770 = vmatmul.f32.gmra.mxu0 %v688
        %v771 = vpop.f32.mrf.mxu0
        %v772 = vadd.f32 0.0, %v771
        %773 = vmatmul.f32.gmra.mxu0 %v689
        %v774 = vpop.f32.mrf.mxu0
        %v775 = vadd.f32 0.0, %v774
        %776 = vmatmul.f32.gmra.mxu0 %v690
        %v777 = vpop.f32.mrf.mxu0
        %v778 = vadd.f32 0.0, %v777
        %779 = vmatmul.f32.gmra.mxu0 %v691
        %v780 = vpop.f32.mrf.mxu0
        %v781 = vadd.f32 0.0, %v780
        %782 = vmatmul.f32.gmra.mxu0 %v692
        %v783 = vpop.f32.mrf.mxu0
        %v784 = vadd.f32 0.0, %v783
        %785 = vmatmul.f32.gmra.mxu0 %v693
        %v786 = vpop.f32.mrf.mxu0
        %v787 = vadd.f32 0.0, %v786
        %788 = vdwg.mxu0
        %v789 = vmax.f32 %v642, %v712
        %v790 = vmax.f32 %v643, %v715
        %v791 = vmax.f32 %v644, %v718
        %v792 = vmax.f32 %v645, %v721
        %v793 = vmax.f32 %v646, %v724
        %v794 = vmax.f32 %v647, %v727
        %v795 = vmax.f32 %v648, %v730
        %v796 = vmax.f32 %v649, %v733
        %v797 = vmax.f32 %v650, %v736
        %v798 = vmax.f32 %v651, %v739
        %v799 = vmax.f32 %v652, %v742
        %v800 = vmax.f32 %v653, %v745
        %v801 = vmax.f32 %v654, %v748
        %v802 = vmax.f32 %v655, %v751
        %v803 = vmax.f32 %v656, %v754
        %v804 = vmax.f32 %v657, %v757
        %v805 = vmax.f32 %v658, %v760
        %v806 = vmax.f32 %v659, %v763
        %v807 = vmax.f32 %v660, %v766
        %v808 = vmax.f32 %v661, %v769
        %v809 = vmax.f32 %v662, %v772
        %v810 = vmax.f32 %v663, %v775
        %v811 = vmax.f32 %v664, %v778
        %v812 = vmax.f32 %v665, %v781
        %v813 = vmax.f32 %v666, %v784
        %v814 = vmax.f32 %v667, %v787
        %v815 = vld [vmem:[%s383 + $0x270] sm:$0xff]
        %v816 = vld [vmem:[%s383 + $0x278] sm:$0xff]
        %v817 = vld [vmem:[%s383 + $0x280] sm:$0xff]
        %v818 = vld [vmem:[%s383 + $0x288] sm:$0xff]
        %v819 = vld [vmem:[%s383 + $0x290] sm:$0xff]
        %v820 = vld [vmem:[%s383 + $0x298] sm:$0xff]
        %v821 = vld [vmem:[%s383 + $0x2a0] sm:$0xff]
        %v822 = vld [vmem:[%s383 + $0x2a8] sm:$0xff]
        %v823 = vld [vmem:[%s383 + $0x2b0] sm:$0xff]
        %v824 = vld [vmem:[%s383 + $0x2b8] sm:$0xff]
        %v825 = vld [vmem:[%s383 + $0x2c0] sm:$0xff]
        %v826 = vld [vmem:[%s383 + $0x2c8] sm:$0xff]
        %v827 = vld [vmem:[%s383 + $0x2d0] sm:$0xff]
        %v828 = vld [vmem:[%s383 + $0x2d8] sm:$0xff]
        %v829 = vld [vmem:[%s383 + $0x2e0] sm:$0xff]
        %v830 = vld [vmem:[%s383 + $0x2e8] sm:$0xff]
        %v831 = vld [vmem:[%s383 + $0x2f0] sm:$0xff]
        %v832 = vld [vmem:[%s383 + $0x2f8] sm:$0xff]
        %v833 = vld [vmem:[%s383 + $0x300] sm:$0xff]
        %v834 = vld [vmem:[%s383 + $0x308] sm:$0xff]
        %v835 = vld [vmem:[%s383 + $0x310] sm:$0xff]
        %v836 = vld [vmem:[%s383 + $0x318] sm:$0xff]
        %v837 = vld [vmem:[%s383 + $0x320] sm:$0xff]
        %v838 = vld [vmem:[%s383 + $0x328] sm:$0xff]
        %v839 = vld [vmem:[%s383 + $0x330] sm:$0xff]
        %v840 = vld [vmem:[%s383 + $0x338] sm:$0xff]
        %841 = vmatpush.msra.mxu0 %v425
        %842 = vmatpush.msra.mxu0 %v424
        %843 = vmatpush.msra.mxu0 %v423
        %844 = vmatpush.msra.mxu0 %v422
        %845 = vmatpush.msra.mxu0 %v421
        %846 = vmatpush.msra.mxu0 %v420
        %847 = vmatpush.msra.mxu0 %v419
        %848 = vmatpush.msra.mxu0 %v418
        %849 = vmatpush.msra.mxu0 %v417
        %850 = vmatpush.msra.mxu0 %v416
        %851 = vmatpush.msra.mxu0 %v415
        %852 = vmatpush.msra.mxu0 %v414
        %853 = vmatpush.msra.mxu0 %v413
        %854 = vmatpush.msra.mxu0 %v412
        %855 = vmatpush.msra.mxu0 %v411
        %856 = vmatpush.msra.mxu0 %v410
        %857 = vmatmul.f32.gmra.mxu0 %v815
        %v858 = vpop.f32.mrf.mxu0
        %v859 = vadd.f32 0.0, %v858
        %860 = vmatmul.f32.gmra.mxu0 %v816
        %v861 = vpop.f32.mrf.mxu0
        %v862 = vadd.f32 0.0, %v861
        %863 = vmatmul.f32.gmra.mxu0 %v817
        %v864 = vpop.f32.mrf.mxu0
        %v865 = vadd.f32 0.0, %v864
        %866 = vmatmul.f32.gmra.mxu0 %v818
        %v867 = vpop.f32.mrf.mxu0
        %v868 = vadd.f32 0.0, %v867
        %869 = vmatmul.f32.gmra.mxu0 %v819
        %v870 = vpop.f32.mrf.mxu0
        %v871 = vadd.f32 0.0, %v870
        %872 = vmatmul.f32.gmra.mxu0 %v820
        %v873 = vpop.f32.mrf.mxu0
        %v874 = vadd.f32 0.0, %v873
        %875 = vmatmul.f32.gmra.mxu0 %v821
        %v876 = vpop.f32.mrf.mxu0
        %v877 = vadd.f32 0.0, %v876
        %878 = vmatmul.f32.gmra.mxu0 %v822
        %v879 = vpop.f32.mrf.mxu0
        %v880 = vadd.f32 0.0, %v879
        %881 = vmatmul.f32.gmra.mxu0 %v823
        %v882 = vpop.f32.mrf.mxu0
        %v883 = vadd.f32 0.0, %v882
        %884 = vmatmul.f32.gmra.mxu0 %v824
        %v885 = vpop.f32.mrf.mxu0
        %v886 = vadd.f32 0.0, %v885
        %887 = vmatmul.f32.gmra.mxu0 %v825
        %v888 = vpop.f32.mrf.mxu0
        %v889 = vadd.f32 0.0, %v888
        %890 = vmatmul.f32.gmra.mxu0 %v826
        %v891 = vpop.f32.mrf.mxu0
        %v892 = vadd.f32 0.0, %v891
        %893 = vmatmul.f32.gmra.mxu0 %v827
        %v894 = vpop.f32.mrf.mxu0
        %v895 = vadd.f32 0.0, %v894
        %896 = vmatmul.f32.gmra.mxu0 %v828
        %v897 = vpop.f32.mrf.mxu0
        %v898 = vadd.f32 0.0, %v897
        %899 = vmatmul.f32.gmra.mxu0 %v829
        %v900 = vpop.f32.mrf.mxu0
        %v901 = vadd.f32 0.0, %v900
        %902 = vmatmul.f32.gmra.mxu0 %v830
        %v903 = vpop.f32.mrf.mxu0
        %v904 = vadd.f32 0.0, %v903
        %905 = vmatmul.f32.gmra.mxu0 %v831
        %v906 = vpop.f32.mrf.mxu0
        %v907 = vadd.f32 0.0, %v906
        %908 = vmatmul.f32.gmra.mxu0 %v832
        %v909 = vpop.f32.mrf.mxu0
        %v910 = vadd.f32 0.0, %v909
        %911 = vmatmul.f32.gmra.mxu0 %v833
        %v912 = vpop.f32.mrf.mxu0
        %v913 = vadd.f32 0.0, %v912
        %914 = vmatmul.f32.gmra.mxu0 %v834
        %v915 = vpop.f32.mrf.mxu0
        %v916 = vadd.f32 0.0, %v915
        %917 = vmatmul.f32.gmra.mxu0 %v835
        %v918 = vpop.f32.mrf.mxu0
        %v919 = vadd.f32 0.0, %v918
        %920 = vmatmul.f32.gmra.mxu0 %v836
        %v921 = vpop.f32.mrf.mxu0
        %v922 = vadd.f32 0.0, %v921
        %923 = vmatmul.f32.gmra.mxu0 %v837
        %v924 = vpop.f32.mrf.mxu0
        %v925 = vadd.f32 0.0, %v924
        %926 = vmatmul.f32.gmra.mxu0 %v838
        %v927 = vpop.f32.mrf.mxu0
        %v928 = vadd.f32 0.0, %v927
        %929 = vmatmul.f32.gmra.mxu0 %v839
        %v930 = vpop.f32.mrf.mxu0
        %v931 = vadd.f32 0.0, %v930
        %932 = vmatmul.f32.gmra.mxu0 %v840
        %v933 = vpop.f32.mrf.mxu0
        %v934 = vadd.f32 0.0, %v933
        %935 = vdwg.mxu0
        %v936 = vmax.f32 %v789, %v859
        %v937 = vmax.f32 %v790, %v862
        %v938 = vmax.f32 %v791, %v865
        %v939 = vmax.f32 %v792, %v868
        %v940 = vmax.f32 %v793, %v871
        %v941 = vmax.f32 %v794, %v874
        %v942 = vmax.f32 %v795, %v877
        %v943 = vmax.f32 %v796, %v880
        %v944 = vmax.f32 %v797, %v883
        %v945 = vmax.f32 %v798, %v886
        %v946 = vmax.f32 %v799, %v889
        %v947 = vmax.f32 %v800, %v892
        %v948 = vmax.f32 %v801, %v895
        %v949 = vmax.f32 %v802, %v898
        %v950 = vmax.f32 %v803, %v901
        %v951 = vmax.f32 %v804, %v904
        %v952 = vmax.f32 %v805, %v907
        %v953 = vmax.f32 %v806, %v910
        %v954 = vmax.f32 %v807, %v913
        %v955 = vmax.f32 %v808, %v916
        %v956 = vmax.f32 %v809, %v919
        %v957 = vmax.f32 %v810, %v922
        %v958 = vmax.f32 %v811, %v925
        %v959 = vmax.f32 %v812, %v928
        %v960 = vmax.f32 %v813, %v931
        %v961 = vmax.f32 %v814, %v934
        %v962 = vld [vmem:[%s2] sm:$0x1]
        %v964 = vperm.slane %v962, 0
        %v966 = vadd.f32 %v936, %v964
        %v967 = vadd.f32 %v937, %v964
        %v968 = vadd.f32 %v938, %v964
        %v969 = vadd.f32 %v939, %v964
        %v970 = vadd.f32 %v940, %v964
        %v971 = vadd.f32 %v941, %v964
        %v972 = vadd.f32 %v942, %v964
        %v973 = vadd.f32 %v943, %v964
        %v974 = vadd.f32 %v944, %v964
        %v975 = vadd.f32 %v945, %v964
        %v976 = vadd.f32 %v946, %v964
        %v977 = vadd.f32 %v947, %v964
        %v978 = vadd.f32 %v948, %v964
        %v979 = vadd.f32 %v949, %v964
        %v980 = vadd.f32 %v950, %v964
        %v981 = vadd.f32 %v951, %v964
        %v982 = vadd.f32 %v952, %v964
        %v983 = vadd.f32 %v953, %v964
        %v984 = vadd.f32 %v954, %v964
        %v985 = vadd.f32 %v955, %v964
        %v986 = vadd.f32 %v956, %v964
        %v987 = vadd.f32 %v957, %v964
        %v988 = vadd.f32 %v958, %v964
        %v989 = vadd.f32 %v959, %v964
        %v990 = vadd.f32 %v960, %v964
        %v991 = vadd.f32 %v961, %v964
        %v992 = vmax.f32 %v966, 0.0
        %v993 = vmax.f32 %v967, 0.0
        %v994 = vmax.f32 %v968, 0.0
        %v995 = vmax.f32 %v969, 0.0
        %v996 = vmax.f32 %v970, 0.0
        %v997 = vmax.f32 %v971, 0.0
        %v998 = vmax.f32 %v972, 0.0
        %v999 = vmax.f32 %v973, 0.0
        %v1000 = vmax.f32 %v974, 0.0
        %v1001 = vmax.f32 %v975, 0.0
        %v1002 = vmax.f32 %v976, 0.0
        %v1003 = vmax.f32 %v977, 0.0
        %v1004 = vmax.f32 %v978, 0.0
        %v1005 = vmax.f32 %v979, 0.0
        %v1006 = vmax.f32 %v980, 0.0
        %v1007 = vmax.f32 %v981, 0.0
        %v1008 = vmax.f32 %v982, 0.0
        %v1009 = vmax.f32 %v983, 0.0
        %v1010 = vmax.f32 %v984, 0.0
        %v1011 = vmax.f32 %v985, 0.0
        %v1012 = vmax.f32 %v986, 0.0
        %v1013 = vmax.f32 %v987, 0.0
        %v1014 = vmax.f32 %v988, 0.0
        %v1015 = vmax.f32 %v989, 0.0
        %v1016 = vmax.f32 %v990, 0.0
        %v1017 = vmax.f32 %v991, 0.0
        %1018 = vst [vmem:[#allocation2] sm:$0xff] %v992
        %1019 = vst [vmem:[#allocation2 + $0x8] sm:$0xff] %v993
        %1020 = vst [vmem:[#allocation2 + $0x10] sm:$0xff] %v994
        %1021 = vst [vmem:[#allocation2 + $0x18] sm:$0xff] %v995
        %1022 = vst [vmem:[#allocation2 + $0x20] sm:$0xff] %v996
        %1023 = vst [vmem:[#allocation2 + $0x28] sm:$0xff] %v997
        %1024 = vst [vmem:[#allocation2 + $0x30] sm:$0xff] %v998
        %1025 = vst [vmem:[#allocation2 + $0x38] sm:$0xff] %v999
        %1026 = vst [vmem:[#allocation2 + $0x40] sm:$0xff] %v1000
        %1027 = vst [vmem:[#allocation2 + $0x48] sm:$0xff] %v1001
        %1028 = vst [vmem:[#allocation2 + $0x50] sm:$0xff] %v1002
        %1029 = vst [vmem:[#allocation2 + $0x58] sm:$0xff] %v1003
        %1030 = vst [vmem:[#allocation2 + $0x60] sm:$0xff] %v1004
        %1031 = vst [vmem:[#allocation2 + $0x68] sm:$0xff] %v1005
        %1032 = vst [vmem:[#allocation2 + $0x70] sm:$0xff] %v1006
        %1033 = vst [vmem:[#allocation2 + $0x78] sm:$0xff] %v1007
        %1034 = vst [vmem:[#allocation2 + $0x80] sm:$0xff] %v1008
        %1035 = vst [vmem:[#allocation2 + $0x88] sm:$0xff] %v1009
        %1036 = vst [vmem:[#allocation2 + $0x90] sm:$0xff] %v1010
        %1037 = vst [vmem:[#allocation2 + $0x98] sm:$0xff] %v1011
        %1038 = vst [vmem:[#allocation2 + $0xa0] sm:$0xff] %v1012
        %1039 = vst [vmem:[#allocation2 + $0xa8] sm:$0xff] %v1013
        %1040 = vst [vmem:[#allocation2 + $0xb0] sm:$0xff] %v1014
        %1041 = vst [vmem:[#allocation2 + $0xb8] sm:$0xff] %v1015
        %1042 = vst [vmem:[#allocation2 + $0xc0] sm:$0xff] %v1016
        %1043 = vst [vmem:[#allocation2 + $0xc8] sm:$0xff] %v1017
        %v1044 = vld [vmem:[#allocation2] sm:$0xff]
        %v1045 = vld [vmem:[#allocation2 + $0x8] sm:$0xff]
        %v1046 = vld [vmem:[#allocation2 + $0x10] sm:$0xff]
        %v1047 = vld [vmem:[#allocation2 + $0x18] sm:$0xff]
        %v1048 = vld [vmem:[#allocation2 + $0x20] sm:$0xff]
        %v1049 = vld [vmem:[#allocation2 + $0x28] sm:$0xff]
        %v1050 = vld [vmem:[#allocation2 + $0x30] sm:$0xff]
        %v1051 = vld [vmem:[#allocation2 + $0x38] sm:$0xff]
        %v1052 = vld [vmem:[#allocation2 + $0x40] sm:$0xff]
        %v1053 = vld [vmem:[#allocation2 + $0x48] sm:$0xff]
        %v1054 = vld [vmem:[#allocation2 + $0x50] sm:$0xff]
        %v1055 = vld [vmem:[#allocation2 + $0x58] sm:$0xff]
        %v1056 = vld [vmem:[#allocation2 + $0x60] sm:$0xff]
        %v1057 = vld [vmem:[#allocation2 + $0x68] sm:$0xff]
        %v1058 = vld [vmem:[#allocation2 + $0x70] sm:$0xff]
        %v1059 = vld [vmem:[#allocation2 + $0x78] sm:$0xff]
        %v1060 = vld [vmem:[#allocation2 + $0x80] sm:$0xff]
        %v1061 = vld [vmem:[#allocation2 + $0x88] sm:$0xf]
        %v1062 = vld [vmem:[%s3] sm:$0xff]
        %v1063 = vld [vmem:[%s3 + $0x8] sm:$0xff]
        %v1064 = vld [vmem:[%s3 + $0x10] sm:$0xff]
        %v1065 = vld [vmem:[%s3 + $0x18] sm:$0xff]
        %v1066 = vld [vmem:[%s3 + $0x20] sm:$0xff]
        %v1067 = vld [vmem:[%s3 + $0x28] sm:$0xff]
        %v1068 = vld [vmem:[%s3 + $0x30] sm:$0xff]
        %v1069 = vld [vmem:[%s3 + $0x38] sm:$0xff]
        %v1070 = vld [vmem:[%s3 + $0x40] sm:$0xff]
        %v1071 = vld [vmem:[%s3 + $0x48] sm:$0xff]
        %v1072 = vld [vmem:[%s3 + $0x50] sm:$0xff]
        %v1073 = vld [vmem:[%s3 + $0x58] sm:$0xff]
        %v1074 = vld [vmem:[%s3 + $0x60] sm:$0xff]
        %v1075 = vld [vmem:[%s3 + $0x68] sm:$0xff]
        %v1076 = vld [vmem:[%s3 + $0x70] sm:$0xff]
        %v1077 = vld [vmem:[%s3 + $0x78] sm:$0xff]
        %v1078 = vld [vmem:[#allocation2 + $0x1] sm:$0xff]
        %v1079 = vld [vmem:[#allocation2 + $0x9] sm:$0xff]
        %v1080 = vld [vmem:[#allocation2 + $0x11] sm:$0xff]
        %v1081 = vld [vmem:[#allocation2 + $0x19] sm:$0xff]
        %v1082 = vld [vmem:[#allocation2 + $0x21] sm:$0xff]
        %v1083 = vld [vmem:[#allocation2 + $0x29] sm:$0xff]
        %v1084 = vld [vmem:[#allocation2 + $0x31] sm:$0xff]
        %v1085 = vld [vmem:[#allocation2 + $0x39] sm:$0xff]
        %v1086 = vld [vmem:[#allocation2 + $0x41] sm:$0xff]
        %v1087 = vld [vmem:[#allocation2 + $0x49] sm:$0xff]
        %v1088 = vld [vmem:[#allocation2 + $0x51] sm:$0xff]
        %v1089 = vld [vmem:[#allocation2 + $0x59] sm:$0xff]
        %v1090 = vld [vmem:[#allocation2 + $0x61] sm:$0xff]
        %v1091 = vld [vmem:[#allocation2 + $0x69] sm:$0xff]
        %v1092 = vld [vmem:[#allocation2 + $0x71] sm:$0xff]
        %v1093 = vld [vmem:[#allocation2 + $0x79] sm:$0xff]
        %v1094 = vld [vmem:[#allocation2 + $0x81] sm:$0xff]
        %v1095 = vld [vmem:[#allocation2 + $0x89] sm:$0xf]
        %s1096 = scalar_lea.vmem %s3, 128
        %v1097 = vld [vmem:[%s1096] sm:$0xff]
        %v1098 = vld [vmem:[%s1096 + $0x8] sm:$0xff]
        %v1099 = vld [vmem:[%s1096 + $0x10] sm:$0xff]
        %v1100 = vld [vmem:[%s1096 + $0x18] sm:$0xff]
        %v1101 = vld [vmem:[%s1096 + $0x20] sm:$0xff]
        %v1102 = vld [vmem:[%s1096 + $0x28] sm:$0xff]
        %v1103 = vld [vmem:[%s1096 + $0x30] sm:$0xff]
        %v1104 = vld [vmem:[%s1096 + $0x38] sm:$0xff]
        %v1105 = vld [vmem:[%s1096 + $0x40] sm:$0xff]
        %v1106 = vld [vmem:[%s1096 + $0x48] sm:$0xff]
        %v1107 = vld [vmem:[%s1096 + $0x50] sm:$0xff]
        %v1108 = vld [vmem:[%s1096 + $0x58] sm:$0xff]
        %v1109 = vld [vmem:[%s1096 + $0x60] sm:$0xff]
        %v1110 = vld [vmem:[%s1096 + $0x68] sm:$0xff]
        %v1111 = vld [vmem:[%s1096 + $0x70] sm:$0xff]
        %v1112 = vld [vmem:[%s1096 + $0x78] sm:$0xff]
        %1113 = vmatpush.msra.mxu0 %v1112
        %1114 = vmatpush.msra.mxu0 %v1111
        %1115 = vmatpush.msra.mxu0 %v1110
        %1116 = vmatpush.msra.mxu0 %v1109
        %1117 = vmatpush.msra.mxu0 %v1108
        %1118 = vmatpush.msra.mxu0 %v1107
        %1119 = vmatpush.msra.mxu0 %v1106
        %1120 = vmatpush.msra.mxu0 %v1105
        %1121 = vmatpush.msra.mxu0 %v1104
        %1122 = vmatpush.msra.mxu0 %v1103
        %1123 = vmatpush.msra.mxu0 %v1102
        %1124 = vmatpush.msra.mxu0 %v1101
        %1125 = vmatpush.msra.mxu0 %v1100
        %1126 = vmatpush.msra.mxu0 %v1099
        %1127 = vmatpush.msra.mxu0 %v1098
        %1128 = vmatpush.msra.mxu0 %v1097
        %1129 = vmatmul.f32.gmra.mxu0 %v1078
        %v1130 = vpop.f32.mrf.mxu0
        %v1131 = vadd.f32 0.0, %v1130
        %1132 = vmatmul.f32.gmra.mxu0 %v1079
        %v1133 = vpop.f32.mrf.mxu0
        %v1134 = vadd.f32 0.0, %v1133
        %1135 = vmatmul.f32.gmra.mxu0 %v1080
        %v1136 = vpop.f32.mrf.mxu0
        %v1137 = vadd.f32 0.0, %v1136
        %1138 = vmatmul.f32.gmra.mxu0 %v1081
        %v1139 = vpop.f32.mrf.mxu0
        %v1140 = vadd.f32 0.0, %v1139
        %1141 = vmatmul.f32.gmra.mxu0 %v1082
        %v1142 = vpop.f32.mrf.mxu0
        %v1143 = vadd.f32 0.0, %v1142
        %1144 = vmatmul.f32.gmra.mxu0 %v1083
        %v1145 = vpop.f32.mrf.mxu0
        %v1146 = vadd.f32 0.0, %v1145
        %1147 = vmatmul.f32.gmra.mxu0 %v1084
        %v1148 = vpop.f32.mrf.mxu0
        %v1149 = vadd.f32 0.0, %v1148
        %1150 = vmatmul.f32.gmra.mxu0 %v1085
        %v1151 = vpop.f32.mrf.mxu0
        %v1152 = vadd.f32 0.0, %v1151
        %1153 = vmatmul.f32.gmra.mxu0 %v1086
        %v1154 = vpop.f32.mrf.mxu0
        %v1155 = vadd.f32 0.0, %v1154
        %1156 = vmatmul.f32.gmra.mxu0 %v1087
        %v1157 = vpop.f32.mrf.mxu0
        %v1158 = vadd.f32 0.0, %v1157
        %1159 = vmatmul.f32.gmra.mxu0 %v1088
        %v1160 = vpop.f32.mrf.mxu0
        %v1161 = vadd.f32 0.0, %v1160
        %1162 = vmatmul.f32.gmra.mxu0 %v1089
        %v1163 = vpop.f32.mrf.mxu0
        %v1164 = vadd.f32 0.0, %v1163
        %1165 = vmatmul.f32.gmra.mxu0 %v1090
        %v1166 = vpop.f32.mrf.mxu0
        %v1167 = vadd.f32 0.0, %v1166
        %1168 = vmatmul.f32.gmra.mxu0 %v1091
        %v1169 = vpop.f32.mrf.mxu0
        %v1170 = vadd.f32 0.0, %v1169
        %1171 = vmatmul.f32.gmra.mxu0 %v1092
        %v1172 = vpop.f32.mrf.mxu0
        %v1173 = vadd.f32 0.0, %v1172
        %1174 = vmatmul.f32.gmra.mxu0 %v1093
        %v1175 = vpop.f32.mrf.mxu0
        %v1176 = vadd.f32 0.0, %v1175
        %1177 = vmatmul.f32.gmra.mxu0 %v1094
        %v1178 = vpop.f32.mrf.mxu0
        %v1179 = vadd.f32 0.0, %v1178
        %1180 = vmatmul.f32.gmra.mxu0 %v1095
        %v1181 = vpop.f32.mrf.mxu0
        %v1182 = vadd.f32 0.0, %v1181
        %1183 = vdwg.mxu0
        %1184 = vmatpush.msra.mxu0 %v1077
        %1185 = vmatpush.msra.mxu0 %v1076
        %1186 = vmatpush.msra.mxu0 %v1075
        %1187 = vmatpush.msra.mxu0 %v1074
        %1188 = vmatpush.msra.mxu0 %v1073
        %1189 = vmatpush.msra.mxu0 %v1072
        %1190 = vmatpush.msra.mxu0 %v1071
        %1191 = vmatpush.msra.mxu0 %v1070
        %1192 = vmatpush.msra.mxu0 %v1069
        %1193 = vmatpush.msra.mxu0 %v1068
        %1194 = vmatpush.msra.mxu0 %v1067
        %1195 = vmatpush.msra.mxu0 %v1066
        %1196 = vmatpush.msra.mxu0 %v1065
        %1197 = vmatpush.msra.mxu0 %v1064
        %1198 = vmatpush.msra.mxu0 %v1063
        %1199 = vmatpush.msra.mxu0 %v1062
        %1200 = vmatmul.f32.gmra.mxu0 %v1044
        %v1201 = vpop.f32.mrf.mxu0
        %v1202 = vadd.f32 %v1131, %v1201
        %1203 = vmatmul.f32.gmra.mxu0 %v1045
        %v1204 = vpop.f32.mrf.mxu0
        %v1205 = vadd.f32 %v1134, %v1204
        %1206 = vmatmul.f32.gmra.mxu0 %v1046
        %v1207 = vpop.f32.mrf.mxu0
        %v1208 = vadd.f32 %v1137, %v1207
        %1209 = vmatmul.f32.gmra.mxu0 %v1047
        %v1210 = vpop.f32.mrf.mxu0
        %v1211 = vadd.f32 %v1140, %v1210
        %1212 = vmatmul.f32.gmra.mxu0 %v1048
        %v1213 = vpop.f32.mrf.mxu0
        %v1214 = vadd.f32 %v1143, %v1213
        %1215 = vmatmul.f32.gmra.mxu0 %v1049
        %v1216 = vpop.f32.mrf.mxu0
        %v1217 = vadd.f32 %v1146, %v1216
        %1218 = vmatmul.f32.gmra.mxu0 %v1050
        %v1219 = vpop.f32.mrf.mxu0
        %v1220 = vadd.f32 %v1149, %v1219
        %1221 = vmatmul.f32.gmra.mxu0 %v1051
        %v1222 = vpop.f32.mrf.mxu0
        %v1223 = vadd.f32 %v1152, %v1222
        %1224 = vmatmul.f32.gmra.mxu0 %v1052
        %v1225 = vpop.f32.mrf.mxu0
        %v1226 = vadd.f32 %v1155, %v1225
        %1227 = vmatmul.f32.gmra.mxu0 %v1053
        %v1228 = vpop.f32.mrf.mxu0
        %v1229 = vadd.f32 %v1158, %v1228
        %1230 = vmatmul.f32.gmra.mxu0 %v1054
        %v1231 = vpop.f32.mrf.mxu0
        %v1232 = vadd.f32 %v1161, %v1231
        %1233 = vmatmul.f32.gmra.mxu0 %v1055
        %v1234 = vpop.f32.mrf.mxu0
        %v1235 = vadd.f32 %v1164, %v1234
        %1236 = vmatmul.f32.gmra.mxu0 %v1056
        %v1237 = vpop.f32.mrf.mxu0
        %v1238 = vadd.f32 %v1167, %v1237
        %1239 = vmatmul.f32.gmra.mxu0 %v1057
        %v1240 = vpop.f32.mrf.mxu0
        %v1241 = vadd.f32 %v1170, %v1240
        %1242 = vmatmul.f32.gmra.mxu0 %v1058
        %v1243 = vpop.f32.mrf.mxu0
        %v1244 = vadd.f32 %v1173, %v1243
        %1245 = vmatmul.f32.gmra.mxu0 %v1059
        %v1246 = vpop.f32.mrf.mxu0
        %v1247 = vadd.f32 %v1176, %v1246
        %1248 = vmatmul.f32.gmra.mxu0 %v1060
        %v1249 = vpop.f32.mrf.mxu0
        %v1250 = vadd.f32 %v1179, %v1249
        %1251 = vmatmul.f32.gmra.mxu0 %v1061
        %v1252 = vpop.f32.mrf.mxu0
        %v1253 = vadd.f32 %v1182, %v1252
        %1254 = vdwg.mxu0
        %v1255 = vld [vmem:[#allocation2 + $0x2] sm:$0xff]
        %v1256 = vld [vmem:[#allocation2 + $0xa] sm:$0xff]
        %v1257 = vld [vmem:[#allocation2 + $0x12] sm:$0xff]
        %v1258 = vld [vmem:[#allocation2 + $0x1a] sm:$0xff]
        %v1259 = vld [vmem:[#allocation2 + $0x22] sm:$0xff]
        %v1260 = vld [vmem:[#allocation2 + $0x2a] sm:$0xff]
        %v1261 = vld [vmem:[#allocation2 + $0x32] sm:$0xff]
        %v1262 = vld [vmem:[#allocation2 + $0x3a] sm:$0xff]
        %v1263 = vld [vmem:[#allocation2 + $0x42] sm:$0xff]
        %v1264 = vld [vmem:[#allocation2 + $0x4a] sm:$0xff]
        %v1265 = vld [vmem:[#allocation2 + $0x52] sm:$0xff]
        %v1266 = vld [vmem:[#allocation2 + $0x5a] sm:$0xff]
        %v1267 = vld [vmem:[#allocation2 + $0x62] sm:$0xff]
        %v1268 = vld [vmem:[#allocation2 + $0x6a] sm:$0xff]
        %v1269 = vld [vmem:[#allocation2 + $0x72] sm:$0xff]
        %v1270 = vld [vmem:[#allocation2 + $0x7a] sm:$0xff]
        %v1271 = vld [vmem:[#allocation2 + $0x82] sm:$0xff]
        %v1272 = vld [vmem:[#allocation2 + $0x8a] sm:$0xf]
        %s1273 = scalar_lea.vmem %s3, 256
        %v1274 = vld [vmem:[%s1273] sm:$0xff]
        %v1275 = vld [vmem:[%s1273 + $0x8] sm:$0xff]
        %v1276 = vld [vmem:[%s1273 + $0x10] sm:$0xff]
        %v1277 = vld [vmem:[%s1273 + $0x18] sm:$0xff]
        %v1278 = vld [vmem:[%s1273 + $0x20] sm:$0xff]
        %v1279 = vld [vmem:[%s1273 + $0x28] sm:$0xff]
        %v1280 = vld [vmem:[%s1273 + $0x30] sm:$0xff]
        %v1281 = vld [vmem:[%s1273 + $0x38] sm:$0xff]
        %v1282 = vld [vmem:[%s1273 + $0x40] sm:$0xff]
        %v1283 = vld [vmem:[%s1273 + $0x48] sm:$0xff]
        %v1284 = vld [vmem:[%s1273 + $0x50] sm:$0xff]
        %v1285 = vld [vmem:[%s1273 + $0x58] sm:$0xff]
        %v1286 = vld [vmem:[%s1273 + $0x60] sm:$0xff]
        %v1287 = vld [vmem:[%s1273 + $0x68] sm:$0xff]
        %v1288 = vld [vmem:[%s1273 + $0x70] sm:$0xff]
        %v1289 = vld [vmem:[%s1273 + $0x78] sm:$0xff]
        %1290 = vmatpush.msra.mxu0 %v1289
        %1291 = vmatpush.msra.mxu0 %v1288
        %1292 = vmatpush.msra.mxu0 %v1287
        %1293 = vmatpush.msra.mxu0 %v1286
        %1294 = vmatpush.msra.mxu0 %v1285
        %1295 = vmatpush.msra.mxu0 %v1284
        %1296 = vmatpush.msra.mxu0 %v1283
        %1297 = vmatpush.msra.mxu0 %v1282
        %1298 = vmatpush.msra.mxu0 %v1281
        %1299 = vmatpush.msra.mxu0 %v1280
        %1300 = vmatpush.msra.mxu0 %v1279
        %1301 = vmatpush.msra.mxu0 %v1278
        %1302 = vmatpush.msra.mxu0 %v1277
        %1303 = vmatpush.msra.mxu0 %v1276
        %1304 = vmatpush.msra.mxu0 %v1275
        %1305 = vmatpush.msra.mxu0 %v1274
        %1306 = vmatmul.f32.gmra.mxu0 %v1255
        %v1307 = vpop.f32.mrf.mxu0
        %v1308 = vadd.f32 0.0, %v1307
        %1309 = vmatmul.f32.gmra.mxu0 %v1256
        %v1310 = vpop.f32.mrf.mxu0
        %v1311 = vadd.f32 0.0, %v1310
        %1312 = vmatmul.f32.gmra.mxu0 %v1257
        %v1313 = vpop.f32.mrf.mxu0
        %v1314 = vadd.f32 0.0, %v1313
        %1315 = vmatmul.f32.gmra.mxu0 %v1258
        %v1316 = vpop.f32.mrf.mxu0
        %v1317 = vadd.f32 0.0, %v1316
        %1318 = vmatmul.f32.gmra.mxu0 %v1259
        %v1319 = vpop.f32.mrf.mxu0
        %v1320 = vadd.f32 0.0, %v1319
        %1321 = vmatmul.f32.gmra.mxu0 %v1260
        %v1322 = vpop.f32.mrf.mxu0
        %v1323 = vadd.f32 0.0, %v1322
        %1324 = vmatmul.f32.gmra.mxu0 %v1261
        %v1325 = vpop.f32.mrf.mxu0
        %v1326 = vadd.f32 0.0, %v1325
        %1327 = vmatmul.f32.gmra.mxu0 %v1262
        %v1328 = vpop.f32.mrf.mxu0
        %v1329 = vadd.f32 0.0, %v1328
        %1330 = vmatmul.f32.gmra.mxu0 %v1263
        %v1331 = vpop.f32.mrf.mxu0
        %v1332 = vadd.f32 0.0, %v1331
        %1333 = vmatmul.f32.gmra.mxu0 %v1264
        %v1334 = vpop.f32.mrf.mxu0
        %v1335 = vadd.f32 0.0, %v1334
        %1336 = vmatmul.f32.gmra.mxu0 %v1265
        %v1337 = vpop.f32.mrf.mxu0
        %v1338 = vadd.f32 0.0, %v1337
        %1339 = vmatmul.f32.gmra.mxu0 %v1266
        %v1340 = vpop.f32.mrf.mxu0
        %v1341 = vadd.f32 0.0, %v1340
        %1342 = vmatmul.f32.gmra.mxu0 %v1267
        %v1343 = vpop.f32.mrf.mxu0
        %v1344 = vadd.f32 0.0, %v1343
        %1345 = vmatmul.f32.gmra.mxu0 %v1268
        %v1346 = vpop.f32.mrf.mxu0
        %v1347 = vadd.f32 0.0, %v1346
        %1348 = vmatmul.f32.gmra.mxu0 %v1269
        %v1349 = vpop.f32.mrf.mxu0
        %v1350 = vadd.f32 0.0, %v1349
        %1351 = vmatmul.f32.gmra.mxu0 %v1270
        %v1352 = vpop.f32.mrf.mxu0
        %v1353 = vadd.f32 0.0, %v1352
        %1354 = vmatmul.f32.gmra.mxu0 %v1271
        %v1355 = vpop.f32.mrf.mxu0
        %v1356 = vadd.f32 0.0, %v1355
        %1357 = vmatmul.f32.gmra.mxu0 %v1272
        %v1358 = vpop.f32.mrf.mxu0
        %v1359 = vadd.f32 0.0, %v1358
        %1360 = vdwg.mxu0
        %v1361 = vadd.f32 %v1202, %v1308
        %v1362 = vadd.f32 %v1205, %v1311
        %v1363 = vadd.f32 %v1208, %v1314
        %v1364 = vadd.f32 %v1211, %v1317
        %v1365 = vadd.f32 %v1214, %v1320
        %v1366 = vadd.f32 %v1217, %v1323
        %v1367 = vadd.f32 %v1220, %v1326
        %v1368 = vadd.f32 %v1223, %v1329
        %v1369 = vadd.f32 %v1226, %v1332
        %v1370 = vadd.f32 %v1229, %v1335
        %v1371 = vadd.f32 %v1232, %v1338
        %v1372 = vadd.f32 %v1235, %v1341
        %v1373 = vadd.f32 %v1238, %v1344
        %v1374 = vadd.f32 %v1241, %v1347
        %v1375 = vadd.f32 %v1244, %v1350
        %v1376 = vadd.f32 %v1247, %v1353
        %v1377 = vadd.f32 %v1250, %v1356
        %v1378 = vadd.f32 %v1253, %v1359
        %v1379 = vld [vmem:[#allocation2 + $0x3] sm:$0xff]
        %v1380 = vld [vmem:[#allocation2 + $0xb] sm:$0xff]
        %v1381 = vld [vmem:[#allocation2 + $0x13] sm:$0xff]
        %v1382 = vld [vmem:[#allocation2 + $0x1b] sm:$0xff]
        %v1383 = vld [vmem:[#allocation2 + $0x23] sm:$0xff]
        %v1384 = vld [vmem:[#allocation2 + $0x2b] sm:$0xff]
        %v1385 = vld [vmem:[#allocation2 + $0x33] sm:$0xff]
        %v1386 = vld [vmem:[#allocation2 + $0x3b] sm:$0xff]
        %v1387 = vld [vmem:[#allocation2 + $0x43] sm:$0xff]
        %v1388 = vld [vmem:[#allocation2 + $0x4b] sm:$0xff]
        %v1389 = vld [vmem:[#allocation2 + $0x53] sm:$0xff]
        %v1390 = vld [vmem:[#allocation2 + $0x5b] sm:$0xff]
        %v1391 = vld [vmem:[#allocation2 + $0x63] sm:$0xff]
        %v1392 = vld [vmem:[#allocation2 + $0x6b] sm:$0xff]
        %v1393 = vld [vmem:[#allocation2 + $0x73] sm:$0xff]
        %v1394 = vld [vmem:[#allocation2 + $0x7b] sm:$0xff]
        %v1395 = vld [vmem:[#allocation2 + $0x83] sm:$0xff]
        %v1396 = vld [vmem:[#allocation2 + $0x8b] sm:$0xf]
        %s1397 = scalar_lea.vmem %s3, 384
        %v1398 = vld [vmem:[%s1397] sm:$0xff]
        %v1399 = vld [vmem:[%s1397 + $0x8] sm:$0xff]
        %v1400 = vld [vmem:[%s1397 + $0x10] sm:$0xff]
        %v1401 = vld [vmem:[%s1397 + $0x18] sm:$0xff]
        %v1402 = vld [vmem:[%s1397 + $0x20] sm:$0xff]
        %v1403 = vld [vmem:[%s1397 + $0x28] sm:$0xff]
        %v1404 = vld [vmem:[%s1397 + $0x30] sm:$0xff]
        %v1405 = vld [vmem:[%s1397 + $0x38] sm:$0xff]
        %v1406 = vld [vmem:[%s1397 + $0x40] sm:$0xff]
        %v1407 = vld [vmem:[%s1397 + $0x48] sm:$0xff]
        %v1408 = vld [vmem:[%s1397 + $0x50] sm:$0xff]
        %v1409 = vld [vmem:[%s1397 + $0x58] sm:$0xff]
        %v1410 = vld [vmem:[%s1397 + $0x60] sm:$0xff]
        %v1411 = vld [vmem:[%s1397 + $0x68] sm:$0xff]
        %v1412 = vld [vmem:[%s1397 + $0x70] sm:$0xff]
        %v1413 = vld [vmem:[%s1397 + $0x78] sm:$0xff]
        %1414 = vmatpush.msra.mxu0 %v1413
        %1415 = vmatpush.msra.mxu0 %v1412
        %1416 = vmatpush.msra.mxu0 %v1411
        %1417 = vmatpush.msra.mxu0 %v1410
        %1418 = vmatpush.msra.mxu0 %v1409
        %1419 = vmatpush.msra.mxu0 %v1408
        %1420 = vmatpush.msra.mxu0 %v1407
        %1421 = vmatpush.msra.mxu0 %v1406
        %1422 = vmatpush.msra.mxu0 %v1405
        %1423 = vmatpush.msra.mxu0 %v1404
        %1424 = vmatpush.msra.mxu0 %v1403
        %1425 = vmatpush.msra.mxu0 %v1402
        %1426 = vmatpush.msra.mxu0 %v1401
        %1427 = vmatpush.msra.mxu0 %v1400
        %1428 = vmatpush.msra.mxu0 %v1399
        %1429 = vmatpush.msra.mxu0 %v1398
        %1430 = vmatmul.f32.gmra.mxu0 %v1379
        %v1431 = vpop.f32.mrf.mxu0
        %v1432 = vadd.f32 0.0, %v1431
        %1433 = vmatmul.f32.gmra.mxu0 %v1380
        %v1434 = vpop.f32.mrf.mxu0
        %v1435 = vadd.f32 0.0, %v1434
        %1436 = vmatmul.f32.gmra.mxu0 %v1381
        %v1437 = vpop.f32.mrf.mxu0
        %v1438 = vadd.f32 0.0, %v1437
        %1439 = vmatmul.f32.gmra.mxu0 %v1382
        %v1440 = vpop.f32.mrf.mxu0
        %v1441 = vadd.f32 0.0, %v1440
        %1442 = vmatmul.f32.gmra.mxu0 %v1383
        %v1443 = vpop.f32.mrf.mxu0
        %v1444 = vadd.f32 0.0, %v1443
        %1445 = vmatmul.f32.gmra.mxu0 %v1384
        %v1446 = vpop.f32.mrf.mxu0
        %v1447 = vadd.f32 0.0, %v1446
        %1448 = vmatmul.f32.gmra.mxu0 %v1385
        %v1449 = vpop.f32.mrf.mxu0
        %v1450 = vadd.f32 0.0, %v1449
        %1451 = vmatmul.f32.gmra.mxu0 %v1386
        %v1452 = vpop.f32.mrf.mxu0
        %v1453 = vadd.f32 0.0, %v1452
        %1454 = vmatmul.f32.gmra.mxu0 %v1387
        %v1455 = vpop.f32.mrf.mxu0
        %v1456 = vadd.f32 0.0, %v1455
        %1457 = vmatmul.f32.gmra.mxu0 %v1388
        %v1458 = vpop.f32.mrf.mxu0
        %v1459 = vadd.f32 0.0, %v1458
        %1460 = vmatmul.f32.gmra.mxu0 %v1389
        %v1461 = vpop.f32.mrf.mxu0
        %v1462 = vadd.f32 0.0, %v1461
        %1463 = vmatmul.f32.gmra.mxu0 %v1390
        %v1464 = vpop.f32.mrf.mxu0
        %v1465 = vadd.f32 0.0, %v1464
        %1466 = vmatmul.f32.gmra.mxu0 %v1391
        %v1467 = vpop.f32.mrf.mxu0
        %v1468 = vadd.f32 0.0, %v1467
        %1469 = vmatmul.f32.gmra.mxu0 %v1392
        %v1470 = vpop.f32.mrf.mxu0
        %v1471 = vadd.f32 0.0, %v1470
        %1472 = vmatmul.f32.gmra.mxu0 %v1393
        %v1473 = vpop.f32.mrf.mxu0
        %v1474 = vadd.f32 0.0, %v1473
        %1475 = vmatmul.f32.gmra.mxu0 %v1394
        %v1476 = vpop.f32.mrf.mxu0
        %v1477 = vadd.f32 0.0, %v1476
        %1478 = vmatmul.f32.gmra.mxu0 %v1395
        %v1479 = vpop.f32.mrf.mxu0
        %v1480 = vadd.f32 0.0, %v1479
        %1481 = vmatmul.f32.gmra.mxu0 %v1396
        %v1482 = vpop.f32.mrf.mxu0
        %v1483 = vadd.f32 0.0, %v1482
        %1484 = vdwg.mxu0
        %v1485 = vadd.f32 %v1361, %v1432
        %v1486 = vadd.f32 %v1362, %v1435
        %v1487 = vadd.f32 %v1363, %v1438
        %v1488 = vadd.f32 %v1364, %v1441
        %v1489 = vadd.f32 %v1365, %v1444
        %v1490 = vadd.f32 %v1366, %v1447
        %v1491 = vadd.f32 %v1367, %v1450
        %v1492 = vadd.f32 %v1368, %v1453
        %v1493 = vadd.f32 %v1369, %v1456
        %v1494 = vadd.f32 %v1370, %v1459
        %v1495 = vadd.f32 %v1371, %v1462
        %v1496 = vadd.f32 %v1372, %v1465
        %v1497 = vadd.f32 %v1373, %v1468
        %v1498 = vadd.f32 %v1374, %v1471
        %v1499 = vadd.f32 %v1375, %v1474
        %v1500 = vadd.f32 %v1376, %v1477
        %v1501 = vadd.f32 %v1377, %v1480
        %v1502 = vadd.f32 %v1378, %v1483
        %v1503 = vld [vmem:[#allocation2 + $0x4] sm:$0xff]
        %v1504 = vld [vmem:[#allocation2 + $0xc] sm:$0xff]
        %v1505 = vld [vmem:[#allocation2 + $0x14] sm:$0xff]
        %v1506 = vld [vmem:[#allocation2 + $0x1c] sm:$0xff]
        %v1507 = vld [vmem:[#allocation2 + $0x24] sm:$0xff]
        %v1508 = vld [vmem:[#allocation2 + $0x2c] sm:$0xff]
        %v1509 = vld [vmem:[#allocation2 + $0x34] sm:$0xff]
        %v1510 = vld [vmem:[#allocation2 + $0x3c] sm:$0xff]
        %v1511 = vld [vmem:[#allocation2 + $0x44] sm:$0xff]
        %v1512 = vld [vmem:[#allocation2 + $0x4c] sm:$0xff]
        %v1513 = vld [vmem:[#allocation2 + $0x54] sm:$0xff]
        %v1514 = vld [vmem:[#allocation2 + $0x5c] sm:$0xff]
        %v1515 = vld [vmem:[#allocation2 + $0x64] sm:$0xff]
        %v1516 = vld [vmem:[#allocation2 + $0x6c] sm:$0xff]
        %v1517 = vld [vmem:[#allocation2 + $0x74] sm:$0xff]
        %v1518 = vld [vmem:[#allocation2 + $0x7c] sm:$0xff]
        %v1519 = vld [vmem:[#allocation2 + $0x84] sm:$0xff]
        %v1520 = vld [vmem:[#allocation2 + $0x8c] sm:$0xf]
        %s1521 = scalar_lea.vmem %s3, 512
        %v1522 = vld [vmem:[%s1521] sm:$0xff]
        %v1523 = vld [vmem:[%s1521 + $0x8] sm:$0xff]
        %v1524 = vld [vmem:[%s1521 + $0x10] sm:$0xff]
        %v1525 = vld [vmem:[%s1521 + $0x18] sm:$0xff]
        %v1526 = vld [vmem:[%s1521 + $0x20] sm:$0xff]
        %v1527 = vld [vmem:[%s1521 + $0x28] sm:$0xff]
        %v1528 = vld [vmem:[%s1521 + $0x30] sm:$0xff]
        %v1529 = vld [vmem:[%s1521 + $0x38] sm:$0xff]
        %v1530 = vld [vmem:[%s1521 + $0x40] sm:$0xff]
        %v1531 = vld [vmem:[%s1521 + $0x48] sm:$0xff]
        %v1532 = vld [vmem:[%s1521 + $0x50] sm:$0xff]
        %v1533 = vld [vmem:[%s1521 + $0x58] sm:$0xff]
        %v1534 = vld [vmem:[%s1521 + $0x60] sm:$0xff]
        %v1535 = vld [vmem:[%s1521 + $0x68] sm:$0xff]
        %v1536 = vld [vmem:[%s1521 + $0x70] sm:$0xff]
        %v1537 = vld [vmem:[%s1521 + $0x78] sm:$0xff]
        %1538 = vmatpush.msra.mxu0 %v1537
        %1539 = vmatpush.msra.mxu0 %v1536
        %1540 = vmatpush.msra.mxu0 %v1535
        %1541 = vmatpush.msra.mxu0 %v1534
        %1542 = vmatpush.msra.mxu0 %v1533
        %1543 = vmatpush.msra.mxu0 %v1532
        %1544 = vmatpush.msra.mxu0 %v1531
        %1545 = vmatpush.msra.mxu0 %v1530
        %1546 = vmatpush.msra.mxu0 %v1529
        %1547 = vmatpush.msra.mxu0 %v1528
        %1548 = vmatpush.msra.mxu0 %v1527
        %1549 = vmatpush.msra.mxu0 %v1526
        %1550 = vmatpush.msra.mxu0 %v1525
        %1551 = vmatpush.msra.mxu0 %v1524
        %1552 = vmatpush.msra.mxu0 %v1523
        %1553 = vmatpush.msra.mxu0 %v1522
        %1554 = vmatmul.f32.gmra.mxu0 %v1503
        %v1555 = vpop.f32.mrf.mxu0
        %v1556 = vadd.f32 0.0, %v1555
        %1557 = vmatmul.f32.gmra.mxu0 %v1504
        %v1558 = vpop.f32.mrf.mxu0
        %v1559 = vadd.f32 0.0, %v1558
        %1560 = vmatmul.f32.gmra.mxu0 %v1505
        %v1561 = vpop.f32.mrf.mxu0
        %v1562 = vadd.f32 0.0, %v1561
        %1563 = vmatmul.f32.gmra.mxu0 %v1506
        %v1564 = vpop.f32.mrf.mxu0
        %v1565 = vadd.f32 0.0, %v1564
        %1566 = vmatmul.f32.gmra.mxu0 %v1507
        %v1567 = vpop.f32.mrf.mxu0
        %v1568 = vadd.f32 0.0, %v1567
        %1569 = vmatmul.f32.gmra.mxu0 %v1508
        %v1570 = vpop.f32.mrf.mxu0
        %v1571 = vadd.f32 0.0, %v1570
        %1572 = vmatmul.f32.gmra.mxu0 %v1509
        %v1573 = vpop.f32.mrf.mxu0
        %v1574 = vadd.f32 0.0, %v1573
        %1575 = vmatmul.f32.gmra.mxu0 %v1510
        %v1576 = vpop.f32.mrf.mxu0
        %v1577 = vadd.f32 0.0, %v1576
        %1578 = vmatmul.f32.gmra.mxu0 %v1511
        %v1579 = vpop.f32.mrf.mxu0
        %v1580 = vadd.f32 0.0, %v1579
        %1581 = vmatmul.f32.gmra.mxu0 %v1512
        %v1582 = vpop.f32.mrf.mxu0
        %v1583 = vadd.f32 0.0, %v1582
        %1584 = vmatmul.f32.gmra.mxu0 %v1513
        %v1585 = vpop.f32.mrf.mxu0
        %v1586 = vadd.f32 0.0, %v1585
        %1587 = vmatmul.f32.gmra.mxu0 %v1514
        %v1588 = vpop.f32.mrf.mxu0
        %v1589 = vadd.f32 0.0, %v1588
        %1590 = vmatmul.f32.gmra.mxu0 %v1515
        %v1591 = vpop.f32.mrf.mxu0
        %v1592 = vadd.f32 0.0, %v1591
        %1593 = vmatmul.f32.gmra.mxu0 %v1516
        %v1594 = vpop.f32.mrf.mxu0
        %v1595 = vadd.f32 0.0, %v1594
        %1596 = vmatmul.f32.gmra.mxu0 %v1517
        %v1597 = vpop.f32.mrf.mxu0
        %v1598 = vadd.f32 0.0, %v1597
        %1599 = vmatmul.f32.gmra.mxu0 %v1518
        %v1600 = vpop.f32.mrf.mxu0
        %v1601 = vadd.f32 0.0, %v1600
        %1602 = vmatmul.f32.gmra.mxu0 %v1519
        %v1603 = vpop.f32.mrf.mxu0
        %v1604 = vadd.f32 0.0, %v1603
        %1605 = vmatmul.f32.gmra.mxu0 %v1520
        %v1606 = vpop.f32.mrf.mxu0
        %v1607 = vadd.f32 0.0, %v1606
        %1608 = vdwg.mxu0
        %v1609 = vadd.f32 %v1485, %v1556
        %v1610 = vadd.f32 %v1486, %v1559
        %v1611 = vadd.f32 %v1487, %v1562
        %v1612 = vadd.f32 %v1488, %v1565
        %v1613 = vadd.f32 %v1489, %v1568
        %v1614 = vadd.f32 %v1490, %v1571
        %v1615 = vadd.f32 %v1491, %v1574
        %v1616 = vadd.f32 %v1492, %v1577
        %v1617 = vadd.f32 %v1493, %v1580
        %v1618 = vadd.f32 %v1494, %v1583
        %v1619 = vadd.f32 %v1495, %v1586
        %v1620 = vadd.f32 %v1496, %v1589
        %v1621 = vadd.f32 %v1497, %v1592
        %v1622 = vadd.f32 %v1498, %v1595
        %v1623 = vadd.f32 %v1499, %v1598
        %v1624 = vadd.f32 %v1500, %v1601
        %v1625 = vadd.f32 %v1501, %v1604
        %v1626 = vadd.f32 %v1502, %v1607
        %v1627 = vld [vmem:[#allocation2 + $0xe] sm:$0xff]
        %v1628 = vld [vmem:[#allocation2 + $0x16] sm:$0xff]
        %v1629 = vld [vmem:[#allocation2 + $0x1e] sm:$0xff]
        %v1630 = vld [vmem:[#allocation2 + $0x26] sm:$0xff]
        %v1631 = vld [vmem:[#allocation2 + $0x2e] sm:$0xff]
        %v1632 = vld [vmem:[#allocation2 + $0x36] sm:$0xff]
        %v1633 = vld [vmem:[#allocation2 + $0x3e] sm:$0xff]
        %v1634 = vld [vmem:[#allocation2 + $0x46] sm:$0xff]
        %v1635 = vld [vmem:[#allocation2 + $0x4e] sm:$0xff]
        %v1636 = vld [vmem:[#allocation2 + $0x56] sm:$0xff]
        %v1637 = vld [vmem:[#allocation2 + $0x5e] sm:$0xff]
        %v1638 = vld [vmem:[#allocation2 + $0x66] sm:$0xff]
        %v1639 = vld [vmem:[#allocation2 + $0x6e] sm:$0xff]
        %v1640 = vld [vmem:[#allocation2 + $0x76] sm:$0xff]
        %v1641 = vld [vmem:[#allocation2 + $0x7e] sm:$0xff]
        %v1642 = vld [vmem:[#allocation2 + $0x86] sm:$0xff]
        %v1643 = vld [vmem:[#allocation2 + $0x8e] sm:$0xff]
        %v1644 = vld [vmem:[#allocation2 + $0x96] sm:$0xf]
        %s1645 = scalar_lea.vmem %s3, 640
        %v1646 = vld [vmem:[%s1645] sm:$0xff]
        %v1647 = vld [vmem:[%s1645 + $0x8] sm:$0xff]
        %v1648 = vld [vmem:[%s1645 + $0x10] sm:$0xff]
        %v1649 = vld [vmem:[%s1645 + $0x18] sm:$0xff]
        %v1650 = vld [vmem:[%s1645 + $0x20] sm:$0xff]
        %v1651 = vld [vmem:[%s1645 + $0x28] sm:$0xff]
        %v1652 = vld [vmem:[%s1645 + $0x30] sm:$0xff]
        %v1653 = vld [vmem:[%s1645 + $0x38] sm:$0xff]
        %v1654 = vld [vmem:[%s1645 + $0x40] sm:$0xff]
        %v1655 = vld [vmem:[%s1645 + $0x48] sm:$0xff]
        %v1656 = vld [vmem:[%s1645 + $0x50] sm:$0xff]
        %v1657 = vld [vmem:[%s1645 + $0x58] sm:$0xff]
        %v1658 = vld [vmem:[%s1645 + $0x60] sm:$0xff]
        %v1659 = vld [vmem:[%s1645 + $0x68] sm:$0xff]
        %v1660 = vld [vmem:[%s1645 + $0x70] sm:$0xff]
        %v1661 = vld [vmem:[%s1645 + $0x78] sm:$0xff]
        %1662 = vmatpush.msra.mxu0 %v1661
        %1663 = vmatpush.msra.mxu0 %v1660
        %1664 = vmatpush.msra.mxu0 %v1659
        %1665 = vmatpush.msra.mxu0 %v1658
        %1666 = vmatpush.msra.mxu0 %v1657
        %1667 = vmatpush.msra.mxu0 %v1656
        %1668 = vmatpush.msra.mxu0 %v1655
        %1669 = vmatpush.msra.mxu0 %v1654
        %1670 = vmatpush.msra.mxu0 %v1653
        %1671 = vmatpush.msra.mxu0 %v1652
        %1672 = vmatpush.msra.mxu0 %v1651
        %1673 = vmatpush.msra.mxu0 %v1650
        %1674 = vmatpush.msra.mxu0 %v1649
        %1675 = vmatpush.msra.mxu0 %v1648
        %1676 = vmatpush.msra.mxu0 %v1647
        %1677 = vmatpush.msra.mxu0 %v1646
        %1678 = vmatmul.f32.gmra.mxu0 %v1627
        %v1679 = vpop.f32.mrf.mxu0
        %v1680 = vadd.f32 0.0, %v1679
        %1681 = vmatmul.f32.gmra.mxu0 %v1628
        %v1682 = vpop.f32.mrf.mxu0
        %v1683 = vadd.f32 0.0, %v1682
        %1684 = vmatmul.f32.gmra.mxu0 %v1629
        %v1685 = vpop.f32.mrf.mxu0
        %v1686 = vadd.f32 0.0, %v1685
        %1687 = vmatmul.f32.gmra.mxu0 %v1630
        %v1688 = vpop.f32.mrf.mxu0
        %v1689 = vadd.f32 0.0, %v1688
        %1690 = vmatmul.f32.gmra.mxu0 %v1631
        %v1691 = vpop.f32.mrf.mxu0
        %v1692 = vadd.f32 0.0, %v1691
        %1693 = vmatmul.f32.gmra.mxu0 %v1632
        %v1694 = vpop.f32.mrf.mxu0
        %v1695 = vadd.f32 0.0, %v1694
        %1696 = vmatmul.f32.gmra.mxu0 %v1633
        %v1697 = vpop.f32.mrf.mxu0
        %v1698 = vadd.f32 0.0, %v1697
        %1699 = vmatmul.f32.gmra.mxu0 %v1634
        %v1700 = vpop.f32.mrf.mxu0
        %v1701 = vadd.f32 0.0, %v1700
        %1702 = vmatmul.f32.gmra.mxu0 %v1635
        %v1703 = vpop.f32.mrf.mxu0
        %v1704 = vadd.f32 0.0, %v1703
        %1705 = vmatmul.f32.gmra.mxu0 %v1636
        %v1706 = vpop.f32.mrf.mxu0
        %v1707 = vadd.f32 0.0, %v1706
        %1708 = vmatmul.f32.gmra.mxu0 %v1637
        %v1709 = vpop.f32.mrf.mxu0
        %v1710 = vadd.f32 0.0, %v1709
        %1711 = vmatmul.f32.gmra.mxu0 %v1638
        %v1712 = vpop.f32.mrf.mxu0
        %v1713 = vadd.f32 0.0, %v1712
        %1714 = vmatmul.f32.gmra.mxu0 %v1639
        %v1715 = vpop.f32.mrf.mxu0
        %v1716 = vadd.f32 0.0, %v1715
        %1717 = vmatmul.f32.gmra.mxu0 %v1640
        %v1718 = vpop.f32.mrf.mxu0
        %v1719 = vadd.f32 0.0, %v1718
        %1720 = vmatmul.f32.gmra.mxu0 %v1641
        %v1721 = vpop.f32.mrf.mxu0
        %v1722 = vadd.f32 0.0, %v1721
        %1723 = vmatmul.f32.gmra.mxu0 %v1642
        %v1724 = vpop.f32.mrf.mxu0
        %v1725 = vadd.f32 0.0, %v1724
        %1726 = vmatmul.f32.gmra.mxu0 %v1643
        %v1727 = vpop.f32.mrf.mxu0
        %v1728 = vadd.f32 0.0, %v1727
        %1729 = vmatmul.f32.gmra.mxu0 %v1644
        %v1730 = vpop.f32.mrf.mxu0
        %v1731 = vadd.f32 0.0, %v1730
        %1732 = vdwg.mxu0
        %v1733 = vadd.f32 %v1609, %v1680
        %v1734 = vadd.f32 %v1610, %v1683
        %v1735 = vadd.f32 %v1611, %v1686
        %v1736 = vadd.f32 %v1612, %v1689
        %v1737 = vadd.f32 %v1613, %v1692
        %v1738 = vadd.f32 %v1614, %v1695
        %v1739 = vadd.f32 %v1615, %v1698
        %v1740 = vadd.f32 %v1616, %v1701
        %v1741 = vadd.f32 %v1617, %v1704
        %v1742 = vadd.f32 %v1618, %v1707
        %v1743 = vadd.f32 %v1619, %v1710
        %v1744 = vadd.f32 %v1620, %v1713
        %v1745 = vadd.f32 %v1621, %v1716
        %v1746 = vadd.f32 %v1622, %v1719
        %v1747 = vadd.f32 %v1623, %v1722
        %v1748 = vadd.f32 %v1624, %v1725
        %v1749 = vadd.f32 %v1625, %v1728
        %v1750 = vadd.f32 %v1626, %v1731
        %v1751 = vld [vmem:[#allocation2 + $0xf] sm:$0xff]
        %v1752 = vld [vmem:[#allocation2 + $0x17] sm:$0xff]
        %v1753 = vld [vmem:[#allocation2 + $0x1f] sm:$0xff]
        %v1754 = vld [vmem:[#allocation2 + $0x27] sm:$0xff]
        %v1755 = vld [vmem:[#allocation2 + $0x2f] sm:$0xff]
        %v1756 = vld [vmem:[#allocation2 + $0x37] sm:$0xff]
        %v1757 = vld [vmem:[#allocation2 + $0x3f] sm:$0xff]
        %v1758 = vld [vmem:[#allocation2 + $0x47] sm:$0xff]
        %v1759 = vld [vmem:[#allocation2 + $0x4f] sm:$0xff]
        %v1760 = vld [vmem:[#allocation2 + $0x57] sm:$0xff]
        %v1761 = vld [vmem:[#allocation2 + $0x5f] sm:$0xff]
        %v1762 = vld [vmem:[#allocation2 + $0x67] sm:$0xff]
        %v1763 = vld [vmem:[#allocation2 + $0x6f] sm:$0xff]
        %v1764 = vld [vmem:[#allocation2 + $0x77] sm:$0xff]
        %v1765 = vld [vmem:[#allocation2 + $0x7f] sm:$0xff]
        %v1766 = vld [vmem:[#allocation2 + $0x87] sm:$0xff]
        %v1767 = vld [vmem:[#allocation2 + $0x8f] sm:$0xff]
        %v1768 = vld [vmem:[#allocation2 + $0x97] sm:$0xf]
        %s1769 = scalar_lea.vmem %s3, 768
        %v1770 = vld [vmem:[%s1769] sm:$0xff]
        %v1771 = vld [vmem:[%s1769 + $0x8] sm:$0xff]
        %v1772 = vld [vmem:[%s1769 + $0x10] sm:$0xff]
        %v1773 = vld [vmem:[%s1769 + $0x18] sm:$0xff]
        %v1774 = vld [vmem:[%s1769 + $0x20] sm:$0xff]
        %v1775 = vld [vmem:[%s1769 + $0x28] sm:$0xff]
        %v1776 = vld [vmem:[%s1769 + $0x30] sm:$0xff]
        %v1777 = vld [vmem:[%s1769 + $0x38] sm:$0xff]
        %v1778 = vld [vmem:[%s1769 + $0x40] sm:$0xff]
        %v1779 = vld [vmem:[%s1769 + $0x48] sm:$0xff]
        %v1780 = vld [vmem:[%s1769 + $0x50] sm:$0xff]
        %v1781 = vld [vmem:[%s1769 + $0x58] sm:$0xff]
        %v1782 = vld [vmem:[%s1769 + $0x60] sm:$0xff]
        %v1783 = vld [vmem:[%s1769 + $0x68] sm:$0xff]
        %v1784 = vld [vmem:[%s1769 + $0x70] sm:$0xff]
        %v1785 = vld [vmem:[%s1769 + $0x78] sm:$0xff]
        %1786 = vmatpush.msra.mxu0 %v1785
        %1787 = vmatpush.msra.mxu0 %v1784
        %1788 = vmatpush.msra.mxu0 %v1783
        %1789 = vmatpush.msra.mxu0 %v1782
        %1790 = vmatpush.msra.mxu0 %v1781
        %1791 = vmatpush.msra.mxu0 %v1780
        %1792 = vmatpush.msra.mxu0 %v1779
        %1793 = vmatpush.msra.mxu0 %v1778
        %1794 = vmatpush.msra.mxu0 %v1777
        %1795 = vmatpush.msra.mxu0 %v1776
        %1796 = vmatpush.msra.mxu0 %v1775
        %1797 = vmatpush.msra.mxu0 %v1774
        %1798 = vmatpush.msra.mxu0 %v1773
        %1799 = vmatpush.msra.mxu0 %v1772
        %1800 = vmatpush.msra.mxu0 %v1771
        %1801 = vmatpush.msra.mxu0 %v1770
        %1802 = vmatmul.f32.gmra.mxu0 %v1751
        %v1803 = vpop.f32.mrf.mxu0
        %v1804 = vadd.f32 0.0, %v1803
        %1805 = vmatmul.f32.gmra.mxu0 %v1752
        %v1806 = vpop.f32.mrf.mxu0
        %v1807 = vadd.f32 0.0, %v1806
        %1808 = vmatmul.f32.gmra.mxu0 %v1753
        %v1809 = vpop.f32.mrf.mxu0
        %v1810 = vadd.f32 0.0, %v1809
        %1811 = vmatmul.f32.gmra.mxu0 %v1754
        %v1812 = vpop.f32.mrf.mxu0
        %v1813 = vadd.f32 0.0, %v1812
        %1814 = vmatmul.f32.gmra.mxu0 %v1755
        %v1815 = vpop.f32.mrf.mxu0
        %v1816 = vadd.f32 0.0, %v1815
        %1817 = vmatmul.f32.gmra.mxu0 %v1756
        %v1818 = vpop.f32.mrf.mxu0
        %v1819 = vadd.f32 0.0, %v1818
        %1820 = vmatmul.f32.gmra.mxu0 %v1757
        %v1821 = vpop.f32.mrf.mxu0
        %v1822 = vadd.f32 0.0, %v1821
        %1823 = vmatmul.f32.gmra.mxu0 %v1758
        %v1824 = vpop.f32.mrf.mxu0
        %v1825 = vadd.f32 0.0, %v1824
        %1826 = vmatmul.f32.gmra.mxu0 %v1759
        %v1827 = vpop.f32.mrf.mxu0
        %v1828 = vadd.f32 0.0, %v1827
        %1829 = vmatmul.f32.gmra.mxu0 %v1760
        %v1830 = vpop.f32.mrf.mxu0
        %v1831 = vadd.f32 0.0, %v1830
        %1832 = vmatmul.f32.gmra.mxu0 %v1761
        %v1833 = vpop.f32.mrf.mxu0
        %v1834 = vadd.f32 0.0, %v1833
        %1835 = vmatmul.f32.gmra.mxu0 %v1762
        %v1836 = vpop.f32.mrf.mxu0
        %v1837 = vadd.f32 0.0, %v1836
        %1838 = vmatmul.f32.gmra.mxu0 %v1763
        %v1839 = vpop.f32.mrf.mxu0
        %v1840 = vadd.f32 0.0, %v1839
        %1841 = vmatmul.f32.gmra.mxu0 %v1764
        %v1842 = vpop.f32.mrf.mxu0
        %v1843 = vadd.f32 0.0, %v1842
        %1844 = vmatmul.f32.gmra.mxu0 %v1765
        %v1845 = vpop.f32.mrf.mxu0
        %v1846 = vadd.f32 0.0, %v1845
        %1847 = vmatmul.f32.gmra.mxu0 %v1766
        %v1848 = vpop.f32.mrf.mxu0
        %v1849 = vadd.f32 0.0, %v1848
        %1850 = vmatmul.f32.gmra.mxu0 %v1767
        %v1851 = vpop.f32.mrf.mxu0
        %v1852 = vadd.f32 0.0, %v1851
        %1853 = vmatmul.f32.gmra.mxu0 %v1768
        %v1854 = vpop.f32.mrf.mxu0
        %v1855 = vadd.f32 0.0, %v1854
        %1856 = vdwg.mxu0
        %v1857 = vadd.f32 %v1733, %v1804
        %v1858 = vadd.f32 %v1734, %v1807
        %v1859 = vadd.f32 %v1735, %v1810
        %v1860 = vadd.f32 %v1736, %v1813
        %v1861 = vadd.f32 %v1737, %v1816
        %v1862 = vadd.f32 %v1738, %v1819
        %v1863 = vadd.f32 %v1739, %v1822
        %v1864 = vadd.f32 %v1740, %v1825
        %v1865 = vadd.f32 %v1741, %v1828
        %v1866 = vadd.f32 %v1742, %v1831
        %v1867 = vadd.f32 %v1743, %v1834
        %v1868 = vadd.f32 %v1744, %v1837
        %v1869 = vadd.f32 %v1745, %v1840
        %v1870 = vadd.f32 %v1746, %v1843
        %v1871 = vadd.f32 %v1747, %v1846
        %v1872 = vadd.f32 %v1748, %v1849
        %v1873 = vadd.f32 %v1749, %v1852
        %v1874 = vadd.f32 %v1750, %v1855
        %v1875 = vld [vmem:[#allocation2 + $0x10] sm:$0xff]
        %v1876 = vld [vmem:[#allocation2 + $0x18] sm:$0xff]
        %v1877 = vld [vmem:[#allocation2 + $0x20] sm:$0xff]
        %v1878 = vld [vmem:[#allocation2 + $0x28] sm:$0xff]
        %v1879 = vld [vmem:[#allocation2 + $0x30] sm:$0xff]
        %v1880 = vld [vmem:[#allocation2 + $0x38] sm:$0xff]
        %v1881 = vld [vmem:[#allocation2 + $0x40] sm:$0xff]
        %v1882 = vld [vmem:[#allocation2 + $0x48] sm:$0xff]
        %v1883 = vld [vmem:[#allocation2 + $0x50] sm:$0xff]
        %v1884 = vld [vmem:[#allocation2 + $0x58] sm:$0xff]
        %v1885 = vld [vmem:[#allocation2 + $0x60] sm:$0xff]
        %v1886 = vld [vmem:[#allocation2 + $0x68] sm:$0xff]
        %v1887 = vld [vmem:[#allocation2 + $0x70] sm:$0xff]
        %v1888 = vld [vmem:[#allocation2 + $0x78] sm:$0xff]
        %v1889 = vld [vmem:[#allocation2 + $0x80] sm:$0xff]
        %v1890 = vld [vmem:[#allocation2 + $0x88] sm:$0xff]
        %v1891 = vld [vmem:[#allocation2 + $0x90] sm:$0xff]
        %v1892 = vld [vmem:[#allocation2 + $0x98] sm:$0xf]
        %s1893 = scalar_lea.vmem %s3, 896
        %v1894 = vld [vmem:[%s1893] sm:$0xff]
        %v1895 = vld [vmem:[%s1893 + $0x8] sm:$0xff]
        %v1896 = vld [vmem:[%s1893 + $0x10] sm:$0xff]
        %v1897 = vld [vmem:[%s1893 + $0x18] sm:$0xff]
        %v1898 = vld [vmem:[%s1893 + $0x20] sm:$0xff]
        %v1899 = vld [vmem:[%s1893 + $0x28] sm:$0xff]
        %v1900 = vld [vmem:[%s1893 + $0x30] sm:$0xff]
        %v1901 = vld [vmem:[%s1893 + $0x38] sm:$0xff]
        %v1902 = vld [vmem:[%s1893 + $0x40] sm:$0xff]
        %v1903 = vld [vmem:[%s1893 + $0x48] sm:$0xff]
        %v1904 = vld [vmem:[%s1893 + $0x50] sm:$0xff]
        %v1905 = vld [vmem:[%s1893 + $0x58] sm:$0xff]
        %v1906 = vld [vmem:[%s1893 + $0x60] sm:$0xff]
        %v1907 = vld [vmem:[%s1893 + $0x68] sm:$0xff]
        %v1908 = vld [vmem:[%s1893 + $0x70] sm:$0xff]
        %v1909 = vld [vmem:[%s1893 + $0x78] sm:$0xff]
        %1910 = vmatpush.msra.mxu0 %v1909
        %1911 = vmatpush.msra.mxu0 %v1908
        %1912 = vmatpush.msra.mxu0 %v1907
        %1913 = vmatpush.msra.mxu0 %v1906
        %1914 = vmatpush.msra.mxu0 %v1905
        %1915 = vmatpush.msra.mxu0 %v1904
        %1916 = vmatpush.msra.mxu0 %v1903
        %1917 = vmatpush.msra.mxu0 %v1902
        %1918 = vmatpush.msra.mxu0 %v1901
        %1919 = vmatpush.msra.mxu0 %v1900
        %1920 = vmatpush.msra.mxu0 %v1899
        %1921 = vmatpush.msra.mxu0 %v1898
        %1922 = vmatpush.msra.mxu0 %v1897
        %1923 = vmatpush.msra.mxu0 %v1896
        %1924 = vmatpush.msra.mxu0 %v1895
        %1925 = vmatpush.msra.mxu0 %v1894
        %1926 = vmatmul.f32.gmra.mxu0 %v1875
        %v1927 = vpop.f32.mrf.mxu0
        %v1928 = vadd.f32 0.0, %v1927
        %1929 = vmatmul.f32.gmra.mxu0 %v1876
        %v1930 = vpop.f32.mrf.mxu0
        %v1931 = vadd.f32 0.0, %v1930
        %1932 = vmatmul.f32.gmra.mxu0 %v1877
        %v1933 = vpop.f32.mrf.mxu0
        %v1934 = vadd.f32 0.0, %v1933
        %1935 = vmatmul.f32.gmra.mxu0 %v1878
        %v1936 = vpop.f32.mrf.mxu0
        %v1937 = vadd.f32 0.0, %v1936
        %1938 = vmatmul.f32.gmra.mxu0 %v1879
        %v1939 = vpop.f32.mrf.mxu0
        %v1940 = vadd.f32 0.0, %v1939
        %1941 = vmatmul.f32.gmra.mxu0 %v1880
        %v1942 = vpop.f32.mrf.mxu0
        %v1943 = vadd.f32 0.0, %v1942
        %1944 = vmatmul.f32.gmra.mxu0 %v1881
        %v1945 = vpop.f32.mrf.mxu0
        %v1946 = vadd.f32 0.0, %v1945
        %1947 = vmatmul.f32.gmra.mxu0 %v1882
        %v1948 = vpop.f32.mrf.mxu0
        %v1949 = vadd.f32 0.0, %v1948
        %1950 = vmatmul.f32.gmra.mxu0 %v1883
        %v1951 = vpop.f32.mrf.mxu0
        %v1952 = vadd.f32 0.0, %v1951
        %1953 = vmatmul.f32.gmra.mxu0 %v1884
        %v1954 = vpop.f32.mrf.mxu0
        %v1955 = vadd.f32 0.0, %v1954
        %1956 = vmatmul.f32.gmra.mxu0 %v1885
        %v1957 = vpop.f32.mrf.mxu0
        %v1958 = vadd.f32 0.0, %v1957
        %1959 = vmatmul.f32.gmra.mxu0 %v1886
        %v1960 = vpop.f32.mrf.mxu0
        %v1961 = vadd.f32 0.0, %v1960
        %1962 = vmatmul.f32.gmra.mxu0 %v1887
        %v1963 = vpop.f32.mrf.mxu0
        %v1964 = vadd.f32 0.0, %v1963
        %1965 = vmatmul.f32.gmra.mxu0 %v1888
        %v1966 = vpop.f32.mrf.mxu0
        %v1967 = vadd.f32 0.0, %v1966
        %1968 = vmatmul.f32.gmra.mxu0 %v1889
        %v1969 = vpop.f32.mrf.mxu0
        %v1970 = vadd.f32 0.0, %v1969
        %1971 = vmatmul.f32.gmra.mxu0 %v1890
        %v1972 = vpop.f32.mrf.mxu0
        %v1973 = vadd.f32 0.0, %v1972
        %1974 = vmatmul.f32.gmra.mxu0 %v1891
        %v1975 = vpop.f32.mrf.mxu0
        %v1976 = vadd.f32 0.0, %v1975
        %1977 = vmatmul.f32.gmra.mxu0 %v1892
        %v1978 = vpop.f32.mrf.mxu0
        %v1979 = vadd.f32 0.0, %v1978
        %1980 = vdwg.mxu0
        %v1981 = vadd.f32 %v1857, %v1928
        %v1982 = vadd.f32 %v1858, %v1931
        %v1983 = vadd.f32 %v1859, %v1934
        %v1984 = vadd.f32 %v1860, %v1937
        %v1985 = vadd.f32 %v1861, %v1940
        %v1986 = vadd.f32 %v1862, %v1943
        %v1987 = vadd.f32 %v1863, %v1946
        %v1988 = vadd.f32 %v1864, %v1949
        %v1989 = vadd.f32 %v1865, %v1952
        %v1990 = vadd.f32 %v1866, %v1955
        %v1991 = vadd.f32 %v1867, %v1958
        %v1992 = vadd.f32 %v1868, %v1961
        %v1993 = vadd.f32 %v1869, %v1964
        %v1994 = vadd.f32 %v1870, %v1967
        %v1995 = vadd.f32 %v1871, %v1970
        %v1996 = vadd.f32 %v1872, %v1973
        %v1997 = vadd.f32 %v1873, %v1976
        %v1998 = vadd.f32 %v1874, %v1979
        %v1999 = vld [vmem:[#allocation2 + $0x11] sm:$0xff]
        %v2000 = vld [vmem:[#allocation2 + $0x19] sm:$0xff]
        %v2001 = vld [vmem:[#allocation2 + $0x21] sm:$0xff]
        %v2002 = vld [vmem:[#allocation2 + $0x29] sm:$0xff]
        %v2003 = vld [vmem:[#allocation2 + $0x31] sm:$0xff]
        %v2004 = vld [vmem:[#allocation2 + $0x39] sm:$0xff]
        %v2005 = vld [vmem:[#allocation2 + $0x41] sm:$0xff]
        %v2006 = vld [vmem:[#allocation2 + $0x49] sm:$0xff]
        %v2007 = vld [vmem:[#allocation2 + $0x51] sm:$0xff]
        %v2008 = vld [vmem:[#allocation2 + $0x59] sm:$0xff]
        %v2009 = vld [vmem:[#allocation2 + $0x61] sm:$0xff]
        %v2010 = vld [vmem:[#allocation2 + $0x69] sm:$0xff]
        %v2011 = vld [vmem:[#allocation2 + $0x71] sm:$0xff]
        %v2012 = vld [vmem:[#allocation2 + $0x79] sm:$0xff]
        %v2013 = vld [vmem:[#allocation2 + $0x81] sm:$0xff]
        %v2014 = vld [vmem:[#allocation2 + $0x89] sm:$0xff]
        %v2015 = vld [vmem:[#allocation2 + $0x91] sm:$0xff]
        %v2016 = vld [vmem:[#allocation2 + $0x99] sm:$0xf]
        %s2017 = scalar_lea.vmem %s3, 1024
        %v2018 = vld [vmem:[%s2017] sm:$0xff]
        %v2019 = vld [vmem:[%s2017 + $0x8] sm:$0xff]
        %v2020 = vld [vmem:[%s2017 + $0x10] sm:$0xff]
        %v2021 = vld [vmem:[%s2017 + $0x18] sm:$0xff]
        %v2022 = vld [vmem:[%s2017 + $0x20] sm:$0xff]
        %v2023 = vld [vmem:[%s2017 + $0x28] sm:$0xff]
        %v2024 = vld [vmem:[%s2017 + $0x30] sm:$0xff]
        %v2025 = vld [vmem:[%s2017 + $0x38] sm:$0xff]
        %v2026 = vld [vmem:[%s2017 + $0x40] sm:$0xff]
        %v2027 = vld [vmem:[%s2017 + $0x48] sm:$0xff]
        %v2028 = vld [vmem:[%s2017 + $0x50] sm:$0xff]
        %v2029 = vld [vmem:[%s2017 + $0x58] sm:$0xff]
        %v2030 = vld [vmem:[%s2017 + $0x60] sm:$0xff]
        %v2031 = vld [vmem:[%s2017 + $0x68] sm:$0xff]
        %v2032 = vld [vmem:[%s2017 + $0x70] sm:$0xff]
        %v2033 = vld [vmem:[%s2017 + $0x78] sm:$0xff]
        %2034 = vmatpush.msra.mxu0 %v2033
        %2035 = vmatpush.msra.mxu0 %v2032
        %2036 = vmatpush.msra.mxu0 %v2031
        %2037 = vmatpush.msra.mxu0 %v2030
        %2038 = vmatpush.msra.mxu0 %v2029
        %2039 = vmatpush.msra.mxu0 %v2028
        %2040 = vmatpush.msra.mxu0 %v2027
        %2041 = vmatpush.msra.mxu0 %v2026
        %2042 = vmatpush.msra.mxu0 %v2025
        %2043 = vmatpush.msra.mxu0 %v2024
        %2044 = vmatpush.msra.mxu0 %v2023
        %2045 = vmatpush.msra.mxu0 %v2022
        %2046 = vmatpush.msra.mxu0 %v2021
        %2047 = vmatpush.msra.mxu0 %v2020
        %2048 = vmatpush.msra.mxu0 %v2019
        %2049 = vmatpush.msra.mxu0 %v2018
        %2050 = vmatmul.f32.gmra.mxu0 %v1999
        %v2051 = vpop.f32.mrf.mxu0
        %v2052 = vadd.f32 0.0, %v2051
        %2053 = vmatmul.f32.gmra.mxu0 %v2000
        %v2054 = vpop.f32.mrf.mxu0
        %v2055 = vadd.f32 0.0, %v2054
        %2056 = vmatmul.f32.gmra.mxu0 %v2001
        %v2057 = vpop.f32.mrf.mxu0
        %v2058 = vadd.f32 0.0, %v2057
        %2059 = vmatmul.f32.gmra.mxu0 %v2002
        %v2060 = vpop.f32.mrf.mxu0
        %v2061 = vadd.f32 0.0, %v2060
        %2062 = vmatmul.f32.gmra.mxu0 %v2003
        %v2063 = vpop.f32.mrf.mxu0
        %v2064 = vadd.f32 0.0, %v2063
        %2065 = vmatmul.f32.gmra.mxu0 %v2004
        %v2066 = vpop.f32.mrf.mxu0
        %v2067 = vadd.f32 0.0, %v2066
        %2068 = vmatmul.f32.gmra.mxu0 %v2005
        %v2069 = vpop.f32.mrf.mxu0
        %v2070 = vadd.f32 0.0, %v2069
        %2071 = vmatmul.f32.gmra.mxu0 %v2006
        %v2072 = vpop.f32.mrf.mxu0
        %v2073 = vadd.f32 0.0, %v2072
        %2074 = vmatmul.f32.gmra.mxu0 %v2007
        %v2075 = vpop.f32.mrf.mxu0
        %v2076 = vadd.f32 0.0, %v2075
        %2077 = vmatmul.f32.gmra.mxu0 %v2008
        %v2078 = vpop.f32.mrf.mxu0
        %v2079 = vadd.f32 0.0, %v2078
        %2080 = vmatmul.f32.gmra.mxu0 %v2009
        %v2081 = vpop.f32.mrf.mxu0
        %v2082 = vadd.f32 0.0, %v2081
        %2083 = vmatmul.f32.gmra.mxu0 %v2010
        %v2084 = vpop.f32.mrf.mxu0
        %v2085 = vadd.f32 0.0, %v2084
        %2086 = vmatmul.f32.gmra.mxu0 %v2011
        %v2087 = vpop.f32.mrf.mxu0
        %v2088 = vadd.f32 0.0, %v2087
        %2089 = vmatmul.f32.gmra.mxu0 %v2012
        %v2090 = vpop.f32.mrf.mxu0
        %v2091 = vadd.f32 0.0, %v2090
        %2092 = vmatmul.f32.gmra.mxu0 %v2013
        %v2093 = vpop.f32.mrf.mxu0
        %v2094 = vadd.f32 0.0, %v2093
        %2095 = vmatmul.f32.gmra.mxu0 %v2014
        %v2096 = vpop.f32.mrf.mxu0
        %v2097 = vadd.f32 0.0, %v2096
        %2098 = vmatmul.f32.gmra.mxu0 %v2015
        %v2099 = vpop.f32.mrf.mxu0
        %v2100 = vadd.f32 0.0, %v2099
        %2101 = vmatmul.f32.gmra.mxu0 %v2016
        %v2102 = vpop.f32.mrf.mxu0
        %v2103 = vadd.f32 0.0, %v2102
        %2104 = vdwg.mxu0
        %v2105 = vadd.f32 %v1981, %v2052
        %v2106 = vadd.f32 %v1982, %v2055
        %v2107 = vadd.f32 %v1983, %v2058
        %v2108 = vadd.f32 %v1984, %v2061
        %v2109 = vadd.f32 %v1985, %v2064
        %v2110 = vadd.f32 %v1986, %v2067
        %v2111 = vadd.f32 %v1987, %v2070
        %v2112 = vadd.f32 %v1988, %v2073
        %v2113 = vadd.f32 %v1989, %v2076
        %v2114 = vadd.f32 %v1990, %v2079
        %v2115 = vadd.f32 %v1991, %v2082
        %v2116 = vadd.f32 %v1992, %v2085
        %v2117 = vadd.f32 %v1993, %v2088
        %v2118 = vadd.f32 %v1994, %v2091
        %v2119 = vadd.f32 %v1995, %v2094
        %v2120 = vadd.f32 %v1996, %v2097
        %v2121 = vadd.f32 %v1997, %v2100
        %v2122 = vadd.f32 %v1998, %v2103
        %v2123 = vld [vmem:[#allocation2 + $0x12] sm:$0xff]
        %v2124 = vld [vmem:[#allocation2 + $0x1a] sm:$0xff]
        %v2125 = vld [vmem:[#allocation2 + $0x22] sm:$0xff]
        %v2126 = vld [vmem:[#allocation2 + $0x2a] sm:$0xff]
        %v2127 = vld [vmem:[#allocation2 + $0x32] sm:$0xff]
        %v2128 = vld [vmem:[#allocation2 + $0x3a] sm:$0xff]
        %v2129 = vld [vmem:[#allocation2 + $0x42] sm:$0xff]
        %v2130 = vld [vmem:[#allocation2 + $0x4a] sm:$0xff]
        %v2131 = vld [vmem:[#allocation2 + $0x52] sm:$0xff]
        %v2132 = vld [vmem:[#allocation2 + $0x5a] sm:$0xff]
        %v2133 = vld [vmem:[#allocation2 + $0x62] sm:$0xff]
        %v2134 = vld [vmem:[#allocation2 + $0x6a] sm:$0xff]
        %v2135 = vld [vmem:[#allocation2 + $0x72] sm:$0xff]
        %v2136 = vld [vmem:[#allocation2 + $0x7a] sm:$0xff]
        %v2137 = vld [vmem:[#allocation2 + $0x82] sm:$0xff]
        %v2138 = vld [vmem:[#allocation2 + $0x8a] sm:$0xff]
        %v2139 = vld [vmem:[#allocation2 + $0x92] sm:$0xff]
        %v2140 = vld [vmem:[#allocation2 + $0x9a] sm:$0xf]
        %s2141 = scalar_lea.vmem %s3, 1152
        %v2142 = vld [vmem:[%s2141] sm:$0xff]
        %v2143 = vld [vmem:[%s2141 + $0x8] sm:$0xff]
        %v2144 = vld [vmem:[%s2141 + $0x10] sm:$0xff]
        %v2145 = vld [vmem:[%s2141 + $0x18] sm:$0xff]
        %v2146 = vld [vmem:[%s2141 + $0x20] sm:$0xff]
        %v2147 = vld [vmem:[%s2141 + $0x28] sm:$0xff]
        %v2148 = vld [vmem:[%s2141 + $0x30] sm:$0xff]
        %v2149 = vld [vmem:[%s2141 + $0x38] sm:$0xff]
        %v2150 = vld [vmem:[%s2141 + $0x40] sm:$0xff]
        %v2151 = vld [vmem:[%s2141 + $0x48] sm:$0xff]
        %v2152 = vld [vmem:[%s2141 + $0x50] sm:$0xff]
        %v2153 = vld [vmem:[%s2141 + $0x58] sm:$0xff]
        %v2154 = vld [vmem:[%s2141 + $0x60] sm:$0xff]
        %v2155 = vld [vmem:[%s2141 + $0x68] sm:$0xff]
        %v2156 = vld [vmem:[%s2141 + $0x70] sm:$0xff]
        %v2157 = vld [vmem:[%s2141 + $0x78] sm:$0xff]
        %2158 = vmatpush.msra.mxu0 %v2157
        %2159 = vmatpush.msra.mxu0 %v2156
        %2160 = vmatpush.msra.mxu0 %v2155
        %2161 = vmatpush.msra.mxu0 %v2154
        %2162 = vmatpush.msra.mxu0 %v2153
        %2163 = vmatpush.msra.mxu0 %v2152
        %2164 = vmatpush.msra.mxu0 %v2151
        %2165 = vmatpush.msra.mxu0 %v2150
        %2166 = vmatpush.msra.mxu0 %v2149
        %2167 = vmatpush.msra.mxu0 %v2148
        %2168 = vmatpush.msra.mxu0 %v2147
        %2169 = vmatpush.msra.mxu0 %v2146
        %2170 = vmatpush.msra.mxu0 %v2145
        %2171 = vmatpush.msra.mxu0 %v2144
        %2172 = vmatpush.msra.mxu0 %v2143
        %2173 = vmatpush.msra.mxu0 %v2142
        %2174 = vmatmul.f32.gmra.mxu0 %v2123
        %v2175 = vpop.f32.mrf.mxu0
        %v2176 = vadd.f32 0.0, %v2175
        %2177 = vmatmul.f32.gmra.mxu0 %v2124
        %v2178 = vpop.f32.mrf.mxu0
        %v2179 = vadd.f32 0.0, %v2178
        %2180 = vmatmul.f32.gmra.mxu0 %v2125
        %v2181 = vpop.f32.mrf.mxu0
        %v2182 = vadd.f32 0.0, %v2181
        %2183 = vmatmul.f32.gmra.mxu0 %v2126
        %v2184 = vpop.f32.mrf.mxu0
        %v2185 = vadd.f32 0.0, %v2184
        %2186 = vmatmul.f32.gmra.mxu0 %v2127
        %v2187 = vpop.f32.mrf.mxu0
        %v2188 = vadd.f32 0.0, %v2187
        %2189 = vmatmul.f32.gmra.mxu0 %v2128
        %v2190 = vpop.f32.mrf.mxu0
        %v2191 = vadd.f32 0.0, %v2190
        %2192 = vmatmul.f32.gmra.mxu0 %v2129
        %v2193 = vpop.f32.mrf.mxu0
        %v2194 = vadd.f32 0.0, %v2193
        %2195 = vmatmul.f32.gmra.mxu0 %v2130
        %v2196 = vpop.f32.mrf.mxu0
        %v2197 = vadd.f32 0.0, %v2196
        %2198 = vmatmul.f32.gmra.mxu0 %v2131
        %v2199 = vpop.f32.mrf.mxu0
        %v2200 = vadd.f32 0.0, %v2199
        %2201 = vmatmul.f32.gmra.mxu0 %v2132
        %v2202 = vpop.f32.mrf.mxu0
        %v2203 = vadd.f32 0.0, %v2202
        %2204 = vmatmul.f32.gmra.mxu0 %v2133
        %v2205 = vpop.f32.mrf.mxu0
        %v2206 = vadd.f32 0.0, %v2205
        %2207 = vmatmul.f32.gmra.mxu0 %v2134
        %v2208 = vpop.f32.mrf.mxu0
        %v2209 = vadd.f32 0.0, %v2208
        %2210 = vmatmul.f32.gmra.mxu0 %v2135
        %v2211 = vpop.f32.mrf.mxu0
        %v2212 = vadd.f32 0.0, %v2211
        %2213 = vmatmul.f32.gmra.mxu0 %v2136
        %v2214 = vpop.f32.mrf.mxu0
        %v2215 = vadd.f32 0.0, %v2214
        %2216 = vmatmul.f32.gmra.mxu0 %v2137
        %v2217 = vpop.f32.mrf.mxu0
        %v2218 = vadd.f32 0.0, %v2217
        %2219 = vmatmul.f32.gmra.mxu0 %v2138
        %v2220 = vpop.f32.mrf.mxu0
        %v2221 = vadd.f32 0.0, %v2220
        %2222 = vmatmul.f32.gmra.mxu0 %v2139
        %v2223 = vpop.f32.mrf.mxu0
        %v2224 = vadd.f32 0.0, %v2223
        %2225 = vmatmul.f32.gmra.mxu0 %v2140
        %v2226 = vpop.f32.mrf.mxu0
        %v2227 = vadd.f32 0.0, %v2226
        %2228 = vdwg.mxu0
        %v2229 = vadd.f32 %v2105, %v2176
        %v2230 = vadd.f32 %v2106, %v2179
        %v2231 = vadd.f32 %v2107, %v2182
        %v2232 = vadd.f32 %v2108, %v2185
        %v2233 = vadd.f32 %v2109, %v2188
        %v2234 = vadd.f32 %v2110, %v2191
        %v2235 = vadd.f32 %v2111, %v2194
        %v2236 = vadd.f32 %v2112, %v2197
        %v2237 = vadd.f32 %v2113, %v2200
        %v2238 = vadd.f32 %v2114, %v2203
        %v2239 = vadd.f32 %v2115, %v2206
        %v2240 = vadd.f32 %v2116, %v2209
        %v2241 = vadd.f32 %v2117, %v2212
        %v2242 = vadd.f32 %v2118, %v2215
        %v2243 = vadd.f32 %v2119, %v2218
        %v2244 = vadd.f32 %v2120, %v2221
        %v2245 = vadd.f32 %v2121, %v2224
        %v2246 = vadd.f32 %v2122, %v2227
        %v2247 = vld [vmem:[#allocation2 + $0x1c] sm:$0xff]
        %v2248 = vld [vmem:[#allocation2 + $0x24] sm:$0xff]
        %v2249 = vld [vmem:[#allocation2 + $0x2c] sm:$0xff]
        %v2250 = vld [vmem:[#allocation2 + $0x34] sm:$0xff]
        %v2251 = vld [vmem:[#allocation2 + $0x3c] sm:$0xff]
        %v2252 = vld [vmem:[#allocation2 + $0x44] sm:$0xff]
        %v2253 = vld [vmem:[#allocation2 + $0x4c] sm:$0xff]
        %v2254 = vld [vmem:[#allocation2 + $0x54] sm:$0xff]
        %v2255 = vld [vmem:[#allocation2 + $0x5c] sm:$0xff]
        %v2256 = vld [vmem:[#allocation2 + $0x64] sm:$0xff]
        %v2257 = vld [vmem:[#allocation2 + $0x6c] sm:$0xff]
        %v2258 = vld [vmem:[#allocation2 + $0x74] sm:$0xff]
        %v2259 = vld [vmem:[#allocation2 + $0x7c] sm:$0xff]
        %v2260 = vld [vmem:[#allocation2 + $0x84] sm:$0xff]
        %v2261 = vld [vmem:[#allocation2 + $0x8c] sm:$0xff]
        %v2262 = vld [vmem:[#allocation2 + $0x94] sm:$0xff]
        %v2263 = vld [vmem:[#allocation2 + $0x9c] sm:$0xff]
        %v2264 = vld [vmem:[#allocation2 + $0xa4] sm:$0xf]
        %s2265 = scalar_lea.vmem %s3, 1280
        %v2266 = vld [vmem:[%s2265] sm:$0xff]
        %v2267 = vld [vmem:[%s2265 + $0x8] sm:$0xff]
        %v2268 = vld [vmem:[%s2265 + $0x10] sm:$0xff]
        %v2269 = vld [vmem:[%s2265 + $0x18] sm:$0xff]
        %v2270 = vld [vmem:[%s2265 + $0x20] sm:$0xff]
        %v2271 = vld [vmem:[%s2265 + $0x28] sm:$0xff]
        %v2272 = vld [vmem:[%s2265 + $0x30] sm:$0xff]
        %v2273 = vld [vmem:[%s2265 + $0x38] sm:$0xff]
        %v2274 = vld [vmem:[%s2265 + $0x40] sm:$0xff]
        %v2275 = vld [vmem:[%s2265 + $0x48] sm:$0xff]
        %v2276 = vld [vmem:[%s2265 + $0x50] sm:$0xff]
        %v2277 = vld [vmem:[%s2265 + $0x58] sm:$0xff]
        %v2278 = vld [vmem:[%s2265 + $0x60] sm:$0xff]
        %v2279 = vld [vmem:[%s2265 + $0x68] sm:$0xff]
        %v2280 = vld [vmem:[%s2265 + $0x70] sm:$0xff]
        %v2281 = vld [vmem:[%s2265 + $0x78] sm:$0xff]
        %2282 = vmatpush.msra.mxu0 %v2281
        %2283 = vmatpush.msra.mxu0 %v2280
        %2284 = vmatpush.msra.mxu0 %v2279
        %2285 = vmatpush.msra.mxu0 %v2278
        %2286 = vmatpush.msra.mxu0 %v2277
        %2287 = vmatpush.msra.mxu0 %v2276
        %2288 = vmatpush.msra.mxu0 %v2275
        %2289 = vmatpush.msra.mxu0 %v2274
        %2290 = vmatpush.msra.mxu0 %v2273
        %2291 = vmatpush.msra.mxu0 %v2272
        %2292 = vmatpush.msra.mxu0 %v2271
        %2293 = vmatpush.msra.mxu0 %v2270
        %2294 = vmatpush.msra.mxu0 %v2269
        %2295 = vmatpush.msra.mxu0 %v2268
        %2296 = vmatpush.msra.mxu0 %v2267
        %2297 = vmatpush.msra.mxu0 %v2266
        %2298 = vmatmul.f32.gmra.mxu0 %v2247
        %v2299 = vpop.f32.mrf.mxu0
        %v2300 = vadd.f32 0.0, %v2299
        %2301 = vmatmul.f32.gmra.mxu0 %v2248
        %v2302 = vpop.f32.mrf.mxu0
        %v2303 = vadd.f32 0.0, %v2302
        %2304 = vmatmul.f32.gmra.mxu0 %v2249
        %v2305 = vpop.f32.mrf.mxu0
        %v2306 = vadd.f32 0.0, %v2305
        %2307 = vmatmul.f32.gmra.mxu0 %v2250
        %v2308 = vpop.f32.mrf.mxu0
        %v2309 = vadd.f32 0.0, %v2308
        %2310 = vmatmul.f32.gmra.mxu0 %v2251
        %v2311 = vpop.f32.mrf.mxu0
        %v2312 = vadd.f32 0.0, %v2311
        %2313 = vmatmul.f32.gmra.mxu0 %v2252
        %v2314 = vpop.f32.mrf.mxu0
        %v2315 = vadd.f32 0.0, %v2314
        %2316 = vmatmul.f32.gmra.mxu0 %v2253
        %v2317 = vpop.f32.mrf.mxu0
        %v2318 = vadd.f32 0.0, %v2317
        %2319 = vmatmul.f32.gmra.mxu0 %v2254
        %v2320 = vpop.f32.mrf.mxu0
        %v2321 = vadd.f32 0.0, %v2320
        %2322 = vmatmul.f32.gmra.mxu0 %v2255
        %v2323 = vpop.f32.mrf.mxu0
        %v2324 = vadd.f32 0.0, %v2323
        %2325 = vmatmul.f32.gmra.mxu0 %v2256
        %v2326 = vpop.f32.mrf.mxu0
        %v2327 = vadd.f32 0.0, %v2326
        %2328 = vmatmul.f32.gmra.mxu0 %v2257
        %v2329 = vpop.f32.mrf.mxu0
        %v2330 = vadd.f32 0.0, %v2329
        %2331 = vmatmul.f32.gmra.mxu0 %v2258
        %v2332 = vpop.f32.mrf.mxu0
        %v2333 = vadd.f32 0.0, %v2332
        %2334 = vmatmul.f32.gmra.mxu0 %v2259
        %v2335 = vpop.f32.mrf.mxu0
        %v2336 = vadd.f32 0.0, %v2335
        %2337 = vmatmul.f32.gmra.mxu0 %v2260
        %v2338 = vpop.f32.mrf.mxu0
        %v2339 = vadd.f32 0.0, %v2338
        %2340 = vmatmul.f32.gmra.mxu0 %v2261
        %v2341 = vpop.f32.mrf.mxu0
        %v2342 = vadd.f32 0.0, %v2341
        %2343 = vmatmul.f32.gmra.mxu0 %v2262
        %v2344 = vpop.f32.mrf.mxu0
        %v2345 = vadd.f32 0.0, %v2344
        %2346 = vmatmul.f32.gmra.mxu0 %v2263
        %v2347 = vpop.f32.mrf.mxu0
        %v2348 = vadd.f32 0.0, %v2347
        %2349 = vmatmul.f32.gmra.mxu0 %v2264
        %v2350 = vpop.f32.mrf.mxu0
        %v2351 = vadd.f32 0.0, %v2350
        %2352 = vdwg.mxu0
        %v2353 = vadd.f32 %v2229, %v2300
        %v2354 = vadd.f32 %v2230, %v2303
        %v2355 = vadd.f32 %v2231, %v2306
        %v2356 = vadd.f32 %v2232, %v2309
        %v2357 = vadd.f32 %v2233, %v2312
        %v2358 = vadd.f32 %v2234, %v2315
        %v2359 = vadd.f32 %v2235, %v2318
        %v2360 = vadd.f32 %v2236, %v2321
        %v2361 = vadd.f32 %v2237, %v2324
        %v2362 = vadd.f32 %v2238, %v2327
        %v2363 = vadd.f32 %v2239, %v2330
        %v2364 = vadd.f32 %v2240, %v2333
        %v2365 = vadd.f32 %v2241, %v2336
        %v2366 = vadd.f32 %v2242, %v2339
        %v2367 = vadd.f32 %v2243, %v2342
        %v2368 = vadd.f32 %v2244, %v2345
        %v2369 = vadd.f32 %v2245, %v2348
        %v2370 = vadd.f32 %v2246, %v2351
        %v2371 = vld [vmem:[#allocation2 + $0x1d] sm:$0xff]
        %v2372 = vld [vmem:[#allocation2 + $0x25] sm:$0xff]
        %v2373 = vld [vmem:[#allocation2 + $0x2d] sm:$0xff]
        %v2374 = vld [vmem:[#allocation2 + $0x35] sm:$0xff]
        %v2375 = vld [vmem:[#allocation2 + $0x3d] sm:$0xff]
        %v2376 = vld [vmem:[#allocation2 + $0x45] sm:$0xff]
        %v2377 = vld [vmem:[#allocation2 + $0x4d] sm:$0xff]
        %v2378 = vld [vmem:[#allocation2 + $0x55] sm:$0xff]
        %v2379 = vld [vmem:[#allocation2 + $0x5d] sm:$0xff]
        %v2380 = vld [vmem:[#allocation2 + $0x65] sm:$0xff]
        %v2381 = vld [vmem:[#allocation2 + $0x6d] sm:$0xff]
        %v2382 = vld [vmem:[#allocation2 + $0x75] sm:$0xff]
        %v2383 = vld [vmem:[#allocation2 + $0x7d] sm:$0xff]
        %v2384 = vld [vmem:[#allocation2 + $0x85] sm:$0xff]
        %v2385 = vld [vmem:[#allocation2 + $0x8d] sm:$0xff]
        %v2386 = vld [vmem:[#allocation2 + $0x95] sm:$0xff]
        %v2387 = vld [vmem:[#allocation2 + $0x9d] sm:$0xff]
        %v2388 = vld [vmem:[#allocation2 + $0xa5] sm:$0xf]
        %s2389 = scalar_lea.vmem %s3, 1408
        %v2390 = vld [vmem:[%s2389] sm:$0xff]
        %v2391 = vld [vmem:[%s2389 + $0x8] sm:$0xff]
        %v2392 = vld [vmem:[%s2389 + $0x10] sm:$0xff]
        %v2393 = vld [vmem:[%s2389 + $0x18] sm:$0xff]
        %v2394 = vld [vmem:[%s2389 + $0x20] sm:$0xff]
        %v2395 = vld [vmem:[%s2389 + $0x28] sm:$0xff]
        %v2396 = vld [vmem:[%s2389 + $0x30] sm:$0xff]
        %v2397 = vld [vmem:[%s2389 + $0x38] sm:$0xff]
        %v2398 = vld [vmem:[%s2389 + $0x40] sm:$0xff]
        %v2399 = vld [vmem:[%s2389 + $0x48] sm:$0xff]
        %v2400 = vld [vmem:[%s2389 + $0x50] sm:$0xff]
        %v2401 = vld [vmem:[%s2389 + $0x58] sm:$0xff]
        %v2402 = vld [vmem:[%s2389 + $0x60] sm:$0xff]
        %v2403 = vld [vmem:[%s2389 + $0x68] sm:$0xff]
        %v2404 = vld [vmem:[%s2389 + $0x70] sm:$0xff]
        %v2405 = vld [vmem:[%s2389 + $0x78] sm:$0xff]
        %2406 = vmatpush.msra.mxu0 %v2405
        %2407 = vmatpush.msra.mxu0 %v2404
        %2408 = vmatpush.msra.mxu0 %v2403
        %2409 = vmatpush.msra.mxu0 %v2402
        %2410 = vmatpush.msra.mxu0 %v2401
        %2411 = vmatpush.msra.mxu0 %v2400
        %2412 = vmatpush.msra.mxu0 %v2399
        %2413 = vmatpush.msra.mxu0 %v2398
        %2414 = vmatpush.msra.mxu0 %v2397
        %2415 = vmatpush.msra.mxu0 %v2396
        %2416 = vmatpush.msra.mxu0 %v2395
        %2417 = vmatpush.msra.mxu0 %v2394
        %2418 = vmatpush.msra.mxu0 %v2393
        %2419 = vmatpush.msra.mxu0 %v2392
        %2420 = vmatpush.msra.mxu0 %v2391
        %2421 = vmatpush.msra.mxu0 %v2390
        %2422 = vmatmul.f32.gmra.mxu0 %v2371
        %v2423 = vpop.f32.mrf.mxu0
        %v2424 = vadd.f32 0.0, %v2423
        %2425 = vmatmul.f32.gmra.mxu0 %v2372
        %v2426 = vpop.f32.mrf.mxu0
        %v2427 = vadd.f32 0.0, %v2426
        %2428 = vmatmul.f32.gmra.mxu0 %v2373
        %v2429 = vpop.f32.mrf.mxu0
        %v2430 = vadd.f32 0.0, %v2429
        %2431 = vmatmul.f32.gmra.mxu0 %v2374
        %v2432 = vpop.f32.mrf.mxu0
        %v2433 = vadd.f32 0.0, %v2432
        %2434 = vmatmul.f32.gmra.mxu0 %v2375
        %v2435 = vpop.f32.mrf.mxu0
        %v2436 = vadd.f32 0.0, %v2435
        %2437 = vmatmul.f32.gmra.mxu0 %v2376
        %v2438 = vpop.f32.mrf.mxu0
        %v2439 = vadd.f32 0.0, %v2438
        %2440 = vmatmul.f32.gmra.mxu0 %v2377
        %v2441 = vpop.f32.mrf.mxu0
        %v2442 = vadd.f32 0.0, %v2441
        %2443 = vmatmul.f32.gmra.mxu0 %v2378
        %v2444 = vpop.f32.mrf.mxu0
        %v2445 = vadd.f32 0.0, %v2444
        %2446 = vmatmul.f32.gmra.mxu0 %v2379
        %v2447 = vpop.f32.mrf.mxu0
        %v2448 = vadd.f32 0.0, %v2447
        %2449 = vmatmul.f32.gmra.mxu0 %v2380
        %v2450 = vpop.f32.mrf.mxu0
        %v2451 = vadd.f32 0.0, %v2450
        %2452 = vmatmul.f32.gmra.mxu0 %v2381
        %v2453 = vpop.f32.mrf.mxu0
        %v2454 = vadd.f32 0.0, %v2453
        %2455 = vmatmul.f32.gmra.mxu0 %v2382
        %v2456 = vpop.f32.mrf.mxu0
        %v2457 = vadd.f32 0.0, %v2456
        %2458 = vmatmul.f32.gmra.mxu0 %v2383
        %v2459 = vpop.f32.mrf.mxu0
        %v2460 = vadd.f32 0.0, %v2459
        %2461 = vmatmul.f32.gmra.mxu0 %v2384
        %v2462 = vpop.f32.mrf.mxu0
        %v2463 = vadd.f32 0.0, %v2462
        %2464 = vmatmul.f32.gmra.mxu0 %v2385
        %v2465 = vpop.f32.mrf.mxu0
        %v2466 = vadd.f32 0.0, %v2465
        %2467 = vmatmul.f32.gmra.mxu0 %v2386
        %v2468 = vpop.f32.mrf.mxu0
        %v2469 = vadd.f32 0.0, %v2468
        %2470 = vmatmul.f32.gmra.mxu0 %v2387
        %v2471 = vpop.f32.mrf.mxu0
        %v2472 = vadd.f32 0.0, %v2471
        %2473 = vmatmul.f32.gmra.mxu0 %v2388
        %v2474 = vpop.f32.mrf.mxu0
        %v2475 = vadd.f32 0.0, %v2474
        %2476 = vdwg.mxu0
        %v2477 = vadd.f32 %v2353, %v2424
        %v2478 = vadd.f32 %v2354, %v2427
        %v2479 = vadd.f32 %v2355, %v2430
        %v2480 = vadd.f32 %v2356, %v2433
        %v2481 = vadd.f32 %v2357, %v2436
        %v2482 = vadd.f32 %v2358, %v2439
        %v2483 = vadd.f32 %v2359, %v2442
        %v2484 = vadd.f32 %v2360, %v2445
        %v2485 = vadd.f32 %v2361, %v2448
        %v2486 = vadd.f32 %v2362, %v2451
        %v2487 = vadd.f32 %v2363, %v2454
        %v2488 = vadd.f32 %v2364, %v2457
        %v2489 = vadd.f32 %v2365, %v2460
        %v2490 = vadd.f32 %v2366, %v2463
        %v2491 = vadd.f32 %v2367, %v2466
        %v2492 = vadd.f32 %v2368, %v2469
        %v2493 = vadd.f32 %v2369, %v2472
        %v2494 = vadd.f32 %v2370, %v2475
        %v2495 = vld [vmem:[#allocation2 + $0x1e] sm:$0xff]
        %v2496 = vld [vmem:[#allocation2 + $0x26] sm:$0xff]
        %v2497 = vld [vmem:[#allocation2 + $0x2e] sm:$0xff]
        %v2498 = vld [vmem:[#allocation2 + $0x36] sm:$0xff]
        %v2499 = vld [vmem:[#allocation2 + $0x3e] sm:$0xff]
        %v2500 = vld [vmem:[#allocation2 + $0x46] sm:$0xff]
        %v2501 = vld [vmem:[#allocation2 + $0x4e] sm:$0xff]
        %v2502 = vld [vmem:[#allocation2 + $0x56] sm:$0xff]
        %v2503 = vld [vmem:[#allocation2 + $0x5e] sm:$0xff]
        %v2504 = vld [vmem:[#allocation2 + $0x66] sm:$0xff]
        %v2505 = vld [vmem:[#allocation2 + $0x6e] sm:$0xff]
        %v2506 = vld [vmem:[#allocation2 + $0x76] sm:$0xff]
        %v2507 = vld [vmem:[#allocation2 + $0x7e] sm:$0xff]
        %v2508 = vld [vmem:[#allocation2 + $0x86] sm:$0xff]
        %v2509 = vld [vmem:[#allocation2 + $0x8e] sm:$0xff]
        %v2510 = vld [vmem:[#allocation2 + $0x96] sm:$0xff]
        %v2511 = vld [vmem:[#allocation2 + $0x9e] sm:$0xff]
        %v2512 = vld [vmem:[#allocation2 + $0xa6] sm:$0xf]
        %s2513 = scalar_lea.vmem %s3, 1536
        %v2514 = vld [vmem:[%s2513] sm:$0xff]
        %v2515 = vld [vmem:[%s2513 + $0x8] sm:$0xff]
        %v2516 = vld [vmem:[%s2513 + $0x10] sm:$0xff]
        %v2517 = vld [vmem:[%s2513 + $0x18] sm:$0xff]
        %v2518 = vld [vmem:[%s2513 + $0x20] sm:$0xff]
        %v2519 = vld [vmem:[%s2513 + $0x28] sm:$0xff]
        %v2520 = vld [vmem:[%s2513 + $0x30] sm:$0xff]
        %v2521 = vld [vmem:[%s2513 + $0x38] sm:$0xff]
        %v2522 = vld [vmem:[%s2513 + $0x40] sm:$0xff]
        %v2523 = vld [vmem:[%s2513 + $0x48] sm:$0xff]
        %v2524 = vld [vmem:[%s2513 + $0x50] sm:$0xff]
        %v2525 = vld [vmem:[%s2513 + $0x58] sm:$0xff]
        %v2526 = vld [vmem:[%s2513 + $0x60] sm:$0xff]
        %v2527 = vld [vmem:[%s2513 + $0x68] sm:$0xff]
        %v2528 = vld [vmem:[%s2513 + $0x70] sm:$0xff]
        %v2529 = vld [vmem:[%s2513 + $0x78] sm:$0xff]
        %2530 = vmatpush.msra.mxu0 %v2529
        %2531 = vmatpush.msra.mxu0 %v2528
        %2532 = vmatpush.msra.mxu0 %v2527
        %2533 = vmatpush.msra.mxu0 %v2526
        %2534 = vmatpush.msra.mxu0 %v2525
        %2535 = vmatpush.msra.mxu0 %v2524
        %2536 = vmatpush.msra.mxu0 %v2523
        %2537 = vmatpush.msra.mxu0 %v2522
        %2538 = vmatpush.msra.mxu0 %v2521
        %2539 = vmatpush.msra.mxu0 %v2520
        %2540 = vmatpush.msra.mxu0 %v2519
        %2541 = vmatpush.msra.mxu0 %v2518
        %2542 = vmatpush.msra.mxu0 %v2517
        %2543 = vmatpush.msra.mxu0 %v2516
        %2544 = vmatpush.msra.mxu0 %v2515
        %2545 = vmatpush.msra.mxu0 %v2514
        %2546 = vmatmul.f32.gmra.mxu0 %v2495
        %v2547 = vpop.f32.mrf.mxu0
        %v2548 = vadd.f32 0.0, %v2547
        %2549 = vmatmul.f32.gmra.mxu0 %v2496
        %v2550 = vpop.f32.mrf.mxu0
        %v2551 = vadd.f32 0.0, %v2550
        %2552 = vmatmul.f32.gmra.mxu0 %v2497
        %v2553 = vpop.f32.mrf.mxu0
        %v2554 = vadd.f32 0.0, %v2553
        %2555 = vmatmul.f32.gmra.mxu0 %v2498
        %v2556 = vpop.f32.mrf.mxu0
        %v2557 = vadd.f32 0.0, %v2556
        %2558 = vmatmul.f32.gmra.mxu0 %v2499
        %v2559 = vpop.f32.mrf.mxu0
        %v2560 = vadd.f32 0.0, %v2559
        %2561 = vmatmul.f32.gmra.mxu0 %v2500
        %v2562 = vpop.f32.mrf.mxu0
        %v2563 = vadd.f32 0.0, %v2562
        %2564 = vmatmul.f32.gmra.mxu0 %v2501
        %v2565 = vpop.f32.mrf.mxu0
        %v2566 = vadd.f32 0.0, %v2565
        %2567 = vmatmul.f32.gmra.mxu0 %v2502
        %v2568 = vpop.f32.mrf.mxu0
        %v2569 = vadd.f32 0.0, %v2568
        %2570 = vmatmul.f32.gmra.mxu0 %v2503
        %v2571 = vpop.f32.mrf.mxu0
        %v2572 = vadd.f32 0.0, %v2571
        %2573 = vmatmul.f32.gmra.mxu0 %v2504
        %v2574 = vpop.f32.mrf.mxu0
        %v2575 = vadd.f32 0.0, %v2574
        %2576 = vmatmul.f32.gmra.mxu0 %v2505
        %v2577 = vpop.f32.mrf.mxu0
        %v2578 = vadd.f32 0.0, %v2577
        %2579 = vmatmul.f32.gmra.mxu0 %v2506
        %v2580 = vpop.f32.mrf.mxu0
        %v2581 = vadd.f32 0.0, %v2580
        %2582 = vmatmul.f32.gmra.mxu0 %v2507
        %v2583 = vpop.f32.mrf.mxu0
        %v2584 = vadd.f32 0.0, %v2583
        %2585 = vmatmul.f32.gmra.mxu0 %v2508
        %v2586 = vpop.f32.mrf.mxu0
        %v2587 = vadd.f32 0.0, %v2586
        %2588 = vmatmul.f32.gmra.mxu0 %v2509
        %v2589 = vpop.f32.mrf.mxu0
        %v2590 = vadd.f32 0.0, %v2589
        %2591 = vmatmul.f32.gmra.mxu0 %v2510
        %v2592 = vpop.f32.mrf.mxu0
        %v2593 = vadd.f32 0.0, %v2592
        %2594 = vmatmul.f32.gmra.mxu0 %v2511
        %v2595 = vpop.f32.mrf.mxu0
        %v2596 = vadd.f32 0.0, %v2595
        %2597 = vmatmul.f32.gmra.mxu0 %v2512
        %v2598 = vpop.f32.mrf.mxu0
        %v2599 = vadd.f32 0.0, %v2598
        %2600 = vdwg.mxu0
        %v2601 = vadd.f32 %v2477, %v2548
        %v2602 = vadd.f32 %v2478, %v2551
        %v2603 = vadd.f32 %v2479, %v2554
        %v2604 = vadd.f32 %v2480, %v2557
        %v2605 = vadd.f32 %v2481, %v2560
        %v2606 = vadd.f32 %v2482, %v2563
        %v2607 = vadd.f32 %v2483, %v2566
        %v2608 = vadd.f32 %v2484, %v2569
        %v2609 = vadd.f32 %v2485, %v2572
        %v2610 = vadd.f32 %v2486, %v2575
        %v2611 = vadd.f32 %v2487, %v2578
        %v2612 = vadd.f32 %v2488, %v2581
        %v2613 = vadd.f32 %v2489, %v2584
        %v2614 = vadd.f32 %v2490, %v2587
        %v2615 = vadd.f32 %v2491, %v2590
        %v2616 = vadd.f32 %v2492, %v2593
        %v2617 = vadd.f32 %v2493, %v2596
        %v2618 = vadd.f32 %v2494, %v2599
        %v2619 = vld [vmem:[#allocation2 + $0x1f] sm:$0xff]
        %v2620 = vld [vmem:[#allocation2 + $0x27] sm:$0xff]
        %v2621 = vld [vmem:[#allocation2 + $0x2f] sm:$0xff]
        %v2622 = vld [vmem:[#allocation2 + $0x37] sm:$0xff]
        %v2623 = vld [vmem:[#allocation2 + $0x3f] sm:$0xff]
        %v2624 = vld [vmem:[#allocation2 + $0x47] sm:$0xff]
        %v2625 = vld [vmem:[#allocation2 + $0x4f] sm:$0xff]
        %v2626 = vld [vmem:[#allocation2 + $0x57] sm:$0xff]
        %v2627 = vld [vmem:[#allocation2 + $0x5f] sm:$0xff]
        %v2628 = vld [vmem:[#allocation2 + $0x67] sm:$0xff]
        %v2629 = vld [vmem:[#allocation2 + $0x6f] sm:$0xff]
        %v2630 = vld [vmem:[#allocation2 + $0x77] sm:$0xff]
        %v2631 = vld [vmem:[#allocation2 + $0x7f] sm:$0xff]
        %v2632 = vld [vmem:[#allocation2 + $0x87] sm:$0xff]
        %v2633 = vld [vmem:[#allocation2 + $0x8f] sm:$0xff]
        %v2634 = vld [vmem:[#allocation2 + $0x97] sm:$0xff]
        %v2635 = vld [vmem:[#allocation2 + $0x9f] sm:$0xff]
        %v2636 = vld [vmem:[#allocation2 + $0xa7] sm:$0xf]
        %s2637 = scalar_lea.vmem %s3, 1664
        %v2638 = vld [vmem:[%s2637] sm:$0xff]
        %v2639 = vld [vmem:[%s2637 + $0x8] sm:$0xff]
        %v2640 = vld [vmem:[%s2637 + $0x10] sm:$0xff]
        %v2641 = vld [vmem:[%s2637 + $0x18] sm:$0xff]
        %v2642 = vld [vmem:[%s2637 + $0x20] sm:$0xff]
        %v2643 = vld [vmem:[%s2637 + $0x28] sm:$0xff]
        %v2644 = vld [vmem:[%s2637 + $0x30] sm:$0xff]
        %v2645 = vld [vmem:[%s2637 + $0x38] sm:$0xff]
        %v2646 = vld [vmem:[%s2637 + $0x40] sm:$0xff]
        %v2647 = vld [vmem:[%s2637 + $0x48] sm:$0xff]
        %v2648 = vld [vmem:[%s2637 + $0x50] sm:$0xff]
        %v2649 = vld [vmem:[%s2637 + $0x58] sm:$0xff]
        %v2650 = vld [vmem:[%s2637 + $0x60] sm:$0xff]
        %v2651 = vld [vmem:[%s2637 + $0x68] sm:$0xff]
        %v2652 = vld [vmem:[%s2637 + $0x70] sm:$0xff]
        %v2653 = vld [vmem:[%s2637 + $0x78] sm:$0xff]
        %2654 = vmatpush.msra.mxu0 %v2653
        %2655 = vmatpush.msra.mxu0 %v2652
        %2656 = vmatpush.msra.mxu0 %v2651
        %2657 = vmatpush.msra.mxu0 %v2650
        %2658 = vmatpush.msra.mxu0 %v2649
        %2659 = vmatpush.msra.mxu0 %v2648
        %2660 = vmatpush.msra.mxu0 %v2647
        %2661 = vmatpush.msra.mxu0 %v2646
        %2662 = vmatpush.msra.mxu0 %v2645
        %2663 = vmatpush.msra.mxu0 %v2644
        %2664 = vmatpush.msra.mxu0 %v2643
        %2665 = vmatpush.msra.mxu0 %v2642
        %2666 = vmatpush.msra.mxu0 %v2641
        %2667 = vmatpush.msra.mxu0 %v2640
        %2668 = vmatpush.msra.mxu0 %v2639
        %2669 = vmatpush.msra.mxu0 %v2638
        %2670 = vmatmul.f32.gmra.mxu0 %v2619
        %v2671 = vpop.f32.mrf.mxu0
        %v2672 = vadd.f32 0.0, %v2671
        %2673 = vmatmul.f32.gmra.mxu0 %v2620
        %v2674 = vpop.f32.mrf.mxu0
        %v2675 = vadd.f32 0.0, %v2674
        %2676 = vmatmul.f32.gmra.mxu0 %v2621
        %v2677 = vpop.f32.mrf.mxu0
        %v2678 = vadd.f32 0.0, %v2677
        %2679 = vmatmul.f32.gmra.mxu0 %v2622
        %v2680 = vpop.f32.mrf.mxu0
        %v2681 = vadd.f32 0.0, %v2680
        %2682 = vmatmul.f32.gmra.mxu0 %v2623
        %v2683 = vpop.f32.mrf.mxu0
        %v2684 = vadd.f32 0.0, %v2683
        %2685 = vmatmul.f32.gmra.mxu0 %v2624
        %v2686 = vpop.f32.mrf.mxu0
        %v2687 = vadd.f32 0.0, %v2686
        %2688 = vmatmul.f32.gmra.mxu0 %v2625
        %v2689 = vpop.f32.mrf.mxu0
        %v2690 = vadd.f32 0.0, %v2689
        %2691 = vmatmul.f32.gmra.mxu0 %v2626
        %v2692 = vpop.f32.mrf.mxu0
        %v2693 = vadd.f32 0.0, %v2692
        %2694 = vmatmul.f32.gmra.mxu0 %v2627
        %v2695 = vpop.f32.mrf.mxu0
        %v2696 = vadd.f32 0.0, %v2695
        %2697 = vmatmul.f32.gmra.mxu0 %v2628
        %v2698 = vpop.f32.mrf.mxu0
        %v2699 = vadd.f32 0.0, %v2698
        %2700 = vmatmul.f32.gmra.mxu0 %v2629
        %v2701 = vpop.f32.mrf.mxu0
        %v2702 = vadd.f32 0.0, %v2701
        %2703 = vmatmul.f32.gmra.mxu0 %v2630
        %v2704 = vpop.f32.mrf.mxu0
        %v2705 = vadd.f32 0.0, %v2704
        %2706 = vmatmul.f32.gmra.mxu0 %v2631
        %v2707 = vpop.f32.mrf.mxu0
        %v2708 = vadd.f32 0.0, %v2707
        %2709 = vmatmul.f32.gmra.mxu0 %v2632
        %v2710 = vpop.f32.mrf.mxu0
        %v2711 = vadd.f32 0.0, %v2710
        %2712 = vmatmul.f32.gmra.mxu0 %v2633
        %v2713 = vpop.f32.mrf.mxu0
        %v2714 = vadd.f32 0.0, %v2713
        %2715 = vmatmul.f32.gmra.mxu0 %v2634
        %v2716 = vpop.f32.mrf.mxu0
        %v2717 = vadd.f32 0.0, %v2716
        %2718 = vmatmul.f32.gmra.mxu0 %v2635
        %v2719 = vpop.f32.mrf.mxu0
        %v2720 = vadd.f32 0.0, %v2719
        %2721 = vmatmul.f32.gmra.mxu0 %v2636
        %v2722 = vpop.f32.mrf.mxu0
        %v2723 = vadd.f32 0.0, %v2722
        %2724 = vdwg.mxu0
        %v2725 = vadd.f32 %v2601, %v2672
        %v2726 = vadd.f32 %v2602, %v2675
        %v2727 = vadd.f32 %v2603, %v2678
        %v2728 = vadd.f32 %v2604, %v2681
        %v2729 = vadd.f32 %v2605, %v2684
        %v2730 = vadd.f32 %v2606, %v2687
        %v2731 = vadd.f32 %v2607, %v2690
        %v2732 = vadd.f32 %v2608, %v2693
        %v2733 = vadd.f32 %v2609, %v2696
        %v2734 = vadd.f32 %v2610, %v2699
        %v2735 = vadd.f32 %v2611, %v2702
        %v2736 = vadd.f32 %v2612, %v2705
        %v2737 = vadd.f32 %v2613, %v2708
        %v2738 = vadd.f32 %v2614, %v2711
        %v2739 = vadd.f32 %v2615, %v2714
        %v2740 = vadd.f32 %v2616, %v2717
        %v2741 = vadd.f32 %v2617, %v2720
        %v2742 = vadd.f32 %v2618, %v2723
        %v2743 = vld [vmem:[#allocation2 + $0x20] sm:$0xff]
        %v2744 = vld [vmem:[#allocation2 + $0x28] sm:$0xff]
        %v2745 = vld [vmem:[#allocation2 + $0x30] sm:$0xff]
        %v2746 = vld [vmem:[#allocation2 + $0x38] sm:$0xff]
        %v2747 = vld [vmem:[#allocation2 + $0x40] sm:$0xff]
        %v2748 = vld [vmem:[#allocation2 + $0x48] sm:$0xff]
        %v2749 = vld [vmem:[#allocation2 + $0x50] sm:$0xff]
        %v2750 = vld [vmem:[#allocation2 + $0x58] sm:$0xff]
        %v2751 = vld [vmem:[#allocation2 + $0x60] sm:$0xff]
        %v2752 = vld [vmem:[#allocation2 + $0x68] sm:$0xff]
        %v2753 = vld [vmem:[#allocation2 + $0x70] sm:$0xff]
        %v2754 = vld [vmem:[#allocation2 + $0x78] sm:$0xff]
        %v2755 = vld [vmem:[#allocation2 + $0x80] sm:$0xff]
        %v2756 = vld [vmem:[#allocation2 + $0x88] sm:$0xff]
        %v2757 = vld [vmem:[#allocation2 + $0x90] sm:$0xff]
        %v2758 = vld [vmem:[#allocation2 + $0x98] sm:$0xff]
        %v2759 = vld [vmem:[#allocation2 + $0xa0] sm:$0xff]
        %v2760 = vld [vmem:[#allocation2 + $0xa8] sm:$0xf]
        %s2761 = scalar_lea.vmem %s3, 1792
        %v2762 = vld [vmem:[%s2761] sm:$0xff]
        %v2763 = vld [vmem:[%s2761 + $0x8] sm:$0xff]
        %v2764 = vld [vmem:[%s2761 + $0x10] sm:$0xff]
        %v2765 = vld [vmem:[%s2761 + $0x18] sm:$0xff]
        %v2766 = vld [vmem:[%s2761 + $0x20] sm:$0xff]
        %v2767 = vld [vmem:[%s2761 + $0x28] sm:$0xff]
        %v2768 = vld [vmem:[%s2761 + $0x30] sm:$0xff]
        %v2769 = vld [vmem:[%s2761 + $0x38] sm:$0xff]
        %v2770 = vld [vmem:[%s2761 + $0x40] sm:$0xff]
        %v2771 = vld [vmem:[%s2761 + $0x48] sm:$0xff]
        %v2772 = vld [vmem:[%s2761 + $0x50] sm:$0xff]
        %v2773 = vld [vmem:[%s2761 + $0x58] sm:$0xff]
        %v2774 = vld [vmem:[%s2761 + $0x60] sm:$0xff]
        %v2775 = vld [vmem:[%s2761 + $0x68] sm:$0xff]
        %v2776 = vld [vmem:[%s2761 + $0x70] sm:$0xff]
        %v2777 = vld [vmem:[%s2761 + $0x78] sm:$0xff]
        %2778 = vmatpush.msra.mxu0 %v2777
        %2779 = vmatpush.msra.mxu0 %v2776
        %2780 = vmatpush.msra.mxu0 %v2775
        %2781 = vmatpush.msra.mxu0 %v2774
        %2782 = vmatpush.msra.mxu0 %v2773
        %2783 = vmatpush.msra.mxu0 %v2772
        %2784 = vmatpush.msra.mxu0 %v2771
        %2785 = vmatpush.msra.mxu0 %v2770
        %2786 = vmatpush.msra.mxu0 %v2769
        %2787 = vmatpush.msra.mxu0 %v2768
        %2788 = vmatpush.msra.mxu0 %v2767
        %2789 = vmatpush.msra.mxu0 %v2766
        %2790 = vmatpush.msra.mxu0 %v2765
        %2791 = vmatpush.msra.mxu0 %v2764
        %2792 = vmatpush.msra.mxu0 %v2763
        %2793 = vmatpush.msra.mxu0 %v2762
        %2794 = vmatmul.f32.gmra.mxu0 %v2743
        %v2795 = vpop.f32.mrf.mxu0
        %v2796 = vadd.f32 0.0, %v2795
        %2797 = vmatmul.f32.gmra.mxu0 %v2744
        %v2798 = vpop.f32.mrf.mxu0
        %v2799 = vadd.f32 0.0, %v2798
        %2800 = vmatmul.f32.gmra.mxu0 %v2745
        %v2801 = vpop.f32.mrf.mxu0
        %v2802 = vadd.f32 0.0, %v2801
        %2803 = vmatmul.f32.gmra.mxu0 %v2746
        %v2804 = vpop.f32.mrf.mxu0
        %v2805 = vadd.f32 0.0, %v2804
        %2806 = vmatmul.f32.gmra.mxu0 %v2747
        %v2807 = vpop.f32.mrf.mxu0
        %v2808 = vadd.f32 0.0, %v2807
        %2809 = vmatmul.f32.gmra.mxu0 %v2748
        %v2810 = vpop.f32.mrf.mxu0
        %v2811 = vadd.f32 0.0, %v2810
        %2812 = vmatmul.f32.gmra.mxu0 %v2749
        %v2813 = vpop.f32.mrf.mxu0
        %v2814 = vadd.f32 0.0, %v2813
        %2815 = vmatmul.f32.gmra.mxu0 %v2750
        %v2816 = vpop.f32.mrf.mxu0
        %v2817 = vadd.f32 0.0, %v2816
        %2818 = vmatmul.f32.gmra.mxu0 %v2751
        %v2819 = vpop.f32.mrf.mxu0
        %v2820 = vadd.f32 0.0, %v2819
        %2821 = vmatmul.f32.gmra.mxu0 %v2752
        %v2822 = vpop.f32.mrf.mxu0
        %v2823 = vadd.f32 0.0, %v2822
        %2824 = vmatmul.f32.gmra.mxu0 %v2753
        %v2825 = vpop.f32.mrf.mxu0
        %v2826 = vadd.f32 0.0, %v2825
        %2827 = vmatmul.f32.gmra.mxu0 %v2754
        %v2828 = vpop.f32.mrf.mxu0
        %v2829 = vadd.f32 0.0, %v2828
        %2830 = vmatmul.f32.gmra.mxu0 %v2755
        %v2831 = vpop.f32.mrf.mxu0
        %v2832 = vadd.f32 0.0, %v2831
        %2833 = vmatmul.f32.gmra.mxu0 %v2756
        %v2834 = vpop.f32.mrf.mxu0
        %v2835 = vadd.f32 0.0, %v2834
        %2836 = vmatmul.f32.gmra.mxu0 %v2757
        %v2837 = vpop.f32.mrf.mxu0
        %v2838 = vadd.f32 0.0, %v2837
        %2839 = vmatmul.f32.gmra.mxu0 %v2758
        %v2840 = vpop.f32.mrf.mxu0
        %v2841 = vadd.f32 0.0, %v2840
        %2842 = vmatmul.f32.gmra.mxu0 %v2759
        %v2843 = vpop.f32.mrf.mxu0
        %v2844 = vadd.f32 0.0, %v2843
        %2845 = vmatmul.f32.gmra.mxu0 %v2760
        %v2846 = vpop.f32.mrf.mxu0
        %v2847 = vadd.f32 0.0, %v2846
        %2848 = vdwg.mxu0
        %v2849 = vadd.f32 %v2725, %v2796
        %v2850 = vadd.f32 %v2726, %v2799
        %v2851 = vadd.f32 %v2727, %v2802
        %v2852 = vadd.f32 %v2728, %v2805
        %v2853 = vadd.f32 %v2729, %v2808
        %v2854 = vadd.f32 %v2730, %v2811
        %v2855 = vadd.f32 %v2731, %v2814
        %v2856 = vadd.f32 %v2732, %v2817
        %v2857 = vadd.f32 %v2733, %v2820
        %v2858 = vadd.f32 %v2734, %v2823
        %v2859 = vadd.f32 %v2735, %v2826
        %v2860 = vadd.f32 %v2736, %v2829
        %v2861 = vadd.f32 %v2737, %v2832
        %v2862 = vadd.f32 %v2738, %v2835
        %v2863 = vadd.f32 %v2739, %v2838
        %v2864 = vadd.f32 %v2740, %v2841
        %v2865 = vadd.f32 %v2741, %v2844
        %v2866 = vadd.f32 %v2742, %v2847
        %v2867 = vld [vmem:[#allocation2 + $0x2a] sm:$0xff]
        %v2868 = vld [vmem:[#allocation2 + $0x32] sm:$0xff]
        %v2869 = vld [vmem:[#allocation2 + $0x3a] sm:$0xff]
        %v2870 = vld [vmem:[#allocation2 + $0x42] sm:$0xff]
        %v2871 = vld [vmem:[#allocation2 + $0x4a] sm:$0xff]
        %v2872 = vld [vmem:[#allocation2 + $0x52] sm:$0xff]
        %v2873 = vld [vmem:[#allocation2 + $0x5a] sm:$0xff]
        %v2874 = vld [vmem:[#allocation2 + $0x62] sm:$0xff]
        %v2875 = vld [vmem:[#allocation2 + $0x6a] sm:$0xff]
        %v2876 = vld [vmem:[#allocation2 + $0x72] sm:$0xff]
        %v2877 = vld [vmem:[#allocation2 + $0x7a] sm:$0xff]
        %v2878 = vld [vmem:[#allocation2 + $0x82] sm:$0xff]
        %v2879 = vld [vmem:[#allocation2 + $0x8a] sm:$0xff]
        %v2880 = vld [vmem:[#allocation2 + $0x92] sm:$0xff]
        %v2881 = vld [vmem:[#allocation2 + $0x9a] sm:$0xff]
        %v2882 = vld [vmem:[#allocation2 + $0xa2] sm:$0xff]
        %v2883 = vld [vmem:[#allocation2 + $0xaa] sm:$0xff]
        %v2884 = vld [vmem:[#allocation2 + $0xb2] sm:$0xf]
        %s2885 = scalar_lea.vmem %s3, 1920
        %v2886 = vld [vmem:[%s2885] sm:$0xff]
        %v2887 = vld [vmem:[%s2885 + $0x8] sm:$0xff]
        %v2888 = vld [vmem:[%s2885 + $0x10] sm:$0xff]
        %v2889 = vld [vmem:[%s2885 + $0x18] sm:$0xff]
        %v2890 = vld [vmem:[%s2885 + $0x20] sm:$0xff]
        %v2891 = vld [vmem:[%s2885 + $0x28] sm:$0xff]
        %v2892 = vld [vmem:[%s2885 + $0x30] sm:$0xff]
        %v2893 = vld [vmem:[%s2885 + $0x38] sm:$0xff]
        %v2894 = vld [vmem:[%s2885 + $0x40] sm:$0xff]
        %v2895 = vld [vmem:[%s2885 + $0x48] sm:$0xff]
        %v2896 = vld [vmem:[%s2885 + $0x50] sm:$0xff]
        %v2897 = vld [vmem:[%s2885 + $0x58] sm:$0xff]
        %v2898 = vld [vmem:[%s2885 + $0x60] sm:$0xff]
        %v2899 = vld [vmem:[%s2885 + $0x68] sm:$0xff]
        %v2900 = vld [vmem:[%s2885 + $0x70] sm:$0xff]
        %v2901 = vld [vmem:[%s2885 + $0x78] sm:$0xff]
        %2902 = vmatpush.msra.mxu0 %v2901
        %2903 = vmatpush.msra.mxu0 %v2900
        %2904 = vmatpush.msra.mxu0 %v2899
        %2905 = vmatpush.msra.mxu0 %v2898
        %2906 = vmatpush.msra.mxu0 %v2897
        %2907 = vmatpush.msra.mxu0 %v2896
        %2908 = vmatpush.msra.mxu0 %v2895
        %2909 = vmatpush.msra.mxu0 %v2894
        %2910 = vmatpush.msra.mxu0 %v2893
        %2911 = vmatpush.msra.mxu0 %v2892
        %2912 = vmatpush.msra.mxu0 %v2891
        %2913 = vmatpush.msra.mxu0 %v2890
        %2914 = vmatpush.msra.mxu0 %v2889
        %2915 = vmatpush.msra.mxu0 %v2888
        %2916 = vmatpush.msra.mxu0 %v2887
        %2917 = vmatpush.msra.mxu0 %v2886
        %2918 = vmatmul.f32.gmra.mxu0 %v2867
        %v2919 = vpop.f32.mrf.mxu0
        %v2920 = vadd.f32 0.0, %v2919
        %2921 = vmatmul.f32.gmra.mxu0 %v2868
        %v2922 = vpop.f32.mrf.mxu0
        %v2923 = vadd.f32 0.0, %v2922
        %2924 = vmatmul.f32.gmra.mxu0 %v2869
        %v2925 = vpop.f32.mrf.mxu0
        %v2926 = vadd.f32 0.0, %v2925
        %2927 = vmatmul.f32.gmra.mxu0 %v2870
        %v2928 = vpop.f32.mrf.mxu0
        %v2929 = vadd.f32 0.0, %v2928
        %2930 = vmatmul.f32.gmra.mxu0 %v2871
        %v2931 = vpop.f32.mrf.mxu0
        %v2932 = vadd.f32 0.0, %v2931
        %2933 = vmatmul.f32.gmra.mxu0 %v2872
        %v2934 = vpop.f32.mrf.mxu0
        %v2935 = vadd.f32 0.0, %v2934
        %2936 = vmatmul.f32.gmra.mxu0 %v2873
        %v2937 = vpop.f32.mrf.mxu0
        %v2938 = vadd.f32 0.0, %v2937
        %2939 = vmatmul.f32.gmra.mxu0 %v2874
        %v2940 = vpop.f32.mrf.mxu0
        %v2941 = vadd.f32 0.0, %v2940
        %2942 = vmatmul.f32.gmra.mxu0 %v2875
        %v2943 = vpop.f32.mrf.mxu0
        %v2944 = vadd.f32 0.0, %v2943
        %2945 = vmatmul.f32.gmra.mxu0 %v2876
        %v2946 = vpop.f32.mrf.mxu0
        %v2947 = vadd.f32 0.0, %v2946
        %2948 = vmatmul.f32.gmra.mxu0 %v2877
        %v2949 = vpop.f32.mrf.mxu0
        %v2950 = vadd.f32 0.0, %v2949
        %2951 = vmatmul.f32.gmra.mxu0 %v2878
        %v2952 = vpop.f32.mrf.mxu0
        %v2953 = vadd.f32 0.0, %v2952
        %2954 = vmatmul.f32.gmra.mxu0 %v2879
        %v2955 = vpop.f32.mrf.mxu0
        %v2956 = vadd.f32 0.0, %v2955
        %2957 = vmatmul.f32.gmra.mxu0 %v2880
        %v2958 = vpop.f32.mrf.mxu0
        %v2959 = vadd.f32 0.0, %v2958
        %2960 = vmatmul.f32.gmra.mxu0 %v2881
        %v2961 = vpop.f32.mrf.mxu0
        %v2962 = vadd.f32 0.0, %v2961
        %2963 = vmatmul.f32.gmra.mxu0 %v2882
        %v2964 = vpop.f32.mrf.mxu0
        %v2965 = vadd.f32 0.0, %v2964
        %2966 = vmatmul.f32.gmra.mxu0 %v2883
        %v2967 = vpop.f32.mrf.mxu0
        %v2968 = vadd.f32 0.0, %v2967
        %2969 = vmatmul.f32.gmra.mxu0 %v2884
        %v2970 = vpop.f32.mrf.mxu0
        %v2971 = vadd.f32 0.0, %v2970
        %2972 = vdwg.mxu0
        %v2973 = vadd.f32 %v2849, %v2920
        %v2974 = vadd.f32 %v2850, %v2923
        %v2975 = vadd.f32 %v2851, %v2926
        %v2976 = vadd.f32 %v2852, %v2929
        %v2977 = vadd.f32 %v2853, %v2932
        %v2978 = vadd.f32 %v2854, %v2935
        %v2979 = vadd.f32 %v2855, %v2938
        %v2980 = vadd.f32 %v2856, %v2941
        %v2981 = vadd.f32 %v2857, %v2944
        %v2982 = vadd.f32 %v2858, %v2947
        %v2983 = vadd.f32 %v2859, %v2950
        %v2984 = vadd.f32 %v2860, %v2953
        %v2985 = vadd.f32 %v2861, %v2956
        %v2986 = vadd.f32 %v2862, %v2959
        %v2987 = vadd.f32 %v2863, %v2962
        %v2988 = vadd.f32 %v2864, %v2965
        %v2989 = vadd.f32 %v2865, %v2968
        %v2990 = vadd.f32 %v2866, %v2971
        %v2991 = vld [vmem:[#allocation2 + $0x2b] sm:$0xff]
        %v2992 = vld [vmem:[#allocation2 + $0x33] sm:$0xff]
        %v2993 = vld [vmem:[#allocation2 + $0x3b] sm:$0xff]
        %v2994 = vld [vmem:[#allocation2 + $0x43] sm:$0xff]
        %v2995 = vld [vmem:[#allocation2 + $0x4b] sm:$0xff]
        %v2996 = vld [vmem:[#allocation2 + $0x53] sm:$0xff]
        %v2997 = vld [vmem:[#allocation2 + $0x5b] sm:$0xff]
        %v2998 = vld [vmem:[#allocation2 + $0x63] sm:$0xff]
        %v2999 = vld [vmem:[#allocation2 + $0x6b] sm:$0xff]
        %v3000 = vld [vmem:[#allocation2 + $0x73] sm:$0xff]
        %v3001 = vld [vmem:[#allocation2 + $0x7b] sm:$0xff]
        %v3002 = vld [vmem:[#allocation2 + $0x83] sm:$0xff]
        %v3003 = vld [vmem:[#allocation2 + $0x8b] sm:$0xff]
        %v3004 = vld [vmem:[#allocation2 + $0x93] sm:$0xff]
        %v3005 = vld [vmem:[#allocation2 + $0x9b] sm:$0xff]
        %v3006 = vld [vmem:[#allocation2 + $0xa3] sm:$0xff]
        %v3007 = vld [vmem:[#allocation2 + $0xab] sm:$0xff]
        %v3008 = vld [vmem:[#allocation2 + $0xb3] sm:$0xf]
        %s3009 = scalar_lea.vmem %s3, 2048
        %v3010 = vld [vmem:[%s3009] sm:$0xff]
        %v3011 = vld [vmem:[%s3009 + $0x8] sm:$0xff]
        %v3012 = vld [vmem:[%s3009 + $0x10] sm:$0xff]
        %v3013 = vld [vmem:[%s3009 + $0x18] sm:$0xff]
        %v3014 = vld [vmem:[%s3009 + $0x20] sm:$0xff]
        %v3015 = vld [vmem:[%s3009 + $0x28] sm:$0xff]
        %v3016 = vld [vmem:[%s3009 + $0x30] sm:$0xff]
        %v3017 = vld [vmem:[%s3009 + $0x38] sm:$0xff]
        %v3018 = vld [vmem:[%s3009 + $0x40] sm:$0xff]
        %v3019 = vld [vmem:[%s3009 + $0x48] sm:$0xff]
        %v3020 = vld [vmem:[%s3009 + $0x50] sm:$0xff]
        %v3021 = vld [vmem:[%s3009 + $0x58] sm:$0xff]
        %v3022 = vld [vmem:[%s3009 + $0x60] sm:$0xff]
        %v3023 = vld [vmem:[%s3009 + $0x68] sm:$0xff]
        %v3024 = vld [vmem:[%s3009 + $0x70] sm:$0xff]
        %v3025 = vld [vmem:[%s3009 + $0x78] sm:$0xff]
        %3026 = vmatpush.msra.mxu0 %v3025
        %3027 = vmatpush.msra.mxu0 %v3024
        %3028 = vmatpush.msra.mxu0 %v3023
        %3029 = vmatpush.msra.mxu0 %v3022
        %3030 = vmatpush.msra.mxu0 %v3021
        %3031 = vmatpush.msra.mxu0 %v3020
        %3032 = vmatpush.msra.mxu0 %v3019
        %3033 = vmatpush.msra.mxu0 %v3018
        %3034 = vmatpush.msra.mxu0 %v3017
        %3035 = vmatpush.msra.mxu0 %v3016
        %3036 = vmatpush.msra.mxu0 %v3015
        %3037 = vmatpush.msra.mxu0 %v3014
        %3038 = vmatpush.msra.mxu0 %v3013
        %3039 = vmatpush.msra.mxu0 %v3012
        %3040 = vmatpush.msra.mxu0 %v3011
        %3041 = vmatpush.msra.mxu0 %v3010
        %3042 = vmatmul.f32.gmra.mxu0 %v2991
        %v3043 = vpop.f32.mrf.mxu0
        %v3044 = vadd.f32 0.0, %v3043
        %3045 = vmatmul.f32.gmra.mxu0 %v2992
        %v3046 = vpop.f32.mrf.mxu0
        %v3047 = vadd.f32 0.0, %v3046
        %3048 = vmatmul.f32.gmra.mxu0 %v2993
        %v3049 = vpop.f32.mrf.mxu0
        %v3050 = vadd.f32 0.0, %v3049
        %3051 = vmatmul.f32.gmra.mxu0 %v2994
        %v3052 = vpop.f32.mrf.mxu0
        %v3053 = vadd.f32 0.0, %v3052
        %3054 = vmatmul.f32.gmra.mxu0 %v2995
        %v3055 = vpop.f32.mrf.mxu0
        %v3056 = vadd.f32 0.0, %v3055
        %3057 = vmatmul.f32.gmra.mxu0 %v2996
        %v3058 = vpop.f32.mrf.mxu0
        %v3059 = vadd.f32 0.0, %v3058
        %3060 = vmatmul.f32.gmra.mxu0 %v2997
        %v3061 = vpop.f32.mrf.mxu0
        %v3062 = vadd.f32 0.0, %v3061
        %3063 = vmatmul.f32.gmra.mxu0 %v2998
        %v3064 = vpop.f32.mrf.mxu0
        %v3065 = vadd.f32 0.0, %v3064
        %3066 = vmatmul.f32.gmra.mxu0 %v2999
        %v3067 = vpop.f32.mrf.mxu0
        %v3068 = vadd.f32 0.0, %v3067
        %3069 = vmatmul.f32.gmra.mxu0 %v3000
        %v3070 = vpop.f32.mrf.mxu0
        %v3071 = vadd.f32 0.0, %v3070
        %3072 = vmatmul.f32.gmra.mxu0 %v3001
        %v3073 = vpop.f32.mrf.mxu0
        %v3074 = vadd.f32 0.0, %v3073
        %3075 = vmatmul.f32.gmra.mxu0 %v3002
        %v3076 = vpop.f32.mrf.mxu0
        %v3077 = vadd.f32 0.0, %v3076
        %3078 = vmatmul.f32.gmra.mxu0 %v3003
        %v3079 = vpop.f32.mrf.mxu0
        %v3080 = vadd.f32 0.0, %v3079
        %3081 = vmatmul.f32.gmra.mxu0 %v3004
        %v3082 = vpop.f32.mrf.mxu0
        %v3083 = vadd.f32 0.0, %v3082
        %3084 = vmatmul.f32.gmra.mxu0 %v3005
        %v3085 = vpop.f32.mrf.mxu0
        %v3086 = vadd.f32 0.0, %v3085
        %3087 = vmatmul.f32.gmra.mxu0 %v3006
        %v3088 = vpop.f32.mrf.mxu0
        %v3089 = vadd.f32 0.0, %v3088
        %3090 = vmatmul.f32.gmra.mxu0 %v3007
        %v3091 = vpop.f32.mrf.mxu0
        %v3092 = vadd.f32 0.0, %v3091
        %3093 = vmatmul.f32.gmra.mxu0 %v3008
        %v3094 = vpop.f32.mrf.mxu0
        %v3095 = vadd.f32 0.0, %v3094
        %3096 = vdwg.mxu0
        %v3097 = vadd.f32 %v2973, %v3044
        %v3098 = vadd.f32 %v2974, %v3047
        %v3099 = vadd.f32 %v2975, %v3050
        %v3100 = vadd.f32 %v2976, %v3053
        %v3101 = vadd.f32 %v2977, %v3056
        %v3102 = vadd.f32 %v2978, %v3059
        %v3103 = vadd.f32 %v2979, %v3062
        %v3104 = vadd.f32 %v2980, %v3065
        %v3105 = vadd.f32 %v2981, %v3068
        %v3106 = vadd.f32 %v2982, %v3071
        %v3107 = vadd.f32 %v2983, %v3074
        %v3108 = vadd.f32 %v2984, %v3077
        %v3109 = vadd.f32 %v2985, %v3080
        %v3110 = vadd.f32 %v2986, %v3083
        %v3111 = vadd.f32 %v2987, %v3086
        %v3112 = vadd.f32 %v2988, %v3089
        %v3113 = vadd.f32 %v2989, %v3092
        %v3114 = vadd.f32 %v2990, %v3095
        %v3115 = vld [vmem:[#allocation2 + $0x2c] sm:$0xff]
        %v3116 = vld [vmem:[#allocation2 + $0x34] sm:$0xff]
        %v3117 = vld [vmem:[#allocation2 + $0x3c] sm:$0xff]
        %v3118 = vld [vmem:[#allocation2 + $0x44] sm:$0xff]
        %v3119 = vld [vmem:[#allocation2 + $0x4c] sm:$0xff]
        %v3120 = vld [vmem:[#allocation2 + $0x54] sm:$0xff]
        %v3121 = vld [vmem:[#allocation2 + $0x5c] sm:$0xff]
        %v3122 = vld [vmem:[#allocation2 + $0x64] sm:$0xff]
        %v3123 = vld [vmem:[#allocation2 + $0x6c] sm:$0xff]
        %v3124 = vld [vmem:[#allocation2 + $0x74] sm:$0xff]
        %v3125 = vld [vmem:[#allocation2 + $0x7c] sm:$0xff]
        %v3126 = vld [vmem:[#allocation2 + $0x84] sm:$0xff]
        %v3127 = vld [vmem:[#allocation2 + $0x8c] sm:$0xff]
        %v3128 = vld [vmem:[#allocation2 + $0x94] sm:$0xff]
        %v3129 = vld [vmem:[#allocation2 + $0x9c] sm:$0xff]
        %v3130 = vld [vmem:[#allocation2 + $0xa4] sm:$0xff]
        %v3131 = vld [vmem:[#allocation2 + $0xac] sm:$0xff]
        %v3132 = vld [vmem:[#allocation2 + $0xb4] sm:$0xf]
        %s3133 = scalar_lea.vmem %s3, 2176
        %v3134 = vld [vmem:[%s3133] sm:$0xff]
        %v3135 = vld [vmem:[%s3133 + $0x8] sm:$0xff]
        %v3136 = vld [vmem:[%s3133 + $0x10] sm:$0xff]
        %v3137 = vld [vmem:[%s3133 + $0x18] sm:$0xff]
        %v3138 = vld [vmem:[%s3133 + $0x20] sm:$0xff]
        %v3139 = vld [vmem:[%s3133 + $0x28] sm:$0xff]
        %v3140 = vld [vmem:[%s3133 + $0x30] sm:$0xff]
        %v3141 = vld [vmem:[%s3133 + $0x38] sm:$0xff]
        %v3142 = vld [vmem:[%s3133 + $0x40] sm:$0xff]
        %v3143 = vld [vmem:[%s3133 + $0x48] sm:$0xff]
        %v3144 = vld [vmem:[%s3133 + $0x50] sm:$0xff]
        %v3145 = vld [vmem:[%s3133 + $0x58] sm:$0xff]
        %v3146 = vld [vmem:[%s3133 + $0x60] sm:$0xff]
        %v3147 = vld [vmem:[%s3133 + $0x68] sm:$0xff]
        %v3148 = vld [vmem:[%s3133 + $0x70] sm:$0xff]
        %v3149 = vld [vmem:[%s3133 + $0x78] sm:$0xff]
        %3150 = vmatpush.msra.mxu0 %v3149
        %3151 = vmatpush.msra.mxu0 %v3148
        %3152 = vmatpush.msra.mxu0 %v3147
        %3153 = vmatpush.msra.mxu0 %v3146
        %3154 = vmatpush.msra.mxu0 %v3145
        %3155 = vmatpush.msra.mxu0 %v3144
        %3156 = vmatpush.msra.mxu0 %v3143
        %3157 = vmatpush.msra.mxu0 %v3142
        %3158 = vmatpush.msra.mxu0 %v3141
        %3159 = vmatpush.msra.mxu0 %v3140
        %3160 = vmatpush.msra.mxu0 %v3139
        %3161 = vmatpush.msra.mxu0 %v3138
        %3162 = vmatpush.msra.mxu0 %v3137
        %3163 = vmatpush.msra.mxu0 %v3136
        %3164 = vmatpush.msra.mxu0 %v3135
        %3165 = vmatpush.msra.mxu0 %v3134
        %3166 = vmatmul.f32.gmra.mxu0 %v3115
        %v3167 = vpop.f32.mrf.mxu0
        %v3168 = vadd.f32 0.0, %v3167
        %3169 = vmatmul.f32.gmra.mxu0 %v3116
        %v3170 = vpop.f32.mrf.mxu0
        %v3171 = vadd.f32 0.0, %v3170
        %3172 = vmatmul.f32.gmra.mxu0 %v3117
        %v3173 = vpop.f32.mrf.mxu0
        %v3174 = vadd.f32 0.0, %v3173
        %3175 = vmatmul.f32.gmra.mxu0 %v3118
        %v3176 = vpop.f32.mrf.mxu0
        %v3177 = vadd.f32 0.0, %v3176
        %3178 = vmatmul.f32.gmra.mxu0 %v3119
        %v3179 = vpop.f32.mrf.mxu0
        %v3180 = vadd.f32 0.0, %v3179
        %3181 = vmatmul.f32.gmra.mxu0 %v3120
        %v3182 = vpop.f32.mrf.mxu0
        %v3183 = vadd.f32 0.0, %v3182
        %3184 = vmatmul.f32.gmra.mxu0 %v3121
        %v3185 = vpop.f32.mrf.mxu0
        %v3186 = vadd.f32 0.0, %v3185
        %3187 = vmatmul.f32.gmra.mxu0 %v3122
        %v3188 = vpop.f32.mrf.mxu0
        %v3189 = vadd.f32 0.0, %v3188
        %3190 = vmatmul.f32.gmra.mxu0 %v3123
        %v3191 = vpop.f32.mrf.mxu0
        %v3192 = vadd.f32 0.0, %v3191
        %3193 = vmatmul.f32.gmra.mxu0 %v3124
        %v3194 = vpop.f32.mrf.mxu0
        %v3195 = vadd.f32 0.0, %v3194
        %3196 = vmatmul.f32.gmra.mxu0 %v3125
        %v3197 = vpop.f32.mrf.mxu0
        %v3198 = vadd.f32 0.0, %v3197
        %3199 = vmatmul.f32.gmra.mxu0 %v3126
        %v3200 = vpop.f32.mrf.mxu0
        %v3201 = vadd.f32 0.0, %v3200
        %3202 = vmatmul.f32.gmra.mxu0 %v3127
        %v3203 = vpop.f32.mrf.mxu0
        %v3204 = vadd.f32 0.0, %v3203
        %3205 = vmatmul.f32.gmra.mxu0 %v3128
        %v3206 = vpop.f32.mrf.mxu0
        %v3207 = vadd.f32 0.0, %v3206
        %3208 = vmatmul.f32.gmra.mxu0 %v3129
        %v3209 = vpop.f32.mrf.mxu0
        %v3210 = vadd.f32 0.0, %v3209
        %3211 = vmatmul.f32.gmra.mxu0 %v3130
        %v3212 = vpop.f32.mrf.mxu0
        %v3213 = vadd.f32 0.0, %v3212
        %3214 = vmatmul.f32.gmra.mxu0 %v3131
        %v3215 = vpop.f32.mrf.mxu0
        %v3216 = vadd.f32 0.0, %v3215
        %3217 = vmatmul.f32.gmra.mxu0 %v3132
        %v3218 = vpop.f32.mrf.mxu0
        %v3219 = vadd.f32 0.0, %v3218
        %3220 = vdwg.mxu0
        %v3221 = vadd.f32 %v3097, %v3168
        %v3222 = vadd.f32 %v3098, %v3171
        %v3223 = vadd.f32 %v3099, %v3174
        %v3224 = vadd.f32 %v3100, %v3177
        %v3225 = vadd.f32 %v3101, %v3180
        %v3226 = vadd.f32 %v3102, %v3183
        %v3227 = vadd.f32 %v3103, %v3186
        %v3228 = vadd.f32 %v3104, %v3189
        %v3229 = vadd.f32 %v3105, %v3192
        %v3230 = vadd.f32 %v3106, %v3195
        %v3231 = vadd.f32 %v3107, %v3198
        %v3232 = vadd.f32 %v3108, %v3201
        %v3233 = vadd.f32 %v3109, %v3204
        %v3234 = vadd.f32 %v3110, %v3207
        %v3235 = vadd.f32 %v3111, %v3210
        %v3236 = vadd.f32 %v3112, %v3213
        %v3237 = vadd.f32 %v3113, %v3216
        %v3238 = vadd.f32 %v3114, %v3219
        %v3239 = vld [vmem:[#allocation2 + $0x2d] sm:$0xff]
        %v3240 = vld [vmem:[#allocation2 + $0x35] sm:$0xff]
        %v3241 = vld [vmem:[#allocation2 + $0x3d] sm:$0xff]
        %v3242 = vld [vmem:[#allocation2 + $0x45] sm:$0xff]
        %v3243 = vld [vmem:[#allocation2 + $0x4d] sm:$0xff]
        %v3244 = vld [vmem:[#allocation2 + $0x55] sm:$0xff]
        %v3245 = vld [vmem:[#allocation2 + $0x5d] sm:$0xff]
        %v3246 = vld [vmem:[#allocation2 + $0x65] sm:$0xff]
        %v3247 = vld [vmem:[#allocation2 + $0x6d] sm:$0xff]
        %v3248 = vld [vmem:[#allocation2 + $0x75] sm:$0xff]
        %v3249 = vld [vmem:[#allocation2 + $0x7d] sm:$0xff]
        %v3250 = vld [vmem:[#allocation2 + $0x85] sm:$0xff]
        %v3251 = vld [vmem:[#allocation2 + $0x8d] sm:$0xff]
        %v3252 = vld [vmem:[#allocation2 + $0x95] sm:$0xff]
        %v3253 = vld [vmem:[#allocation2 + $0x9d] sm:$0xff]
        %v3254 = vld [vmem:[#allocation2 + $0xa5] sm:$0xff]
        %v3255 = vld [vmem:[#allocation2 + $0xad] sm:$0xff]
        %v3256 = vld [vmem:[#allocation2 + $0xb5] sm:$0xf]
        %s3257 = scalar_lea.vmem %s3, 2304
        %v3258 = vld [vmem:[%s3257] sm:$0xff]
        %v3259 = vld [vmem:[%s3257 + $0x8] sm:$0xff]
        %v3260 = vld [vmem:[%s3257 + $0x10] sm:$0xff]
        %v3261 = vld [vmem:[%s3257 + $0x18] sm:$0xff]
        %v3262 = vld [vmem:[%s3257 + $0x20] sm:$0xff]
        %v3263 = vld [vmem:[%s3257 + $0x28] sm:$0xff]
        %v3264 = vld [vmem:[%s3257 + $0x30] sm:$0xff]
        %v3265 = vld [vmem:[%s3257 + $0x38] sm:$0xff]
        %v3266 = vld [vmem:[%s3257 + $0x40] sm:$0xff]
        %v3267 = vld [vmem:[%s3257 + $0x48] sm:$0xff]
        %v3268 = vld [vmem:[%s3257 + $0x50] sm:$0xff]
        %v3269 = vld [vmem:[%s3257 + $0x58] sm:$0xff]
        %v3270 = vld [vmem:[%s3257 + $0x60] sm:$0xff]
        %v3271 = vld [vmem:[%s3257 + $0x68] sm:$0xff]
        %v3272 = vld [vmem:[%s3257 + $0x70] sm:$0xff]
        %v3273 = vld [vmem:[%s3257 + $0x78] sm:$0xff]
        %3274 = vmatpush.msra.mxu0 %v3273
        %3275 = vmatpush.msra.mxu0 %v3272
        %3276 = vmatpush.msra.mxu0 %v3271
        %3277 = vmatpush.msra.mxu0 %v3270
        %3278 = vmatpush.msra.mxu0 %v3269
        %3279 = vmatpush.msra.mxu0 %v3268
        %3280 = vmatpush.msra.mxu0 %v3267
        %3281 = vmatpush.msra.mxu0 %v3266
        %3282 = vmatpush.msra.mxu0 %v3265
        %3283 = vmatpush.msra.mxu0 %v3264
        %3284 = vmatpush.msra.mxu0 %v3263
        %3285 = vmatpush.msra.mxu0 %v3262
        %3286 = vmatpush.msra.mxu0 %v3261
        %3287 = vmatpush.msra.mxu0 %v3260
        %3288 = vmatpush.msra.mxu0 %v3259
        %3289 = vmatpush.msra.mxu0 %v3258
        %3290 = vmatmul.f32.gmra.mxu0 %v3239
        %v3291 = vpop.f32.mrf.mxu0
        %v3292 = vadd.f32 0.0, %v3291
        %3293 = vmatmul.f32.gmra.mxu0 %v3240
        %v3294 = vpop.f32.mrf.mxu0
        %v3295 = vadd.f32 0.0, %v3294
        %3296 = vmatmul.f32.gmra.mxu0 %v3241
        %v3297 = vpop.f32.mrf.mxu0
        %v3298 = vadd.f32 0.0, %v3297
        %3299 = vmatmul.f32.gmra.mxu0 %v3242
        %v3300 = vpop.f32.mrf.mxu0
        %v3301 = vadd.f32 0.0, %v3300
        %3302 = vmatmul.f32.gmra.mxu0 %v3243
        %v3303 = vpop.f32.mrf.mxu0
        %v3304 = vadd.f32 0.0, %v3303
        %3305 = vmatmul.f32.gmra.mxu0 %v3244
        %v3306 = vpop.f32.mrf.mxu0
        %v3307 = vadd.f32 0.0, %v3306
        %3308 = vmatmul.f32.gmra.mxu0 %v3245
        %v3309 = vpop.f32.mrf.mxu0
        %v3310 = vadd.f32 0.0, %v3309
        %3311 = vmatmul.f32.gmra.mxu0 %v3246
        %v3312 = vpop.f32.mrf.mxu0
        %v3313 = vadd.f32 0.0, %v3312
        %3314 = vmatmul.f32.gmra.mxu0 %v3247
        %v3315 = vpop.f32.mrf.mxu0
        %v3316 = vadd.f32 0.0, %v3315
        %3317 = vmatmul.f32.gmra.mxu0 %v3248
        %v3318 = vpop.f32.mrf.mxu0
        %v3319 = vadd.f32 0.0, %v3318
        %3320 = vmatmul.f32.gmra.mxu0 %v3249
        %v3321 = vpop.f32.mrf.mxu0
        %v3322 = vadd.f32 0.0, %v3321
        %3323 = vmatmul.f32.gmra.mxu0 %v3250
        %v3324 = vpop.f32.mrf.mxu0
        %v3325 = vadd.f32 0.0, %v3324
        %3326 = vmatmul.f32.gmra.mxu0 %v3251
        %v3327 = vpop.f32.mrf.mxu0
        %v3328 = vadd.f32 0.0, %v3327
        %3329 = vmatmul.f32.gmra.mxu0 %v3252
        %v3330 = vpop.f32.mrf.mxu0
        %v3331 = vadd.f32 0.0, %v3330
        %3332 = vmatmul.f32.gmra.mxu0 %v3253
        %v3333 = vpop.f32.mrf.mxu0
        %v3334 = vadd.f32 0.0, %v3333
        %3335 = vmatmul.f32.gmra.mxu0 %v3254
        %v3336 = vpop.f32.mrf.mxu0
        %v3337 = vadd.f32 0.0, %v3336
        %3338 = vmatmul.f32.gmra.mxu0 %v3255
        %v3339 = vpop.f32.mrf.mxu0
        %v3340 = vadd.f32 0.0, %v3339
        %3341 = vmatmul.f32.gmra.mxu0 %v3256
        %v3342 = vpop.f32.mrf.mxu0
        %v3343 = vadd.f32 0.0, %v3342
        %3344 = vdwg.mxu0
        %v3345 = vadd.f32 %v3221, %v3292
        %v3346 = vadd.f32 %v3222, %v3295
        %v3347 = vadd.f32 %v3223, %v3298
        %v3348 = vadd.f32 %v3224, %v3301
        %v3349 = vadd.f32 %v3225, %v3304
        %v3350 = vadd.f32 %v3226, %v3307
        %v3351 = vadd.f32 %v3227, %v3310
        %v3352 = vadd.f32 %v3228, %v3313
        %v3353 = vadd.f32 %v3229, %v3316
        %v3354 = vadd.f32 %v3230, %v3319
        %v3355 = vadd.f32 %v3231, %v3322
        %v3356 = vadd.f32 %v3232, %v3325
        %v3357 = vadd.f32 %v3233, %v3328
        %v3358 = vadd.f32 %v3234, %v3331
        %v3359 = vadd.f32 %v3235, %v3334
        %v3360 = vadd.f32 %v3236, %v3337
        %v3361 = vadd.f32 %v3237, %v3340
        %v3362 = vadd.f32 %v3238, %v3343
        %v3363 = vld [vmem:[#allocation2 + $0x2e] sm:$0xff]
        %v3364 = vld [vmem:[#allocation2 + $0x36] sm:$0xff]
        %v3365 = vld [vmem:[#allocation2 + $0x3e] sm:$0xff]
        %v3366 = vld [vmem:[#allocation2 + $0x46] sm:$0xff]
        %v3367 = vld [vmem:[#allocation2 + $0x4e] sm:$0xff]
        %v3368 = vld [vmem:[#allocation2 + $0x56] sm:$0xff]
        %v3369 = vld [vmem:[#allocation2 + $0x5e] sm:$0xff]
        %v3370 = vld [vmem:[#allocation2 + $0x66] sm:$0xff]
        %v3371 = vld [vmem:[#allocation2 + $0x6e] sm:$0xff]
        %v3372 = vld [vmem:[#allocation2 + $0x76] sm:$0xff]
        %v3373 = vld [vmem:[#allocation2 + $0x7e] sm:$0xff]
        %v3374 = vld [vmem:[#allocation2 + $0x86] sm:$0xff]
        %v3375 = vld [vmem:[#allocation2 + $0x8e] sm:$0xff]
        %v3376 = vld [vmem:[#allocation2 + $0x96] sm:$0xff]
        %v3377 = vld [vmem:[#allocation2 + $0x9e] sm:$0xff]
        %v3378 = vld [vmem:[#allocation2 + $0xa6] sm:$0xff]
        %v3379 = vld [vmem:[#allocation2 + $0xae] sm:$0xff]
        %v3380 = vld [vmem:[#allocation2 + $0xb6] sm:$0xf]
        %s3381 = scalar_lea.vmem %s3, 2432
        %v3382 = vld [vmem:[%s3381] sm:$0xff]
        %v3383 = vld [vmem:[%s3381 + $0x8] sm:$0xff]
        %v3384 = vld [vmem:[%s3381 + $0x10] sm:$0xff]
        %v3385 = vld [vmem:[%s3381 + $0x18] sm:$0xff]
        %v3386 = vld [vmem:[%s3381 + $0x20] sm:$0xff]
        %v3387 = vld [vmem:[%s3381 + $0x28] sm:$0xff]
        %v3388 = vld [vmem:[%s3381 + $0x30] sm:$0xff]
        %v3389 = vld [vmem:[%s3381 + $0x38] sm:$0xff]
        %v3390 = vld [vmem:[%s3381 + $0x40] sm:$0xff]
        %v3391 = vld [vmem:[%s3381 + $0x48] sm:$0xff]
        %v3392 = vld [vmem:[%s3381 + $0x50] sm:$0xff]
        %v3393 = vld [vmem:[%s3381 + $0x58] sm:$0xff]
        %v3394 = vld [vmem:[%s3381 + $0x60] sm:$0xff]
        %v3395 = vld [vmem:[%s3381 + $0x68] sm:$0xff]
        %v3396 = vld [vmem:[%s3381 + $0x70] sm:$0xff]
        %v3397 = vld [vmem:[%s3381 + $0x78] sm:$0xff]
        %3398 = vmatpush.msra.mxu0 %v3397
        %3399 = vmatpush.msra.mxu0 %v3396
        %3400 = vmatpush.msra.mxu0 %v3395
        %3401 = vmatpush.msra.mxu0 %v3394
        %3402 = vmatpush.msra.mxu0 %v3393
        %3403 = vmatpush.msra.mxu0 %v3392
        %3404 = vmatpush.msra.mxu0 %v3391
        %3405 = vmatpush.msra.mxu0 %v3390
        %3406 = vmatpush.msra.mxu0 %v3389
        %3407 = vmatpush.msra.mxu0 %v3388
        %3408 = vmatpush.msra.mxu0 %v3387
        %3409 = vmatpush.msra.mxu0 %v3386
        %3410 = vmatpush.msra.mxu0 %v3385
        %3411 = vmatpush.msra.mxu0 %v3384
        %3412 = vmatpush.msra.mxu0 %v3383
        %3413 = vmatpush.msra.mxu0 %v3382
        %3414 = vmatmul.f32.gmra.mxu0 %v3363
        %v3415 = vpop.f32.mrf.mxu0
        %v3416 = vadd.f32 0.0, %v3415
        %3417 = vmatmul.f32.gmra.mxu0 %v3364
        %v3418 = vpop.f32.mrf.mxu0
        %v3419 = vadd.f32 0.0, %v3418
        %3420 = vmatmul.f32.gmra.mxu0 %v3365
        %v3421 = vpop.f32.mrf.mxu0
        %v3422 = vadd.f32 0.0, %v3421
        %3423 = vmatmul.f32.gmra.mxu0 %v3366
        %v3424 = vpop.f32.mrf.mxu0
        %v3425 = vadd.f32 0.0, %v3424
        %3426 = vmatmul.f32.gmra.mxu0 %v3367
        %v3427 = vpop.f32.mrf.mxu0
        %v3428 = vadd.f32 0.0, %v3427
        %3429 = vmatmul.f32.gmra.mxu0 %v3368
        %v3430 = vpop.f32.mrf.mxu0
        %v3431 = vadd.f32 0.0, %v3430
        %3432 = vmatmul.f32.gmra.mxu0 %v3369
        %v3433 = vpop.f32.mrf.mxu0
        %v3434 = vadd.f32 0.0, %v3433
        %3435 = vmatmul.f32.gmra.mxu0 %v3370
        %v3436 = vpop.f32.mrf.mxu0
        %v3437 = vadd.f32 0.0, %v3436
        %3438 = vmatmul.f32.gmra.mxu0 %v3371
        %v3439 = vpop.f32.mrf.mxu0
        %v3440 = vadd.f32 0.0, %v3439
        %3441 = vmatmul.f32.gmra.mxu0 %v3372
        %v3442 = vpop.f32.mrf.mxu0
        %v3443 = vadd.f32 0.0, %v3442
        %3444 = vmatmul.f32.gmra.mxu0 %v3373
        %v3445 = vpop.f32.mrf.mxu0
        %v3446 = vadd.f32 0.0, %v3445
        %3447 = vmatmul.f32.gmra.mxu0 %v3374
        %v3448 = vpop.f32.mrf.mxu0
        %v3449 = vadd.f32 0.0, %v3448
        %3450 = vmatmul.f32.gmra.mxu0 %v3375
        %v3451 = vpop.f32.mrf.mxu0
        %v3452 = vadd.f32 0.0, %v3451
        %3453 = vmatmul.f32.gmra.mxu0 %v3376
        %v3454 = vpop.f32.mrf.mxu0
        %v3455 = vadd.f32 0.0, %v3454
        %3456 = vmatmul.f32.gmra.mxu0 %v3377
        %v3457 = vpop.f32.mrf.mxu0
        %v3458 = vadd.f32 0.0, %v3457
        %3459 = vmatmul.f32.gmra.mxu0 %v3378
        %v3460 = vpop.f32.mrf.mxu0
        %v3461 = vadd.f32 0.0, %v3460
        %3462 = vmatmul.f32.gmra.mxu0 %v3379
        %v3463 = vpop.f32.mrf.mxu0
        %v3464 = vadd.f32 0.0, %v3463
        %3465 = vmatmul.f32.gmra.mxu0 %v3380
        %v3466 = vpop.f32.mrf.mxu0
        %v3467 = vadd.f32 0.0, %v3466
        %3468 = vdwg.mxu0
        %v3469 = vadd.f32 %v3345, %v3416
        %v3470 = vadd.f32 %v3346, %v3419
        %v3471 = vadd.f32 %v3347, %v3422
        %v3472 = vadd.f32 %v3348, %v3425
        %v3473 = vadd.f32 %v3349, %v3428
        %v3474 = vadd.f32 %v3350, %v3431
        %v3475 = vadd.f32 %v3351, %v3434
        %v3476 = vadd.f32 %v3352, %v3437
        %v3477 = vadd.f32 %v3353, %v3440
        %v3478 = vadd.f32 %v3354, %v3443
        %v3479 = vadd.f32 %v3355, %v3446
        %v3480 = vadd.f32 %v3356, %v3449
        %v3481 = vadd.f32 %v3357, %v3452
        %v3482 = vadd.f32 %v3358, %v3455
        %v3483 = vadd.f32 %v3359, %v3458
        %v3484 = vadd.f32 %v3360, %v3461
        %v3485 = vadd.f32 %v3361, %v3464
        %v3486 = vadd.f32 %v3362, %v3467
        %v3487 = vld [vmem:[#allocation2 + $0x38] sm:$0xff]
        %v3488 = vld [vmem:[#allocation2 + $0x40] sm:$0xff]
        %v3489 = vld [vmem:[#allocation2 + $0x48] sm:$0xff]
        %v3490 = vld [vmem:[#allocation2 + $0x50] sm:$0xff]
        %v3491 = vld [vmem:[#allocation2 + $0x58] sm:$0xff]
        %v3492 = vld [vmem:[#allocation2 + $0x60] sm:$0xff]
        %v3493 = vld [vmem:[#allocation2 + $0x68] sm:$0xff]
        %v3494 = vld [vmem:[#allocation2 + $0x70] sm:$0xff]
        %v3495 = vld [vmem:[#allocation2 + $0x78] sm:$0xff]
        %v3496 = vld [vmem:[#allocation2 + $0x80] sm:$0xff]
        %v3497 = vld [vmem:[#allocation2 + $0x88] sm:$0xff]
        %v3498 = vld [vmem:[#allocation2 + $0x90] sm:$0xff]
        %v3499 = vld [vmem:[#allocation2 + $0x98] sm:$0xff]
        %v3500 = vld [vmem:[#allocation2 + $0xa0] sm:$0xff]
        %v3501 = vld [vmem:[#allocation2 + $0xa8] sm:$0xff]
        %v3502 = vld [vmem:[#allocation2 + $0xb0] sm:$0xff]
        %v3503 = vld [vmem:[#allocation2 + $0xb8] sm:$0xff]
        %v3504 = vld [vmem:[#allocation2 + $0xc0] sm:$0xf]
        %s3505 = scalar_lea.vmem %s3, 2560
        %v3506 = vld [vmem:[%s3505] sm:$0xff]
        %v3507 = vld [vmem:[%s3505 + $0x8] sm:$0xff]
        %v3508 = vld [vmem:[%s3505 + $0x10] sm:$0xff]
        %v3509 = vld [vmem:[%s3505 + $0x18] sm:$0xff]
        %v3510 = vld [vmem:[%s3505 + $0x20] sm:$0xff]
        %v3511 = vld [vmem:[%s3505 + $0x28] sm:$0xff]
        %v3512 = vld [vmem:[%s3505 + $0x30] sm:$0xff]
        %v3513 = vld [vmem:[%s3505 + $0x38] sm:$0xff]
        %v3514 = vld [vmem:[%s3505 + $0x40] sm:$0xff]
        %v3515 = vld [vmem:[%s3505 + $0x48] sm:$0xff]
        %v3516 = vld [vmem:[%s3505 + $0x50] sm:$0xff]
        %v3517 = vld [vmem:[%s3505 + $0x58] sm:$0xff]
        %v3518 = vld [vmem:[%s3505 + $0x60] sm:$0xff]
        %v3519 = vld [vmem:[%s3505 + $0x68] sm:$0xff]
        %v3520 = vld [vmem:[%s3505 + $0x70] sm:$0xff]
        %v3521 = vld [vmem:[%s3505 + $0x78] sm:$0xff]
        %3522 = vmatpush.msra.mxu0 %v3521
        %3523 = vmatpush.msra.mxu0 %v3520
        %3524 = vmatpush.msra.mxu0 %v3519
        %3525 = vmatpush.msra.mxu0 %v3518
        %3526 = vmatpush.msra.mxu0 %v3517
        %3527 = vmatpush.msra.mxu0 %v3516
        %3528 = vmatpush.msra.mxu0 %v3515
        %3529 = vmatpush.msra.mxu0 %v3514
        %3530 = vmatpush.msra.mxu0 %v3513
        %3531 = vmatpush.msra.mxu0 %v3512
        %3532 = vmatpush.msra.mxu0 %v3511
        %3533 = vmatpush.msra.mxu0 %v3510
        %3534 = vmatpush.msra.mxu0 %v3509
        %3535 = vmatpush.msra.mxu0 %v3508
        %3536 = vmatpush.msra.mxu0 %v3507
        %3537 = vmatpush.msra.mxu0 %v3506
        %3538 = vmatmul.f32.gmra.mxu0 %v3487
        %v3539 = vpop.f32.mrf.mxu0
        %v3540 = vadd.f32 0.0, %v3539
        %3541 = vmatmul.f32.gmra.mxu0 %v3488
        %v3542 = vpop.f32.mrf.mxu0
        %v3543 = vadd.f32 0.0, %v3542
        %3544 = vmatmul.f32.gmra.mxu0 %v3489
        %v3545 = vpop.f32.mrf.mxu0
        %v3546 = vadd.f32 0.0, %v3545
        %3547 = vmatmul.f32.gmra.mxu0 %v3490
        %v3548 = vpop.f32.mrf.mxu0
        %v3549 = vadd.f32 0.0, %v3548
        %3550 = vmatmul.f32.gmra.mxu0 %v3491
        %v3551 = vpop.f32.mrf.mxu0
        %v3552 = vadd.f32 0.0, %v3551
        %3553 = vmatmul.f32.gmra.mxu0 %v3492
        %v3554 = vpop.f32.mrf.mxu0
        %v3555 = vadd.f32 0.0, %v3554
        %3556 = vmatmul.f32.gmra.mxu0 %v3493
        %v3557 = vpop.f32.mrf.mxu0
        %v3558 = vadd.f32 0.0, %v3557
        %3559 = vmatmul.f32.gmra.mxu0 %v3494
        %v3560 = vpop.f32.mrf.mxu0
        %v3561 = vadd.f32 0.0, %v3560
        %3562 = vmatmul.f32.gmra.mxu0 %v3495
        %v3563 = vpop.f32.mrf.mxu0
        %v3564 = vadd.f32 0.0, %v3563
        %3565 = vmatmul.f32.gmra.mxu0 %v3496
        %v3566 = vpop.f32.mrf.mxu0
        %v3567 = vadd.f32 0.0, %v3566
        %3568 = vmatmul.f32.gmra.mxu0 %v3497
        %v3569 = vpop.f32.mrf.mxu0
        %v3570 = vadd.f32 0.0, %v3569
        %3571 = vmatmul.f32.gmra.mxu0 %v3498
        %v3572 = vpop.f32.mrf.mxu0
        %v3573 = vadd.f32 0.0, %v3572
        %3574 = vmatmul.f32.gmra.mxu0 %v3499
        %v3575 = vpop.f32.mrf.mxu0
        %v3576 = vadd.f32 0.0, %v3575
        %3577 = vmatmul.f32.gmra.mxu0 %v3500
        %v3578 = vpop.f32.mrf.mxu0
        %v3579 = vadd.f32 0.0, %v3578
        %3580 = vmatmul.f32.gmra.mxu0 %v3501
        %v3581 = vpop.f32.mrf.mxu0
        %v3582 = vadd.f32 0.0, %v3581
        %3583 = vmatmul.f32.gmra.mxu0 %v3502
        %v3584 = vpop.f32.mrf.mxu0
        %v3585 = vadd.f32 0.0, %v3584
        %3586 = vmatmul.f32.gmra.mxu0 %v3503
        %v3587 = vpop.f32.mrf.mxu0
        %v3588 = vadd.f32 0.0, %v3587
        %3589 = vmatmul.f32.gmra.mxu0 %v3504
        %v3590 = vpop.f32.mrf.mxu0
        %v3591 = vadd.f32 0.0, %v3590
        %3592 = vdwg.mxu0
        %v3593 = vadd.f32 %v3469, %v3540
        %v3594 = vadd.f32 %v3470, %v3543
        %v3595 = vadd.f32 %v3471, %v3546
        %v3596 = vadd.f32 %v3472, %v3549
        %v3597 = vadd.f32 %v3473, %v3552
        %v3598 = vadd.f32 %v3474, %v3555
        %v3599 = vadd.f32 %v3475, %v3558
        %v3600 = vadd.f32 %v3476, %v3561
        %v3601 = vadd.f32 %v3477, %v3564
        %v3602 = vadd.f32 %v3478, %v3567
        %v3603 = vadd.f32 %v3479, %v3570
        %v3604 = vadd.f32 %v3480, %v3573
        %v3605 = vadd.f32 %v3481, %v3576
        %v3606 = vadd.f32 %v3482, %v3579
        %v3607 = vadd.f32 %v3483, %v3582
        %v3608 = vadd.f32 %v3484, %v3585
        %v3609 = vadd.f32 %v3485, %v3588
        %v3610 = vadd.f32 %v3486, %v3591
        %v3611 = vld [vmem:[#allocation2 + $0x39] sm:$0xff]
        %v3612 = vld [vmem:[#allocation2 + $0x41] sm:$0xff]
        %v3613 = vld [vmem:[#allocation2 + $0x49] sm:$0xff]
        %v3614 = vld [vmem:[#allocation2 + $0x51] sm:$0xff]
        %v3615 = vld [vmem:[#allocation2 + $0x59] sm:$0xff]
        %v3616 = vld [vmem:[#allocation2 + $0x61] sm:$0xff]
        %v3617 = vld [vmem:[#allocation2 + $0x69] sm:$0xff]
        %v3618 = vld [vmem:[#allocation2 + $0x71] sm:$0xff]
        %v3619 = vld [vmem:[#allocation2 + $0x79] sm:$0xff]
        %v3620 = vld [vmem:[#allocation2 + $0x81] sm:$0xff]
        %v3621 = vld [vmem:[#allocation2 + $0x89] sm:$0xff]
        %v3622 = vld [vmem:[#allocation2 + $0x91] sm:$0xff]
        %v3623 = vld [vmem:[#allocation2 + $0x99] sm:$0xff]
        %v3624 = vld [vmem:[#allocation2 + $0xa1] sm:$0xff]
        %v3625 = vld [vmem:[#allocation2 + $0xa9] sm:$0xff]
        %v3626 = vld [vmem:[#allocation2 + $0xb1] sm:$0xff]
        %v3627 = vld [vmem:[#allocation2 + $0xb9] sm:$0xff]
        %v3628 = vld [vmem:[#allocation2 + $0xc1] sm:$0xf]
        %s3629 = scalar_lea.vmem %s3, 2688
        %v3630 = vld [vmem:[%s3629] sm:$0xff]
        %v3631 = vld [vmem:[%s3629 + $0x8] sm:$0xff]
        %v3632 = vld [vmem:[%s3629 + $0x10] sm:$0xff]
        %v3633 = vld [vmem:[%s3629 + $0x18] sm:$0xff]
        %v3634 = vld [vmem:[%s3629 + $0x20] sm:$0xff]
        %v3635 = vld [vmem:[%s3629 + $0x28] sm:$0xff]
        %v3636 = vld [vmem:[%s3629 + $0x30] sm:$0xff]
        %v3637 = vld [vmem:[%s3629 + $0x38] sm:$0xff]
        %v3638 = vld [vmem:[%s3629 + $0x40] sm:$0xff]
        %v3639 = vld [vmem:[%s3629 + $0x48] sm:$0xff]
        %v3640 = vld [vmem:[%s3629 + $0x50] sm:$0xff]
        %v3641 = vld [vmem:[%s3629 + $0x58] sm:$0xff]
        %v3642 = vld [vmem:[%s3629 + $0x60] sm:$0xff]
        %v3643 = vld [vmem:[%s3629 + $0x68] sm:$0xff]
        %v3644 = vld [vmem:[%s3629 + $0x70] sm:$0xff]
        %v3645 = vld [vmem:[%s3629 + $0x78] sm:$0xff]
        %3646 = vmatpush.msra.mxu0 %v3645
        %3647 = vmatpush.msra.mxu0 %v3644
        %3648 = vmatpush.msra.mxu0 %v3643
        %3649 = vmatpush.msra.mxu0 %v3642
        %3650 = vmatpush.msra.mxu0 %v3641
        %3651 = vmatpush.msra.mxu0 %v3640
        %3652 = vmatpush.msra.mxu0 %v3639
        %3653 = vmatpush.msra.mxu0 %v3638
        %3654 = vmatpush.msra.mxu0 %v3637
        %3655 = vmatpush.msra.mxu0 %v3636
        %3656 = vmatpush.msra.mxu0 %v3635
        %3657 = vmatpush.msra.mxu0 %v3634
        %3658 = vmatpush.msra.mxu0 %v3633
        %3659 = vmatpush.msra.mxu0 %v3632
        %3660 = vmatpush.msra.mxu0 %v3631
        %3661 = vmatpush.msra.mxu0 %v3630
        %3662 = vmatmul.f32.gmra.mxu0 %v3611
        %v3663 = vpop.f32.mrf.mxu0
        %v3664 = vadd.f32 0.0, %v3663
        %3665 = vmatmul.f32.gmra.mxu0 %v3612
        %v3666 = vpop.f32.mrf.mxu0
        %v3667 = vadd.f32 0.0, %v3666
        %3668 = vmatmul.f32.gmra.mxu0 %v3613
        %v3669 = vpop.f32.mrf.mxu0
        %v3670 = vadd.f32 0.0, %v3669
        %3671 = vmatmul.f32.gmra.mxu0 %v3614
        %v3672 = vpop.f32.mrf.mxu0
        %v3673 = vadd.f32 0.0, %v3672
        %3674 = vmatmul.f32.gmra.mxu0 %v3615
        %v3675 = vpop.f32.mrf.mxu0
        %v3676 = vadd.f32 0.0, %v3675
        %3677 = vmatmul.f32.gmra.mxu0 %v3616
        %v3678 = vpop.f32.mrf.mxu0
        %v3679 = vadd.f32 0.0, %v3678
        %3680 = vmatmul.f32.gmra.mxu0 %v3617
        %v3681 = vpop.f32.mrf.mxu0
        %v3682 = vadd.f32 0.0, %v3681
        %3683 = vmatmul.f32.gmra.mxu0 %v3618
        %v3684 = vpop.f32.mrf.mxu0
        %v3685 = vadd.f32 0.0, %v3684
        %3686 = vmatmul.f32.gmra.mxu0 %v3619
        %v3687 = vpop.f32.mrf.mxu0
        %v3688 = vadd.f32 0.0, %v3687
        %3689 = vmatmul.f32.gmra.mxu0 %v3620
        %v3690 = vpop.f32.mrf.mxu0
        %v3691 = vadd.f32 0.0, %v3690
        %3692 = vmatmul.f32.gmra.mxu0 %v3621
        %v3693 = vpop.f32.mrf.mxu0
        %v3694 = vadd.f32 0.0, %v3693
        %3695 = vmatmul.f32.gmra.mxu0 %v3622
        %v3696 = vpop.f32.mrf.mxu0
        %v3697 = vadd.f32 0.0, %v3696
        %3698 = vmatmul.f32.gmra.mxu0 %v3623
        %v3699 = vpop.f32.mrf.mxu0
        %v3700 = vadd.f32 0.0, %v3699
        %3701 = vmatmul.f32.gmra.mxu0 %v3624
        %v3702 = vpop.f32.mrf.mxu0
        %v3703 = vadd.f32 0.0, %v3702
        %3704 = vmatmul.f32.gmra.mxu0 %v3625
        %v3705 = vpop.f32.mrf.mxu0
        %v3706 = vadd.f32 0.0, %v3705
        %3707 = vmatmul.f32.gmra.mxu0 %v3626
        %v3708 = vpop.f32.mrf.mxu0
        %v3709 = vadd.f32 0.0, %v3708
        %3710 = vmatmul.f32.gmra.mxu0 %v3627
        %v3711 = vpop.f32.mrf.mxu0
        %v3712 = vadd.f32 0.0, %v3711
        %3713 = vmatmul.f32.gmra.mxu0 %v3628
        %v3714 = vpop.f32.mrf.mxu0
        %v3715 = vadd.f32 0.0, %v3714
        %3716 = vdwg.mxu0
        %v3717 = vadd.f32 %v3593, %v3664
        %v3718 = vadd.f32 %v3594, %v3667
        %v3719 = vadd.f32 %v3595, %v3670
        %v3720 = vadd.f32 %v3596, %v3673
        %v3721 = vadd.f32 %v3597, %v3676
        %v3722 = vadd.f32 %v3598, %v3679
        %v3723 = vadd.f32 %v3599, %v3682
        %v3724 = vadd.f32 %v3600, %v3685
        %v3725 = vadd.f32 %v3601, %v3688
        %v3726 = vadd.f32 %v3602, %v3691
        %v3727 = vadd.f32 %v3603, %v3694
        %v3728 = vadd.f32 %v3604, %v3697
        %v3729 = vadd.f32 %v3605, %v3700
        %v3730 = vadd.f32 %v3606, %v3703
        %v3731 = vadd.f32 %v3607, %v3706
        %v3732 = vadd.f32 %v3608, %v3709
        %v3733 = vadd.f32 %v3609, %v3712
        %v3734 = vadd.f32 %v3610, %v3715
        %v3735 = vld [vmem:[#allocation2 + $0x3a] sm:$0xff]
        %v3736 = vld [vmem:[#allocation2 + $0x42] sm:$0xff]
        %v3737 = vld [vmem:[#allocation2 + $0x4a] sm:$0xff]
        %v3738 = vld [vmem:[#allocation2 + $0x52] sm:$0xff]
        %v3739 = vld [vmem:[#allocation2 + $0x5a] sm:$0xff]
        %v3740 = vld [vmem:[#allocation2 + $0x62] sm:$0xff]
        %v3741 = vld [vmem:[#allocation2 + $0x6a] sm:$0xff]
        %v3742 = vld [vmem:[#allocation2 + $0x72] sm:$0xff]
        %v3743 = vld [vmem:[#allocation2 + $0x7a] sm:$0xff]
        %v3744 = vld [vmem:[#allocation2 + $0x82] sm:$0xff]
        %v3745 = vld [vmem:[#allocation2 + $0x8a] sm:$0xff]
        %v3746 = vld [vmem:[#allocation2 + $0x92] sm:$0xff]
        %v3747 = vld [vmem:[#allocation2 + $0x9a] sm:$0xff]
        %v3748 = vld [vmem:[#allocation2 + $0xa2] sm:$0xff]
        %v3749 = vld [vmem:[#allocation2 + $0xaa] sm:$0xff]
        %v3750 = vld [vmem:[#allocation2 + $0xb2] sm:$0xff]
        %v3751 = vld [vmem:[#allocation2 + $0xba] sm:$0xff]
        %v3752 = vld [vmem:[#allocation2 + $0xc2] sm:$0xf]
        %s3753 = scalar_lea.vmem %s3, 2816
        %v3754 = vld [vmem:[%s3753] sm:$0xff]
        %v3755 = vld [vmem:[%s3753 + $0x8] sm:$0xff]
        %v3756 = vld [vmem:[%s3753 + $0x10] sm:$0xff]
        %v3757 = vld [vmem:[%s3753 + $0x18] sm:$0xff]
        %v3758 = vld [vmem:[%s3753 + $0x20] sm:$0xff]
        %v3759 = vld [vmem:[%s3753 + $0x28] sm:$0xff]
        %v3760 = vld [vmem:[%s3753 + $0x30] sm:$0xff]
        %v3761 = vld [vmem:[%s3753 + $0x38] sm:$0xff]
        %v3762 = vld [vmem:[%s3753 + $0x40] sm:$0xff]
        %v3763 = vld [vmem:[%s3753 + $0x48] sm:$0xff]
        %v3764 = vld [vmem:[%s3753 + $0x50] sm:$0xff]
        %v3765 = vld [vmem:[%s3753 + $0x58] sm:$0xff]
        %v3766 = vld [vmem:[%s3753 + $0x60] sm:$0xff]
        %v3767 = vld [vmem:[%s3753 + $0x68] sm:$0xff]
        %v3768 = vld [vmem:[%s3753 + $0x70] sm:$0xff]
        %v3769 = vld [vmem:[%s3753 + $0x78] sm:$0xff]
        %3770 = vmatpush.msra.mxu0 %v3769
        %3771 = vmatpush.msra.mxu0 %v3768
        %3772 = vmatpush.msra.mxu0 %v3767
        %3773 = vmatpush.msra.mxu0 %v3766
        %3774 = vmatpush.msra.mxu0 %v3765
        %3775 = vmatpush.msra.mxu0 %v3764
        %3776 = vmatpush.msra.mxu0 %v3763
        %3777 = vmatpush.msra.mxu0 %v3762
        %3778 = vmatpush.msra.mxu0 %v3761
        %3779 = vmatpush.msra.mxu0 %v3760
        %3780 = vmatpush.msra.mxu0 %v3759
        %3781 = vmatpush.msra.mxu0 %v3758
        %3782 = vmatpush.msra.mxu0 %v3757
        %3783 = vmatpush.msra.mxu0 %v3756
        %3784 = vmatpush.msra.mxu0 %v3755
        %3785 = vmatpush.msra.mxu0 %v3754
        %3786 = vmatmul.f32.gmra.mxu0 %v3735
        %v3787 = vpop.f32.mrf.mxu0
        %v3788 = vadd.f32 0.0, %v3787
        %3789 = vmatmul.f32.gmra.mxu0 %v3736
        %v3790 = vpop.f32.mrf.mxu0
        %v3791 = vadd.f32 0.0, %v3790
        %3792 = vmatmul.f32.gmra.mxu0 %v3737
        %v3793 = vpop.f32.mrf.mxu0
        %v3794 = vadd.f32 0.0, %v3793
        %3795 = vmatmul.f32.gmra.mxu0 %v3738
        %v3796 = vpop.f32.mrf.mxu0
        %v3797 = vadd.f32 0.0, %v3796
        %3798 = vmatmul.f32.gmra.mxu0 %v3739
        %v3799 = vpop.f32.mrf.mxu0
        %v3800 = vadd.f32 0.0, %v3799
        %3801 = vmatmul.f32.gmra.mxu0 %v3740
        %v3802 = vpop.f32.mrf.mxu0
        %v3803 = vadd.f32 0.0, %v3802
        %3804 = vmatmul.f32.gmra.mxu0 %v3741
        %v3805 = vpop.f32.mrf.mxu0
        %v3806 = vadd.f32 0.0, %v3805
        %3807 = vmatmul.f32.gmra.mxu0 %v3742
        %v3808 = vpop.f32.mrf.mxu0
        %v3809 = vadd.f32 0.0, %v3808
        %3810 = vmatmul.f32.gmra.mxu0 %v3743
        %v3811 = vpop.f32.mrf.mxu0
        %v3812 = vadd.f32 0.0, %v3811
        %3813 = vmatmul.f32.gmra.mxu0 %v3744
        %v3814 = vpop.f32.mrf.mxu0
        %v3815 = vadd.f32 0.0, %v3814
        %3816 = vmatmul.f32.gmra.mxu0 %v3745
        %v3817 = vpop.f32.mrf.mxu0
        %v3818 = vadd.f32 0.0, %v3817
        %3819 = vmatmul.f32.gmra.mxu0 %v3746
        %v3820 = vpop.f32.mrf.mxu0
        %v3821 = vadd.f32 0.0, %v3820
        %3822 = vmatmul.f32.gmra.mxu0 %v3747
        %v3823 = vpop.f32.mrf.mxu0
        %v3824 = vadd.f32 0.0, %v3823
        %3825 = vmatmul.f32.gmra.mxu0 %v3748
        %v3826 = vpop.f32.mrf.mxu0
        %v3827 = vadd.f32 0.0, %v3826
        %3828 = vmatmul.f32.gmra.mxu0 %v3749
        %v3829 = vpop.f32.mrf.mxu0
        %v3830 = vadd.f32 0.0, %v3829
        %3831 = vmatmul.f32.gmra.mxu0 %v3750
        %v3832 = vpop.f32.mrf.mxu0
        %v3833 = vadd.f32 0.0, %v3832
        %3834 = vmatmul.f32.gmra.mxu0 %v3751
        %v3835 = vpop.f32.mrf.mxu0
        %v3836 = vadd.f32 0.0, %v3835
        %3837 = vmatmul.f32.gmra.mxu0 %v3752
        %v3838 = vpop.f32.mrf.mxu0
        %v3839 = vadd.f32 0.0, %v3838
        %3840 = vdwg.mxu0
        %v3841 = vadd.f32 %v3717, %v3788
        %v3842 = vadd.f32 %v3718, %v3791
        %v3843 = vadd.f32 %v3719, %v3794
        %v3844 = vadd.f32 %v3720, %v3797
        %v3845 = vadd.f32 %v3721, %v3800
        %v3846 = vadd.f32 %v3722, %v3803
        %v3847 = vadd.f32 %v3723, %v3806
        %v3848 = vadd.f32 %v3724, %v3809
        %v3849 = vadd.f32 %v3725, %v3812
        %v3850 = vadd.f32 %v3726, %v3815
        %v3851 = vadd.f32 %v3727, %v3818
        %v3852 = vadd.f32 %v3728, %v3821
        %v3853 = vadd.f32 %v3729, %v3824
        %v3854 = vadd.f32 %v3730, %v3827
        %v3855 = vadd.f32 %v3731, %v3830
        %v3856 = vadd.f32 %v3732, %v3833
        %v3857 = vadd.f32 %v3733, %v3836
        %v3858 = vadd.f32 %v3734, %v3839
        %v3859 = vld [vmem:[#allocation2 + $0x3b] sm:$0xff]
        %v3860 = vld [vmem:[#allocation2 + $0x43] sm:$0xff]
        %v3861 = vld [vmem:[#allocation2 + $0x4b] sm:$0xff]
        %v3862 = vld [vmem:[#allocation2 + $0x53] sm:$0xff]
        %v3863 = vld [vmem:[#allocation2 + $0x5b] sm:$0xff]
        %v3864 = vld [vmem:[#allocation2 + $0x63] sm:$0xff]
        %v3865 = vld [vmem:[#allocation2 + $0x6b] sm:$0xff]
        %v3866 = vld [vmem:[#allocation2 + $0x73] sm:$0xff]
        %v3867 = vld [vmem:[#allocation2 + $0x7b] sm:$0xff]
        %v3868 = vld [vmem:[#allocation2 + $0x83] sm:$0xff]
        %v3869 = vld [vmem:[#allocation2 + $0x8b] sm:$0xff]
        %v3870 = vld [vmem:[#allocation2 + $0x93] sm:$0xff]
        %v3871 = vld [vmem:[#allocation2 + $0x9b] sm:$0xff]
        %v3872 = vld [vmem:[#allocation2 + $0xa3] sm:$0xff]
        %v3873 = vld [vmem:[#allocation2 + $0xab] sm:$0xff]
        %v3874 = vld [vmem:[#allocation2 + $0xb3] sm:$0xff]
        %v3875 = vld [vmem:[#allocation2 + $0xbb] sm:$0xff]
        %v3876 = vld [vmem:[#allocation2 + $0xc3] sm:$0xf]
        %s3877 = scalar_lea.vmem %s3, 2944
        %v3878 = vld [vmem:[%s3877] sm:$0xff]
        %v3879 = vld [vmem:[%s3877 + $0x8] sm:$0xff]
        %v3880 = vld [vmem:[%s3877 + $0x10] sm:$0xff]
        %v3881 = vld [vmem:[%s3877 + $0x18] sm:$0xff]
        %v3882 = vld [vmem:[%s3877 + $0x20] sm:$0xff]
        %v3883 = vld [vmem:[%s3877 + $0x28] sm:$0xff]
        %v3884 = vld [vmem:[%s3877 + $0x30] sm:$0xff]
        %v3885 = vld [vmem:[%s3877 + $0x38] sm:$0xff]
        %v3886 = vld [vmem:[%s3877 + $0x40] sm:$0xff]
        %v3887 = vld [vmem:[%s3877 + $0x48] sm:$0xff]
        %v3888 = vld [vmem:[%s3877 + $0x50] sm:$0xff]
        %v3889 = vld [vmem:[%s3877 + $0x58] sm:$0xff]
        %v3890 = vld [vmem:[%s3877 + $0x60] sm:$0xff]
        %v3891 = vld [vmem:[%s3877 + $0x68] sm:$0xff]
        %v3892 = vld [vmem:[%s3877 + $0x70] sm:$0xff]
        %v3893 = vld [vmem:[%s3877 + $0x78] sm:$0xff]
        %3894 = vmatpush.msra.mxu0 %v3893
        %3895 = vmatpush.msra.mxu0 %v3892
        %3896 = vmatpush.msra.mxu0 %v3891
        %3897 = vmatpush.msra.mxu0 %v3890
        %3898 = vmatpush.msra.mxu0 %v3889
        %3899 = vmatpush.msra.mxu0 %v3888
        %3900 = vmatpush.msra.mxu0 %v3887
        %3901 = vmatpush.msra.mxu0 %v3886
        %3902 = vmatpush.msra.mxu0 %v3885
        %3903 = vmatpush.msra.mxu0 %v3884
        %3904 = vmatpush.msra.mxu0 %v3883
        %3905 = vmatpush.msra.mxu0 %v3882
        %3906 = vmatpush.msra.mxu0 %v3881
        %3907 = vmatpush.msra.mxu0 %v3880
        %3908 = vmatpush.msra.mxu0 %v3879
        %3909 = vmatpush.msra.mxu0 %v3878
        %3910 = vmatmul.f32.gmra.mxu0 %v3859
        %v3911 = vpop.f32.mrf.mxu0
        %v3912 = vadd.f32 0.0, %v3911
        %3913 = vmatmul.f32.gmra.mxu0 %v3860
        %v3914 = vpop.f32.mrf.mxu0
        %v3915 = vadd.f32 0.0, %v3914
        %3916 = vmatmul.f32.gmra.mxu0 %v3861
        %v3917 = vpop.f32.mrf.mxu0
        %v3918 = vadd.f32 0.0, %v3917
        %3919 = vmatmul.f32.gmra.mxu0 %v3862
        %v3920 = vpop.f32.mrf.mxu0
        %v3921 = vadd.f32 0.0, %v3920
        %3922 = vmatmul.f32.gmra.mxu0 %v3863
        %v3923 = vpop.f32.mrf.mxu0
        %v3924 = vadd.f32 0.0, %v3923
        %3925 = vmatmul.f32.gmra.mxu0 %v3864
        %v3926 = vpop.f32.mrf.mxu0
        %v3927 = vadd.f32 0.0, %v3926
        %3928 = vmatmul.f32.gmra.mxu0 %v3865
        %v3929 = vpop.f32.mrf.mxu0
        %v3930 = vadd.f32 0.0, %v3929
        %3931 = vmatmul.f32.gmra.mxu0 %v3866
        %v3932 = vpop.f32.mrf.mxu0
        %v3933 = vadd.f32 0.0, %v3932
        %3934 = vmatmul.f32.gmra.mxu0 %v3867
        %v3935 = vpop.f32.mrf.mxu0
        %v3936 = vadd.f32 0.0, %v3935
        %3937 = vmatmul.f32.gmra.mxu0 %v3868
        %v3938 = vpop.f32.mrf.mxu0
        %v3939 = vadd.f32 0.0, %v3938
        %3940 = vmatmul.f32.gmra.mxu0 %v3869
        %v3941 = vpop.f32.mrf.mxu0
        %v3942 = vadd.f32 0.0, %v3941
        %3943 = vmatmul.f32.gmra.mxu0 %v3870
        %v3944 = vpop.f32.mrf.mxu0
        %v3945 = vadd.f32 0.0, %v3944
        %3946 = vmatmul.f32.gmra.mxu0 %v3871
        %v3947 = vpop.f32.mrf.mxu0
        %v3948 = vadd.f32 0.0, %v3947
        %3949 = vmatmul.f32.gmra.mxu0 %v3872
        %v3950 = vpop.f32.mrf.mxu0
        %v3951 = vadd.f32 0.0, %v3950
        %3952 = vmatmul.f32.gmra.mxu0 %v3873
        %v3953 = vpop.f32.mrf.mxu0
        %v3954 = vadd.f32 0.0, %v3953
        %3955 = vmatmul.f32.gmra.mxu0 %v3874
        %v3956 = vpop.f32.mrf.mxu0
        %v3957 = vadd.f32 0.0, %v3956
        %3958 = vmatmul.f32.gmra.mxu0 %v3875
        %v3959 = vpop.f32.mrf.mxu0
        %v3960 = vadd.f32 0.0, %v3959
        %3961 = vmatmul.f32.gmra.mxu0 %v3876
        %v3962 = vpop.f32.mrf.mxu0
        %v3963 = vadd.f32 0.0, %v3962
        %3964 = vdwg.mxu0
        %v3965 = vadd.f32 %v3841, %v3912
        %v3966 = vadd.f32 %v3842, %v3915
        %v3967 = vadd.f32 %v3843, %v3918
        %v3968 = vadd.f32 %v3844, %v3921
        %v3969 = vadd.f32 %v3845, %v3924
        %v3970 = vadd.f32 %v3846, %v3927
        %v3971 = vadd.f32 %v3847, %v3930
        %v3972 = vadd.f32 %v3848, %v3933
        %v3973 = vadd.f32 %v3849, %v3936
        %v3974 = vadd.f32 %v3850, %v3939
        %v3975 = vadd.f32 %v3851, %v3942
        %v3976 = vadd.f32 %v3852, %v3945
        %v3977 = vadd.f32 %v3853, %v3948
        %v3978 = vadd.f32 %v3854, %v3951
        %v3979 = vadd.f32 %v3855, %v3954
        %v3980 = vadd.f32 %v3856, %v3957
        %v3981 = vadd.f32 %v3857, %v3960
        %v3982 = vadd.f32 %v3858, %v3963
        %v3983 = vld [vmem:[#allocation2 + $0x3c] sm:$0xff]
        %v3984 = vld [vmem:[#allocation2 + $0x44] sm:$0xff]
        %v3985 = vld [vmem:[#allocation2 + $0x4c] sm:$0xff]
        %v3986 = vld [vmem:[#allocation2 + $0x54] sm:$0xff]
        %v3987 = vld [vmem:[#allocation2 + $0x5c] sm:$0xff]
        %v3988 = vld [vmem:[#allocation2 + $0x64] sm:$0xff]
        %v3989 = vld [vmem:[#allocation2 + $0x6c] sm:$0xff]
        %v3990 = vld [vmem:[#allocation2 + $0x74] sm:$0xff]
        %v3991 = vld [vmem:[#allocation2 + $0x7c] sm:$0xff]
        %v3992 = vld [vmem:[#allocation2 + $0x84] sm:$0xff]
        %v3993 = vld [vmem:[#allocation2 + $0x8c] sm:$0xff]
        %v3994 = vld [vmem:[#allocation2 + $0x94] sm:$0xff]
        %v3995 = vld [vmem:[#allocation2 + $0x9c] sm:$0xff]
        %v3996 = vld [vmem:[#allocation2 + $0xa4] sm:$0xff]
        %v3997 = vld [vmem:[#allocation2 + $0xac] sm:$0xff]
        %v3998 = vld [vmem:[#allocation2 + $0xb4] sm:$0xff]
        %v3999 = vld [vmem:[#allocation2 + $0xbc] sm:$0xff]
        %v4000 = vld [vmem:[#allocation2 + $0xc4] sm:$0xf]
        %s4001 = scalar_lea.vmem %s3, 3072
        %v4002 = vld [vmem:[%s4001] sm:$0xff]
        %v4003 = vld [vmem:[%s4001 + $0x8] sm:$0xff]
        %v4004 = vld [vmem:[%s4001 + $0x10] sm:$0xff]
        %v4005 = vld [vmem:[%s4001 + $0x18] sm:$0xff]
        %v4006 = vld [vmem:[%s4001 + $0x20] sm:$0xff]
        %v4007 = vld [vmem:[%s4001 + $0x28] sm:$0xff]
        %v4008 = vld [vmem:[%s4001 + $0x30] sm:$0xff]
        %v4009 = vld [vmem:[%s4001 + $0x38] sm:$0xff]
        %v4010 = vld [vmem:[%s4001 + $0x40] sm:$0xff]
        %v4011 = vld [vmem:[%s4001 + $0x48] sm:$0xff]
        %v4012 = vld [vmem:[%s4001 + $0x50] sm:$0xff]
        %v4013 = vld [vmem:[%s4001 + $0x58] sm:$0xff]
        %v4014 = vld [vmem:[%s4001 + $0x60] sm:$0xff]
        %v4015 = vld [vmem:[%s4001 + $0x68] sm:$0xff]
        %v4016 = vld [vmem:[%s4001 + $0x70] sm:$0xff]
        %v4017 = vld [vmem:[%s4001 + $0x78] sm:$0xff]
        %4018 = vmatpush.msra.mxu0 %v4017
        %4019 = vmatpush.msra.mxu0 %v4016
        %4020 = vmatpush.msra.mxu0 %v4015
        %4021 = vmatpush.msra.mxu0 %v4014
        %4022 = vmatpush.msra.mxu0 %v4013
        %4023 = vmatpush.msra.mxu0 %v4012
        %4024 = vmatpush.msra.mxu0 %v4011
        %4025 = vmatpush.msra.mxu0 %v4010
        %4026 = vmatpush.msra.mxu0 %v4009
        %4027 = vmatpush.msra.mxu0 %v4008
        %4028 = vmatpush.msra.mxu0 %v4007
        %4029 = vmatpush.msra.mxu0 %v4006
        %4030 = vmatpush.msra.mxu0 %v4005
        %4031 = vmatpush.msra.mxu0 %v4004
        %4032 = vmatpush.msra.mxu0 %v4003
        %4033 = vmatpush.msra.mxu0 %v4002
        %4034 = vmatmul.f32.gmra.mxu0 %v3983
        %v4035 = vpop.f32.mrf.mxu0
        %v4036 = vadd.f32 0.0, %v4035
        %4037 = vmatmul.f32.gmra.mxu0 %v3984
        %v4038 = vpop.f32.mrf.mxu0
        %v4039 = vadd.f32 0.0, %v4038
        %4040 = vmatmul.f32.gmra.mxu0 %v3985
        %v4041 = vpop.f32.mrf.mxu0
        %v4042 = vadd.f32 0.0, %v4041
        %4043 = vmatmul.f32.gmra.mxu0 %v3986
        %v4044 = vpop.f32.mrf.mxu0
        %v4045 = vadd.f32 0.0, %v4044
        %4046 = vmatmul.f32.gmra.mxu0 %v3987
        %v4047 = vpop.f32.mrf.mxu0
        %v4048 = vadd.f32 0.0, %v4047
        %4049 = vmatmul.f32.gmra.mxu0 %v3988
        %v4050 = vpop.f32.mrf.mxu0
        %v4051 = vadd.f32 0.0, %v4050
        %4052 = vmatmul.f32.gmra.mxu0 %v3989
        %v4053 = vpop.f32.mrf.mxu0
        %v4054 = vadd.f32 0.0, %v4053
        %4055 = vmatmul.f32.gmra.mxu0 %v3990
        %v4056 = vpop.f32.mrf.mxu0
        %v4057 = vadd.f32 0.0, %v4056
        %4058 = vmatmul.f32.gmra.mxu0 %v3991
        %v4059 = vpop.f32.mrf.mxu0
        %v4060 = vadd.f32 0.0, %v4059
        %4061 = vmatmul.f32.gmra.mxu0 %v3992
        %v4062 = vpop.f32.mrf.mxu0
        %v4063 = vadd.f32 0.0, %v4062
        %4064 = vmatmul.f32.gmra.mxu0 %v3993
        %v4065 = vpop.f32.mrf.mxu0
        %v4066 = vadd.f32 0.0, %v4065
        %4067 = vmatmul.f32.gmra.mxu0 %v3994
        %v4068 = vpop.f32.mrf.mxu0
        %v4069 = vadd.f32 0.0, %v4068
        %4070 = vmatmul.f32.gmra.mxu0 %v3995
        %v4071 = vpop.f32.mrf.mxu0
        %v4072 = vadd.f32 0.0, %v4071
        %4073 = vmatmul.f32.gmra.mxu0 %v3996
        %v4074 = vpop.f32.mrf.mxu0
        %v4075 = vadd.f32 0.0, %v4074
        %4076 = vmatmul.f32.gmra.mxu0 %v3997
        %v4077 = vpop.f32.mrf.mxu0
        %v4078 = vadd.f32 0.0, %v4077
        %4079 = vmatmul.f32.gmra.mxu0 %v3998
        %v4080 = vpop.f32.mrf.mxu0
        %v4081 = vadd.f32 0.0, %v4080
        %4082 = vmatmul.f32.gmra.mxu0 %v3999
        %v4083 = vpop.f32.mrf.mxu0
        %v4084 = vadd.f32 0.0, %v4083
        %4085 = vmatmul.f32.gmra.mxu0 %v4000
        %v4086 = vpop.f32.mrf.mxu0
        %v4087 = vadd.f32 0.0, %v4086
        %4088 = vdwg.mxu0
        %v4089 = vadd.f32 %v3965, %v4036
        %v4090 = vadd.f32 %v3966, %v4039
        %v4091 = vadd.f32 %v3967, %v4042
        %v4092 = vadd.f32 %v3968, %v4045
        %v4093 = vadd.f32 %v3969, %v4048
        %v4094 = vadd.f32 %v3970, %v4051
        %v4095 = vadd.f32 %v3971, %v4054
        %v4096 = vadd.f32 %v3972, %v4057
        %v4097 = vadd.f32 %v3973, %v4060
        %v4098 = vadd.f32 %v3974, %v4063
        %v4099 = vadd.f32 %v3975, %v4066
        %v4100 = vadd.f32 %v3976, %v4069
        %v4101 = vadd.f32 %v3977, %v4072
        %v4102 = vadd.f32 %v3978, %v4075
        %v4103 = vadd.f32 %v3979, %v4078
        %v4104 = vadd.f32 %v3980, %v4081
        %v4105 = vadd.f32 %v3981, %v4084
        %v4106 = vadd.f32 %v3982, %v4087
        %v4107 = vld [vmem:[%s4] sm:$0x1]
        %v4109 = vperm.slane %v4107, 0
        %v4111 = vadd.f32 %v4089, %v4109
        %v4112 = vadd.f32 %v4090, %v4109
        %v4113 = vadd.f32 %v4091, %v4109
        %v4114 = vadd.f32 %v4092, %v4109
        %v4115 = vadd.f32 %v4093, %v4109
        %v4116 = vadd.f32 %v4094, %v4109
        %v4117 = vadd.f32 %v4095, %v4109
        %v4118 = vadd.f32 %v4096, %v4109
        %v4119 = vadd.f32 %v4097, %v4109
        %v4120 = vadd.f32 %v4098, %v4109
        %v4121 = vadd.f32 %v4099, %v4109
        %v4122 = vadd.f32 %v4100, %v4109
        %v4123 = vadd.f32 %v4101, %v4109
        %v4124 = vadd.f32 %v4102, %v4109
        %v4125 = vadd.f32 %v4103, %v4109
        %v4126 = vadd.f32 %v4104, %v4109
        %v4127 = vadd.f32 %v4105, %v4109
        %v4128 = vadd.f32 %v4106, %v4109
        %v4129 = vmax.f32 %v4111, 0.0
        %v4130 = vmax.f32 %v4112, 0.0
        %v4131 = vmax.f32 %v4113, 0.0
        %v4132 = vmax.f32 %v4114, 0.0
        %v4133 = vmax.f32 %v4115, 0.0
        %v4134 = vmax.f32 %v4116, 0.0
        %v4135 = vmax.f32 %v4117, 0.0
        %v4136 = vmax.f32 %v4118, 0.0
        %v4137 = vmax.f32 %v4119, 0.0
        %v4138 = vmax.f32 %v4120, 0.0
        %v4139 = vmax.f32 %v4121, 0.0
        %v4140 = vmax.f32 %v4122, 0.0
        %v4141 = vmax.f32 %v4123, 0.0
        %v4142 = vmax.f32 %v4124, 0.0
        %v4143 = vmax.f32 %v4125, 0.0
        %v4144 = vmax.f32 %v4126, 0.0
        %v4145 = vmax.f32 %v4127, 0.0
        %v4146 = vmax.f32 %v4128, 0.0
        %4147 = vst [vmem:[#allocation3] sm:$0xff] %v4129
        %4148 = vst [vmem:[#allocation3 + $0x8] sm:$0xff] %v4130
        %4149 = vst [vmem:[#allocation3 + $0x10] sm:$0xff] %v4131
        %4150 = vst [vmem:[#allocation3 + $0x18] sm:$0xff] %v4132
        %4151 = vst [vmem:[#allocation3 + $0x20] sm:$0xff] %v4133
        %4152 = vst [vmem:[#allocation3 + $0x28] sm:$0xff] %v4134
        %4153 = vst [vmem:[#allocation3 + $0x30] sm:$0xff] %v4135
        %4154 = vst [vmem:[#allocation3 + $0x38] sm:$0xff] %v4136
        %4155 = vst [vmem:[#allocation3 + $0x40] sm:$0xff] %v4137
        %4156 = vst [vmem:[#allocation3 + $0x48] sm:$0xff] %v4138
        %4157 = vst [vmem:[#allocation3 + $0x50] sm:$0xff] %v4139
        %4158 = vst [vmem:[#allocation3 + $0x58] sm:$0xff] %v4140
        %4159 = vst [vmem:[#allocation3 + $0x60] sm:$0xff] %v4141
        %4160 = vst [vmem:[#allocation3 + $0x68] sm:$0xff] %v4142
        %4161 = vst [vmem:[#allocation3 + $0x70] sm:$0xff] %v4143
        %4162 = vst [vmem:[#allocation3 + $0x78] sm:$0xff] %v4144
        %4163 = vst [vmem:[#allocation3 + $0x80] sm:$0xff] %v4145
        %4164 = vst [vmem:[#allocation3 + $0x88] sm:$0xf] %v4146
        %v4165 = vld [vmem:[%s6] sm:$0x1]
        %v4166 = vld [vmem:[#allocation3] sm:$0x1]
        %v4167 = vld [vmem:[#allocation3 + $0x1] sm:$0x1]
        %v4168 = vld [vmem:[#allocation3 + $0xe] sm:$0x1]
        %v4169 = vld [vmem:[#allocation3 + $0xf] sm:$0x1]
        %v4170 = vmax.f32 %v4166, %v4167
        %v4171 = vmax.f32 %v4168, %v4169
        %v4172 = vmax.f32 %v4170, %v4171
        %v4173 = vld [vmem:[%s5] sm:$0xff]
        %v4174 = vld [vmem:[%s5 + $0x8] sm:$0xff]
        %vm4175 = vcmask 130048
        %v4177 = vsel %vm4175, %v4172, 0
        %4179 = vmatpush.msra.mxu0 0.0
        %4180 = vmatpush.msra.mxu0 0.0
        %4181 = vmatpush.msra.mxu0 0.0
        %4182 = vmatpush.msra.mxu0 0.0
        %4183 = vmatpush.msra.mxu0 0.0
        %4184 = vmatpush.msra.mxu0 0.0
        %4185 = vmatpush.msra.mxu0 0.0
        %4186 = vmatpush.msra.mxu0 0.0
        %4187 = vmatpush.msra.mxu0 0.0
        %4188 = vmatpush.msra.mxu0 0.0
        %4189 = vmatpush.msra.mxu0 0.0
        %4190 = vmatpush.msra.mxu0 0.0
        %4191 = vmatpush.msra.mxu0 0.0
        %4192 = vmatpush.msra.mxu0 0.0
        %4193 = vmatpush.msra.mxu0 %v4174
        %4194 = vmatpush.msra.mxu0 %v4173
        %4195 = vmatmul.f32.gmra.mxu0 %v4177
        %v4196 = vpop.f32.mrf.mxu0
        %v4197 = vadd.f32 0.0, %v4196
        %4198 = vdwg.mxu0
        %v4199 = vadd.f32 %v4165, %v4197
        %v4200 = vld [vmem:[#allocation3 + $0x2] sm:$0x1]
        %v4201 = vld [vmem:[#allocation3 + $0x3] sm:$0x1]
        %v4202 = vld [vmem:[#allocation3 + $0x10] sm:$0x1]
        %v4203 = vld [vmem:[#allocation3 + $0x11] sm:$0x1]
        %v4204 = vmax.f32 %v4200, %v4201
        %v4205 = vmax.f32 %v4202, %v4203
        %v4206 = vmax.f32 %v4204, %v4205
        %s4207 = scalar_lea.vmem %s5, 16
        %v4208 = vld [vmem:[%s4207] sm:$0xff]
        %v4209 = vld [vmem:[%s4207 + $0x8] sm:$0xff]
        %v4211 = vsel %vm4175, %v4206, 0
        %4213 = vmatpush.msra.mxu0 0.0
        %4214 = vmatpush.msra.mxu0 0.0
        %4215 = vmatpush.msra.mxu0 0.0
        %4216 = vmatpush.msra.mxu0 0.0
        %4217 = vmatpush.msra.mxu0 0.0
        %4218 = vmatpush.msra.mxu0 0.0
        %4219 = vmatpush.msra.mxu0 0.0
        %4220 = vmatpush.msra.mxu0 0.0
        %4221 = vmatpush.msra.mxu0 0.0
        %4222 = vmatpush.msra.mxu0 0.0
        %4223 = vmatpush.msra.mxu0 0.0
        %4224 = vmatpush.msra.mxu0 0.0
        %4225 = vmatpush.msra.mxu0 0.0
        %4226 = vmatpush.msra.mxu0 0.0
        %4227 = vmatpush.msra.mxu0 %v4209
        %4228 = vmatpush.msra.mxu0 %v4208
        %4229 = vmatmul.f32.gmra.mxu0 %v4211
        %v4230 = vpop.f32.mrf.mxu0
        %v4231 = vadd.f32 0.0, %v4230
        %4232 = vdwg.mxu0
        %v4233 = vadd.f32 %v4199, %v4231
        %v4234 = vld [vmem:[#allocation3 + $0x4] sm:$0x1]
        %v4235 = vld [vmem:[#allocation3 + $0x5] sm:$0x1]
        %v4236 = vld [vmem:[#allocation3 + $0x12] sm:$0x1]
        %v4237 = vld [vmem:[#allocation3 + $0x13] sm:$0x1]
        %v4238 = vmax.f32 %v4234, %v4235
        %v4239 = vmax.f32 %v4236, %v4237
        %v4240 = vmax.f32 %v4238, %v4239
        %s4241 = scalar_lea.vmem %s5, 32
        %v4242 = vld [vmem:[%s4241] sm:$0xff]
        %v4243 = vld [vmem:[%s4241 + $0x8] sm:$0xff]
        %v4245 = vsel %vm4175, %v4240, 0
        %4247 = vmatpush.msra.mxu0 0.0
        %4248 = vmatpush.msra.mxu0 0.0
        %4249 = vmatpush.msra.mxu0 0.0
        %4250 = vmatpush.msra.mxu0 0.0
        %4251 = vmatpush.msra.mxu0 0.0
        %4252 = vmatpush.msra.mxu0 0.0
        %4253 = vmatpush.msra.mxu0 0.0
        %4254 = vmatpush.msra.mxu0 0.0
        %4255 = vmatpush.msra.mxu0 0.0
        %4256 = vmatpush.msra.mxu0 0.0
        %4257 = vmatpush.msra.mxu0 0.0
        %4258 = vmatpush.msra.mxu0 0.0
        %4259 = vmatpush.msra.mxu0 0.0
        %4260 = vmatpush.msra.mxu0 0.0
        %4261 = vmatpush.msra.mxu0 %v4243
        %4262 = vmatpush.msra.mxu0 %v4242
        %4263 = vmatmul.f32.gmra.mxu0 %v4245
        %v4264 = vpop.f32.mrf.mxu0
        %v4265 = vadd.f32 0.0, %v4264
        %4266 = vdwg.mxu0
        %v4267 = vadd.f32 %v4233, %v4265
        %v4268 = vld [vmem:[#allocation3 + $0x6] sm:$0x1]
        %v4269 = vld [vmem:[#allocation3 + $0x7] sm:$0x1]
        %v4270 = vld [vmem:[#allocation3 + $0x14] sm:$0x1]
        %v4271 = vld [vmem:[#allocation3 + $0x15] sm:$0x1]
        %v4272 = vmax.f32 %v4268, %v4269
        %v4273 = vmax.f32 %v4270, %v4271
        %v4274 = vmax.f32 %v4272, %v4273
        %s4275 = scalar_lea.vmem %s5, 48
        %v4276 = vld [vmem:[%s4275] sm:$0xff]
        %v4277 = vld [vmem:[%s4275 + $0x8] sm:$0xff]
        %v4279 = vsel %vm4175, %v4274, 0
        %4281 = vmatpush.msra.mxu0 0.0
        %4282 = vmatpush.msra.mxu0 0.0
        %4283 = vmatpush.msra.mxu0 0.0
        %4284 = vmatpush.msra.mxu0 0.0
        %4285 = vmatpush.msra.mxu0 0.0
        %4286 = vmatpush.msra.mxu0 0.0
        %4287 = vmatpush.msra.mxu0 0.0
        %4288 = vmatpush.msra.mxu0 0.0
        %4289 = vmatpush.msra.mxu0 0.0
        %4290 = vmatpush.msra.mxu0 0.0
        %4291 = vmatpush.msra.mxu0 0.0
        %4292 = vmatpush.msra.mxu0 0.0
        %4293 = vmatpush.msra.mxu0 0.0
        %4294 = vmatpush.msra.mxu0 0.0
        %4295 = vmatpush.msra.mxu0 %v4277
        %4296 = vmatpush.msra.mxu0 %v4276
        %4297 = vmatmul.f32.gmra.mxu0 %v4279
        %v4298 = vpop.f32.mrf.mxu0
        %v4299 = vadd.f32 0.0, %v4298
        %4300 = vdwg.mxu0
        %v4301 = vadd.f32 %v4267, %v4299
        %v4302 = vld [vmem:[#allocation3 + $0x8] sm:$0x1]
        %v4303 = vld [vmem:[#allocation3 + $0x9] sm:$0x1]
        %v4304 = vld [vmem:[#allocation3 + $0x16] sm:$0x1]
        %v4305 = vld [vmem:[#allocation3 + $0x17] sm:$0x1]
        %v4306 = vmax.f32 %v4302, %v4303
        %v4307 = vmax.f32 %v4304, %v4305
        %v4308 = vmax.f32 %v4306, %v4307
        %s4309 = scalar_lea.vmem %s5, 64
        %v4310 = vld [vmem:[%s4309] sm:$0xff]
        %v4311 = vld [vmem:[%s4309 + $0x8] sm:$0xff]
        %v4313 = vsel %vm4175, %v4308, 0
        %4315 = vmatpush.msra.mxu0 0.0
        %4316 = vmatpush.msra.mxu0 0.0
        %4317 = vmatpush.msra.mxu0 0.0
        %4318 = vmatpush.msra.mxu0 0.0
        %4319 = vmatpush.msra.mxu0 0.0
        %4320 = vmatpush.msra.mxu0 0.0
        %4321 = vmatpush.msra.mxu0 0.0
        %4322 = vmatpush.msra.mxu0 0.0
        %4323 = vmatpush.msra.mxu0 0.0
        %4324 = vmatpush.msra.mxu0 0.0
        %4325 = vmatpush.msra.mxu0 0.0
        %4326 = vmatpush.msra.mxu0 0.0
        %4327 = vmatpush.msra.mxu0 0.0
        %4328 = vmatpush.msra.mxu0 0.0
        %4329 = vmatpush.msra.mxu0 %v4311
        %4330 = vmatpush.msra.mxu0 %v4310
        %4331 = vmatmul.f32.gmra.mxu0 %v4313
        %v4332 = vpop.f32.mrf.mxu0
        %v4333 = vadd.f32 0.0, %v4332
        %4334 = vdwg.mxu0
        %v4335 = vadd.f32 %v4301, %v4333
        %v4336 = vld [vmem:[#allocation3 + $0x1c] sm:$0x1]
        %v4337 = vld [vmem:[#allocation3 + $0x1d] sm:$0x1]
        %v4338 = vld [vmem:[#allocation3 + $0x2a] sm:$0x1]
        %v4339 = vld [vmem:[#allocation3 + $0x2b] sm:$0x1]
        %v4340 = vmax.f32 %v4336, %v4337
        %v4341 = vmax.f32 %v4338, %v4339
        %v4342 = vmax.f32 %v4340, %v4341
        %s4343 = scalar_lea.vmem %s5, 80
        %v4344 = vld [vmem:[%s4343] sm:$0xff]
        %v4345 = vld [vmem:[%s4343 + $0x8] sm:$0xff]
        %v4347 = vsel %vm4175, %v4342, 0
        %4349 = vmatpush.msra.mxu0 0.0
        %4350 = vmatpush.msra.mxu0 0.0
        %4351 = vmatpush.msra.mxu0 0.0
        %4352 = vmatpush.msra.mxu0 0.0
        %4353 = vmatpush.msra.mxu0 0.0
        %4354 = vmatpush.msra.mxu0 0.0
        %4355 = vmatpush.msra.mxu0 0.0
        %4356 = vmatpush.msra.mxu0 0.0
        %4357 = vmatpush.msra.mxu0 0.0
        %4358 = vmatpush.msra.mxu0 0.0
        %4359 = vmatpush.msra.mxu0 0.0
        %4360 = vmatpush.msra.mxu0 0.0
        %4361 = vmatpush.msra.mxu0 0.0
        %4362 = vmatpush.msra.mxu0 0.0
        %4363 = vmatpush.msra.mxu0 %v4345
        %4364 = vmatpush.msra.mxu0 %v4344
        %4365 = vmatmul.f32.gmra.mxu0 %v4347
        %v4366 = vpop.f32.mrf.mxu0
        %v4367 = vadd.f32 0.0, %v4366
        %4368 = vdwg.mxu0
        %v4369 = vadd.f32 %v4335, %v4367
        %v4370 = vld [vmem:[#allocation3 + $0x1e] sm:$0x1]
        %v4371 = vld [vmem:[#allocation3 + $0x1f] sm:$0x1]
        %v4372 = vld [vmem:[#allocation3 + $0x2c] sm:$0x1]
        %v4373 = vld [vmem:[#allocation3 + $0x2d] sm:$0x1]
        %v4374 = vmax.f32 %v4370, %v4371
        %v4375 = vmax.f32 %v4372, %v4373
        %v4376 = vmax.f32 %v4374, %v4375
        %s4377 = scalar_lea.vmem %s5, 96
        %v4378 = vld [vmem:[%s4377] sm:$0xff]
        %v4379 = vld [vmem:[%s4377 + $0x8] sm:$0xff]
        %v4381 = vsel %vm4175, %v4376, 0
        %4383 = vmatpush.msra.mxu0 0.0
        %4384 = vmatpush.msra.mxu0 0.0
        %4385 = vmatpush.msra.mxu0 0.0
        %4386 = vmatpush.msra.mxu0 0.0
        %4387 = vmatpush.msra.mxu0 0.0
        %4388 = vmatpush.msra.mxu0 0.0
        %4389 = vmatpush.msra.mxu0 0.0
        %4390 = vmatpush.msra.mxu0 0.0
        %4391 = vmatpush.msra.mxu0 0.0
        %4392 = vmatpush.msra.mxu0 0.0
        %4393 = vmatpush.msra.mxu0 0.0
        %4394 = vmatpush.msra.mxu0 0.0
        %4395 = vmatpush.msra.mxu0 0.0
        %4396 = vmatpush.msra.mxu0 0.0
        %4397 = vmatpush.msra.mxu0 %v4379
        %4398 = vmatpush.msra.mxu0 %v4378
        %4399 = vmatmul.f32.gmra.mxu0 %v4381
        %v4400 = vpop.f32.mrf.mxu0
        %v4401 = vadd.f32 0.0, %v4400
        %4402 = vdwg.mxu0
        %v4403 = vadd.f32 %v4369, %v4401
        %v4404 = vld [vmem:[#allocation3 + $0x20] sm:$0x1]
        %v4405 = vld [vmem:[#allocation3 + $0x21] sm:$0x1]
        %v4406 = vld [vmem:[#allocation3 + $0x2e] sm:$0x1]
        %v4407 = vld [vmem:[#allocation3 + $0x2f] sm:$0x1]
        %v4408 = vmax.f32 %v4404, %v4405
        %v4409 = vmax.f32 %v4406, %v4407
        %v4410 = vmax.f32 %v4408, %v4409
        %s4411 = scalar_lea.vmem %s5, 112
        %v4412 = vld [vmem:[%s4411] sm:$0xff]
        %v4413 = vld [vmem:[%s4411 + $0x8] sm:$0xff]
        %v4415 = vsel %vm4175, %v4410, 0
        %4417 = vmatpush.msra.mxu0 0.0
        %4418 = vmatpush.msra.mxu0 0.0
        %4419 = vmatpush.msra.mxu0 0.0
        %4420 = vmatpush.msra.mxu0 0.0
        %4421 = vmatpush.msra.mxu0 0.0
        %4422 = vmatpush.msra.mxu0 0.0
        %4423 = vmatpush.msra.mxu0 0.0
        %4424 = vmatpush.msra.mxu0 0.0
        %4425 = vmatpush.msra.mxu0 0.0
        %4426 = vmatpush.msra.mxu0 0.0
        %4427 = vmatpush.msra.mxu0 0.0
        %4428 = vmatpush.msra.mxu0 0.0
        %4429 = vmatpush.msra.mxu0 0.0
        %4430 = vmatpush.msra.mxu0 0.0
        %4431 = vmatpush.msra.mxu0 %v4413
        %4432 = vmatpush.msra.mxu0 %v4412
        %4433 = vmatmul.f32.gmra.mxu0 %v4415
        %v4434 = vpop.f32.mrf.mxu0
        %v4435 = vadd.f32 0.0, %v4434
        %4436 = vdwg.mxu0
        %v4437 = vadd.f32 %v4403, %v4435
        %v4438 = vld [vmem:[#allocation3 + $0x22] sm:$0x1]
        %v4439 = vld [vmem:[#allocation3 + $0x23] sm:$0x1]
        %v4440 = vld [vmem:[#allocation3 + $0x30] sm:$0x1]
        %v4441 = vld [vmem:[#allocation3 + $0x31] sm:$0x1]
        %v4442 = vmax.f32 %v4438, %v4439
        %v4443 = vmax.f32 %v4440, %v4441
        %v4444 = vmax.f32 %v4442, %v4443
        %s4445 = scalar_lea.vmem %s5, 128
        %v4446 = vld [vmem:[%s4445] sm:$0xff]
        %v4447 = vld [vmem:[%s4445 + $0x8] sm:$0xff]
        %v4449 = vsel %vm4175, %v4444, 0
        %4451 = vmatpush.msra.mxu0 0.0
        %4452 = vmatpush.msra.mxu0 0.0
        %4453 = vmatpush.msra.mxu0 0.0
        %4454 = vmatpush.msra.mxu0 0.0
        %4455 = vmatpush.msra.mxu0 0.0
        %4456 = vmatpush.msra.mxu0 0.0
        %4457 = vmatpush.msra.mxu0 0.0
        %4458 = vmatpush.msra.mxu0 0.0
        %4459 = vmatpush.msra.mxu0 0.0
        %4460 = vmatpush.msra.mxu0 0.0
        %4461 = vmatpush.msra.mxu0 0.0
        %4462 = vmatpush.msra.mxu0 0.0
        %4463 = vmatpush.msra.mxu0 0.0
        %4464 = vmatpush.msra.mxu0 0.0
        %4465 = vmatpush.msra.mxu0 %v4447
        %4466 = vmatpush.msra.mxu0 %v4446
        %4467 = vmatmul.f32.gmra.mxu0 %v4449
        %v4468 = vpop.f32.mrf.mxu0
        %v4469 = vadd.f32 0.0, %v4468
        %4470 = vdwg.mxu0
        %v4471 = vadd.f32 %v4437, %v4469
        %v4472 = vld [vmem:[#allocation3 + $0x24] sm:$0x1]
        %v4473 = vld [vmem:[#allocation3 + $0x25] sm:$0x1]
        %v4474 = vld [vmem:[#allocation3 + $0x32] sm:$0x1]
        %v4475 = vld [vmem:[#allocation3 + $0x33] sm:$0x1]
        %v4476 = vmax.f32 %v4472, %v4473
        %v4477 = vmax.f32 %v4474, %v4475
        %v4478 = vmax.f32 %v4476, %v4477
        %s4479 = scalar_lea.vmem %s5, 144
        %v4480 = vld [vmem:[%s4479] sm:$0xff]
        %v4481 = vld [vmem:[%s4479 + $0x8] sm:$0xff]
        %v4483 = vsel %vm4175, %v4478, 0
        %4485 = vmatpush.msra.mxu0 0.0
        %4486 = vmatpush.msra.mxu0 0.0
        %4487 = vmatpush.msra.mxu0 0.0
        %4488 = vmatpush.msra.mxu0 0.0
        %4489 = vmatpush.msra.mxu0 0.0
        %4490 = vmatpush.msra.mxu0 0.0
        %4491 = vmatpush.msra.mxu0 0.0
        %4492 = vmatpush.msra.mxu0 0.0
        %4493 = vmatpush.msra.mxu0 0.0
        %4494 = vmatpush.msra.mxu0 0.0
        %4495 = vmatpush.msra.mxu0 0.0
        %4496 = vmatpush.msra.mxu0 0.0
        %4497 = vmatpush.msra.mxu0 0.0
        %4498 = vmatpush.msra.mxu0 0.0
        %4499 = vmatpush.msra.mxu0 %v4481
        %4500 = vmatpush.msra.mxu0 %v4480
        %4501 = vmatmul.f32.gmra.mxu0 %v4483
        %v4502 = vpop.f32.mrf.mxu0
        %v4503 = vadd.f32 0.0, %v4502
        %4504 = vdwg.mxu0
        %v4505 = vadd.f32 %v4471, %v4503
        %v4506 = vld [vmem:[#allocation3 + $0x38] sm:$0x1]
        %v4507 = vld [vmem:[#allocation3 + $0x39] sm:$0x1]
        %v4508 = vld [vmem:[#allocation3 + $0x46] sm:$0x1]
        %v4509 = vld [vmem:[#allocation3 + $0x47] sm:$0x1]
        %v4510 = vmax.f32 %v4506, %v4507
        %v4511 = vmax.f32 %v4508, %v4509
        %v4512 = vmax.f32 %v4510, %v4511
        %s4513 = scalar_lea.vmem %s5, 160
        %v4514 = vld [vmem:[%s4513] sm:$0xff]
        %v4515 = vld [vmem:[%s4513 + $0x8] sm:$0xff]
        %v4517 = vsel %vm4175, %v4512, 0
        %4519 = vmatpush.msra.mxu0 0.0
        %4520 = vmatpush.msra.mxu0 0.0
        %4521 = vmatpush.msra.mxu0 0.0
        %4522 = vmatpush.msra.mxu0 0.0
        %4523 = vmatpush.msra.mxu0 0.0
        %4524 = vmatpush.msra.mxu0 0.0
        %4525 = vmatpush.msra.mxu0 0.0
        %4526 = vmatpush.msra.mxu0 0.0
        %4527 = vmatpush.msra.mxu0 0.0
        %4528 = vmatpush.msra.mxu0 0.0
        %4529 = vmatpush.msra.mxu0 0.0
        %4530 = vmatpush.msra.mxu0 0.0
        %4531 = vmatpush.msra.mxu0 0.0
        %4532 = vmatpush.msra.mxu0 0.0
        %4533 = vmatpush.msra.mxu0 %v4515
        %4534 = vmatpush.msra.mxu0 %v4514
        %4535 = vmatmul.f32.gmra.mxu0 %v4517
        %v4536 = vpop.f32.mrf.mxu0
        %v4537 = vadd.f32 0.0, %v4536
        %4538 = vdwg.mxu0
        %v4539 = vadd.f32 %v4505, %v4537
        %v4540 = vld [vmem:[#allocation3 + $0x3a] sm:$0x1]
        %v4541 = vld [vmem:[#allocation3 + $0x3b] sm:$0x1]
        %v4542 = vld [vmem:[#allocation3 + $0x48] sm:$0x1]
        %v4543 = vld [vmem:[#allocation3 + $0x49] sm:$0x1]
        %v4544 = vmax.f32 %v4540, %v4541
        %v4545 = vmax.f32 %v4542, %v4543
        %v4546 = vmax.f32 %v4544, %v4545
        %s4547 = scalar_lea.vmem %s5, 176
        %v4548 = vld [vmem:[%s4547] sm:$0xff]
        %v4549 = vld [vmem:[%s4547 + $0x8] sm:$0xff]
        %v4551 = vsel %vm4175, %v4546, 0
        %4553 = vmatpush.msra.mxu0 0.0
        %4554 = vmatpush.msra.mxu0 0.0
        %4555 = vmatpush.msra.mxu0 0.0
        %4556 = vmatpush.msra.mxu0 0.0
        %4557 = vmatpush.msra.mxu0 0.0
        %4558 = vmatpush.msra.mxu0 0.0
        %4559 = vmatpush.msra.mxu0 0.0
        %4560 = vmatpush.msra.mxu0 0.0
        %4561 = vmatpush.msra.mxu0 0.0
        %4562 = vmatpush.msra.mxu0 0.0
        %4563 = vmatpush.msra.mxu0 0.0
        %4564 = vmatpush.msra.mxu0 0.0
        %4565 = vmatpush.msra.mxu0 0.0
        %4566 = vmatpush.msra.mxu0 0.0
        %4567 = vmatpush.msra.mxu0 %v4549
        %4568 = vmatpush.msra.mxu0 %v4548
        %4569 = vmatmul.f32.gmra.mxu0 %v4551
        %v4570 = vpop.f32.mrf.mxu0
        %v4571 = vadd.f32 0.0, %v4570
        %4572 = vdwg.mxu0
        %v4573 = vadd.f32 %v4539, %v4571
        %v4574 = vld [vmem:[#allocation3 + $0x3c] sm:$0x1]
        %v4575 = vld [vmem:[#allocation3 + $0x3d] sm:$0x1]
        %v4576 = vld [vmem:[#allocation3 + $0x4a] sm:$0x1]
        %v4577 = vld [vmem:[#allocation3 + $0x4b] sm:$0x1]
        %v4578 = vmax.f32 %v4574, %v4575
        %v4579 = vmax.f32 %v4576, %v4577
        %v4580 = vmax.f32 %v4578, %v4579
        %s4581 = scalar_lea.vmem %s5, 192
        %v4582 = vld [vmem:[%s4581] sm:$0xff]
        %v4583 = vld [vmem:[%s4581 + $0x8] sm:$0xff]
        %v4585 = vsel %vm4175, %v4580, 0
        %4587 = vmatpush.msra.mxu0 0.0
        %4588 = vmatpush.msra.mxu0 0.0
        %4589 = vmatpush.msra.mxu0 0.0
        %4590 = vmatpush.msra.mxu0 0.0
        %4591 = vmatpush.msra.mxu0 0.0
        %4592 = vmatpush.msra.mxu0 0.0
        %4593 = vmatpush.msra.mxu0 0.0
        %4594 = vmatpush.msra.mxu0 0.0
        %4595 = vmatpush.msra.mxu0 0.0
        %4596 = vmatpush.msra.mxu0 0.0
        %4597 = vmatpush.msra.mxu0 0.0
        %4598 = vmatpush.msra.mxu0 0.0
        %4599 = vmatpush.msra.mxu0 0.0
        %4600 = vmatpush.msra.mxu0 0.0
        %4601 = vmatpush.msra.mxu0 %v4583
        %4602 = vmatpush.msra.mxu0 %v4582
        %4603 = vmatmul.f32.gmra.mxu0 %v4585
        %v4604 = vpop.f32.mrf.mxu0
        %v4605 = vadd.f32 0.0, %v4604
        %4606 = vdwg.mxu0
        %v4607 = vadd.f32 %v4573, %v4605
        %v4608 = vld [vmem:[#allocation3 + $0x3e] sm:$0x1]
        %v4609 = vld [vmem:[#allocation3 + $0x3f] sm:$0x1]
        %v4610 = vld [vmem:[#allocation3 + $0x4c] sm:$0x1]
        %v4611 = vld [vmem:[#allocation3 + $0x4d] sm:$0x1]
        %v4612 = vmax.f32 %v4608, %v4609
        %v4613 = vmax.f32 %v4610, %v4611
        %v4614 = vmax.f32 %v4612, %v4613
        %s4615 = scalar_lea.vmem %s5, 208
        %v4616 = vld [vmem:[%s4615] sm:$0xff]
        %v4617 = vld [vmem:[%s4615 + $0x8] sm:$0xff]
        %v4619 = vsel %vm4175, %v4614, 0
        %4621 = vmatpush.msra.mxu0 0.0
        %4622 = vmatpush.msra.mxu0 0.0
        %4623 = vmatpush.msra.mxu0 0.0
        %4624 = vmatpush.msra.mxu0 0.0
        %4625 = vmatpush.msra.mxu0 0.0
        %4626 = vmatpush.msra.mxu0 0.0
        %4627 = vmatpush.msra.mxu0 0.0
        %4628 = vmatpush.msra.mxu0 0.0
        %4629 = vmatpush.msra.mxu0 0.0
        %4630 = vmatpush.msra.mxu0 0.0
        %4631 = vmatpush.msra.mxu0 0.0
        %4632 = vmatpush.msra.mxu0 0.0
        %4633 = vmatpush.msra.mxu0 0.0
        %4634 = vmatpush.msra.mxu0 0.0
        %4635 = vmatpush.msra.mxu0 %v4617
        %4636 = vmatpush.msra.mxu0 %v4616
        %4637 = vmatmul.f32.gmra.mxu0 %v4619
        %v4638 = vpop.f32.mrf.mxu0
        %v4639 = vadd.f32 0.0, %v4638
        %4640 = vdwg.mxu0
        %v4641 = vadd.f32 %v4607, %v4639
        %v4642 = vld [vmem:[#allocation3 + $0x40] sm:$0x1]
        %v4643 = vld [vmem:[#allocation3 + $0x41] sm:$0x1]
        %v4644 = vld [vmem:[#allocation3 + $0x4e] sm:$0x1]
        %v4645 = vld [vmem:[#allocation3 + $0x4f] sm:$0x1]
        %v4646 = vmax.f32 %v4642, %v4643
        %v4647 = vmax.f32 %v4644, %v4645
        %v4648 = vmax.f32 %v4646, %v4647
        %s4649 = scalar_lea.vmem %s5, 224
        %v4650 = vld [vmem:[%s4649] sm:$0xff]
        %v4651 = vld [vmem:[%s4649 + $0x8] sm:$0xff]
        %v4653 = vsel %vm4175, %v4648, 0
        %4655 = vmatpush.msra.mxu0 0.0
        %4656 = vmatpush.msra.mxu0 0.0
        %4657 = vmatpush.msra.mxu0 0.0
        %4658 = vmatpush.msra.mxu0 0.0
        %4659 = vmatpush.msra.mxu0 0.0
        %4660 = vmatpush.msra.mxu0 0.0
        %4661 = vmatpush.msra.mxu0 0.0
        %4662 = vmatpush.msra.mxu0 0.0
        %4663 = vmatpush.msra.mxu0 0.0
        %4664 = vmatpush.msra.mxu0 0.0
        %4665 = vmatpush.msra.mxu0 0.0
        %4666 = vmatpush.msra.mxu0 0.0
        %4667 = vmatpush.msra.mxu0 0.0
        %4668 = vmatpush.msra.mxu0 0.0
        %4669 = vmatpush.msra.mxu0 %v4651
        %4670 = vmatpush.msra.mxu0 %v4650
        %4671 = vmatmul.f32.gmra.mxu0 %v4653
        %v4672 = vpop.f32.mrf.mxu0
        %v4673 = vadd.f32 0.0, %v4672
        %4674 = vdwg.mxu0
        %v4675 = vadd.f32 %v4641, %v4673
        %v4676 = vld [vmem:[#allocation3 + $0x54] sm:$0x1]
        %v4677 = vld [vmem:[#allocation3 + $0x55] sm:$0x1]
        %v4678 = vld [vmem:[#allocation3 + $0x62] sm:$0x1]
        %v4679 = vld [vmem:[#allocation3 + $0x63] sm:$0x1]
        %v4680 = vmax.f32 %v4676, %v4677
        %v4681 = vmax.f32 %v4678, %v4679
        %v4682 = vmax.f32 %v4680, %v4681
        %s4683 = scalar_lea.vmem %s5, 240
        %v4684 = vld [vmem:[%s4683] sm:$0xff]
        %v4685 = vld [vmem:[%s4683 + $0x8] sm:$0xff]
        %v4687 = vsel %vm4175, %v4682, 0
        %4689 = vmatpush.msra.mxu0 0.0
        %4690 = vmatpush.msra.mxu0 0.0
        %4691 = vmatpush.msra.mxu0 0.0
        %4692 = vmatpush.msra.mxu0 0.0
        %4693 = vmatpush.msra.mxu0 0.0
        %4694 = vmatpush.msra.mxu0 0.0
        %4695 = vmatpush.msra.mxu0 0.0
        %4696 = vmatpush.msra.mxu0 0.0
        %4697 = vmatpush.msra.mxu0 0.0
        %4698 = vmatpush.msra.mxu0 0.0
        %4699 = vmatpush.msra.mxu0 0.0
        %4700 = vmatpush.msra.mxu0 0.0
        %4701 = vmatpush.msra.mxu0 0.0
        %4702 = vmatpush.msra.mxu0 0.0
        %4703 = vmatpush.msra.mxu0 %v4685
        %4704 = vmatpush.msra.mxu0 %v4684
        %4705 = vmatmul.f32.gmra.mxu0 %v4687
        %v4706 = vpop.f32.mrf.mxu0
        %v4707 = vadd.f32 0.0, %v4706
        %4708 = vdwg.mxu0
        %v4709 = vadd.f32 %v4675, %v4707
        %v4710 = vld [vmem:[#allocation3 + $0x56] sm:$0x1]
        %v4711 = vld [vmem:[#allocation3 + $0x57] sm:$0x1]
        %v4712 = vld [vmem:[#allocation3 + $0x64] sm:$0x1]
        %v4713 = vld [vmem:[#allocation3 + $0x65] sm:$0x1]
        %v4714 = vmax.f32 %v4710, %v4711
        %v4715 = vmax.f32 %v4712, %v4713
        %v4716 = vmax.f32 %v4714, %v4715
        %s4717 = scalar_lea.vmem %s5, 256
        %v4718 = vld [vmem:[%s4717] sm:$0xff]
        %v4719 = vld [vmem:[%s4717 + $0x8] sm:$0xff]
        %v4721 = vsel %vm4175, %v4716, 0
        %4723 = vmatpush.msra.mxu0 0.0
        %4724 = vmatpush.msra.mxu0 0.0
        %4725 = vmatpush.msra.mxu0 0.0
        %4726 = vmatpush.msra.mxu0 0.0
        %4727 = vmatpush.msra.mxu0 0.0
        %4728 = vmatpush.msra.mxu0 0.0
        %4729 = vmatpush.msra.mxu0 0.0
        %4730 = vmatpush.msra.mxu0 0.0
        %4731 = vmatpush.msra.mxu0 0.0
        %4732 = vmatpush.msra.mxu0 0.0
        %4733 = vmatpush.msra.mxu0 0.0
        %4734 = vmatpush.msra.mxu0 0.0
        %4735 = vmatpush.msra.mxu0 0.0
        %4736 = vmatpush.msra.mxu0 0.0
        %4737 = vmatpush.msra.mxu0 %v4719
        %4738 = vmatpush.msra.mxu0 %v4718
        %4739 = vmatmul.f32.gmra.mxu0 %v4721
        %v4740 = vpop.f32.mrf.mxu0
        %v4741 = vadd.f32 0.0, %v4740
        %4742 = vdwg.mxu0
        %v4743 = vadd.f32 %v4709, %v4741
        %v4744 = vld [vmem:[#allocation3 + $0x58] sm:$0x1]
        %v4745 = vld [vmem:[#allocation3 + $0x59] sm:$0x1]
        %v4746 = vld [vmem:[#allocation3 + $0x66] sm:$0x1]
        %v4747 = vld [vmem:[#allocation3 + $0x67] sm:$0x1]
        %v4748 = vmax.f32 %v4744, %v4745
        %v4749 = vmax.f32 %v4746, %v4747
        %v4750 = vmax.f32 %v4748, %v4749
        %s4751 = scalar_lea.vmem %s5, 272
        %v4752 = vld [vmem:[%s4751] sm:$0xff]
        %v4753 = vld [vmem:[%s4751 + $0x8] sm:$0xff]
        %v4755 = vsel %vm4175, %v4750, 0
        %4757 = vmatpush.msra.mxu0 0.0
        %4758 = vmatpush.msra.mxu0 0.0
        %4759 = vmatpush.msra.mxu0 0.0
        %4760 = vmatpush.msra.mxu0 0.0
        %4761 = vmatpush.msra.mxu0 0.0
        %4762 = vmatpush.msra.mxu0 0.0
        %4763 = vmatpush.msra.mxu0 0.0
        %4764 = vmatpush.msra.mxu0 0.0
        %4765 = vmatpush.msra.mxu0 0.0
        %4766 = vmatpush.msra.mxu0 0.0
        %4767 = vmatpush.msra.mxu0 0.0
        %4768 = vmatpush.msra.mxu0 0.0
        %4769 = vmatpush.msra.mxu0 0.0
        %4770 = vmatpush.msra.mxu0 0.0
        %4771 = vmatpush.msra.mxu0 %v4753
        %4772 = vmatpush.msra.mxu0 %v4752
        %4773 = vmatmul.f32.gmra.mxu0 %v4755
        %v4774 = vpop.f32.mrf.mxu0
        %v4775 = vadd.f32 0.0, %v4774
        %4776 = vdwg.mxu0
        %v4777 = vadd.f32 %v4743, %v4775
        %v4778 = vld [vmem:[#allocation3 + $0x5a] sm:$0x1]
        %v4779 = vld [vmem:[#allocation3 + $0x5b] sm:$0x1]
        %v4780 = vld [vmem:[#allocation3 + $0x68] sm:$0x1]
        %v4781 = vld [vmem:[#allocation3 + $0x69] sm:$0x1]
        %v4782 = vmax.f32 %v4778, %v4779
        %v4783 = vmax.f32 %v4780, %v4781
        %v4784 = vmax.f32 %v4782, %v4783
        %s4785 = scalar_lea.vmem %s5, 288
        %v4786 = vld [vmem:[%s4785] sm:$0xff]
        %v4787 = vld [vmem:[%s4785 + $0x8] sm:$0xff]
        %v4789 = vsel %vm4175, %v4784, 0
        %4791 = vmatpush.msra.mxu0 0.0
        %4792 = vmatpush.msra.mxu0 0.0
        %4793 = vmatpush.msra.mxu0 0.0
        %4794 = vmatpush.msra.mxu0 0.0
        %4795 = vmatpush.msra.mxu0 0.0
        %4796 = vmatpush.msra.mxu0 0.0
        %4797 = vmatpush.msra.mxu0 0.0
        %4798 = vmatpush.msra.mxu0 0.0
        %4799 = vmatpush.msra.mxu0 0.0
        %4800 = vmatpush.msra.mxu0 0.0
        %4801 = vmatpush.msra.mxu0 0.0
        %4802 = vmatpush.msra.mxu0 0.0
        %4803 = vmatpush.msra.mxu0 0.0
        %4804 = vmatpush.msra.mxu0 0.0
        %4805 = vmatpush.msra.mxu0 %v4787
        %4806 = vmatpush.msra.mxu0 %v4786
        %4807 = vmatmul.f32.gmra.mxu0 %v4789
        %v4808 = vpop.f32.mrf.mxu0
        %v4809 = vadd.f32 0.0, %v4808
        %4810 = vdwg.mxu0
        %v4811 = vadd.f32 %v4777, %v4809
        %v4812 = vld [vmem:[#allocation3 + $0x5c] sm:$0x1]
        %v4813 = vld [vmem:[#allocation3 + $0x5d] sm:$0x1]
        %v4814 = vld [vmem:[#allocation3 + $0x6a] sm:$0x1]
        %v4815 = vld [vmem:[#allocation3 + $0x6b] sm:$0x1]
        %v4816 = vmax.f32 %v4812, %v4813
        %v4817 = vmax.f32 %v4814, %v4815
        %v4818 = vmax.f32 %v4816, %v4817
        %s4819 = scalar_lea.vmem %s5, 304
        %v4820 = vld [vmem:[%s4819] sm:$0xff]
        %v4821 = vld [vmem:[%s4819 + $0x8] sm:$0xff]
        %v4823 = vsel %vm4175, %v4818, 0
        %4825 = vmatpush.msra.mxu0 0.0
        %4826 = vmatpush.msra.mxu0 0.0
        %4827 = vmatpush.msra.mxu0 0.0
        %4828 = vmatpush.msra.mxu0 0.0
        %4829 = vmatpush.msra.mxu0 0.0
        %4830 = vmatpush.msra.mxu0 0.0
        %4831 = vmatpush.msra.mxu0 0.0
        %4832 = vmatpush.msra.mxu0 0.0
        %4833 = vmatpush.msra.mxu0 0.0
        %4834 = vmatpush.msra.mxu0 0.0
        %4835 = vmatpush.msra.mxu0 0.0
        %4836 = vmatpush.msra.mxu0 0.0
        %4837 = vmatpush.msra.mxu0 0.0
        %4838 = vmatpush.msra.mxu0 0.0
        %4839 = vmatpush.msra.mxu0 %v4821
        %4840 = vmatpush.msra.mxu0 %v4820
        %4841 = vmatmul.f32.gmra.mxu0 %v4823
        %v4842 = vpop.f32.mrf.mxu0
        %v4843 = vadd.f32 0.0, %v4842
        %4844 = vdwg.mxu0
        %v4845 = vadd.f32 %v4811, %v4843
        %v4846 = vld [vmem:[#allocation3 + $0x70] sm:$0x1]
        %v4847 = vld [vmem:[#allocation3 + $0x71] sm:$0x1]
        %v4848 = vld [vmem:[#allocation3 + $0x7e] sm:$0x1]
        %v4849 = vld [vmem:[#allocation3 + $0x7f] sm:$0x1]
        %v4850 = vmax.f32 %v4846, %v4847
        %v4851 = vmax.f32 %v4848, %v4849
        %v4852 = vmax.f32 %v4850, %v4851
        %s4853 = scalar_lea.vmem %s5, 320
        %v4854 = vld [vmem:[%s4853] sm:$0xff]
        %v4855 = vld [vmem:[%s4853 + $0x8] sm:$0xff]
        %v4857 = vsel %vm4175, %v4852, 0
        %4859 = vmatpush.msra.mxu0 0.0
        %4860 = vmatpush.msra.mxu0 0.0
        %4861 = vmatpush.msra.mxu0 0.0
        %4862 = vmatpush.msra.mxu0 0.0
        %4863 = vmatpush.msra.mxu0 0.0
        %4864 = vmatpush.msra.mxu0 0.0
        %4865 = vmatpush.msra.mxu0 0.0
        %4866 = vmatpush.msra.mxu0 0.0
        %4867 = vmatpush.msra.mxu0 0.0
        %4868 = vmatpush.msra.mxu0 0.0
        %4869 = vmatpush.msra.mxu0 0.0
        %4870 = vmatpush.msra.mxu0 0.0
        %4871 = vmatpush.msra.mxu0 0.0
        %4872 = vmatpush.msra.mxu0 0.0
        %4873 = vmatpush.msra.mxu0 %v4855
        %4874 = vmatpush.msra.mxu0 %v4854
        %4875 = vmatmul.f32.gmra.mxu0 %v4857
        %v4876 = vpop.f32.mrf.mxu0
        %v4877 = vadd.f32 0.0, %v4876
        %4878 = vdwg.mxu0
        %v4879 = vadd.f32 %v4845, %v4877
        %v4880 = vld [vmem:[#allocation3 + $0x72] sm:$0x1]
        %v4881 = vld [vmem:[#allocation3 + $0x73] sm:$0x1]
        %v4882 = vld [vmem:[#allocation3 + $0x80] sm:$0x1]
        %v4883 = vld [vmem:[#allocation3 + $0x81] sm:$0x1]
        %v4884 = vmax.f32 %v4880, %v4881
        %v4885 = vmax.f32 %v4882, %v4883
        %v4886 = vmax.f32 %v4884, %v4885
        %s4887 = scalar_lea.vmem %s5, 336
        %v4888 = vld [vmem:[%s4887] sm:$0xff]
        %v4889 = vld [vmem:[%s4887 + $0x8] sm:$0xff]
        %v4891 = vsel %vm4175, %v4886, 0
        %4893 = vmatpush.msra.mxu0 0.0
        %4894 = vmatpush.msra.mxu0 0.0
        %4895 = vmatpush.msra.mxu0 0.0
        %4896 = vmatpush.msra.mxu0 0.0
        %4897 = vmatpush.msra.mxu0 0.0
        %4898 = vmatpush.msra.mxu0 0.0
        %4899 = vmatpush.msra.mxu0 0.0
        %4900 = vmatpush.msra.mxu0 0.0
        %4901 = vmatpush.msra.mxu0 0.0
        %4902 = vmatpush.msra.mxu0 0.0
        %4903 = vmatpush.msra.mxu0 0.0
        %4904 = vmatpush.msra.mxu0 0.0
        %4905 = vmatpush.msra.mxu0 0.0
        %4906 = vmatpush.msra.mxu0 0.0
        %4907 = vmatpush.msra.mxu0 %v4889
        %4908 = vmatpush.msra.mxu0 %v4888
        %4909 = vmatmul.f32.gmra.mxu0 %v4891
        %v4910 = vpop.f32.mrf.mxu0
        %v4911 = vadd.f32 0.0, %v4910
        %4912 = vdwg.mxu0
        %v4913 = vadd.f32 %v4879, %v4911
        %v4914 = vld [vmem:[#allocation3 + $0x74] sm:$0x1]
        %v4915 = vld [vmem:[#allocation3 + $0x75] sm:$0x1]
        %v4916 = vld [vmem:[#allocation3 + $0x82] sm:$0x1]
        %v4917 = vld [vmem:[#allocation3 + $0x83] sm:$0x1]
        %v4918 = vmax.f32 %v4914, %v4915
        %v4919 = vmax.f32 %v4916, %v4917
        %v4920 = vmax.f32 %v4918, %v4919
        %s4921 = scalar_lea.vmem %s5, 352
        %v4922 = vld [vmem:[%s4921] sm:$0xff]
        %v4923 = vld [vmem:[%s4921 + $0x8] sm:$0xff]
        %v4925 = vsel %vm4175, %v4920, 0
        %4927 = vmatpush.msra.mxu0 0.0
        %4928 = vmatpush.msra.mxu0 0.0
        %4929 = vmatpush.msra.mxu0 0.0
        %4930 = vmatpush.msra.mxu0 0.0
        %4931 = vmatpush.msra.mxu0 0.0
        %4932 = vmatpush.msra.mxu0 0.0
        %4933 = vmatpush.msra.mxu0 0.0
        %4934 = vmatpush.msra.mxu0 0.0
        %4935 = vmatpush.msra.mxu0 0.0
        %4936 = vmatpush.msra.mxu0 0.0
        %4937 = vmatpush.msra.mxu0 0.0
        %4938 = vmatpush.msra.mxu0 0.0
        %4939 = vmatpush.msra.mxu0 0.0
        %4940 = vmatpush.msra.mxu0 0.0
        %4941 = vmatpush.msra.mxu0 %v4923
        %4942 = vmatpush.msra.mxu0 %v4922
        %4943 = vmatmul.f32.gmra.mxu0 %v4925
        %v4944 = vpop.f32.mrf.mxu0
        %v4945 = vadd.f32 0.0, %v4944
        %4946 = vdwg.mxu0
        %v4947 = vadd.f32 %v4913, %v4945
        %v4948 = vld [vmem:[#allocation3 + $0x76] sm:$0x1]
        %v4949 = vld [vmem:[#allocation3 + $0x77] sm:$0x1]
        %v4950 = vld [vmem:[#allocation3 + $0x84] sm:$0x1]
        %v4951 = vld [vmem:[#allocation3 + $0x85] sm:$0x1]
        %v4952 = vmax.f32 %v4948, %v4949
        %v4953 = vmax.f32 %v4950, %v4951
        %v4954 = vmax.f32 %v4952, %v4953
        %s4955 = scalar_lea.vmem %s5, 368
        %v4956 = vld [vmem:[%s4955] sm:$0xff]
        %v4957 = vld [vmem:[%s4955 + $0x8] sm:$0xff]
        %v4959 = vsel %vm4175, %v4954, 0
        %4961 = vmatpush.msra.mxu0 0.0
        %4962 = vmatpush.msra.mxu0 0.0
        %4963 = vmatpush.msra.mxu0 0.0
        %4964 = vmatpush.msra.mxu0 0.0
        %4965 = vmatpush.msra.mxu0 0.0
        %4966 = vmatpush.msra.mxu0 0.0
        %4967 = vmatpush.msra.mxu0 0.0
        %4968 = vmatpush.msra.mxu0 0.0
        %4969 = vmatpush.msra.mxu0 0.0
        %4970 = vmatpush.msra.mxu0 0.0
        %4971 = vmatpush.msra.mxu0 0.0
        %4972 = vmatpush.msra.mxu0 0.0
        %4973 = vmatpush.msra.mxu0 0.0
        %4974 = vmatpush.msra.mxu0 0.0
        %4975 = vmatpush.msra.mxu0 %v4957
        %4976 = vmatpush.msra.mxu0 %v4956
        %4977 = vmatmul.f32.gmra.mxu0 %v4959
        %v4978 = vpop.f32.mrf.mxu0
        %v4979 = vadd.f32 0.0, %v4978
        %4980 = vdwg.mxu0
        %v4981 = vadd.f32 %v4947, %v4979
        %v4982 = vld [vmem:[#allocation3 + $0x78] sm:$0x1]
        %v4983 = vld [vmem:[#allocation3 + $0x79] sm:$0x1]
        %v4984 = vld [vmem:[#allocation3 + $0x86] sm:$0x1]
        %v4985 = vld [vmem:[#allocation3 + $0x87] sm:$0x1]
        %v4986 = vmax.f32 %v4982, %v4983
        %v4987 = vmax.f32 %v4984, %v4985
        %v4988 = vmax.f32 %v4986, %v4987
        %s4989 = scalar_lea.vmem %s5, 384
        %v4990 = vld [vmem:[%s4989] sm:$0xff]
        %v4991 = vld [vmem:[%s4989 + $0x8] sm:$0xff]
        %v4993 = vsel %vm4175, %v4988, 0
        %4995 = vmatpush.msra.mxu0 0.0
        %4996 = vmatpush.msra.mxu0 0.0
        %4997 = vmatpush.msra.mxu0 0.0
        %4998 = vmatpush.msra.mxu0 0.0
        %4999 = vmatpush.msra.mxu0 0.0
        %5000 = vmatpush.msra.mxu0 0.0
        %5001 = vmatpush.msra.mxu0 0.0
        %5002 = vmatpush.msra.mxu0 0.0
        %5003 = vmatpush.msra.mxu0 0.0
        %5004 = vmatpush.msra.mxu0 0.0
        %5005 = vmatpush.msra.mxu0 0.0
        %5006 = vmatpush.msra.mxu0 0.0
        %5007 = vmatpush.msra.mxu0 0.0
        %5008 = vmatpush.msra.mxu0 0.0
        %5009 = vmatpush.msra.mxu0 %v4991
        %5010 = vmatpush.msra.mxu0 %v4990
        %5011 = vmatmul.f32.gmra.mxu0 %v4993
        %v5012 = vpop.f32.mrf.mxu0
        %v5013 = vadd.f32 0.0, %v5012
        %5014 = vdwg.mxu0
        %v5015 = vadd.f32 %v4981, %v5013
        %v5016 = vmax.f32 %v5015, 0.0
        %v5017 = vld [vmem:[%s7] sm:$0xff]
        %v5018 = vld [vmem:[%s7 + $0x8] sm:$0xff]
        %v5019 = vld [vmem:[%s7 + $0x10] sm:$0xff]
        %v5020 = vld [vmem:[%s7 + $0x18] sm:$0xff]
        %v5021 = vld [vmem:[%s7 + $0x20] sm:$0xff]
        %v5022 = vld [vmem:[%s7 + $0x28] sm:$0xff]
        %v5023 = vld [vmem:[%s7 + $0x30] sm:$0xff]
        %v5024 = vld [vmem:[%s7 + $0x38] sm:$0xff]
        %v5025 = vld [vmem:[%s7 + $0x40] sm:$0xff]
        %v5026 = vld [vmem:[%s7 + $0x48] sm:$0xff]
        %v5027 = vld [vmem:[%s7 + $0x50] sm:$0xff]
        %v5028 = vld [vmem:[%s7 + $0x58] sm:$0xff]
        %v5029 = vld [vmem:[%s7 + $0x60] sm:$0xff]
        %v5030 = vld [vmem:[%s7 + $0x68] sm:$0xff]
        %v5031 = vld [vmem:[%s7 + $0x70] sm:$0xff]
        %v5032 = vld [vmem:[%s7 + $0x78] sm:$0xff]
        %v5033 = vld [vmem:[%s8] sm:$0x1]
        %5034 = vmatpush.msra.mxu0 %v5032
        %5035 = vmatpush.msra.mxu0 %v5031
        %5036 = vmatpush.msra.mxu0 %v5030
        %5037 = vmatpush.msra.mxu0 %v5029
        %5038 = vmatpush.msra.mxu0 %v5028
        %5039 = vmatpush.msra.mxu0 %v5027
        %5040 = vmatpush.msra.mxu0 %v5026
        %5041 = vmatpush.msra.mxu0 %v5025
        %5042 = vmatpush.msra.mxu0 %v5024
        %5043 = vmatpush.msra.mxu0 %v5023
        %5044 = vmatpush.msra.mxu0 %v5022
        %5045 = vmatpush.msra.mxu0 %v5021
        %5046 = vmatpush.msra.mxu0 %v5020
        %5047 = vmatpush.msra.mxu0 %v5019
        %5048 = vmatpush.msra.mxu0 %v5018
        %5049 = vmatpush.msra.mxu0 %v5017
        %5050 = vmatmul.f32.gmra.mxu0 %v5016
        %v5051 = vpop.f32.mrf.mxu0
        %v5052 = vadd.f32 %v5033, %v5051
        %5053 = vdwg.mxu0
        %v5054 = vmax.f32 %v5052, 0.0
        %v5055 = vld [vmem:[%s9] sm:$0xff]
        %v5056 = vld [vmem:[%s9 + $0x8] sm:$0xff]
        %v5057 = vld [vmem:[%s9 + $0x10] sm:$0xff]
        %v5058 = vld [vmem:[%s9 + $0x18] sm:$0xff]
        %v5059 = vld [vmem:[%s9 + $0x20] sm:$0xff]
        %v5060 = vld [vmem:[%s9 + $0x28] sm:$0xff]
        %v5061 = vld [vmem:[%s9 + $0x30] sm:$0xff]
        %v5062 = vld [vmem:[%s9 + $0x38] sm:$0xff]
        %v5063 = vld [vmem:[%s9 + $0x40] sm:$0xff]
        %v5064 = vld [vmem:[%s9 + $0x48] sm:$0xff]
        %v5065 = vld [vmem:[%s9 + $0x50] sm:$0xff]
        %v5066 = vld [vmem:[%s9 + $0x58] sm:$0xff]
        %v5067 = vld [vmem:[%s9 + $0x60] sm:$0xff]
        %v5068 = vld [vmem:[%s9 + $0x68] sm:$0xff]
        %v5069 = vld [vmem:[%s9 + $0x70] sm:$0xff]
        %v5070 = vld [vmem:[%s9 + $0x78] sm:$0xff]
        %v5071 = vld [vmem:[%s10] sm:$0x1]
        %5072 = vmatpush.msra.mxu0 %v5070
        %5073 = vmatpush.msra.mxu0 %v5069
        %5074 = vmatpush.msra.mxu0 %v5068
        %5075 = vmatpush.msra.mxu0 %v5067
        %5076 = vmatpush.msra.mxu0 %v5066
        %5077 = vmatpush.msra.mxu0 %v5065
        %5078 = vmatpush.msra.mxu0 %v5064
        %5079 = vmatpush.msra.mxu0 %v5063
        %5080 = vmatpush.msra.mxu0 %v5062
        %5081 = vmatpush.msra.mxu0 %v5061
        %5082 = vmatpush.msra.mxu0 %v5060
        %5083 = vmatpush.msra.mxu0 %v5059
        %5084 = vmatpush.msra.mxu0 %v5058
        %5085 = vmatpush.msra.mxu0 %v5057
        %5086 = vmatpush.msra.mxu0 %v5056
        %5087 = vmatpush.msra.mxu0 %v5055
        %5088 = vmatmul.f32.gmra.mxu0 %v5054
        %v5089 = vpop.f32.mrf.mxu0
        %v5090 = vadd.f32 %v5071, %v5089
        %5091 = vdwg.mxu0
        %5092 = vst [vmem:[%s378] sm:$0x1] %v5090
        %s5093 = sand.u32 %s269, 1
        %s5094 = scalar_lea.sflag [#allocation5], %s5093
        %s5095 = sand.u32 %s269, 1
        %s5096 = scalar_lea.vmem [#allocation4], %s5095
        // Predicated region
        $region65: #{simple_cnn_forward.1} parent=63 // pred_check
          %p5097 = pneg %p279
        $region66: #{simple_cnn_forward.1} parent=63 // pred_check_branch
          %5099 = sbr.rel (%p5097) target = $region68
        $region67: #{simple_cnn_forward.1} parent=63 // pred_region
          %5101 = vsyncadd %s5094, 0
          %s5102 = scalar_lea.hbm %s11, %s25
          %s5104 = sshll.u32 %s5096, 4
          %s5105 = int_to_ptr.vmem [resolvable:$true] %s5104
          %s5106 = sshll.u32 %s5102, 4
          %s5107 = int_to_ptr.hbm [resolvable:$true] %s5106
          %5109 = dma.vmem_to_hbm [thread:$0]  %s5105, 16, %s5107, %s5094
        $region68: #{simple_cnn_forward.1} parent=63 // pred_fallthru
          _
      $region64: #{simple_cnn_forward.1} parent=5 // pred_fallthru
        _
      %p5110 = scmp.le.s32.totalorder 2, %s20
      // Predicated region
      $region69: #{simple_cnn_forward.1} parent=5 // pred_check
        %p5111 = pneg %p5110
      $region70: #{simple_cnn_forward.1} parent=5 // pred_check_branch
        %5113 = sbr.rel (%p5111) target = $region72
      $region71: #{simple_cnn_forward.1} parent=5 // pred_region
        %s5114 = ssub.s32 %s20, 2
        // Predicated region
        $region73: #{simple_cnn_forward.1} parent=71 // pred_check
          %p5115 = pneg %p285
        $region74: #{simple_cnn_forward.1} parent=71 // pred_check_branch
          %5117 = sbr.rel (%p5115) target = $region76
        $region75: #{simple_cnn_forward.1} parent=71 // pred_region
          %s5118 = sand.u32 %s270, 1
          %s5119 = scalar_lea.sflag [#allocation5], %s5118
          %s5120 = sand.u32 %s270, 1
          %s5121 = scalar_lea.vmem [#allocation4], %s5120
          %5123 = dma.done %s5119, 16
        $region76: #{simple_cnn_forward.1} parent=71 // pred_fallthru
          _
      $region72: #{simple_cnn_forward.1} parent=5 // pred_fallthru
        _
    $region6: #{simple_cnn_forward.1} parent=1 // loop_footer
      %s24 = sadd.s32 1, %s20
    $region7: #{simple_cnn_forward.1} parent=1 // loop_footer_branch
      %19 = sbr.rel target = $region3
    $region8: #{simple_cnn_forward.1} parent=1 // loop_exit
      _
    %5124 = vsyncpa [#allocation5], 1
    %s5125 = scalar_lea.sflag [#allocation5], 1
    %5126 = vsyncpa %s5125, 1

</llo_original>
